<compile_context>
chip_gen: v6e
topology: v6e:2x2x1
jax: 0.10.0
libtpu: 0.0.40
codegen_flags: <defaults>
</compile_context>

<pallas_src>
import functools

import jax
import jax.numpy as jnp
from jax.experimental import pallas as pl
from jax.experimental.pallas import tpu as pltpu

EPS = 1e-5  # nn.BatchNorm2d default eps


def _round_up(x, m):
    return ((x + m - 1) // m) * m


# ---------------------------------------------------------------------------
# Fused kernel: `bt` images per grid step.
# ---------------------------------------------------------------------------
def bottleneck_kernel(x_ref, w1_ref, b1_ref, w2_ref, b2_ref, w3_ref, b3_ref,
                      o_ref, h1p_ref, h2_ref, *, H, W, planes, bt):
    """Fused Bottleneck forward for a tile of `bt` images.

    x_ref  : (bt, H*W, Cin)        bf16   NHWC flattened over space
    w1_ref : (Cin, planes)         bf16   BN1 folded
    b1_ref : (1, planes)           f32
    w2_ref : (9, planes, planes)   bf16   3x3 taps (t = dy*3+dx), BN2 folded
    b2_ref : (1, planes)           f32
    w3_ref : (planes, Cout)        bf16   BN3 folded
    b3_ref : (1, Cout)             f32
    o_ref  : (bt, H*W, Cout)       bf16
    h1p_ref: (NP, planes)          bf16   flat zero-padded (H+2)x(W+2) image
    h2_ref : (bt*H*W, planes)      bf16   dense conv2 output (conv3 lhs)
    """
    HW = H * W
    Wp = W + 2
    M2 = H * Wp                       # rows of the shifted-matmul accumulator
    NP = h1p_ref.shape[0]             # (H+2)*Wp + small tail (slice-OOB guard)
    Cin = x_ref.shape[-1]

    x = x_ref[...].reshape(bt * HW, Cin)                       # bf16

    # ---- conv1 (1x1) + folded bn1 + relu (f32 epilogue) ------------------
    h1 = jnp.dot(x, w1_ref[...], preferred_element_type=jnp.float32)
    h1 = jnp.maximum(h1 + b1_ref[...], 0.0).astype(jnp.bfloat16)

    # ---- zero ONLY the 1-pixel border of the padded buffer ---------------
    # Top padded row (+ left pad of padded row 1), bottom padded row + tail,
    # and the adjacent (right-pad, left-pad) row pairs.  The interior is
    # fully overwritten below, so this is megacore-safe without a full zero.
    h1p_ref[0:Wp + 1, :] = jnp.zeros((Wp + 1, planes), jnp.bfloat16)
    h1p_ref[(H + 1) * Wp:NP, :] = jnp.zeros((NP - (H + 1) * Wp, planes),
                                            jnp.bfloat16)
    zero2 = jnp.zeros((2, planes), jnp.bfloat16)
    for y in range(H):
        rp = (y + 1) * Wp + W + 1     # right pad of row y+1 & left pad of y+2
        h1p_ref[rp:rp + 2, :] = zero2

    # ---- conv2 (3x3, pad=1, stride=1), one image at a time ----------------
    for b in range(bt):
        # Write conv1's rows into the interior of the flat padded buffer.
        for y in range(H):
            dst = (y + 1) * Wp + 1
            src = b * HW + y * W
            h1p_ref[dst:dst + W, :] = h1[src:src + W, :]

        # 9 accumulated row-shifted matmuls over the flat padded buffer
        # (no im2col).  Accumulator row y*Wp + x is the conv output at (y, x)
        # for x < W; columns W, W+1 of each padded-width row are junk and are
        # dropped by the compaction below.
        acc = jnp.zeros((M2, planes), jnp.float32)
        for dy in range(3):
            for dx in range(3):
                s = dy * Wp + dx
                acc = acc + jnp.dot(h1p_ref[s:s + M2, :],
                                    w2_ref[dy * 3 + dx],
                                    preferred_element_type=jnp.float32)

        h2pad = jnp.maximum(acc + b2_ref[...], 0.0).astype(jnp.bfloat16)

        # Compact the (W+2)-strided rows to a dense (H*W, planes) layout.
        for y in range(H):
            h2_ref[b * HW + y * W: b * HW + (y + 1) * W, :] = (
                h2pad[y * Wp: y * Wp + W, :])

    # ---- conv3 (1x1) + folded bn3 + residual + relu, bf16 output ----------
    yv = jnp.dot(h2_ref[...], w3_ref[...], preferred_element_type=jnp.float32)
    yv = yv + b3_ref[...] + x          # residual (bf16 x promoted to f32)
    o_ref[...] = jnp.maximum(yv, 0.0).astype(o_ref.dtype).reshape(o_ref.shape)


# ---------------------------------------------------------------------------
# Wrapper (glue): BN folding, dtype casts, grid/specs.
# ---------------------------------------------------------------------------
def _fold_bn(w, g, b, m, v):
    """Fold inference-mode BatchNorm into conv weight + per-Cout bias."""
    scale = g * jax.lax.rsqrt(v + EPS)        # (1, C)
    return w * scale, (b - m * scale)


def _pick_batch_tile(N, H, W):
    """Images per grid step: raise the matmul M-dim for small-H*W stages."""
    target = max(1, 512 // (H * W))
    for cand in range(min(N, 8), 0, -1):
        if cand <= target and N % cand == 0:
            return cand
    return 1


def _pick_vmem_limit_bytes():
    """Generation-aware scoped-VMEM budget (conservative on unknown chips)."""
    kind = jax.devices()[0].device_kind.lower()
    if "v5" in kind or "v6" in kind:
        return 96 * 1024 * 1024       # 128 MiB physical VMEM
    if "7" in kind:
        return 48 * 1024 * 1024       # v7x: 64 MiB physical VMEM
    return 32 * 1024 * 1024


@jax.jit
def bottleneck_forward(x_nchw, params):
    """Bottleneck with stride=1 and downsample=None (inplanes == 4*planes)."""
    p = params
    x = jnp.transpose(x_nchw, (0, 2, 3, 1))                  # NCHW -> NHWC
    N, H, W, Cin = x.shape
    planes = p["w1"].shape[1]
    Cout = p["w3"].shape[1]
    assert Cin == Cout, "downsample=None requires inplanes == 4*planes"
    HW = H * W

    w1f, b1 = _fold_bn(p["w1"], p["g1"], p["b1"], p["m1"], p["v1"])
    w2f, b2 = _fold_bn(p["w2"], p["g2"], p["b2"], p["m2"], p["v2"])
    w3f, b3 = _fold_bn(p["w3"], p["g3"], p["b3"], p["m3"], p["v3"])

    # bf16 MXU operands (all accumulation stays f32 inside the kernel).
    w1f = w1f.astype(jnp.bfloat16)                              # (Cin, planes)
    w2f = w2f.reshape(9, planes, planes).astype(jnp.bfloat16)   # taps t=dy*3+dx
    w3f = w3f.astype(jnp.bfloat16)                              # (planes, Cout)
    x_in = x.reshape(N, HW, Cin).astype(jnp.bfloat16)

    bt = _pick_batch_tile(N, H, W)
    NP = _round_up((H + 2) * (W + 2) + 2, 8)  # flat padded image + OOB guard

    kernel = functools.partial(bottleneck_kernel,
                               H=H, W=W, planes=planes, bt=bt)

    out = pl.pallas_call(
        kernel,
        out_shape=jax.ShapeDtypeStruct((N, HW, Cout), jnp.bfloat16),
        grid_spec=pltpu.PrefetchScalarGridSpec(
            num_scalar_prefetch=0,
            grid=(N // bt,),
            in_specs=[
                pl.BlockSpec((bt, HW, Cin), lambda n: (n, 0, 0)),
                pl.BlockSpec((Cin, planes), lambda n: (0, 0)),
                pl.BlockSpec((1, planes), lambda n: (0, 0)),
                pl.BlockSpec((9, planes, planes), lambda n: (0, 0, 0)),
                pl.BlockSpec((1, planes), lambda n: (0, 0)),
                pl.BlockSpec((planes, Cout), lambda n: (0, 0)),
                pl.BlockSpec((1, Cout), lambda n: (0, 0)),
            ],
            out_specs=pl.BlockSpec((bt, HW, Cout), lambda n: (n, 0, 0)),
            scratch_shapes=[
                pltpu.VMEM((NP, planes), jnp.bfloat16),        # flat padded h1
                pltpu.VMEM((bt * HW, planes), jnp.bfloat16),   # dense conv2 out
            ],
        ),
        compiler_params=pltpu.CompilerParams(
            dimension_semantics=("parallel",),   # shard batch tiles across TCs
            vmem_limit_bytes=_pick_vmem_limit_bytes(),
        ),
    )(x_in, w1f, b1, w2f, b2, w3f, b3)

    out = out.reshape(N, H, W, Cout)
    return jnp.transpose(out, (0, 3, 1, 2))                  # NHWC -> NCHW (bf16)


# ---------------------------------------------------------------------------
# Pure-JAX f32 reference (for correctness check)
# ---------------------------------------------------------------------------
def bottleneck_reference(x_nchw, p):
    def bn(y, g, b, m, v):
        return (y - m) * (g * jax.lax.rsqrt(v + EPS)) + b

    x = jnp.transpose(x_nchw, (0, 2, 3, 1))
    h = jnp.einsum("nhwc,cd->nhwd", x, p["w1"])
    h = jax.nn.relu(bn(h, p["g1"], p["b1"], p["m1"], p["v1"]))
    h = jax.lax.conv_general_dilated(
        h, p["w2"], window_strides=(1, 1), padding="SAME",
        dimension_numbers=("NHWC", "HWIO", "NHWC"))
    h = jax.nn.relu(bn(h, p["g2"], p["b2"], p["m2"], p["v2"]))
    h = jnp.einsum("nhwc,cd->nhwd", h, p["w3"])
    h = bn(h, p["g3"], p["b3"], p["m3"], p["v3"])
    h = jax.nn.relu(h + x)
    return jnp.transpose(h, (0, 3, 1, 2))


# ---------------------------------------------------------------------------
# Deterministic parameter construction
# ---------------------------------------------------------------------------
def make_params(key, inplanes, planes):
    expansion = 4
    ks = list(jax.random.split(key, 6))

    def bn_params(k, c):
        k1, k2, k3, k4 = jax.random.split(k, 4)
        return (jax.random.uniform(k1, (1, c), jnp.float32, 0.5, 1.5),   # gamma
                0.1 * jax.random.normal(k2, (1, c), jnp.float32),        # beta
                0.1 * jax.random.normal(k3, (1, c), jnp.float32),        # mean
                jax.random.uniform(k4, (1, c), jnp.float32, 0.5, 1.5))   # var

    w1 = 0.2 * jax.random.normal(ks[0], (inplanes, planes), jnp.float32)
    w2 = 0.2 * jax.random.normal(ks[1], (3, 3, planes, planes), jnp.float32)
    w3 = 0.2 * jax.random.normal(ks[2], (planes, planes * expansion), jnp.float32)
    g1, b1, m1, v1 = bn_params(ks[3], planes)
    g2, b2, m2, v2 = bn_params(ks[4], planes)
    g3, b3, m3, v3 = bn_params(ks[5], planes * expansion)
    return dict(w1=w1, w2=w2, w3=w3,
                g1=g1, b1=b1, m1=m1, v1=v1,
                g2=g2, b2=b2, m2=m2, v2=v2,
                g3=g3, b3=b3, m3=m3, v3=v3)


if __name__ == "__main__":
    # inplanes = planes * expansion so downsample=None + residual add is valid.
    inplanes, planes = 16, 4
    N, H, W = 2, 16, 16

    key = jax.random.PRNGKey(0)
    kx, kp = jax.random.split(key)
    x = jax.random.normal(kx, (N, inplanes, H, W), jnp.float32)  # NCHW
    params = make_params(kp, inplanes, planes)

    out = bottleneck_forward(x, params)
    out = jax.block_until_ready(out)

    ref = bottleneck_reference(x, params)
    assert out.shape == (N, planes * 4, H, W)
    assert out.dtype == jnp.bfloat16
    err = jnp.max(jnp.abs(out.astype(jnp.float32) - ref))
    # bf16 matmul operands + bf16 output -> loosened tolerance vs f32 reference.
    assert jnp.allclose(out.astype(jnp.float32), ref, rtol=5e-2, atol=1e-1), \
        f"max abs err {err}"

    print("KERNEL_OK")
</pallas_src>

<mosaic_0001>
module attributes {stable_mosaic.version = 11 : i64} {
  func.func @bottleneck_kernel(%arg0: i32, %arg1: memref<2x256x16xbf16, #tpu.memory_space<vmem>>, %arg2: memref<16x4xbf16, #tpu.memory_space<vmem>>, %arg3: memref<1x4xf32, #tpu.memory_space<vmem>>, %arg4: memref<9x4x4xbf16, #tpu.memory_space<vmem>>, %arg5: memref<1x4xf32, #tpu.memory_space<vmem>>, %arg6: memref<4x16xbf16, #tpu.memory_space<vmem>>, %arg7: memref<1x16xf32, #tpu.memory_space<vmem>>, %arg8: memref<2x256x16xbf16, #tpu.memory_space<vmem>>, %arg9: memref<328x4xbf16, #tpu.memory_space<vmem>>, %arg10: memref<512x4xbf16, #tpu.memory_space<vmem>>) attributes {dimension_semantics = [#tpu.dimension_semantics<parallel>], iteration_bounds = array<i64: 1>, scalar_prefetch = 0 : i64, scratch_operands = 2 : i64, tpu.core_type = #tpu.core_type<tc>, window_params = [{transform_indices = @transform_0, window_bounds = array<i64: 2, 256, 16>}, {pipeline_mode = #tpu.pipeline_mode<synchronous>, transform_indices = @transform_1, window_bounds = array<i64: 16, 4>}, {pipeline_mode = #tpu.pipeline_mode<synchronous>, transform_indices = @transform_2, window_bounds = array<i64: 1, 4>}, {pipeline_mode = #tpu.pipeline_mode<synchronous>, transform_indices = @transform_3, window_bounds = array<i64: 9, 4, 4>}, {pipeline_mode = #tpu.pipeline_mode<synchronous>, transform_indices = @transform_4, window_bounds = array<i64: 1, 4>}, {pipeline_mode = #tpu.pipeline_mode<synchronous>, transform_indices = @transform_5, window_bounds = array<i64: 4, 16>}, {pipeline_mode = #tpu.pipeline_mode<synchronous>, transform_indices = @transform_6, window_bounds = array<i64: 1, 16>}, {transform_indices = @transform_7, window_bounds = array<i64: 2, 256, 16>}]} {
    %c0 = arith.constant 0 : index
    %c0_0 = arith.constant 0 : index
    %c0_1 = arith.constant 0 : index
    %0 = vector.load %arg1[%c0, %c0_0, %c0_1] : memref<2x256x16xbf16, #tpu.memory_space<vmem>>, vector<2x256x16xbf16>
    %1 = vector.shape_cast %0 : vector<2x256x16xbf16> to vector<512x16xbf16>
    %c0_2 = arith.constant 0 : index
    %c0_3 = arith.constant 0 : index
    %2 = vector.load %arg2[%c0_2, %c0_3] : memref<16x4xbf16, #tpu.memory_space<vmem>>, vector<16x4xbf16>
    %cst = arith.constant dense<0.000000e+00> : vector<512x4xf32>
    %3 = tpu.matmul %1, %2, %cst {dimension_numbers = #tpu.dot_dimension_numbers<[1], [0], [0], [1], [0, 0, 1, 1], [], []>} : vector<512x16xbf16>, vector<16x4xbf16>, vector<512x4xf32> -> vector<512x4xf32>
    %c0_4 = arith.constant 0 : index
    %c0_5 = arith.constant 0 : index
    %4 = vector.load %arg3[%c0_4, %c0_5] : memref<1x4xf32, #tpu.memory_space<vmem>>, vector<1x4xf32>
    %5 = vector.broadcast %4 : vector<1x4xf32> to vector<512x4xf32>
    %6 = arith.addf %3, %5 : vector<512x4xf32>
    %cst_6 = arith.constant 0.000000e+00 : f32
    %7 = vector.broadcast %cst_6 : f32 to vector<512x4xf32>
    %8 = arith.maximumf %6, %7 : vector<512x4xf32>
    %9 = arith.truncf %8 : vector<512x4xf32> to vector<512x4xbf16>
    %cst_7 = arith.constant 0.000000e+00 : bf16
    %10 = vector.broadcast %cst_7 : bf16 to vector<19x4xbf16>
    %c0_8 = arith.constant 0 : index
    %c0_9 = arith.constant 0 : index
    %11 = vector.load %arg9[%c0_8, %c0_9] : memref<328x4xbf16, #tpu.memory_space<vmem>>, vector<19x4xbf16>
    tpu.vector_store %arg9[%c0_8, %c0_9], %10 {strides = array<i32>} : memref<328x4xbf16, #tpu.memory_space<vmem>>, vector<19x4xbf16>,
    %cst_10 = arith.constant 0.000000e+00 : bf16
    %12 = vector.broadcast %cst_10 : bf16 to vector<22x4xbf16>
    %c306 = arith.constant 306 : index
    %c0_11 = arith.constant 0 : index
    %13 = vector.load %arg9[%c306, %c0_11] : memref<328x4xbf16, #tpu.memory_space<vmem>>, vector<22x4xbf16>
    tpu.vector_store %arg9[%c306, %c0_11], %12 {strides = array<i32>} : memref<328x4xbf16, #tpu.memory_space<vmem>>, vector<22x4xbf16>,
    %cst_12 = arith.constant 0.000000e+00 : bf16
    %14 = vector.broadcast %cst_12 : bf16 to vector<2x4xbf16>
    %c35 = arith.constant 35 : index
    %c0_13 = arith.constant 0 : index
    %15 = vector.load %arg9[%c35, %c0_13] : memref<328x4xbf16, #tpu.memory_space<vmem>>, vector<2x4xbf16>
    tpu.vector_store %arg9[%c35, %c0_13], %14 {strides = array<i32>} : memref<328x4xbf16, #tpu.memory_space<vmem>>, vector<2x4xbf16>,
    %c53 = arith.constant 53 : index
    %c0_14 = arith.constant 0 : index
    %16 = vector.load %arg9[%c53, %c0_14] : memref<328x4xbf16, #tpu.memory_space<vmem>>, vector<2x4xbf16>
    tpu.vector_store %arg9[%c53, %c0_14], %14 {strides = array<i32>} : memref<328x4xbf16, #tpu.memory_space<vmem>>, vector<2x4xbf16>,
    %c71 = arith.constant 71 : index
    %c0_15 = arith.constant 0 : index
    %17 = vector.load %arg9[%c71, %c0_15] : memref<328x4xbf16, #tpu.memory_space<vmem>>, vector<2x4xbf16>
    tpu.vector_store %arg9[%c71, %c0_15], %14 {strides = array<i32>} : memref<328x4xbf16, #tpu.memory_space<vmem>>, vector<2x4xbf16>,
    %c89 = arith.constant 89 : index
    %c0_16 = arith.constant 0 : index
    %18 = vector.load %arg9[%c89, %c0_16] : memref<328x4xbf16, #tpu.memory_space<vmem>>, vector<2x4xbf16>
    tpu.vector_store %arg9[%c89, %c0_16], %14 {strides = array<i32>} : memref<328x4xbf16, #tpu.memory_space<vmem>>, vector<2x4xbf16>,
    %c107 = arith.constant 107 : index
    %c0_17 = arith.constant 0 : index
    %19 = vector.load %arg9[%c107, %c0_17] : memref<328x4xbf16, #tpu.memory_space<vmem>>, vector<2x4xbf16>
    tpu.vector_store %arg9[%c107, %c0_17], %14 {strides = array<i32>} : memref<328x4xbf16, #tpu.memory_space<vmem>>, vector<2x4xbf16>,
    %c125 = arith.constant 125 : index
    %c0_18 = arith.constant 0 : index
    %20 = vector.load %arg9[%c125, %c0_18] : memref<328x4xbf16, #tpu.memory_space<vmem>>, vector<2x4xbf16>
    tpu.vector_store %arg9[%c125, %c0_18], %14 {strides = array<i32>} : memref<328x4xbf16, #tpu.memory_space<vmem>>, vector<2x4xbf16>,
    %c143 = arith.constant 143 : index
    %c0_19 = arith.constant 0 : index
    %21 = vector.load %arg9[%c143, %c0_19] : memref<328x4xbf16, #tpu.memory_space<vmem>>, vector<2x4xbf16>
    tpu.vector_store %arg9[%c143, %c0_19], %14 {strides = array<i32>} : memref<328x4xbf16, #tpu.memory_space<vmem>>, vector<2x4xbf16>,
    %c161 = arith.constant 161 : index
    %c0_20 = arith.constant 0 : index
    %22 = vector.load %arg9[%c161, %c0_20] : memref<328x4xbf16, #tpu.memory_space<vmem>>, vector<2x4xbf16>
    tpu.vector_store %arg9[%c161, %c0_20], %14 {strides = array<i32>} : memref<328x4xbf16, #tpu.memory_space<vmem>>, vector<2x4xbf16>,
    %c179 = arith.constant 179 : index
    %c0_21 = arith.constant 0 : index
    %23 = vector.load %arg9[%c179, %c0_21] : memref<328x4xbf16, #tpu.memory_space<vmem>>, vector<2x4xbf16>
    tpu.vector_store %arg9[%c179, %c0_21], %14 {strides = array<i32>} : memref<328x4xbf16, #tpu.memory_space<vmem>>, vector<2x4xbf16>,
    %c197 = arith.constant 197 : index
    %c0_22 = arith.constant 0 : index
    %24 = vector.load %arg9[%c197, %c0_22] : memref<328x4xbf16, #tpu.memory_space<vmem>>, vector<2x4xbf16>
    tpu.vector_store %arg9[%c197, %c0_22], %14 {strides = array<i32>} : memref<328x4xbf16, #tpu.memory_space<vmem>>, vector<2x4xbf16>,
    %c215 = arith.constant 215 : index
    %c0_23 = arith.constant 0 : index
    %25 = vector.load %arg9[%c215, %c0_23] : memref<328x4xbf16, #tpu.memory_space<vmem>>, vector<2x4xbf16>
    tpu.vector_store %arg9[%c215, %c0_23], %14 {strides = array<i32>} : memref<328x4xbf16, #tpu.memory_space<vmem>>, vector<2x4xbf16>,
    %c233 = arith.constant 233 : index
    %c0_24 = arith.constant 0 : index
    %26 = vector.load %arg9[%c233, %c0_24] : memref<328x4xbf16, #tpu.memory_space<vmem>>, vector<2x4xbf16>
    tpu.vector_store %arg9[%c233, %c0_24], %14 {strides = array<i32>} : memref<328x4xbf16, #tpu.memory_space<vmem>>, vector<2x4xbf16>,
    %c251 = arith.constant 251 : index
    %c0_25 = arith.constant 0 : index
    %27 = vector.load %arg9[%c251, %c0_25] : memref<328x4xbf16, #tpu.memory_space<vmem>>, vector<2x4xbf16>
    tpu.vector_store %arg9[%c251, %c0_25], %14 {strides = array<i32>} : memref<328x4xbf16, #tpu.memory_space<vmem>>, vector<2x4xbf16>,
    %c269 = arith.constant 269 : index
    %c0_26 = arith.constant 0 : index
    %28 = vector.load %arg9[%c269, %c0_26] : memref<328x4xbf16, #tpu.memory_space<vmem>>, vector<2x4xbf16>
    tpu.vector_store %arg9[%c269, %c0_26], %14 {strides = array<i32>} : memref<328x4xbf16, #tpu.memory_space<vmem>>, vector<2x4xbf16>,
    %c287 = arith.constant 287 : index
    %c0_27 = arith.constant 0 : index
    %29 = vector.load %arg9[%c287, %c0_27] : memref<328x4xbf16, #tpu.memory_space<vmem>>, vector<2x4xbf16>
    tpu.vector_store %arg9[%c287, %c0_27], %14 {strides = array<i32>} : memref<328x4xbf16, #tpu.memory_space<vmem>>, vector<2x4xbf16>,
    %c305 = arith.constant 305 : index
    %c0_28 = arith.constant 0 : index
    %30 = vector.load %arg9[%c305, %c0_28] : memref<328x4xbf16, #tpu.memory_space<vmem>>, vector<2x4xbf16>
    tpu.vector_store %arg9[%c305, %c0_28], %14 {strides = array<i32>} : memref<328x4xbf16, #tpu.memory_space<vmem>>, vector<2x4xbf16>,
    %31 = vector.extract_strided_slice %9 {offsets = [0, 0], sizes = [16, 4], strides = [1, 1]} : vector<512x4xbf16> to vector<16x4xbf16>
    %c19 = arith.constant 19 : index
    %c0_29 = arith.constant 0 : index
    %32 = vector.load %arg9[%c19, %c0_29] : memref<328x4xbf16, #tpu.memory_space<vmem>>, vector<16x4xbf16>
    tpu.vector_store %arg9[%c19, %c0_29], %31 {strides = array<i32>} : memref<328x4xbf16, #tpu.memory_space<vmem>>, vector<16x4xbf16>,
    %33 = vector.extract_strided_slice %9 {offsets = [16, 0], sizes = [16, 4], strides = [1, 1]} : vector<512x4xbf16> to vector<16x4xbf16>
    %c37 = arith.constant 37 : index
    %c0_30 = arith.constant 0 : index
    %34 = vector.load %arg9[%c37, %c0_30] : memref<328x4xbf16, #tpu.memory_space<vmem>>, vector<16x4xbf16>
    tpu.vector_store %arg9[%c37, %c0_30], %33 {strides = array<i32>} : memref<328x4xbf16, #tpu.memory_space<vmem>>, vector<16x4xbf16>,
    %35 = vector.extract_strided_slice %9 {offsets = [32, 0], sizes = [16, 4], strides = [1, 1]} : vector<512x4xbf16> to vector<16x4xbf16>
    %c55 = arith.constant 55 : index
    %c0_31 = arith.constant 0 : index
    %36 = vector.load %arg9[%c55, %c0_31] : memref<328x4xbf16, #tpu.memory_space<vmem>>, vector<16x4xbf16>
    tpu.vector_store %arg9[%c55, %c0_31], %35 {strides = array<i32>} : memref<328x4xbf16, #tpu.memory_space<vmem>>, vector<16x4xbf16>,
    %37 = vector.extract_strided_slice %9 {offsets = [48, 0], sizes = [16, 4], strides = [1, 1]} : vector<512x4xbf16> to vector<16x4xbf16>
    %c73 = arith.constant 73 : index
    %c0_32 = arith.constant 0 : index
    %38 = vector.load %arg9[%c73, %c0_32] : memref<328x4xbf16, #tpu.memory_space<vmem>>, vector<16x4xbf16>
    tpu.vector_store %arg9[%c73, %c0_32], %37 {strides = array<i32>} : memref<328x4xbf16, #tpu.memory_space<vmem>>, vector<16x4xbf16>,
    %39 = vector.extract_strided_slice %9 {offsets = [64, 0], sizes = [16, 4], strides = [1, 1]} : vector<512x4xbf16> to vector<16x4xbf16>
    %c91 = arith.constant 91 : index
    %c0_33 = arith.constant 0 : index
    %40 = vector.load %arg9[%c91, %c0_33] : memref<328x4xbf16, #tpu.memory_space<vmem>>, vector<16x4xbf16>
    tpu.vector_store %arg9[%c91, %c0_33], %39 {strides = array<i32>} : memref<328x4xbf16, #tpu.memory_space<vmem>>, vector<16x4xbf16>,
    %41 = vector.extract_strided_slice %9 {offsets = [80, 0], sizes = [16, 4], strides = [1, 1]} : vector<512x4xbf16> to vector<16x4xbf16>
    %c109 = arith.constant 109 : index
    %c0_34 = arith.constant 0 : index
    %42 = vector.load %arg9[%c109, %c0_34] : memref<328x4xbf16, #tpu.memory_space<vmem>>, vector<16x4xbf16>
    tpu.vector_store %arg9[%c109, %c0_34], %41 {strides = array<i32>} : memref<328x4xbf16, #tpu.memory_space<vmem>>, vector<16x4xbf16>,
    %43 = vector.extract_strided_slice %9 {offsets = [96, 0], sizes = [16, 4], strides = [1, 1]} : vector<512x4xbf16> to vector<16x4xbf16>
    %c127 = arith.constant 127 : index
    %c0_35 = arith.constant 0 : index
    %44 = vector.load %arg9[%c127, %c0_35] : memref<328x4xbf16, #tpu.memory_space<vmem>>, vector<16x4xbf16>
    tpu.vector_store %arg9[%c127, %c0_35], %43 {strides = array<i32>} : memref<328x4xbf16, #tpu.memory_space<vmem>>, vector<16x4xbf16>,
    %45 = vector.extract_strided_slice %9 {offsets = [112, 0], sizes = [16, 4], strides = [1, 1]} : vector<512x4xbf16> to vector<16x4xbf16>
    %c145 = arith.constant 145 : index
    %c0_36 = arith.constant 0 : index
    %46 = vector.load %arg9[%c145, %c0_36] : memref<328x4xbf16, #tpu.memory_space<vmem>>, vector<16x4xbf16>
    tpu.vector_store %arg9[%c145, %c0_36], %45 {strides = array<i32>} : memref<328x4xbf16, #tpu.memory_space<vmem>>, vector<16x4xbf16>,
    %47 = vector.extract_strided_slice %9 {offsets = [128, 0], sizes = [16, 4], strides = [1, 1]} : vector<512x4xbf16> to vector<16x4xbf16>
    %c163 = arith.constant 163 : index
    %c0_37 = arith.constant 0 : index
    %48 = vector.load %arg9[%c163, %c0_37] : memref<328x4xbf16, #tpu.memory_space<vmem>>, vector<16x4xbf16>
    tpu.vector_store %arg9[%c163, %c0_37], %47 {strides = array<i32>} : memref<328x4xbf16, #tpu.memory_space<vmem>>, vector<16x4xbf16>,
    %49 = vector.extract_strided_slice %9 {offsets = [144, 0], sizes = [16, 4], strides = [1, 1]} : vector<512x4xbf16> to vector<16x4xbf16>
    %c181 = arith.constant 181 : index
    %c0_38 = arith.constant 0 : index
    %50 = vector.load %arg9[%c181, %c0_38] : memref<328x4xbf16, #tpu.memory_space<vmem>>, vector<16x4xbf16>
    tpu.vector_store %arg9[%c181, %c0_38], %49 {strides = array<i32>} : memref<328x4xbf16, #tpu.memory_space<vmem>>, vector<16x4xbf16>,
    %51 = vector.extract_strided_slice %9 {offsets = [160, 0], sizes = [16, 4], strides = [1, 1]} : vector<512x4xbf16> to vector<16x4xbf16>
    %c199 = arith.constant 199 : index
    %c0_39 = arith.constant 0 : index
    %52 = vector.load %arg9[%c199, %c0_39] : memref<328x4xbf16, #tpu.memory_space<vmem>>, vector<16x4xbf16>
    tpu.vector_store %arg9[%c199, %c0_39], %51 {strides = array<i32>} : memref<328x4xbf16, #tpu.memory_space<vmem>>, vector<16x4xbf16>,
    %53 = vector.extract_strided_slice %9 {offsets = [176, 0], sizes = [16, 4], strides = [1, 1]} : vector<512x4xbf16> to vector<16x4xbf16>
    %c217 = arith.constant 217 : index
    %c0_40 = arith.constant 0 : index
    %54 = vector.load %arg9[%c217, %c0_40] : memref<328x4xbf16, #tpu.memory_space<vmem>>, vector<16x4xbf16>
    tpu.vector_store %arg9[%c217, %c0_40], %53 {strides = array<i32>} : memref<328x4xbf16, #tpu.memory_space<vmem>>, vector<16x4xbf16>,
    %55 = vector.extract_strided_slice %9 {offsets = [192, 0], sizes = [16, 4], strides = [1, 1]} : vector<512x4xbf16> to vector<16x4xbf16>
    %c235 = arith.constant 235 : index
    %c0_41 = arith.constant 0 : index
    %56 = vector.load %arg9[%c235, %c0_41] : memref<328x4xbf16, #tpu.memory_space<vmem>>, vector<16x4xbf16>
    tpu.vector_store %arg9[%c235, %c0_41], %55 {strides = array<i32>} : memref<328x4xbf16, #tpu.memory_space<vmem>>, vector<16x4xbf16>,
    %57 = vector.extract_strided_slice %9 {offsets = [208, 0], sizes = [16, 4], strides = [1, 1]} : vector<512x4xbf16> to vector<16x4xbf16>
    %c253 = arith.constant 253 : index
    %c0_42 = arith.constant 0 : index
    %58 = vector.load %arg9[%c253, %c0_42] : memref<328x4xbf16, #tpu.memory_space<vmem>>, vector<16x4xbf16>
    tpu.vector_store %arg9[%c253, %c0_42], %57 {strides = array<i32>} : memref<328x4xbf16, #tpu.memory_space<vmem>>, vector<16x4xbf16>,
    %59 = vector.extract_strided_slice %9 {offsets = [224, 0], sizes = [16, 4], strides = [1, 1]} : vector<512x4xbf16> to vector<16x4xbf16>
    %c271 = arith.constant 271 : index
    %c0_43 = arith.constant 0 : index
    %60 = vector.load %arg9[%c271, %c0_43] : memref<328x4xbf16, #tpu.memory_space<vmem>>, vector<16x4xbf16>
    tpu.vector_store %arg9[%c271, %c0_43], %59 {strides = array<i32>} : memref<328x4xbf16, #tpu.memory_space<vmem>>, vector<16x4xbf16>,
    %61 = vector.extract_strided_slice %9 {offsets = [240, 0], sizes = [16, 4], strides = [1, 1]} : vector<512x4xbf16> to vector<16x4xbf16>
    %c289 = arith.constant 289 : index
    %c0_44 = arith.constant 0 : index
    %62 = vector.load %arg9[%c289, %c0_44] : memref<328x4xbf16, #tpu.memory_space<vmem>>, vector<16x4xbf16>
    tpu.vector_store %arg9[%c289, %c0_44], %61 {strides = array<i32>} : memref<328x4xbf16, #tpu.memory_space<vmem>>, vector<16x4xbf16>,
    %cst_45 = arith.constant 0.000000e+00 : f32
    %63 = vector.broadcast %cst_45 : f32 to vector<288x4xf32>
    %c0_46 = arith.constant 0 : index
    %c0_47 = arith.constant 0 : index
    %64 = vector.load %arg9[%c0_46, %c0_47] : memref<328x4xbf16, #tpu.memory_space<vmem>>, vector<288x4xbf16>
    %c0_48 = arith.constant 0 : index
    %c0_49 = arith.constant 0 : index
    %c0_50 = arith.constant 0 : index
    %65 = vector.load %arg4[%c0_48, %c0_49, %c0_50] : memref<9x4x4xbf16, #tpu.memory_space<vmem>>, vector<1x4x4xbf16>
    %66 = vector.shape_cast %65 : vector<1x4x4xbf16> to vector<4x4xbf16>
    %cst_51 = arith.constant dense<0.000000e+00> : vector<288x4xf32>
    %67 = tpu.matmul %64, %66, %cst_51 {dimension_numbers = #tpu.dot_dimension_numbers<[1], [0], [0], [1], [0, 0, 1, 1], [], []>} : vector<288x4xbf16>, vector<4x4xbf16>, vector<288x4xf32> -> vector<288x4xf32>
    %68 = arith.addf %63, %67 : vector<288x4xf32>
    %c1 = arith.constant 1 : index
    %c0_52 = arith.constant 0 : index
    %69 = vector.load %arg9[%c1, %c0_52] : memref<328x4xbf16, #tpu.memory_space<vmem>>, vector<288x4xbf16>
    %c1_53 = arith.constant 1 : index
    %c0_54 = arith.constant 0 : index
    %c0_55 = arith.constant 0 : index
    %70 = vector.load %arg4[%c1_53, %c0_54, %c0_55] : memref<9x4x4xbf16, #tpu.memory_space<vmem>>, vector<1x4x4xbf16>
    %71 = vector.shape_cast %70 : vector<1x4x4xbf16> to vector<4x4xbf16>
    %cst_56 = arith.constant dense<0.000000e+00> : vector<288x4xf32>
    %72 = tpu.matmul %69, %71, %cst_56 {dimension_numbers = #tpu.dot_dimension_numbers<[1], [0], [0], [1], [0, 0, 1, 1], [], []>} : vector<288x4xbf16>, vector<4x4xbf16>, vector<288x4xf32> -> vector<288x4xf32>
    %73 = arith.addf %68, %72 : vector<288x4xf32>
    %c2 = arith.constant 2 : index
    %c0_57 = arith.constant 0 : index
    %74 = vector.load %arg9[%c2, %c0_57] : memref<328x4xbf16, #tpu.memory_space<vmem>>, vector<288x4xbf16>
    %c2_58 = arith.constant 2 : index
    %c0_59 = arith.constant 0 : index
    %c0_60 = arith.constant 0 : index
    %75 = vector.load %arg4[%c2_58, %c0_59, %c0_60] : memref<9x4x4xbf16, #tpu.memory_space<vmem>>, vector<1x4x4xbf16>
    %76 = vector.shape_cast %75 : vector<1x4x4xbf16> to vector<4x4xbf16>
    %cst_61 = arith.constant dense<0.000000e+00> : vector<288x4xf32>
    %77 = tpu.matmul %74, %76, %cst_61 {dimension_numbers = #tpu.dot_dimension_numbers<[1], [0], [0], [1], [0, 0, 1, 1], [], []>} : vector<288x4xbf16>, vector<4x4xbf16>, vector<288x4xf32> -> vector<288x4xf32>
    %78 = arith.addf %73, %77 : vector<288x4xf32>
    %c18 = arith.constant 18 : index
    %c0_62 = arith.constant 0 : index
    %79 = vector.load %arg9[%c18, %c0_62] : memref<328x4xbf16, #tpu.memory_space<vmem>>, vector<288x4xbf16>
    %c3 = arith.constant 3 : index
    %c0_63 = arith.constant 0 : index
    %c0_64 = arith.constant 0 : index
    %80 = vector.load %arg4[%c3, %c0_63, %c0_64] : memref<9x4x4xbf16, #tpu.memory_space<vmem>>, vector<1x4x4xbf16>
    %81 = vector.shape_cast %80 : vector<1x4x4xbf16> to vector<4x4xbf16>
    %cst_65 = arith.constant dense<0.000000e+00> : vector<288x4xf32>
    %82 = tpu.matmul %79, %81, %cst_65 {dimension_numbers = #tpu.dot_dimension_numbers<[1], [0], [0], [1], [0, 0, 1, 1], [], []>} : vector<288x4xbf16>, vector<4x4xbf16>, vector<288x4xf32> -> vector<288x4xf32>
    %83 = arith.addf %78, %82 : vector<288x4xf32>
    %c19_66 = arith.constant 19 : index
    %c0_67 = arith.constant 0 : index
    %84 = vector.load %arg9[%c19_66, %c0_67] : memref<328x4xbf16, #tpu.memory_space<vmem>>, vector<288x4xbf16>
    %c4 = arith.constant 4 : index
    %c0_68 = arith.constant 0 : index
    %c0_69 = arith.constant 0 : index
    %85 = vector.load %arg4[%c4, %c0_68, %c0_69] : memref<9x4x4xbf16, #tpu.memory_space<vmem>>, vector<1x4x4xbf16>
    %86 = vector.shape_cast %85 : vector<1x4x4xbf16> to vector<4x4xbf16>
    %cst_70 = arith.constant dense<0.000000e+00> : vector<288x4xf32>
    %87 = tpu.matmul %84, %86, %cst_70 {dimension_numbers = #tpu.dot_dimension_numbers<[1], [0], [0], [1], [0, 0, 1, 1], [], []>} : vector<288x4xbf16>, vector<4x4xbf16>, vector<288x4xf32> -> vector<288x4xf32>
    %88 = arith.addf %83, %87 : vector<288x4xf32>
    %c20 = arith.constant 20 : index
    %c0_71 = arith.constant 0 : index
    %89 = vector.load %arg9[%c20, %c0_71] : memref<328x4xbf16, #tpu.memory_space<vmem>>, vector<288x4xbf16>
    %c5 = arith.constant 5 : index
    %c0_72 = arith.constant 0 : index
    %c0_73 = arith.constant 0 : index
    %90 = vector.load %arg4[%c5, %c0_72, %c0_73] : memref<9x4x4xbf16, #tpu.memory_space<vmem>>, vector<1x4x4xbf16>
    %91 = vector.shape_cast %90 : vector<1x4x4xbf16> to vector<4x4xbf16>
    %cst_74 = arith.constant dense<0.000000e+00> : vector<288x4xf32>
    %92 = tpu.matmul %89, %91, %cst_74 {dimension_numbers = #tpu.dot_dimension_numbers<[1], [0], [0], [1], [0, 0, 1, 1], [], []>} : vector<288x4xbf16>, vector<4x4xbf16>, vector<288x4xf32> -> vector<288x4xf32>
    %93 = arith.addf %88, %92 : vector<288x4xf32>
    %c36 = arith.constant 36 : index
    %c0_75 = arith.constant 0 : index
    %94 = vector.load %arg9[%c36, %c0_75] : memref<328x4xbf16, #tpu.memory_space<vmem>>, vector<288x4xbf16>
    %c6 = arith.constant 6 : index
    %c0_76 = arith.constant 0 : index
    %c0_77 = arith.constant 0 : index
    %95 = vector.load %arg4[%c6, %c0_76, %c0_77] : memref<9x4x4xbf16, #tpu.memory_space<vmem>>, vector<1x4x4xbf16>
    %96 = vector.shape_cast %95 : vector<1x4x4xbf16> to vector<4x4xbf16>
    %cst_78 = arith.constant dense<0.000000e+00> : vector<288x4xf32>
    %97 = tpu.matmul %94, %96, %cst_78 {dimension_numbers = #tpu.dot_dimension_numbers<[1], [0], [0], [1], [0, 0, 1, 1], [], []>} : vector<288x4xbf16>, vector<4x4xbf16>, vector<288x4xf32> -> vector<288x4xf32>
    %98 = arith.addf %93, %97 : vector<288x4xf32>
    %c37_79 = arith.constant 37 : index
    %c0_80 = arith.constant 0 : index
    %99 = vector.load %arg9[%c37_79, %c0_80] : memref<328x4xbf16, #tpu.memory_space<vmem>>, vector<288x4xbf16>
    %c7 = arith.constant 7 : index
    %c0_81 = arith.constant 0 : index
    %c0_82 = arith.constant 0 : index
    %100 = vector.load %arg4[%c7, %c0_81, %c0_82] : memref<9x4x4xbf16, #tpu.memory_space<vmem>>, vector<1x4x4xbf16>
    %101 = vector.shape_cast %100 : vector<1x4x4xbf16> to vector<4x4xbf16>
    %cst_83 = arith.constant dense<0.000000e+00> : vector<288x4xf32>
    %102 = tpu.matmul %99, %101, %cst_83 {dimension_numbers = #tpu.dot_dimension_numbers<[1], [0], [0], [1], [0, 0, 1, 1], [], []>} : vector<288x4xbf16>, vector<4x4xbf16>, vector<288x4xf32> -> vector<288x4xf32>
    %103 = arith.addf %98, %102 : vector<288x4xf32>
    %c38 = arith.constant 38 : index
    %c0_84 = arith.constant 0 : index
    %104 = vector.load %arg9[%c38, %c0_84] : memref<328x4xbf16, #tpu.memory_space<vmem>>, vector<288x4xbf16>
    %c8 = arith.constant 8 : index
    %c0_85 = arith.constant 0 : index
    %c0_86 = arith.constant 0 : index
    %105 = vector.load %arg4[%c8, %c0_85, %c0_86] : memref<9x4x4xbf16, #tpu.memory_space<vmem>>, vector<1x4x4xbf16>
    %106 = vector.shape_cast %105 : vector<1x4x4xbf16> to vector<4x4xbf16>
    %cst_87 = arith.constant dense<0.000000e+00> : vector<288x4xf32>
    %107 = tpu.matmul %104, %106, %cst_87 {dimension_numbers = #tpu.dot_dimension_numbers<[1], [0], [0], [1], [0, 0, 1, 1], [], []>} : vector<288x4xbf16>, vector<4x4xbf16>, vector<288x4xf32> -> vector<288x4xf32>
    %108 = arith.addf %103, %107 : vector<288x4xf32>
    %c0_88 = arith.constant 0 : index
    %c0_89 = arith.constant 0 : index
    %109 = vector.load %arg5[%c0_88, %c0_89] : memref<1x4xf32, #tpu.memory_space<vmem>>, vector<1x4xf32>
    %110 = vector.broadcast %109 : vector<1x4xf32> to vector<288x4xf32>
    %111 = arith.addf %108, %110 : vector<288x4xf32>
    %cst_90 = arith.constant 0.000000e+00 : f32
    %112 = vector.broadcast %cst_90 : f32 to vector<288x4xf32>
    %113 = arith.maximumf %111, %112 : vector<288x4xf32>
    %114 = arith.truncf %113 : vector<288x4xf32> to vector<288x4xbf16>
    %115 = vector.extract_strided_slice %114 {offsets = [0, 0], sizes = [16, 4], strides = [1, 1]} : vector<288x4xbf16> to vector<16x4xbf16>
    %c0_91 = arith.constant 0 : index
    %c0_92 = arith.constant 0 : index
    %116 = vector.load %arg10[%c0_91, %c0_92] : memref<512x4xbf16, #tpu.memory_space<vmem>>, vector<16x4xbf16>
    tpu.vector_store %arg10[%c0_91, %c0_92], %115 {strides = array<i32>} : memref<512x4xbf16, #tpu.memory_space<vmem>>, vector<16x4xbf16>,
    %117 = vector.extract_strided_slice %114 {offsets = [18, 0], sizes = [16, 4], strides = [1, 1]} : vector<288x4xbf16> to vector<16x4xbf16>
    %c16 = arith.constant 16 : index
    %c0_93 = arith.constant 0 : index
    %118 = vector.load %arg10[%c16, %c0_93] : memref<512x4xbf16, #tpu.memory_space<vmem>>, vector<16x4xbf16>
    tpu.vector_store %arg10[%c16, %c0_93], %117 {strides = array<i32>} : memref<512x4xbf16, #tpu.memory_space<vmem>>, vector<16x4xbf16>,
    %119 = vector.extract_strided_slice %114 {offsets = [36, 0], sizes = [16, 4], strides = [1, 1]} : vector<288x4xbf16> to vector<16x4xbf16>
    %c32 = arith.constant 32 : index
    %c0_94 = arith.constant 0 : index
    %120 = vector.load %arg10[%c32, %c0_94] : memref<512x4xbf16, #tpu.memory_space<vmem>>, vector<16x4xbf16>
    tpu.vector_store %arg10[%c32, %c0_94], %119 {strides = array<i32>} : memref<512x4xbf16, #tpu.memory_space<vmem>>, vector<16x4xbf16>,
    %121 = vector.extract_strided_slice %114 {offsets = [54, 0], sizes = [16, 4], strides = [1, 1]} : vector<288x4xbf16> to vector<16x4xbf16>
    %c48 = arith.constant 48 : index
    %c0_95 = arith.constant 0 : index
    %122 = vector.load %arg10[%c48, %c0_95] : memref<512x4xbf16, #tpu.memory_space<vmem>>, vector<16x4xbf16>
    tpu.vector_store %arg10[%c48, %c0_95], %121 {strides = array<i32>} : memref<512x4xbf16, #tpu.memory_space<vmem>>, vector<16x4xbf16>,
    %123 = vector.extract_strided_slice %114 {offsets = [72, 0], sizes = [16, 4], strides = [1, 1]} : vector<288x4xbf16> to vector<16x4xbf16>
    %c64 = arith.constant 64 : index
    %c0_96 = arith.constant 0 : index
    %124 = vector.load %arg10[%c64, %c0_96] : memref<512x4xbf16, #tpu.memory_space<vmem>>, vector<16x4xbf16>
    tpu.vector_store %arg10[%c64, %c0_96], %123 {strides = array<i32>} : memref<512x4xbf16, #tpu.memory_space<vmem>>, vector<16x4xbf16>,
    %125 = vector.extract_strided_slice %114 {offsets = [90, 0], sizes = [16, 4], strides = [1, 1]} : vector<288x4xbf16> to vector<16x4xbf16>
    %c80 = arith.constant 80 : index
    %c0_97 = arith.constant 0 : index
    %126 = vector.load %arg10[%c80, %c0_97] : memref<512x4xbf16, #tpu.memory_space<vmem>>, vector<16x4xbf16>
    tpu.vector_store %arg10[%c80, %c0_97], %125 {strides = array<i32>} : memref<512x4xbf16, #tpu.memory_space<vmem>>, vector<16x4xbf16>,
    %127 = vector.extract_strided_slice %114 {offsets = [108, 0], sizes = [16, 4], strides = [1, 1]} : vector<288x4xbf16> to vector<16x4xbf16>
    %c96 = arith.constant 96 : index
    %c0_98 = arith.constant 0 : index
    %128 = vector.load %arg10[%c96, %c0_98] : memref<512x4xbf16, #tpu.memory_space<vmem>>, vector<16x4xbf16>
    tpu.vector_store %arg10[%c96, %c0_98], %127 {strides = array<i32>} : memref<512x4xbf16, #tpu.memory_space<vmem>>, vector<16x4xbf16>,
    %129 = vector.extract_strided_slice %114 {offsets = [126, 0], sizes = [16, 4], strides = [1, 1]} : vector<288x4xbf16> to vector<16x4xbf16>
    %c112 = arith.constant 112 : index
    %c0_99 = arith.constant 0 : index
    %130 = vector.load %arg10[%c112, %c0_99] : memref<512x4xbf16, #tpu.memory_space<vmem>>, vector<16x4xbf16>
    tpu.vector_store %arg10[%c112, %c0_99], %129 {strides = array<i32>} : memref<512x4xbf16, #tpu.memory_space<vmem>>, vector<16x4xbf16>,
    %131 = vector.extract_strided_slice %114 {offsets = [144, 0], sizes = [16, 4], strides = [1, 1]} : vector<288x4xbf16> to vector<16x4xbf16>
    %c128 = arith.constant 128 : index
    %c0_100 = arith.constant 0 : index
    %132 = vector.load %arg10[%c128, %c0_100] : memref<512x4xbf16, #tpu.memory_space<vmem>>, vector<16x4xbf16>
    tpu.vector_store %arg10[%c128, %c0_100], %131 {strides = array<i32>} : memref<512x4xbf16, #tpu.memory_space<vmem>>, vector<16x4xbf16>,
    %133 = vector.extract_strided_slice %114 {offsets = [162, 0], sizes = [16, 4], strides = [1, 1]} : vector<288x4xbf16> to vector<16x4xbf16>
    %c144 = arith.constant 144 : index
    %c0_101 = arith.constant 0 : index
    %134 = vector.load %arg10[%c144, %c0_101] : memref<512x4xbf16, #tpu.memory_space<vmem>>, vector<16x4xbf16>
    tpu.vector_store %arg10[%c144, %c0_101], %133 {strides = array<i32>} : memref<512x4xbf16, #tpu.memory_space<vmem>>, vector<16x4xbf16>,
    %135 = vector.extract_strided_slice %114 {offsets = [180, 0], sizes = [16, 4], strides = [1, 1]} : vector<288x4xbf16> to vector<16x4xbf16>
    %c160 = arith.constant 160 : index
    %c0_102 = arith.constant 0 : index
    %136 = vector.load %arg10[%c160, %c0_102] : memref<512x4xbf16, #tpu.memory_space<vmem>>, vector<16x4xbf16>
    tpu.vector_store %arg10[%c160, %c0_102], %135 {strides = array<i32>} : memref<512x4xbf16, #tpu.memory_space<vmem>>, vector<16x4xbf16>,
    %137 = vector.extract_strided_slice %114 {offsets = [198, 0], sizes = [16, 4], strides = [1, 1]} : vector<288x4xbf16> to vector<16x4xbf16>
    %c176 = arith.constant 176 : index
    %c0_103 = arith.constant 0 : index
    %138 = vector.load %arg10[%c176, %c0_103] : memref<512x4xbf16, #tpu.memory_space<vmem>>, vector<16x4xbf16>
    tpu.vector_store %arg10[%c176, %c0_103], %137 {strides = array<i32>} : memref<512x4xbf16, #tpu.memory_space<vmem>>, vector<16x4xbf16>,
    %139 = vector.extract_strided_slice %114 {offsets = [216, 0], sizes = [16, 4], strides = [1, 1]} : vector<288x4xbf16> to vector<16x4xbf16>
    %c192 = arith.constant 192 : index
    %c0_104 = arith.constant 0 : index
    %140 = vector.load %arg10[%c192, %c0_104] : memref<512x4xbf16, #tpu.memory_space<vmem>>, vector<16x4xbf16>
    tpu.vector_store %arg10[%c192, %c0_104], %139 {strides = array<i32>} : memref<512x4xbf16, #tpu.memory_space<vmem>>, vector<16x4xbf16>,
    %141 = vector.extract_strided_slice %114 {offsets = [234, 0], sizes = [16, 4], strides = [1, 1]} : vector<288x4xbf16> to vector<16x4xbf16>
    %c208 = arith.constant 208 : index
    %c0_105 = arith.constant 0 : index
    %142 = vector.load %arg10[%c208, %c0_105] : memref<512x4xbf16, #tpu.memory_space<vmem>>, vector<16x4xbf16>
    tpu.vector_store %arg10[%c208, %c0_105], %141 {strides = array<i32>} : memref<512x4xbf16, #tpu.memory_space<vmem>>, vector<16x4xbf16>,
    %143 = vector.extract_strided_slice %114 {offsets = [252, 0], sizes = [16, 4], strides = [1, 1]} : vector<288x4xbf16> to vector<16x4xbf16>
    %c224 = arith.constant 224 : index
    %c0_106 = arith.constant 0 : index
    %144 = vector.load %arg10[%c224, %c0_106] : memref<512x4xbf16, #tpu.memory_space<vmem>>, vector<16x4xbf16>
    tpu.vector_store %arg10[%c224, %c0_106], %143 {strides = array<i32>} : memref<512x4xbf16, #tpu.memory_space<vmem>>, vector<16x4xbf16>,
    %145 = vector.extract_strided_slice %114 {offsets = [270, 0], sizes = [16, 4], strides = [1, 1]} : vector<288x4xbf16> to vector<16x4xbf16>
    %c240 = arith.constant 240 : index
    %c0_107 = arith.constant 0 : index
    %146 = vector.load %arg10[%c240, %c0_107] : memref<512x4xbf16, #tpu.memory_space<vmem>>, vector<16x4xbf16>
    tpu.vector_store %arg10[%c240, %c0_107], %145 {strides = array<i32>} : memref<512x4xbf16, #tpu.memory_space<vmem>>, vector<16x4xbf16>,
    %147 = vector.extract_strided_slice %9 {offsets = [256, 0], sizes = [16, 4], strides = [1, 1]} : vector<512x4xbf16> to vector<16x4xbf16>
    %c19_108 = arith.constant 19 : index
    %c0_109 = arith.constant 0 : index
    %148 = vector.load %arg9[%c19_108, %c0_109] : memref<328x4xbf16, #tpu.memory_space<vmem>>, vector<16x4xbf16>
    tpu.vector_store %arg9[%c19_108, %c0_109], %147 {strides = array<i32>} : memref<328x4xbf16, #tpu.memory_space<vmem>>, vector<16x4xbf16>,
    %149 = vector.extract_strided_slice %9 {offsets = [272, 0], sizes = [16, 4], strides = [1, 1]} : vector<512x4xbf16> to vector<16x4xbf16>
    %c37_110 = arith.constant 37 : index
    %c0_111 = arith.constant 0 : index
    %150 = vector.load %arg9[%c37_110, %c0_111] : memref<328x4xbf16, #tpu.memory_space<vmem>>, vector<16x4xbf16>
    tpu.vector_store %arg9[%c37_110, %c0_111], %149 {strides = array<i32>} : memref<328x4xbf16, #tpu.memory_space<vmem>>, vector<16x4xbf16>,
    %151 = vector.extract_strided_slice %9 {offsets = [288, 0], sizes = [16, 4], strides = [1, 1]} : vector<512x4xbf16> to vector<16x4xbf16>
    %c55_112 = arith.constant 55 : index
    %c0_113 = arith.constant 0 : index
    %152 = vector.load %arg9[%c55_112, %c0_113] : memref<328x4xbf16, #tpu.memory_space<vmem>>, vector<16x4xbf16>
    tpu.vector_store %arg9[%c55_112, %c0_113], %151 {strides = array<i32>} : memref<328x4xbf16, #tpu.memory_space<vmem>>, vector<16x4xbf16>,
    %153 = vector.extract_strided_slice %9 {offsets = [304, 0], sizes = [16, 4], strides = [1, 1]} : vector<512x4xbf16> to vector<16x4xbf16>
    %c73_114 = arith.constant 73 : index
    %c0_115 = arith.constant 0 : index
    %154 = vector.load %arg9[%c73_114, %c0_115] : memref<328x4xbf16, #tpu.memory_space<vmem>>, vector<16x4xbf16>
    tpu.vector_store %arg9[%c73_114, %c0_115], %153 {strides = array<i32>} : memref<328x4xbf16, #tpu.memory_space<vmem>>, vector<16x4xbf16>,
    %155 = vector.extract_strided_slice %9 {offsets = [320, 0], sizes = [16, 4], strides = [1, 1]} : vector<512x4xbf16> to vector<16x4xbf16>
    %c91_116 = arith.constant 91 : index
    %c0_117 = arith.constant 0 : index
    %156 = vector.load %arg9[%c91_116, %c0_117] : memref<328x4xbf16, #tpu.memory_space<vmem>>, vector<16x4xbf16>
    tpu.vector_store %arg9[%c91_116, %c0_117], %155 {strides = array<i32>} : memref<328x4xbf16, #tpu.memory_space<vmem>>, vector<16x4xbf16>,
    %157 = vector.extract_strided_slice %9 {offsets = [336, 0], sizes = [16, 4], strides = [1, 1]} : vector<512x4xbf16> to vector<16x4xbf16>
    %c109_118 = arith.constant 109 : index
    %c0_119 = arith.constant 0 : index
    %158 = vector.load %arg9[%c109_118, %c0_119] : memref<328x4xbf16, #tpu.memory_space<vmem>>, vector<16x4xbf16>
    tpu.vector_store %arg9[%c109_118, %c0_119], %157 {strides = array<i32>} : memref<328x4xbf16, #tpu.memory_space<vmem>>, vector<16x4xbf16>,
    %159 = vector.extract_strided_slice %9 {offsets = [352, 0], sizes = [16, 4], strides = [1, 1]} : vector<512x4xbf16> to vector<16x4xbf16>
    %c127_120 = arith.constant 127 : index
    %c0_121 = arith.constant 0 : index
    %160 = vector.load %arg9[%c127_120, %c0_121] : memref<328x4xbf16, #tpu.memory_space<vmem>>, vector<16x4xbf16>
    tpu.vector_store %arg9[%c127_120, %c0_121], %159 {strides = array<i32>} : memref<328x4xbf16, #tpu.memory_space<vmem>>, vector<16x4xbf16>,
    %161 = vector.extract_strided_slice %9 {offsets = [368, 0], sizes = [16, 4], strides = [1, 1]} : vector<512x4xbf16> to vector<16x4xbf16>
    %c145_122 = arith.constant 145 : index
    %c0_123 = arith.constant 0 : index
    %162 = vector.load %arg9[%c145_122, %c0_123] : memref<328x4xbf16, #tpu.memory_space<vmem>>, vector<16x4xbf16>
    tpu.vector_store %arg9[%c145_122, %c0_123], %161 {strides = array<i32>} : memref<328x4xbf16, #tpu.memory_space<vmem>>, vector<16x4xbf16>,
    %163 = vector.extract_strided_slice %9 {offsets = [384, 0], sizes = [16, 4], strides = [1, 1]} : vector<512x4xbf16> to vector<16x4xbf16>
    %c163_124 = arith.constant 163 : index
    %c0_125 = arith.constant 0 : index
    %164 = vector.load %arg9[%c163_124, %c0_125] : memref<328x4xbf16, #tpu.memory_space<vmem>>, vector<16x4xbf16>
    tpu.vector_store %arg9[%c163_124, %c0_125], %163 {strides = array<i32>} : memref<328x4xbf16, #tpu.memory_space<vmem>>, vector<16x4xbf16>,
    %165 = vector.extract_strided_slice %9 {offsets = [400, 0], sizes = [16, 4], strides = [1, 1]} : vector<512x4xbf16> to vector<16x4xbf16>
    %c181_126 = arith.constant 181 : index
    %c0_127 = arith.constant 0 : index
    %166 = vector.load %arg9[%c181_126, %c0_127] : memref<328x4xbf16, #tpu.memory_space<vmem>>, vector<16x4xbf16>
    tpu.vector_store %arg9[%c181_126, %c0_127], %165 {strides = array<i32>} : memref<328x4xbf16, #tpu.memory_space<vmem>>, vector<16x4xbf16>,
    %167 = vector.extract_strided_slice %9 {offsets = [416, 0], sizes = [16, 4], strides = [1, 1]} : vector<512x4xbf16> to vector<16x4xbf16>
    %c199_128 = arith.constant 199 : index
    %c0_129 = arith.constant 0 : index
    %168 = vector.load %arg9[%c199_128, %c0_129] : memref<328x4xbf16, #tpu.memory_space<vmem>>, vector<16x4xbf16>
    tpu.vector_store %arg9[%c199_128, %c0_129], %167 {strides = array<i32>} : memref<328x4xbf16, #tpu.memory_space<vmem>>, vector<16x4xbf16>,
    %169 = vector.extract_strided_slice %9 {offsets = [432, 0], sizes = [16, 4], strides = [1, 1]} : vector<512x4xbf16> to vector<16x4xbf16>
    %c217_130 = arith.constant 217 : index
    %c0_131 = arith.constant 0 : index
    %170 = vector.load %arg9[%c217_130, %c0_131] : memref<328x4xbf16, #tpu.memory_space<vmem>>, vector<16x4xbf16>
    tpu.vector_store %arg9[%c217_130, %c0_131], %169 {strides = array<i32>} : memref<328x4xbf16, #tpu.memory_space<vmem>>, vector<16x4xbf16>,
    %171 = vector.extract_strided_slice %9 {offsets = [448, 0], sizes = [16, 4], strides = [1, 1]} : vector<512x4xbf16> to vector<16x4xbf16>
    %c235_132 = arith.constant 235 : index
    %c0_133 = arith.constant 0 : index
    %172 = vector.load %arg9[%c235_132, %c0_133] : memref<328x4xbf16, #tpu.memory_space<vmem>>, vector<16x4xbf16>
    tpu.vector_store %arg9[%c235_132, %c0_133], %171 {strides = array<i32>} : memref<328x4xbf16, #tpu.memory_space<vmem>>, vector<16x4xbf16>,
    %173 = vector.extract_strided_slice %9 {offsets = [464, 0], sizes = [16, 4], strides = [1, 1]} : vector<512x4xbf16> to vector<16x4xbf16>
    %c253_134 = arith.constant 253 : index
    %c0_135 = arith.constant 0 : index
    %174 = vector.load %arg9[%c253_134, %c0_135] : memref<328x4xbf16, #tpu.memory_space<vmem>>, vector<16x4xbf16>
    tpu.vector_store %arg9[%c253_134, %c0_135], %173 {strides = array<i32>} : memref<328x4xbf16, #tpu.memory_space<vmem>>, vector<16x4xbf16>,
    %175 = vector.extract_strided_slice %9 {offsets = [480, 0], sizes = [16, 4], strides = [1, 1]} : vector<512x4xbf16> to vector<16x4xbf16>
    %c271_136 = arith.constant 271 : index
    %c0_137 = arith.constant 0 : index
    %176 = vector.load %arg9[%c271_136, %c0_137] : memref<328x4xbf16, #tpu.memory_space<vmem>>, vector<16x4xbf16>
    tpu.vector_store %arg9[%c271_136, %c0_137], %175 {strides = array<i32>} : memref<328x4xbf16, #tpu.memory_space<vmem>>, vector<16x4xbf16>,
    %177 = vector.extract_strided_slice %9 {offsets = [496, 0], sizes = [16, 4], strides = [1, 1]} : vector<512x4xbf16> to vector<16x4xbf16>
    %c289_138 = arith.constant 289 : index
    %c0_139 = arith.constant 0 : index
    %178 = vector.load %arg9[%c289_138, %c0_139] : memref<328x4xbf16, #tpu.memory_space<vmem>>, vector<16x4xbf16>
    tpu.vector_store %arg9[%c289_138, %c0_139], %177 {strides = array<i32>} : memref<328x4xbf16, #tpu.memory_space<vmem>>, vector<16x4xbf16>,
    %cst_140 = arith.constant 0.000000e+00 : f32
    %179 = vector.broadcast %cst_140 : f32 to vector<288x4xf32>
    %c0_141 = arith.constant 0 : index
    %c0_142 = arith.constant 0 : index
    %180 = vector.load %arg9[%c0_141, %c0_142] : memref<328x4xbf16, #tpu.memory_space<vmem>>, vector<288x4xbf16>
    %c0_143 = arith.constant 0 : index
    %c0_144 = arith.constant 0 : index
    %c0_145 = arith.constant 0 : index
    %181 = vector.load %arg4[%c0_143, %c0_144, %c0_145] : memref<9x4x4xbf16, #tpu.memory_space<vmem>>, vector<1x4x4xbf16>
    %182 = vector.shape_cast %181 : vector<1x4x4xbf16> to vector<4x4xbf16>
    %cst_146 = arith.constant dense<0.000000e+00> : vector<288x4xf32>
    %183 = tpu.matmul %180, %182, %cst_146 {dimension_numbers = #tpu.dot_dimension_numbers<[1], [0], [0], [1], [0, 0, 1, 1], [], []>} : vector<288x4xbf16>, vector<4x4xbf16>, vector<288x4xf32> -> vector<288x4xf32>
    %184 = arith.addf %179, %183 : vector<288x4xf32>
    %c1_147 = arith.constant 1 : index
    %c0_148 = arith.constant 0 : index
    %185 = vector.load %arg9[%c1_147, %c0_148] : memref<328x4xbf16, #tpu.memory_space<vmem>>, vector<288x4xbf16>
    %c1_149 = arith.constant 1 : index
    %c0_150 = arith.constant 0 : index
    %c0_151 = arith.constant 0 : index
    %186 = vector.load %arg4[%c1_149, %c0_150, %c0_151] : memref<9x4x4xbf16, #tpu.memory_space<vmem>>, vector<1x4x4xbf16>
    %187 = vector.shape_cast %186 : vector<1x4x4xbf16> to vector<4x4xbf16>
    %cst_152 = arith.constant dense<0.000000e+00> : vector<288x4xf32>
    %188 = tpu.matmul %185, %187, %cst_152 {dimension_numbers = #tpu.dot_dimension_numbers<[1], [0], [0], [1], [0, 0, 1, 1], [], []>} : vector<288x4xbf16>, vector<4x4xbf16>, vector<288x4xf32> -> vector<288x4xf32>
    %189 = arith.addf %184, %188 : vector<288x4xf32>
    %c2_153 = arith.constant 2 : index
    %c0_154 = arith.constant 0 : index
    %190 = vector.load %arg9[%c2_153, %c0_154] : memref<328x4xbf16, #tpu.memory_space<vmem>>, vector<288x4xbf16>
    %c2_155 = arith.constant 2 : index
    %c0_156 = arith.constant 0 : index
    %c0_157 = arith.constant 0 : index
    %191 = vector.load %arg4[%c2_155, %c0_156, %c0_157] : memref<9x4x4xbf16, #tpu.memory_space<vmem>>, vector<1x4x4xbf16>
    %192 = vector.shape_cast %191 : vector<1x4x4xbf16> to vector<4x4xbf16>
    %cst_158 = arith.constant dense<0.000000e+00> : vector<288x4xf32>
    %193 = tpu.matmul %190, %192, %cst_158 {dimension_numbers = #tpu.dot_dimension_numbers<[1], [0], [0], [1], [0, 0, 1, 1], [], []>} : vector<288x4xbf16>, vector<4x4xbf16>, vector<288x4xf32> -> vector<288x4xf32>
    %194 = arith.addf %189, %193 : vector<288x4xf32>
    %c18_159 = arith.constant 18 : index
    %c0_160 = arith.constant 0 : index
    %195 = vector.load %arg9[%c18_159, %c0_160] : memref<328x4xbf16, #tpu.memory_space<vmem>>, vector<288x4xbf16>
    %c3_161 = arith.constant 3 : index
    %c0_162 = arith.constant 0 : index
    %c0_163 = arith.constant 0 : index
    %196 = vector.load %arg4[%c3_161, %c0_162, %c0_163] : memref<9x4x4xbf16, #tpu.memory_space<vmem>>, vector<1x4x4xbf16>
    %197 = vector.shape_cast %196 : vector<1x4x4xbf16> to vector<4x4xbf16>
    %cst_164 = arith.constant dense<0.000000e+00> : vector<288x4xf32>
    %198 = tpu.matmul %195, %197, %cst_164 {dimension_numbers = #tpu.dot_dimension_numbers<[1], [0], [0], [1], [0, 0, 1, 1], [], []>} : vector<288x4xbf16>, vector<4x4xbf16>, vector<288x4xf32> -> vector<288x4xf32>
    %199 = arith.addf %194, %198 : vector<288x4xf32>
    %c19_165 = arith.constant 19 : index
    %c0_166 = arith.constant 0 : index
    %200 = vector.load %arg9[%c19_165, %c0_166] : memref<328x4xbf16, #tpu.memory_space<vmem>>, vector<288x4xbf16>
    %c4_167 = arith.constant 4 : index
    %c0_168 = arith.constant 0 : index
    %c0_169 = arith.constant 0 : index
    %201 = vector.load %arg4[%c4_167, %c0_168, %c0_169] : memref<9x4x4xbf16, #tpu.memory_space<vmem>>, vector<1x4x4xbf16>
    %202 = vector.shape_cast %201 : vector<1x4x4xbf16> to vector<4x4xbf16>
    %cst_170 = arith.constant dense<0.000000e+00> : vector<288x4xf32>
    %203 = tpu.matmul %200, %202, %cst_170 {dimension_numbers = #tpu.dot_dimension_numbers<[1], [0], [0], [1], [0, 0, 1, 1], [], []>} : vector<288x4xbf16>, vector<4x4xbf16>, vector<288x4xf32> -> vector<288x4xf32>
    %204 = arith.addf %199, %203 : vector<288x4xf32>
    %c20_171 = arith.constant 20 : index
    %c0_172 = arith.constant 0 : index
    %205 = vector.load %arg9[%c20_171, %c0_172] : memref<328x4xbf16, #tpu.memory_space<vmem>>, vector<288x4xbf16>
    %c5_173 = arith.constant 5 : index
    %c0_174 = arith.constant 0 : index
    %c0_175 = arith.constant 0 : index
    %206 = vector.load %arg4[%c5_173, %c0_174, %c0_175] : memref<9x4x4xbf16, #tpu.memory_space<vmem>>, vector<1x4x4xbf16>
    %207 = vector.shape_cast %206 : vector<1x4x4xbf16> to vector<4x4xbf16>
    %cst_176 = arith.constant dense<0.000000e+00> : vector<288x4xf32>
    %208 = tpu.matmul %205, %207, %cst_176 {dimension_numbers = #tpu.dot_dimension_numbers<[1], [0], [0], [1], [0, 0, 1, 1], [], []>} : vector<288x4xbf16>, vector<4x4xbf16>, vector<288x4xf32> -> vector<288x4xf32>
    %209 = arith.addf %204, %208 : vector<288x4xf32>
    %c36_177 = arith.constant 36 : index
    %c0_178 = arith.constant 0 : index
    %210 = vector.load %arg9[%c36_177, %c0_178] : memref<328x4xbf16, #tpu.memory_space<vmem>>, vector<288x4xbf16>
    %c6_179 = arith.constant 6 : index
    %c0_180 = arith.constant 0 : index
    %c0_181 = arith.constant 0 : index
    %211 = vector.load %arg4[%c6_179, %c0_180, %c0_181] : memref<9x4x4xbf16, #tpu.memory_space<vmem>>, vector<1x4x4xbf16>
    %212 = vector.shape_cast %211 : vector<1x4x4xbf16> to vector<4x4xbf16>
    %cst_182 = arith.constant dense<0.000000e+00> : vector<288x4xf32>
    %213 = tpu.matmul %210, %212, %cst_182 {dimension_numbers = #tpu.dot_dimension_numbers<[1], [0], [0], [1], [0, 0, 1, 1], [], []>} : vector<288x4xbf16>, vector<4x4xbf16>, vector<288x4xf32> -> vector<288x4xf32>
    %214 = arith.addf %209, %213 : vector<288x4xf32>
    %c37_183 = arith.constant 37 : index
    %c0_184 = arith.constant 0 : index
    %215 = vector.load %arg9[%c37_183, %c0_184] : memref<328x4xbf16, #tpu.memory_space<vmem>>, vector<288x4xbf16>
    %c7_185 = arith.constant 7 : index
    %c0_186 = arith.constant 0 : index
    %c0_187 = arith.constant 0 : index
    %216 = vector.load %arg4[%c7_185, %c0_186, %c0_187] : memref<9x4x4xbf16, #tpu.memory_space<vmem>>, vector<1x4x4xbf16>
    %217 = vector.shape_cast %216 : vector<1x4x4xbf16> to vector<4x4xbf16>
    %cst_188 = arith.constant dense<0.000000e+00> : vector<288x4xf32>
    %218 = tpu.matmul %215, %217, %cst_188 {dimension_numbers = #tpu.dot_dimension_numbers<[1], [0], [0], [1], [0, 0, 1, 1], [], []>} : vector<288x4xbf16>, vector<4x4xbf16>, vector<288x4xf32> -> vector<288x4xf32>
    %219 = arith.addf %214, %218 : vector<288x4xf32>
    %c38_189 = arith.constant 38 : index
    %c0_190 = arith.constant 0 : index
    %220 = vector.load %arg9[%c38_189, %c0_190] : memref<328x4xbf16, #tpu.memory_space<vmem>>, vector<288x4xbf16>
    %c8_191 = arith.constant 8 : index
    %c0_192 = arith.constant 0 : index
    %c0_193 = arith.constant 0 : index
    %221 = vector.load %arg4[%c8_191, %c0_192, %c0_193] : memref<9x4x4xbf16, #tpu.memory_space<vmem>>, vector<1x4x4xbf16>
    %222 = vector.shape_cast %221 : vector<1x4x4xbf16> to vector<4x4xbf16>
    %cst_194 = arith.constant dense<0.000000e+00> : vector<288x4xf32>
    %223 = tpu.matmul %220, %222, %cst_194 {dimension_numbers = #tpu.dot_dimension_numbers<[1], [0], [0], [1], [0, 0, 1, 1], [], []>} : vector<288x4xbf16>, vector<4x4xbf16>, vector<288x4xf32> -> vector<288x4xf32>
    %224 = arith.addf %219, %223 : vector<288x4xf32>
    %c0_195 = arith.constant 0 : index
    %c0_196 = arith.constant 0 : index
    %225 = vector.load %arg5[%c0_195, %c0_196] : memref<1x4xf32, #tpu.memory_space<vmem>>, vector<1x4xf32>
    %226 = vector.broadcast %225 : vector<1x4xf32> to vector<288x4xf32>
    %227 = arith.addf %224, %226 : vector<288x4xf32>
    %cst_197 = arith.constant 0.000000e+00 : f32
    %228 = vector.broadcast %cst_197 : f32 to vector<288x4xf32>
    %229 = arith.maximumf %227, %228 : vector<288x4xf32>
    %230 = arith.truncf %229 : vector<288x4xf32> to vector<288x4xbf16>
    %231 = vector.extract_strided_slice %230 {offsets = [0, 0], sizes = [16, 4], strides = [1, 1]} : vector<288x4xbf16> to vector<16x4xbf16>
    %c256 = arith.constant 256 : index
    %c0_198 = arith.constant 0 : index
    %232 = vector.load %arg10[%c256, %c0_198] : memref<512x4xbf16, #tpu.memory_space<vmem>>, vector<16x4xbf16>
    tpu.vector_store %arg10[%c256, %c0_198], %231 {strides = array<i32>} : memref<512x4xbf16, #tpu.memory_space<vmem>>, vector<16x4xbf16>,
    %233 = vector.extract_strided_slice %230 {offsets = [18, 0], sizes = [16, 4], strides = [1, 1]} : vector<288x4xbf16> to vector<16x4xbf16>
    %c272 = arith.constant 272 : index
    %c0_199 = arith.constant 0 : index
    %234 = vector.load %arg10[%c272, %c0_199] : memref<512x4xbf16, #tpu.memory_space<vmem>>, vector<16x4xbf16>
    tpu.vector_store %arg10[%c272, %c0_199], %233 {strides = array<i32>} : memref<512x4xbf16, #tpu.memory_space<vmem>>, vector<16x4xbf16>,
    %235 = vector.extract_strided_slice %230 {offsets = [36, 0], sizes = [16, 4], strides = [1, 1]} : vector<288x4xbf16> to vector<16x4xbf16>
    %c288 = arith.constant 288 : index
    %c0_200 = arith.constant 0 : index
    %236 = vector.load %arg10[%c288, %c0_200] : memref<512x4xbf16, #tpu.memory_space<vmem>>, vector<16x4xbf16>
    tpu.vector_store %arg10[%c288, %c0_200], %235 {strides = array<i32>} : memref<512x4xbf16, #tpu.memory_space<vmem>>, vector<16x4xbf16>,
    %237 = vector.extract_strided_slice %230 {offsets = [54, 0], sizes = [16, 4], strides = [1, 1]} : vector<288x4xbf16> to vector<16x4xbf16>
    %c304 = arith.constant 304 : index
    %c0_201 = arith.constant 0 : index
    %238 = vector.load %arg10[%c304, %c0_201] : memref<512x4xbf16, #tpu.memory_space<vmem>>, vector<16x4xbf16>
    tpu.vector_store %arg10[%c304, %c0_201], %237 {strides = array<i32>} : memref<512x4xbf16, #tpu.memory_space<vmem>>, vector<16x4xbf16>,
    %239 = vector.extract_strided_slice %230 {offsets = [72, 0], sizes = [16, 4], strides = [1, 1]} : vector<288x4xbf16> to vector<16x4xbf16>
    %c320 = arith.constant 320 : index
    %c0_202 = arith.constant 0 : index
    %240 = vector.load %arg10[%c320, %c0_202] : memref<512x4xbf16, #tpu.memory_space<vmem>>, vector<16x4xbf16>
    tpu.vector_store %arg10[%c320, %c0_202], %239 {strides = array<i32>} : memref<512x4xbf16, #tpu.memory_space<vmem>>, vector<16x4xbf16>,
    %241 = vector.extract_strided_slice %230 {offsets = [90, 0], sizes = [16, 4], strides = [1, 1]} : vector<288x4xbf16> to vector<16x4xbf16>
    %c336 = arith.constant 336 : index
    %c0_203 = arith.constant 0 : index
    %242 = vector.load %arg10[%c336, %c0_203] : memref<512x4xbf16, #tpu.memory_space<vmem>>, vector<16x4xbf16>
    tpu.vector_store %arg10[%c336, %c0_203], %241 {strides = array<i32>} : memref<512x4xbf16, #tpu.memory_space<vmem>>, vector<16x4xbf16>,
    %243 = vector.extract_strided_slice %230 {offsets = [108, 0], sizes = [16, 4], strides = [1, 1]} : vector<288x4xbf16> to vector<16x4xbf16>
    %c352 = arith.constant 352 : index
    %c0_204 = arith.constant 0 : index
    %244 = vector.load %arg10[%c352, %c0_204] : memref<512x4xbf16, #tpu.memory_space<vmem>>, vector<16x4xbf16>
    tpu.vector_store %arg10[%c352, %c0_204], %243 {strides = array<i32>} : memref<512x4xbf16, #tpu.memory_space<vmem>>, vector<16x4xbf16>,
    %245 = vector.extract_strided_slice %230 {offsets = [126, 0], sizes = [16, 4], strides = [1, 1]} : vector<288x4xbf16> to vector<16x4xbf16>
    %c368 = arith.constant 368 : index
    %c0_205 = arith.constant 0 : index
    %246 = vector.load %arg10[%c368, %c0_205] : memref<512x4xbf16, #tpu.memory_space<vmem>>, vector<16x4xbf16>
    tpu.vector_store %arg10[%c368, %c0_205], %245 {strides = array<i32>} : memref<512x4xbf16, #tpu.memory_space<vmem>>, vector<16x4xbf16>,
    %247 = vector.extract_strided_slice %230 {offsets = [144, 0], sizes = [16, 4], strides = [1, 1]} : vector<288x4xbf16> to vector<16x4xbf16>
    %c384 = arith.constant 384 : index
    %c0_206 = arith.constant 0 : index
    %248 = vector.load %arg10[%c384, %c0_206] : memref<512x4xbf16, #tpu.memory_space<vmem>>, vector<16x4xbf16>
    tpu.vector_store %arg10[%c384, %c0_206], %247 {strides = array<i32>} : memref<512x4xbf16, #tpu.memory_space<vmem>>, vector<16x4xbf16>,
    %249 = vector.extract_strided_slice %230 {offsets = [162, 0], sizes = [16, 4], strides = [1, 1]} : vector<288x4xbf16> to vector<16x4xbf16>
    %c400 = arith.constant 400 : index
    %c0_207 = arith.constant 0 : index
    %250 = vector.load %arg10[%c400, %c0_207] : memref<512x4xbf16, #tpu.memory_space<vmem>>, vector<16x4xbf16>
    tpu.vector_store %arg10[%c400, %c0_207], %249 {strides = array<i32>} : memref<512x4xbf16, #tpu.memory_space<vmem>>, vector<16x4xbf16>,
    %251 = vector.extract_strided_slice %230 {offsets = [180, 0], sizes = [16, 4], strides = [1, 1]} : vector<288x4xbf16> to vector<16x4xbf16>
    %c416 = arith.constant 416 : index
    %c0_208 = arith.constant 0 : index
    %252 = vector.load %arg10[%c416, %c0_208] : memref<512x4xbf16, #tpu.memory_space<vmem>>, vector<16x4xbf16>
    tpu.vector_store %arg10[%c416, %c0_208], %251 {strides = array<i32>} : memref<512x4xbf16, #tpu.memory_space<vmem>>, vector<16x4xbf16>,
    %253 = vector.extract_strided_slice %230 {offsets = [198, 0], sizes = [16, 4], strides = [1, 1]} : vector<288x4xbf16> to vector<16x4xbf16>
    %c432 = arith.constant 432 : index
    %c0_209 = arith.constant 0 : index
    %254 = vector.load %arg10[%c432, %c0_209] : memref<512x4xbf16, #tpu.memory_space<vmem>>, vector<16x4xbf16>
    tpu.vector_store %arg10[%c432, %c0_209], %253 {strides = array<i32>} : memref<512x4xbf16, #tpu.memory_space<vmem>>, vector<16x4xbf16>,
    %255 = vector.extract_strided_slice %230 {offsets = [216, 0], sizes = [16, 4], strides = [1, 1]} : vector<288x4xbf16> to vector<16x4xbf16>
    %c448 = arith.constant 448 : index
    %c0_210 = arith.constant 0 : index
    %256 = vector.load %arg10[%c448, %c0_210] : memref<512x4xbf16, #tpu.memory_space<vmem>>, vector<16x4xbf16>
    tpu.vector_store %arg10[%c448, %c0_210], %255 {strides = array<i32>} : memref<512x4xbf16, #tpu.memory_space<vmem>>, vector<16x4xbf16>,
    %257 = vector.extract_strided_slice %230 {offsets = [234, 0], sizes = [16, 4], strides = [1, 1]} : vector<288x4xbf16> to vector<16x4xbf16>
    %c464 = arith.constant 464 : index
    %c0_211 = arith.constant 0 : index
    %258 = vector.load %arg10[%c464, %c0_211] : memref<512x4xbf16, #tpu.memory_space<vmem>>, vector<16x4xbf16>
    tpu.vector_store %arg10[%c464, %c0_211], %257 {strides = array<i32>} : memref<512x4xbf16, #tpu.memory_space<vmem>>, vector<16x4xbf16>,
    %259 = vector.extract_strided_slice %230 {offsets = [252, 0], sizes = [16, 4], strides = [1, 1]} : vector<288x4xbf16> to vector<16x4xbf16>
    %c480 = arith.constant 480 : index
    %c0_212 = arith.constant 0 : index
    %260 = vector.load %arg10[%c480, %c0_212] : memref<512x4xbf16, #tpu.memory_space<vmem>>, vector<16x4xbf16>
    tpu.vector_store %arg10[%c480, %c0_212], %259 {strides = array<i32>} : memref<512x4xbf16, #tpu.memory_space<vmem>>, vector<16x4xbf16>,
    %261 = vector.extract_strided_slice %230 {offsets = [270, 0], sizes = [16, 4], strides = [1, 1]} : vector<288x4xbf16> to vector<16x4xbf16>
    %c496 = arith.constant 496 : index
    %c0_213 = arith.constant 0 : index
    %262 = vector.load %arg10[%c496, %c0_213] : memref<512x4xbf16, #tpu.memory_space<vmem>>, vector<16x4xbf16>
    tpu.vector_store %arg10[%c496, %c0_213], %261 {strides = array<i32>} : memref<512x4xbf16, #tpu.memory_space<vmem>>, vector<16x4xbf16>,
    %c0_214 = arith.constant 0 : index
    %c0_215 = arith.constant 0 : index
    %263 = vector.load %arg10[%c0_214, %c0_215] : memref<512x4xbf16, #tpu.memory_space<vmem>>, vector<512x4xbf16>
    %c0_216 = arith.constant 0 : index
    %c0_217 = arith.constant 0 : index
    %264 = vector.load %arg6[%c0_216, %c0_217] : memref<4x16xbf16, #tpu.memory_space<vmem>>, vector<4x16xbf16>
    %cst_218 = arith.constant dense<0.000000e+00> : vector<512x16xf32>
    %265 = tpu.matmul %263, %264, %cst_218 {dimension_numbers = #tpu.dot_dimension_numbers<[1], [0], [0], [1], [0, 0, 1, 1], [], []>} : vector<512x4xbf16>, vector<4x16xbf16>, vector<512x16xf32> -> vector<512x16xf32>
    %c0_219 = arith.constant 0 : index
    %c0_220 = arith.constant 0 : index
    %266 = vector.load %arg7[%c0_219, %c0_220] : memref<1x16xf32, #tpu.memory_space<vmem>>, vector<1x16xf32>
    %267 = vector.broadcast %266 : vector<1x16xf32> to vector<512x16xf32>
    %268 = arith.addf %265, %267 : vector<512x16xf32>
    %269 = arith.extf %1 : vector<512x16xbf16> to vector<512x16xf32>
    %270 = arith.addf %268, %269 : vector<512x16xf32>
    %cst_221 = arith.constant 0.000000e+00 : f32
    %271 = vector.broadcast %cst_221 : f32 to vector<512x16xf32>
    %272 = arith.maximumf %270, %271 : vector<512x16xf32>
    %273 = arith.truncf %272 : vector<512x16xf32> to vector<512x16xbf16>
    %274 = vector.shape_cast %273 : vector<512x16xbf16> to vector<2x256x16xbf16>
    %c0_222 = arith.constant 0 : index
    %c0_223 = arith.constant 0 : index
    %c0_224 = arith.constant 0 : index
    %275 = vector.load %arg8[%c0_222, %c0_223, %c0_224] : memref<2x256x16xbf16, #tpu.memory_space<vmem>>, vector<2x256x16xbf16>
    tpu.vector_store %arg8[%c0_222, %c0_223, %c0_224], %274 {strides = array<i32>} : memref<2x256x16xbf16, #tpu.memory_space<vmem>>, vector<2x256x16xbf16>,
    return
  }
  func.func @transform_0(%arg0: i32) -> (i32, i32, i32) {
    %c0_i32 = arith.constant 0 : i32
    %c0_i32_0 = arith.constant 0 : i32
    %c0_i32_1 = arith.constant 0 : i32
    return %arg0, %c0_i32, %c0_i32_0 : i32, i32, i32
  }
  func.func @transform_1(%arg0: i32) -> (i32, i32) {
    %c0_i32 = arith.constant 0 : i32
    %c0_i32_0 = arith.constant 0 : i32
    %c0_i32_1 = arith.constant 0 : i32
    return %c0_i32, %c0_i32_0 : i32, i32
  }
  func.func @transform_2(%arg0: i32) -> (i32, i32) {
    %c0_i32 = arith.constant 0 : i32
    %c0_i32_0 = arith.constant 0 : i32
    %c0_i32_1 = arith.constant 0 : i32
    return %c0_i32, %c0_i32_0 : i32, i32
  }
  func.func @transform_3(%arg0: i32) -> (i32, i32, i32) {
    %c0_i32 = arith.constant 0 : i32
    %c0_i32_0 = arith.constant 0 : i32
    %c0_i32_1 = arith.constant 0 : i32
    %c0_i32_2 = arith.constant 0 : i32
    return %c0_i32, %c0_i32_0, %c0_i32_1 : i32, i32, i32
  }
  func.func @transform_4(%arg0: i32) -> (i32, i32) {
    %c0_i32 = arith.constant 0 : i32
    %c0_i32_0 = arith.constant 0 : i32
    %c0_i32_1 = arith.constant 0 : i32
    return %c0_i32, %c0_i32_0 : i32, i32
  }
  func.func @transform_5(%arg0: i32) -> (i32, i32) {
    %c0_i32 = arith.constant 0 : i32
    %c0_i32_0 = arith.constant 0 : i32
    %c0_i32_1 = arith.constant 0 : i32
    return %c0_i32, %c0_i32_0 : i32, i32
  }
  func.func @transform_6(%arg0: i32) -> (i32, i32) {
    %c0_i32 = arith.constant 0 : i32
    %c0_i32_0 = arith.constant 0 : i32
    %c0_i32_1 = arith.constant 0 : i32
    return %c0_i32, %c0_i32_0 : i32, i32
  }
  func.func @transform_7(%arg0: i32) -> (i32, i32, i32) {
    %c0_i32 = arith.constant 0 : i32
    %c0_i32_0 = arith.constant 0 : i32
    %c0_i32_1 = arith.constant 0 : i32
    return %arg0, %c0_i32, %c0_i32_0 : i32, i32, i32
  }
}

</mosaic_0001>

<llo_original>
// kernel: bottleneck_forward.1
$region0: #{bottleneck_forward.1}
  #allocation0 [shape = 'u32[]', space=smem, size = 0x4, offset = 0x4, fixed_abs, tag = 'smem constant byte address 0x4 - core index']
  #allocation1 [shape = 'u32[144,128]{1,0:T(1,128)}', space=vmem, size = 0x12000, scoped, tag = 'internal scratch']
  #allocation2 [shape = 'bf16[328,4]{1,0:T(8,128)(2,1)}', space=vmem, size = 0x14800, scoped, tag = 'scratch operand']
  #allocation3 [shape = 'bf16[512,4]{1,0:T(8,128)(2,1)}', space=vmem, size = 0x20000, scoped, tag = 'scratch operand']
  %s0 = inlined_call_operand.vmem [shape: bf16[2,256,16], index: 0, kind: input, shape index: {}]
  %s1 = inlined_call_operand.vmem [shape: bf16[16,4], index: 1, kind: input, shape index: {}]
  %s2 = inlined_call_operand.vmem [shape: f32[1,4], index: 2, kind: input, shape index: {}]
  %s3 = inlined_call_operand.vmem [shape: bf16[9,4,4], index: 3, kind: input, shape index: {}]
  %s4 = inlined_call_operand.vmem [shape: f32[1,4], index: 4, kind: input, shape index: {}]
  %s5 = inlined_call_operand.vmem [shape: bf16[4,16], index: 5, kind: input, shape index: {}]
  %s6 = inlined_call_operand.vmem [shape: f32[1,16], index: 6, kind: input, shape index: {}]
  %s7 = inlined_call_operand.vmem [shape: bf16[2,256,16], index: 7, kind: output, shape index: {}]
  %s8 = sld [smem:[#allocation0]]
  $region38: #{bottleneck_forward.1} parent=0
    _
  %s10 = ssub.s32 1, %s8
  %s11 = scalar_select 0, %s10, %s8
  // Predicated region
  $region2: #{bottleneck_forward.1} parent=0 // pred_check
    _
  $region3: #{bottleneck_forward.1} parent=0 // pred_check_branch
    %13 = sbr.rel (0) target = $region5
  $region4: #{bottleneck_forward.1} parent=0 // pred_region
    _
  $region5: #{bottleneck_forward.1} parent=0 // pred_fallthru
    _
  // Predicated region
  $region6: #{bottleneck_forward.1} parent=0 // pred_check
    _
  $region7: #{bottleneck_forward.1} parent=0 // pred_check_branch
    %15 = sbr.rel (0) target = $region9
  $region8: #{bottleneck_forward.1} parent=0 // pred_region
    _
  $region9: #{bottleneck_forward.1} parent=0 // pred_fallthru
    _
  // Predicated region
  $region10: #{bottleneck_forward.1} parent=0 // pred_check
    _
  $region11: #{bottleneck_forward.1} parent=0 // pred_check_branch
    %17 = sbr.rel (0) target = $region13
  $region12: #{bottleneck_forward.1} parent=0 // pred_region
    _
  $region13: #{bottleneck_forward.1} parent=0 // pred_fallthru
    _
  // Predicated region
  $region14: #{bottleneck_forward.1} parent=0 // pred_check
    _
  $region15: #{bottleneck_forward.1} parent=0 // pred_check_branch
    %19 = sbr.rel (0) target = $region17
  $region16: #{bottleneck_forward.1} parent=0 // pred_region
    _
  $region17: #{bottleneck_forward.1} parent=0 // pred_fallthru
    _
  // Predicated region
  $region18: #{bottleneck_forward.1} parent=0 // pred_check
    _
  $region19: #{bottleneck_forward.1} parent=0 // pred_check_branch
    %21 = sbr.rel (0) target = $region21
  $region20: #{bottleneck_forward.1} parent=0 // pred_region
    _
  $region21: #{bottleneck_forward.1} parent=0 // pred_fallthru
    _
  // Predicated region
  $region22: #{bottleneck_forward.1} parent=0 // pred_check
    _
  $region23: #{bottleneck_forward.1} parent=0 // pred_check_branch
    %23 = sbr.rel (0) target = $region25
  $region24: #{bottleneck_forward.1} parent=0 // pred_region
    _
  $region25: #{bottleneck_forward.1} parent=0 // pred_fallthru
    _
  // Predicated region
  $region26: #{bottleneck_forward.1} parent=0 // pred_check
    _
  $region27: #{bottleneck_forward.1} parent=0 // pred_check_branch
    %25 = sbr.rel (0) target = $region29
  $region28: #{bottleneck_forward.1} parent=0 // pred_region
    _
  $region29: #{bottleneck_forward.1} parent=0 // pred_fallthru
    _
  %v27 = vld [vmem:[%s0] sm:$0xf]
  %v28 = vld [vmem:[%s0 + $0x4] sm:$0xf]
  %v29 = vld [vmem:[%s0 + $0x8] sm:$0xf]
  %v30 = vld [vmem:[%s0 + $0xc] sm:$0xf]
  %v31 = vld [vmem:[%s0 + $0x10] sm:$0xf]
  %v32 = vld [vmem:[%s0 + $0x14] sm:$0xf]
  %v33 = vld [vmem:[%s0 + $0x18] sm:$0xf]
  %v34 = vld [vmem:[%s0 + $0x1c] sm:$0xf]
  %v35 = vld [vmem:[%s0 + $0x20] sm:$0xf]
  %v36 = vld [vmem:[%s0 + $0x24] sm:$0xf]
  %v37 = vld [vmem:[%s0 + $0x28] sm:$0xf]
  %v38 = vld [vmem:[%s0 + $0x2c] sm:$0xf]
  %v39 = vld [vmem:[%s0 + $0x30] sm:$0xf]
  %v40 = vld [vmem:[%s0 + $0x34] sm:$0xf]
  %v41 = vld [vmem:[%s0 + $0x38] sm:$0xf]
  %v42 = vld [vmem:[%s0 + $0x3c] sm:$0xf]
  %v43 = vld [vmem:[%s0 + $0x40] sm:$0xf]
  %v44 = vld [vmem:[%s0 + $0x44] sm:$0xf]
  %v45 = vld [vmem:[%s0 + $0x48] sm:$0xf]
  %v46 = vld [vmem:[%s0 + $0x4c] sm:$0xf]
  %v47 = vld [vmem:[%s0 + $0x50] sm:$0xf]
  %v48 = vld [vmem:[%s0 + $0x54] sm:$0xf]
  %v49 = vld [vmem:[%s0 + $0x58] sm:$0xf]
  %v50 = vld [vmem:[%s0 + $0x5c] sm:$0xf]
  %v51 = vld [vmem:[%s0 + $0x60] sm:$0xf]
  %v52 = vld [vmem:[%s0 + $0x64] sm:$0xf]
  %v53 = vld [vmem:[%s0 + $0x68] sm:$0xf]
  %v54 = vld [vmem:[%s0 + $0x6c] sm:$0xf]
  %v55 = vld [vmem:[%s0 + $0x70] sm:$0xf]
  %v56 = vld [vmem:[%s0 + $0x74] sm:$0xf]
  %v57 = vld [vmem:[%s0 + $0x78] sm:$0xf]
  %v58 = vld [vmem:[%s0 + $0x7c] sm:$0xf]
  %v59 = vld [vmem:[%s0 + $0x80] sm:$0xf]
  %v60 = vld [vmem:[%s0 + $0x84] sm:$0xf]
  %v61 = vld [vmem:[%s0 + $0x88] sm:$0xf]
  %v62 = vld [vmem:[%s0 + $0x8c] sm:$0xf]
  %v63 = vld [vmem:[%s0 + $0x90] sm:$0xf]
  %v64 = vld [vmem:[%s0 + $0x94] sm:$0xf]
  %v65 = vld [vmem:[%s0 + $0x98] sm:$0xf]
  %v66 = vld [vmem:[%s0 + $0x9c] sm:$0xf]
  %v67 = vld [vmem:[%s0 + $0xa0] sm:$0xf]
  %v68 = vld [vmem:[%s0 + $0xa4] sm:$0xf]
  %v69 = vld [vmem:[%s0 + $0xa8] sm:$0xf]
  %v70 = vld [vmem:[%s0 + $0xac] sm:$0xf]
  %v71 = vld [vmem:[%s0 + $0xb0] sm:$0xf]
  %v72 = vld [vmem:[%s0 + $0xb4] sm:$0xf]
  %v73 = vld [vmem:[%s0 + $0xb8] sm:$0xf]
  %v74 = vld [vmem:[%s0 + $0xbc] sm:$0xf]
  %v75 = vld [vmem:[%s0 + $0xc0] sm:$0xf]
  %v76 = vld [vmem:[%s0 + $0xc4] sm:$0xf]
  %v77 = vld [vmem:[%s0 + $0xc8] sm:$0xf]
  %v78 = vld [vmem:[%s0 + $0xcc] sm:$0xf]
  %v79 = vld [vmem:[%s0 + $0xd0] sm:$0xf]
  %v80 = vld [vmem:[%s0 + $0xd4] sm:$0xf]
  %v81 = vld [vmem:[%s0 + $0xd8] sm:$0xf]
  %v82 = vld [vmem:[%s0 + $0xdc] sm:$0xf]
  %v83 = vld [vmem:[%s0 + $0xe0] sm:$0xf]
  %v84 = vld [vmem:[%s0 + $0xe4] sm:$0xf]
  %v85 = vld [vmem:[%s0 + $0xe8] sm:$0xf]
  %v86 = vld [vmem:[%s0 + $0xec] sm:$0xf]
  %v87 = vld [vmem:[%s0 + $0xf0] sm:$0xf]
  %v88 = vld [vmem:[%s0 + $0xf4] sm:$0xf]
  %v89 = vld [vmem:[%s0 + $0xf8] sm:$0xf]
  %v90 = vld [vmem:[%s0 + $0xfc] sm:$0xf]
  %v91 = vld [vmem:[%s1] sm:$0xf]
  %v92 = vld [vmem:[%s1 + $0x4] sm:$0xf]
  %v93 = vld [vmem:[%s2] sm:$0x1]
  %v95 = vlaneseq
  %v96 = vshrl.u32 %v95, 7
  %v97 = vsub.s32 0, %v96
  %v98 = vrot.slane %v93, %v97
  %v164 = vunpack.c.l.b16 %v27
  %v165 = vunpack.c.l.b16 %v28
  %v166 = vunpack.c.l.b16 %v29
  %v167 = vunpack.c.l.b16 %v30
  %v168 = vunpack.c.l.b16 %v31
  %v169 = vunpack.c.l.b16 %v32
  %v170 = vunpack.c.l.b16 %v33
  %v171 = vunpack.c.l.b16 %v34
  %v172 = vunpack.c.l.b16 %v35
  %v173 = vunpack.c.l.b16 %v36
  %v174 = vunpack.c.l.b16 %v37
  %v175 = vunpack.c.l.b16 %v38
  %v176 = vunpack.c.l.b16 %v39
  %v177 = vunpack.c.l.b16 %v40
  %v178 = vunpack.c.l.b16 %v41
  %v179 = vunpack.c.l.b16 %v42
  %v180 = vunpack.c.l.b16 %v43
  %v181 = vunpack.c.l.b16 %v44
  %v182 = vunpack.c.l.b16 %v45
  %v183 = vunpack.c.l.b16 %v46
  %v184 = vunpack.c.l.b16 %v47
  %v185 = vunpack.c.l.b16 %v48
  %v186 = vunpack.c.l.b16 %v49
  %v187 = vunpack.c.l.b16 %v50
  %v188 = vunpack.c.l.b16 %v51
  %v189 = vunpack.c.l.b16 %v52
  %v190 = vunpack.c.l.b16 %v53
  %v191 = vunpack.c.l.b16 %v54
  %v192 = vunpack.c.l.b16 %v55
  %v193 = vunpack.c.l.b16 %v56
  %v194 = vunpack.c.l.b16 %v57
  %v195 = vunpack.c.l.b16 %v58
  %v196 = vunpack.c.l.b16 %v59
  %v197 = vunpack.c.l.b16 %v60
  %v198 = vunpack.c.l.b16 %v61
  %v199 = vunpack.c.l.b16 %v62
  %v200 = vunpack.c.l.b16 %v63
  %v201 = vunpack.c.l.b16 %v64
  %v202 = vunpack.c.l.b16 %v65
  %v203 = vunpack.c.l.b16 %v66
  %v204 = vunpack.c.l.b16 %v67
  %v205 = vunpack.c.l.b16 %v68
  %v206 = vunpack.c.l.b16 %v69
  %v207 = vunpack.c.l.b16 %v70
  %v208 = vunpack.c.l.b16 %v71
  %v209 = vunpack.c.l.b16 %v72
  %v210 = vunpack.c.l.b16 %v73
  %v211 = vunpack.c.l.b16 %v74
  %v212 = vunpack.c.l.b16 %v75
  %v213 = vunpack.c.l.b16 %v76
  %v214 = vunpack.c.l.b16 %v77
  %v215 = vunpack.c.l.b16 %v78
  %v216 = vunpack.c.l.b16 %v79
  %v217 = vunpack.c.l.b16 %v80
  %v218 = vunpack.c.l.b16 %v81
  %v219 = vunpack.c.l.b16 %v82
  %v220 = vunpack.c.l.b16 %v83
  %v221 = vunpack.c.l.b16 %v84
  %v222 = vunpack.c.l.b16 %v85
  %v223 = vunpack.c.l.b16 %v86
  %v224 = vunpack.c.l.b16 %v87
  %v225 = vunpack.c.l.b16 %v88
  %v226 = vunpack.c.l.b16 %v89
  %v227 = vunpack.c.l.b16 %v90
  %v228 = vpack.c.b16 %v165, %v164
  %v229 = vpack.c.b16 %v167, %v166
  %v230 = vpack.c.b16 %v169, %v168
  %v231 = vpack.c.b16 %v171, %v170
  %v232 = vpack.c.b16 %v173, %v172
  %v233 = vpack.c.b16 %v175, %v174
  %v234 = vpack.c.b16 %v177, %v176
  %v235 = vpack.c.b16 %v179, %v178
  %v236 = vpack.c.b16 %v181, %v180
  %v237 = vpack.c.b16 %v183, %v182
  %v238 = vpack.c.b16 %v185, %v184
  %v239 = vpack.c.b16 %v187, %v186
  %v240 = vpack.c.b16 %v189, %v188
  %v241 = vpack.c.b16 %v191, %v190
  %v242 = vpack.c.b16 %v193, %v192
  %v243 = vpack.c.b16 %v195, %v194
  %v244 = vpack.c.b16 %v197, %v196
  %v245 = vpack.c.b16 %v199, %v198
  %v246 = vpack.c.b16 %v201, %v200
  %v247 = vpack.c.b16 %v203, %v202
  %v248 = vpack.c.b16 %v205, %v204
  %v249 = vpack.c.b16 %v207, %v206
  %v250 = vpack.c.b16 %v209, %v208
  %v251 = vpack.c.b16 %v211, %v210
  %v252 = vpack.c.b16 %v213, %v212
  %v253 = vpack.c.b16 %v215, %v214
  %v254 = vpack.c.b16 %v217, %v216
  %v255 = vpack.c.b16 %v219, %v218
  %v256 = vpack.c.b16 %v221, %v220
  %v257 = vpack.c.b16 %v223, %v222
  %v258 = vpack.c.b16 %v225, %v224
  %v259 = vpack.c.b16 %v227, %v226
  %v262 = vunpack.c.l.b16 %v91
  %v263 = vunpack.c.l.b16 %v92
  %v264 = vpack.c.b16 %v263, %v262
  %vm266 = vcmask 130048
  %v268 = vsel %vm266, %v228, 0
  %v271 = vsel %vm266, %v229, 0
  %v274 = vsel %vm266, %v230, 0
  %v277 = vsel %vm266, %v231, 0
  %v280 = vsel %vm266, %v232, 0
  %v283 = vsel %vm266, %v233, 0
  %v286 = vsel %vm266, %v234, 0
  %v289 = vsel %vm266, %v235, 0
  %v292 = vsel %vm266, %v236, 0
  %v295 = vsel %vm266, %v237, 0
  %v298 = vsel %vm266, %v238, 0
  %v301 = vsel %vm266, %v239, 0
  %v304 = vsel %vm266, %v240, 0
  %v307 = vsel %vm266, %v241, 0
  %v310 = vsel %vm266, %v242, 0
  %v313 = vsel %vm266, %v243, 0
  %v316 = vsel %vm266, %v244, 0
  %v319 = vsel %vm266, %v245, 0
  %v322 = vsel %vm266, %v246, 0
  %v325 = vsel %vm266, %v247, 0
  %v328 = vsel %vm266, %v248, 0
  %v331 = vsel %vm266, %v249, 0
  %v334 = vsel %vm266, %v250, 0
  %v337 = vsel %vm266, %v251, 0
  %v340 = vsel %vm266, %v252, 0
  %v343 = vsel %vm266, %v253, 0
  %v346 = vsel %vm266, %v254, 0
  %v349 = vsel %vm266, %v255, 0
  %v352 = vsel %vm266, %v256, 0
  %v355 = vsel %vm266, %v257, 0
  %v358 = vsel %vm266, %v258, 0
  %v361 = vsel %vm266, %v259, 0
  %363 = vmatprep.subr.bf16.mxu0 0
  %364 = vmatpush1.bf16.msra.mxu0 0
  %365 = vmatprep.subr.bf16.mxu0 0
  %366 = vmatpush1.bf16.msra.mxu0 0
  %367 = vmatprep.subr.bf16.mxu0 0
  %368 = vmatpush1.bf16.msra.mxu0 0
  %369 = vmatprep.subr.bf16.mxu0 0
  %370 = vmatpush1.bf16.msra.mxu0 0
  %371 = vmatprep.subr.bf16.mxu0 0
  %372 = vmatpush1.bf16.msra.mxu0 0
  %373 = vmatprep.subr.bf16.mxu0 0
  %374 = vmatpush1.bf16.msra.mxu0 0
  %375 = vmatprep.subr.bf16.mxu0 0
  %376 = vmatpush1.bf16.msra.mxu0 0
  %377 = vmatprep.subr.bf16.mxu0 0
  %378 = vmatpush1.bf16.msra.mxu0 %v264
  %379 = vmatprep.subr.bf16.mxu0 0
  %380 = vmatpush2.bf16.msra.mxu0 0
  %381 = vmatprep.subr.bf16.mxu0 0
  %382 = vmatpush2.bf16.msra.mxu0 0
  %383 = vmatprep.subr.bf16.mxu0 0
  %384 = vmatpush2.bf16.msra.mxu0 0
  %385 = vmatprep.subr.bf16.mxu0 0
  %386 = vmatpush2.bf16.msra.mxu0 0
  %387 = vmatprep.subr.bf16.mxu0 0
  %388 = vmatpush2.bf16.msra.mxu0 0
  %389 = vmatprep.subr.bf16.mxu0 0
  %390 = vmatpush2.bf16.msra.mxu0 0
  %391 = vmatprep.subr.bf16.mxu0 0
  %392 = vmatpush2.bf16.msra.mxu0 0
  %393 = vmatprep.subr.bf16.mxu0 0
  %394 = vmatpush2.bf16.msra.mxu0 0
  %395 = vmatprep.mubr.bf16.mxu0 0
  %396 = vmatmul.mubr.bf16.gmra.mxu0 %v268
  %v397 = vpop.f32.mrf.mxu0
  %v398 = vadd.f32 %v98, %v397
  %v399 = vpop.f32.mrf.mxu0
  %v400 = vpop.f32.mrf.mxu0
  %v401 = vadd.f32 %v98, %v400
  %v402 = vpop.f32.mrf.mxu0
  %403 = vmatprep.mubr.bf16.mxu0 0
  %404 = vmatmul.mubr.bf16.gmra.mxu0 %v271
  %v405 = vpop.f32.mrf.mxu0
  %v406 = vadd.f32 %v98, %v405
  %v407 = vpop.f32.mrf.mxu0
  %v408 = vpop.f32.mrf.mxu0
  %v409 = vadd.f32 %v98, %v408
  %v410 = vpop.f32.mrf.mxu0
  %411 = vmatprep.mubr.bf16.mxu0 0
  %412 = vmatmul.mubr.bf16.gmra.mxu0 %v274
  %v413 = vpop.f32.mrf.mxu0
  %v414 = vadd.f32 %v98, %v413
  %v415 = vpop.f32.mrf.mxu0
  %v416 = vpop.f32.mrf.mxu0
  %v417 = vadd.f32 %v98, %v416
  %v418 = vpop.f32.mrf.mxu0
  %419 = vmatprep.mubr.bf16.mxu0 0
  %420 = vmatmul.mubr.bf16.gmra.mxu0 %v277
  %v421 = vpop.f32.mrf.mxu0
  %v422 = vadd.f32 %v98, %v421
  %v423 = vpop.f32.mrf.mxu0
  %v424 = vpop.f32.mrf.mxu0
  %v425 = vadd.f32 %v98, %v424
  %v426 = vpop.f32.mrf.mxu0
  %427 = vmatprep.mubr.bf16.mxu0 0
  %428 = vmatmul.mubr.bf16.gmra.mxu0 %v280
  %v429 = vpop.f32.mrf.mxu0
  %v430 = vadd.f32 %v98, %v429
  %v431 = vpop.f32.mrf.mxu0
  %v432 = vpop.f32.mrf.mxu0
  %v433 = vadd.f32 %v98, %v432
  %v434 = vpop.f32.mrf.mxu0
  %435 = vmatprep.mubr.bf16.mxu0 0
  %436 = vmatmul.mubr.bf16.gmra.mxu0 %v283
  %v437 = vpop.f32.mrf.mxu0
  %v438 = vadd.f32 %v98, %v437
  %v439 = vpop.f32.mrf.mxu0
  %v440 = vpop.f32.mrf.mxu0
  %v441 = vadd.f32 %v98, %v440
  %v442 = vpop.f32.mrf.mxu0
  %443 = vmatprep.mubr.bf16.mxu0 0
  %444 = vmatmul.mubr.bf16.gmra.mxu0 %v286
  %v445 = vpop.f32.mrf.mxu0
  %v446 = vadd.f32 %v98, %v445
  %v447 = vpop.f32.mrf.mxu0
  %v448 = vpop.f32.mrf.mxu0
  %v449 = vadd.f32 %v98, %v448
  %v450 = vpop.f32.mrf.mxu0
  %451 = vmatprep.mubr.bf16.mxu0 0
  %452 = vmatmul.mubr.bf16.gmra.mxu0 %v289
  %v453 = vpop.f32.mrf.mxu0
  %v454 = vadd.f32 %v98, %v453
  %v455 = vpop.f32.mrf.mxu0
  %v456 = vpop.f32.mrf.mxu0
  %v457 = vadd.f32 %v98, %v456
  %v458 = vpop.f32.mrf.mxu0
  %459 = vmatprep.mubr.bf16.mxu0 0
  %460 = vmatmul.mubr.bf16.gmra.mxu0 %v292
  %v461 = vpop.f32.mrf.mxu0
  %v462 = vadd.f32 %v98, %v461
  %v463 = vpop.f32.mrf.mxu0
  %v464 = vpop.f32.mrf.mxu0
  %v465 = vadd.f32 %v98, %v464
  %v466 = vpop.f32.mrf.mxu0
  %467 = vmatprep.mubr.bf16.mxu0 0
  %468 = vmatmul.mubr.bf16.gmra.mxu0 %v295
  %v469 = vpop.f32.mrf.mxu0
  %v470 = vadd.f32 %v98, %v469
  %v471 = vpop.f32.mrf.mxu0
  %v472 = vpop.f32.mrf.mxu0
  %v473 = vadd.f32 %v98, %v472
  %v474 = vpop.f32.mrf.mxu0
  %475 = vmatprep.mubr.bf16.mxu0 0
  %476 = vmatmul.mubr.bf16.gmra.mxu0 %v298
  %v477 = vpop.f32.mrf.mxu0
  %v478 = vadd.f32 %v98, %v477
  %v479 = vpop.f32.mrf.mxu0
  %v480 = vpop.f32.mrf.mxu0
  %v481 = vadd.f32 %v98, %v480
  %v482 = vpop.f32.mrf.mxu0
  %483 = vmatprep.mubr.bf16.mxu0 0
  %484 = vmatmul.mubr.bf16.gmra.mxu0 %v301
  %v485 = vpop.f32.mrf.mxu0
  %v486 = vadd.f32 %v98, %v485
  %v487 = vpop.f32.mrf.mxu0
  %v488 = vpop.f32.mrf.mxu0
  %v489 = vadd.f32 %v98, %v488
  %v490 = vpop.f32.mrf.mxu0
  %491 = vmatprep.mubr.bf16.mxu0 0
  %492 = vmatmul.mubr.bf16.gmra.mxu0 %v304
  %v493 = vpop.f32.mrf.mxu0
  %v494 = vadd.f32 %v98, %v493
  %v495 = vpop.f32.mrf.mxu0
  %v496 = vpop.f32.mrf.mxu0
  %v497 = vadd.f32 %v98, %v496
  %v498 = vpop.f32.mrf.mxu0
  %499 = vmatprep.mubr.bf16.mxu0 0
  %500 = vmatmul.mubr.bf16.gmra.mxu0 %v307
  %v501 = vpop.f32.mrf.mxu0
  %v502 = vadd.f32 %v98, %v501
  %v503 = vpop.f32.mrf.mxu0
  %v504 = vpop.f32.mrf.mxu0
  %v505 = vadd.f32 %v98, %v504
  %v506 = vpop.f32.mrf.mxu0
  %507 = vmatprep.mubr.bf16.mxu0 0
  %508 = vmatmul.mubr.bf16.gmra.mxu0 %v310
  %v509 = vpop.f32.mrf.mxu0
  %v510 = vadd.f32 %v98, %v509
  %v511 = vpop.f32.mrf.mxu0
  %v512 = vpop.f32.mrf.mxu0
  %v513 = vadd.f32 %v98, %v512
  %v514 = vpop.f32.mrf.mxu0
  %515 = vmatprep.mubr.bf16.mxu0 0
  %516 = vmatmul.mubr.bf16.gmra.mxu0 %v313
  %v517 = vpop.f32.mrf.mxu0
  %v518 = vadd.f32 %v98, %v517
  %v519 = vpop.f32.mrf.mxu0
  %v520 = vpop.f32.mrf.mxu0
  %v521 = vadd.f32 %v98, %v520
  %v522 = vpop.f32.mrf.mxu0
  %523 = vmatprep.mubr.bf16.mxu0 0
  %524 = vmatmul.mubr.bf16.gmra.mxu0 %v316
  %v525 = vpop.f32.mrf.mxu0
  %v526 = vadd.f32 %v98, %v525
  %v527 = vpop.f32.mrf.mxu0
  %v528 = vpop.f32.mrf.mxu0
  %v529 = vadd.f32 %v98, %v528
  %v530 = vpop.f32.mrf.mxu0
  %531 = vmatprep.mubr.bf16.mxu0 0
  %532 = vmatmul.mubr.bf16.gmra.mxu0 %v319
  %v533 = vpop.f32.mrf.mxu0
  %v534 = vadd.f32 %v98, %v533
  %v535 = vpop.f32.mrf.mxu0
  %v536 = vpop.f32.mrf.mxu0
  %v537 = vadd.f32 %v98, %v536
  %v538 = vpop.f32.mrf.mxu0
  %539 = vmatprep.mubr.bf16.mxu0 0
  %540 = vmatmul.mubr.bf16.gmra.mxu0 %v322
  %v541 = vpop.f32.mrf.mxu0
  %v542 = vadd.f32 %v98, %v541
  %v543 = vpop.f32.mrf.mxu0
  %v544 = vpop.f32.mrf.mxu0
  %v545 = vadd.f32 %v98, %v544
  %v546 = vpop.f32.mrf.mxu0
  %547 = vmatprep.mubr.bf16.mxu0 0
  %548 = vmatmul.mubr.bf16.gmra.mxu0 %v325
  %v549 = vpop.f32.mrf.mxu0
  %v550 = vadd.f32 %v98, %v549
  %v551 = vpop.f32.mrf.mxu0
  %v552 = vpop.f32.mrf.mxu0
  %v553 = vadd.f32 %v98, %v552
  %v554 = vpop.f32.mrf.mxu0
  %555 = vmatprep.mubr.bf16.mxu0 0
  %556 = vmatmul.mubr.bf16.gmra.mxu0 %v328
  %v557 = vpop.f32.mrf.mxu0
  %v558 = vadd.f32 %v98, %v557
  %v559 = vpop.f32.mrf.mxu0
  %v560 = vpop.f32.mrf.mxu0
  %v561 = vadd.f32 %v98, %v560
  %v562 = vpop.f32.mrf.mxu0
  %563 = vmatprep.mubr.bf16.mxu0 0
  %564 = vmatmul.mubr.bf16.gmra.mxu0 %v331
  %v565 = vpop.f32.mrf.mxu0
  %v566 = vadd.f32 %v98, %v565
  %v567 = vpop.f32.mrf.mxu0
  %v568 = vpop.f32.mrf.mxu0
  %v569 = vadd.f32 %v98, %v568
  %v570 = vpop.f32.mrf.mxu0
  %571 = vmatprep.mubr.bf16.mxu0 0
  %572 = vmatmul.mubr.bf16.gmra.mxu0 %v334
  %v573 = vpop.f32.mrf.mxu0
  %v574 = vadd.f32 %v98, %v573
  %v575 = vpop.f32.mrf.mxu0
  %v576 = vpop.f32.mrf.mxu0
  %v577 = vadd.f32 %v98, %v576
  %v578 = vpop.f32.mrf.mxu0
  %579 = vmatprep.mubr.bf16.mxu0 0
  %580 = vmatmul.mubr.bf16.gmra.mxu0 %v337
  %v581 = vpop.f32.mrf.mxu0
  %v582 = vadd.f32 %v98, %v581
  %v583 = vpop.f32.mrf.mxu0
  %v584 = vpop.f32.mrf.mxu0
  %v585 = vadd.f32 %v98, %v584
  %v586 = vpop.f32.mrf.mxu0
  %587 = vmatprep.mubr.bf16.mxu0 0
  %588 = vmatmul.mubr.bf16.gmra.mxu0 %v340
  %v589 = vpop.f32.mrf.mxu0
  %v590 = vadd.f32 %v98, %v589
  %v591 = vpop.f32.mrf.mxu0
  %v592 = vpop.f32.mrf.mxu0
  %v593 = vadd.f32 %v98, %v592
  %v594 = vpop.f32.mrf.mxu0
  %595 = vmatprep.mubr.bf16.mxu0 0
  %596 = vmatmul.mubr.bf16.gmra.mxu0 %v343
  %v597 = vpop.f32.mrf.mxu0
  %v598 = vadd.f32 %v98, %v597
  %v599 = vpop.f32.mrf.mxu0
  %v600 = vpop.f32.mrf.mxu0
  %v601 = vadd.f32 %v98, %v600
  %v602 = vpop.f32.mrf.mxu0
  %603 = vmatprep.mubr.bf16.mxu0 0
  %604 = vmatmul.mubr.bf16.gmra.mxu0 %v346
  %v605 = vpop.f32.mrf.mxu0
  %v606 = vadd.f32 %v98, %v605
  %v607 = vpop.f32.mrf.mxu0
  %v608 = vpop.f32.mrf.mxu0
  %v609 = vadd.f32 %v98, %v608
  %v610 = vpop.f32.mrf.mxu0
  %611 = vmatprep.mubr.bf16.mxu0 0
  %612 = vmatmul.mubr.bf16.gmra.mxu0 %v349
  %v613 = vpop.f32.mrf.mxu0
  %v614 = vadd.f32 %v98, %v613
  %v615 = vpop.f32.mrf.mxu0
  %v616 = vpop.f32.mrf.mxu0
  %v617 = vadd.f32 %v98, %v616
  %v618 = vpop.f32.mrf.mxu0
  %619 = vmatprep.mubr.bf16.mxu0 0
  %620 = vmatmul.mubr.bf16.gmra.mxu0 %v352
  %v621 = vpop.f32.mrf.mxu0
  %v622 = vadd.f32 %v98, %v621
  %v623 = vpop.f32.mrf.mxu0
  %v624 = vpop.f32.mrf.mxu0
  %v625 = vadd.f32 %v98, %v624
  %v626 = vpop.f32.mrf.mxu0
  %627 = vmatprep.mubr.bf16.mxu0 0
  %628 = vmatmul.mubr.bf16.gmra.mxu0 %v355
  %v629 = vpop.f32.mrf.mxu0
  %v630 = vadd.f32 %v98, %v629
  %v631 = vpop.f32.mrf.mxu0
  %v632 = vpop.f32.mrf.mxu0
  %v633 = vadd.f32 %v98, %v632
  %v634 = vpop.f32.mrf.mxu0
  %635 = vmatprep.mubr.bf16.mxu0 0
  %636 = vmatmul.mubr.bf16.gmra.mxu0 %v358
  %v637 = vpop.f32.mrf.mxu0
  %v638 = vadd.f32 %v98, %v637
  %v639 = vpop.f32.mrf.mxu0
  %v640 = vpop.f32.mrf.mxu0
  %v641 = vadd.f32 %v98, %v640
  %v642 = vpop.f32.mrf.mxu0
  %643 = vmatprep.mubr.bf16.mxu0 0
  %644 = vmatmul.mubr.bf16.gmra.mxu0 %v361
  %v645 = vpop.f32.mrf.mxu0
  %v646 = vadd.f32 %v98, %v645
  %v647 = vpop.f32.mrf.mxu0
  %v648 = vpop.f32.mrf.mxu0
  %v649 = vadd.f32 %v98, %v648
  %v650 = vpop.f32.mrf.mxu0
  %651 = vdwg.mxu0
  %v652 = vmax.f32 %v398, 0.0
  %v653 = vmax.f32 %v401, 0.0
  %v654 = vmax.f32 %v406, 0.0
  %v655 = vmax.f32 %v409, 0.0
  %v656 = vmax.f32 %v414, 0.0
  %v657 = vmax.f32 %v417, 0.0
  %v658 = vmax.f32 %v422, 0.0
  %v659 = vmax.f32 %v425, 0.0
  %v660 = vmax.f32 %v430, 0.0
  %v661 = vmax.f32 %v433, 0.0
  %v662 = vmax.f32 %v438, 0.0
  %v663 = vmax.f32 %v441, 0.0
  %v664 = vmax.f32 %v446, 0.0
  %v665 = vmax.f32 %v449, 0.0
  %v666 = vmax.f32 %v454, 0.0
  %v667 = vmax.f32 %v457, 0.0
  %v668 = vmax.f32 %v462, 0.0
  %v669 = vmax.f32 %v465, 0.0
  %v670 = vmax.f32 %v470, 0.0
  %v671 = vmax.f32 %v473, 0.0
  %v672 = vmax.f32 %v478, 0.0
  %v673 = vmax.f32 %v481, 0.0
  %v674 = vmax.f32 %v486, 0.0
  %v675 = vmax.f32 %v489, 0.0
  %v676 = vmax.f32 %v494, 0.0
  %v677 = vmax.f32 %v497, 0.0
  %v678 = vmax.f32 %v502, 0.0
  %v679 = vmax.f32 %v505, 0.0
  %v680 = vmax.f32 %v510, 0.0
  %v681 = vmax.f32 %v513, 0.0
  %v682 = vmax.f32 %v518, 0.0
  %v683 = vmax.f32 %v521, 0.0
  %v684 = vmax.f32 %v526, 0.0
  %v685 = vmax.f32 %v529, 0.0
  %v686 = vmax.f32 %v534, 0.0
  %v687 = vmax.f32 %v537, 0.0
  %v688 = vmax.f32 %v542, 0.0
  %v689 = vmax.f32 %v545, 0.0
  %v690 = vmax.f32 %v550, 0.0
  %v691 = vmax.f32 %v553, 0.0
  %v692 = vmax.f32 %v558, 0.0
  %v693 = vmax.f32 %v561, 0.0
  %v694 = vmax.f32 %v566, 0.0
  %v695 = vmax.f32 %v569, 0.0
  %v696 = vmax.f32 %v574, 0.0
  %v697 = vmax.f32 %v577, 0.0
  %v698 = vmax.f32 %v582, 0.0
  %v699 = vmax.f32 %v585, 0.0
  %v700 = vmax.f32 %v590, 0.0
  %v701 = vmax.f32 %v593, 0.0
  %v702 = vmax.f32 %v598, 0.0
  %v703 = vmax.f32 %v601, 0.0
  %v704 = vmax.f32 %v606, 0.0
  %v705 = vmax.f32 %v609, 0.0
  %v706 = vmax.f32 %v614, 0.0
  %v707 = vmax.f32 %v617, 0.0
  %v708 = vmax.f32 %v622, 0.0
  %v709 = vmax.f32 %v625, 0.0
  %v710 = vmax.f32 %v630, 0.0
  %v711 = vmax.f32 %v633, 0.0
  %v712 = vmax.f32 %v638, 0.0
  %v713 = vmax.f32 %v641, 0.0
  %v714 = vmax.f32 %v646, 0.0
  %v715 = vmax.f32 %v649, 0.0
  %v716 = vpack.c.bf16 %v653, %v652
  %v717 = vpack.c.bf16 %v655, %v654
  %v718 = vpack.c.bf16 %v657, %v656
  %v719 = vpack.c.bf16 %v659, %v658
  %v720 = vpack.c.bf16 %v661, %v660
  %v721 = vpack.c.bf16 %v663, %v662
  %v722 = vpack.c.bf16 %v665, %v664
  %v723 = vpack.c.bf16 %v667, %v666
  %v724 = vpack.c.bf16 %v669, %v668
  %v725 = vpack.c.bf16 %v671, %v670
  %v726 = vpack.c.bf16 %v673, %v672
  %v727 = vpack.c.bf16 %v675, %v674
  %v728 = vpack.c.bf16 %v677, %v676
  %v729 = vpack.c.bf16 %v679, %v678
  %v730 = vpack.c.bf16 %v681, %v680
  %v731 = vpack.c.bf16 %v683, %v682
  %v732 = vpack.c.bf16 %v685, %v684
  %v733 = vpack.c.bf16 %v687, %v686
  %v734 = vpack.c.bf16 %v689, %v688
  %v735 = vpack.c.bf16 %v691, %v690
  %v736 = vpack.c.bf16 %v693, %v692
  %v737 = vpack.c.bf16 %v695, %v694
  %v738 = vpack.c.bf16 %v697, %v696
  %v739 = vpack.c.bf16 %v699, %v698
  %v740 = vpack.c.bf16 %v701, %v700
  %v741 = vpack.c.bf16 %v703, %v702
  %v742 = vpack.c.bf16 %v705, %v704
  %v743 = vpack.c.bf16 %v707, %v706
  %v744 = vpack.c.bf16 %v709, %v708
  %v745 = vpack.c.bf16 %v711, %v710
  %v746 = vpack.c.bf16 %v713, %v712
  %v747 = vpack.c.bf16 %v715, %v714
  %vm748 = vcmask 27648
  %749 = vst.msk [vmem:[#allocation2] sm:$0xf] %vm748, 0
  %750 = vst.msk [vmem:[#allocation2 + $0x4] sm:$0xf] %vm748, 0
  %vm751 = vcmask 25600
  %vm752 = vsmask.f32 1280
  %vm753 = vmand %vm751, %vm752
  %v754 = vld [vmem:[#allocation2 + $0x8] sm:$0x3]
  %v755 = vsel %vm753, 0, %v754
  %756 = vst [vmem:[#allocation2 + $0x8] sm:$0x3] %v755
  %vm757 = vcmask 27649
  %758 = vst.msk [vmem:[#allocation2 + $0x98] sm:$0xe] %vm757, 0
  %759 = vst.msk [vmem:[#allocation2 + $0x9c] sm:$0xf] %vm748, 0
  %760 = vst.msk [vmem:[#allocation2 + $0xa0] sm:$0xf] %vm748, 0
  %vm761 = vcmask 26625
  %vm762 = vsmask.f32 2310
  %vm763 = vmand %vm761, %vm762
  %v764 = vld [vmem:[#allocation2 + $0x10] sm:$0x6]
  %v765 = vsel %vm763, 0, %v764
  %766 = vst [vmem:[#allocation2 + $0x10] sm:$0x6] %v765
  %vm767 = vcmask 27650
  %vm768 = vsmask.f32 3338
  %vm769 = vmand %vm767, %vm768
  %v770 = vld [vmem:[#allocation2 + $0x18] sm:$0xc]
  %v771 = vsel %vm769, 0, %v770
  %772 = vst [vmem:[#allocation2 + $0x18] sm:$0xc] %v771
  %vm773 = vcmask 27651
  %vm774 = vsmask.f32 7950
  %vm775 = vmand %vm773, %vm774
  %v776 = vld [vmem:[#allocation2 + $0x20] sm:$0x8]
  %v777 = vsel %vm775, 0, %v776
  %778 = vst [vmem:[#allocation2 + $0x20] sm:$0x8] %v777
  %vm779 = vcmask 24576
  %vm780 = vsmask.f32 256
  %vm781 = vmand %vm779, %vm780
  %v782 = vld [vmem:[#allocation2 + $0x24] sm:$0x1]
  %v783 = vsel %vm781, 0, %v782
  %784 = vst [vmem:[#allocation2 + $0x24] sm:$0x1] %v783
  %vm785 = vsmask.f32 1282
  %vm786 = vmand %vm751, %vm785
  %v787 = vld [vmem:[#allocation2 + $0x2c] sm:$0x3]
  %v788 = vsel %vm786, 0, %v787
  %789 = vst [vmem:[#allocation2 + $0x2c] sm:$0x3] %v788
  %v790 = vld [vmem:[#allocation2 + $0x34] sm:$0x6]
  %v791 = vsel %vm763, 0, %v790
  %792 = vst [vmem:[#allocation2 + $0x34] sm:$0x6] %v791
  %v793 = vld [vmem:[#allocation2 + $0x3c] sm:$0xc]
  %v794 = vsel %vm769, 0, %v793
  %795 = vst [vmem:[#allocation2 + $0x3c] sm:$0xc] %v794
  %v796 = vld [vmem:[#allocation2 + $0x44] sm:$0x8]
  %v797 = vsel %vm775, 0, %v796
  %798 = vst [vmem:[#allocation2 + $0x44] sm:$0x8] %v797
  %v799 = vld [vmem:[#allocation2 + $0x48] sm:$0x1]
  %v800 = vsel %vm781, 0, %v799
  %801 = vst [vmem:[#allocation2 + $0x48] sm:$0x1] %v800
  %v802 = vld [vmem:[#allocation2 + $0x50] sm:$0x3]
  %v803 = vsel %vm786, 0, %v802
  %804 = vst [vmem:[#allocation2 + $0x50] sm:$0x3] %v803
  %v805 = vld [vmem:[#allocation2 + $0x58] sm:$0x6]
  %v806 = vsel %vm763, 0, %v805
  %807 = vst [vmem:[#allocation2 + $0x58] sm:$0x6] %v806
  %v808 = vld [vmem:[#allocation2 + $0x60] sm:$0xc]
  %v809 = vsel %vm769, 0, %v808
  %810 = vst [vmem:[#allocation2 + $0x60] sm:$0xc] %v809
  %v811 = vld [vmem:[#allocation2 + $0x68] sm:$0x8]
  %v812 = vsel %vm775, 0, %v811
  %813 = vst [vmem:[#allocation2 + $0x68] sm:$0x8] %v812
  %v814 = vld [vmem:[#allocation2 + $0x6c] sm:$0x1]
  %v815 = vsel %vm781, 0, %v814
  %816 = vst [vmem:[#allocation2 + $0x6c] sm:$0x1] %v815
  %v817 = vld [vmem:[#allocation2 + $0x74] sm:$0x3]
  %v818 = vsel %vm786, 0, %v817
  %819 = vst [vmem:[#allocation2 + $0x74] sm:$0x3] %v818
  %v820 = vld [vmem:[#allocation2 + $0x7c] sm:$0x6]
  %v821 = vsel %vm763, 0, %v820
  %822 = vst [vmem:[#allocation2 + $0x7c] sm:$0x6] %v821
  %v823 = vld [vmem:[#allocation2 + $0x84] sm:$0xc]
  %v824 = vsel %vm769, 0, %v823
  %825 = vst [vmem:[#allocation2 + $0x84] sm:$0xc] %v824
  %v826 = vld [vmem:[#allocation2 + $0x8c] sm:$0x8]
  %v827 = vsel %vm775, 0, %v826
  %828 = vst [vmem:[#allocation2 + $0x8c] sm:$0x8] %v827
  %v829 = vld [vmem:[#allocation2 + $0x90] sm:$0x1]
  %v830 = vsel %vm781, 0, %v829
  %831 = vst [vmem:[#allocation2 + $0x90] sm:$0x1] %v830
  %v832 = vld [vmem:[#allocation2 + $0x98] sm:$0x3]
  %v833 = vsel %vm786, 0, %v832
  %834 = vst [vmem:[#allocation2 + $0x98] sm:$0x3] %v833
  %v836 = vunpack.c.l.b16 %v716
  %v837 = vunpack.c.h.b16 %v716
  %v838 = vpack.c.b16 %v836, %v836
  %v839 = vpack.c.b16 %v837, %v837
  %vm840 = vsmask.f32 5392
  %vm841 = vmor %vm752, %vm840
  %v843 = vshrl.u32 %v838, 16
  %v845 = vrot.slane %v843, 6
  %v846 = vshll.u32 %v838, 16
  %v848 = vrot.slane %v846, 7
  %v849 = vor.u32 %v845, %v848
  %v850 = vrot.slane %v849, 4
  %v852 = vshrl.u32 %v839, 16
  %v854 = vrot.slane %v852, 6
  %v855 = vshll.u32 %v839, 16
  %v857 = vrot.slane %v855, 7
  %v858 = vor.u32 %v854, %v857
  %v859 = vsel %vm841, %v850, %v858
  %v860 = vrot.slane %v858, 4
  %vm864 = vcmask 27649
  %vm865 = vsmask.f32 7942
  %vm866 = vmand %vm864, %vm865
  %v867 = vld [vmem:[#allocation2 + $0x8] sm:$0xe]
  %v868 = vsel %vm866, %v849, %v867
  %869 = vst [vmem:[#allocation2 + $0x8] sm:$0xe] %v868
  %870 = vst.msk [vmem:[#allocation2 + $0xc] sm:$0xf] %vm748, %v859
  %v871 = vld [vmem:[#allocation2 + $0x10] sm:$0x3]
  %v872 = vsel %vm753, %v860, %v871
  %873 = vst [vmem:[#allocation2 + $0x10] sm:$0x3] %v872
  %v875 = vunpack.c.l.b16 %v717
  %v876 = vunpack.c.h.b16 %v717
  %v877 = vpack.c.b16 %v875, %v875
  %v878 = vpack.c.b16 %v876, %v876
  %vm879 = vsmask.f32 2304
  %vm880 = vsmask.f32 6416
  %vm881 = vmor %vm879, %vm880
  %v883 = vshrl.u32 %v877, 16
  %v885 = vrot.slane %v883, 5
  %v886 = vshll.u32 %v877, 16
  %v888 = vrot.slane %v886, 6
  %v889 = vor.u32 %v885, %v888
  %v890 = vrot.slane %v889, 4
  %v892 = vshrl.u32 %v878, 16
  %v894 = vrot.slane %v892, 5
  %v895 = vshll.u32 %v878, 16
  %v897 = vrot.slane %v895, 6
  %v898 = vor.u32 %v894, %v897
  %v899 = vsel %vm881, %v890, %v898
  %v900 = vrot.slane %v898, 4
  %vm904 = vsmask.f32 7946
  %vm905 = vmand %vm767, %vm904
  %v906 = vld [vmem:[#allocation2 + $0x10] sm:$0xc]
  %v907 = vsel %vm905, %v889, %v906
  %908 = vst [vmem:[#allocation2 + $0x10] sm:$0xc] %v907
  %909 = vst.msk [vmem:[#allocation2 + $0x14] sm:$0xf] %vm748, %v899
  %vm910 = vcmask 26624
  %vm911 = vmand %vm910, %vm879
  %v912 = vld [vmem:[#allocation2 + $0x18] sm:$0x7]
  %v913 = vsel %vm911, %v900, %v912
  %914 = vst [vmem:[#allocation2 + $0x18] sm:$0x7] %v913
  %v916 = vunpack.c.l.b16 %v718
  %v917 = vunpack.c.h.b16 %v718
  %v918 = vpack.c.b16 %v916, %v916
  %v919 = vpack.c.b16 %v917, %v917
  %vm920 = vsmask.f32 3328
  %vm921 = vsmask.f32 7440
  %vm922 = vmor %vm920, %vm921
  %v924 = vshll.u32 %v918, 16
  %v926 = vrot.slane %v924, 5
  %v927 = vshrl.u32 %v918, 16
  %v929 = vrot.slane %v927, 4
  %v930 = vor.u32 %v929, %v926
  %v931 = vrot.slane %v930, 4
  %v933 = vshll.u32 %v919, 16
  %v935 = vrot.slane %v933, 5
  %v936 = vsel %vm922, %v931, %v935
  %v937 = vshrl.u32 %v919, 16
  %v939 = vrot.slane %v937, 4
  %v940 = vor.u32 %v939, %v935
  %v941 = vrot.slane %v940, 4
  %v945 = vld [vmem:[#allocation2 + $0x18] sm:$0x8]
  %v946 = vsel %vm775, %v926, %v945
  %947 = vst [vmem:[#allocation2 + $0x18] sm:$0x8] %v946
  %948 = vst.msk [vmem:[#allocation2 + $0x1c] sm:$0xf] %vm748, %v936
  %vm949 = vcmask 27648
  %vm950 = vmand %vm949, %vm920
  %v951 = vld [vmem:[#allocation2 + $0x20] sm:$0xf]
  %v952 = vsel %vm950, %v941, %v951
  %953 = vst [vmem:[#allocation2 + $0x20] sm:$0xf] %v952
  %v955 = vunpack.c.l.b16 %v719
  %v956 = vunpack.c.h.b16 %v719
  %v957 = vpack.c.b16 %v955, %v955
  %v958 = vpack.c.b16 %v956, %v956
  %vm959 = vsmask.f32 4368
  %vm960 = vmor %vm780, %vm959
  %v962 = vshrl.u32 %v957, 16
  %v964 = vrot.slane %v962, 7
  %v965 = vshll.u32 %v957, 16
  %v967 = vor.u32 %v964, %v965
  %v968 = vrot.slane %v964, 4
  %v970 = vshrl.u32 %v958, 16
  %v972 = vrot.slane %v970, 7
  %v973 = vshll.u32 %v958, 16
  %v975 = vor.u32 %v972, %v973
  %v976 = vsel %vm960, %v968, %v975
  %v977 = vrot.slane %v972, 4
  %vm981 = vsmask.f32 7938
  %vm982 = vmand %vm949, %vm981
  %v983 = vld [vmem:[#allocation2 + $0x24] sm:$0xf]
  %v984 = vsel %vm982, %v967, %v983
  %985 = vst [vmem:[#allocation2 + $0x24] sm:$0xf] %v984
  %986 = vst.msk [vmem:[#allocation2 + $0x28] sm:$0xf] %vm748, %v976
  %v987 = vld [vmem:[#allocation2 + $0x2c] sm:$0x1]
  %v988 = vsel %vm781, %v977, %v987
  %989 = vst [vmem:[#allocation2 + $0x2c] sm:$0x1] %v988
  %v991 = vunpack.c.l.b16 %v720
  %v992 = vunpack.c.h.b16 %v720
  %v993 = vpack.c.b16 %v991, %v991
  %v994 = vpack.c.b16 %v992, %v992
  %v996 = vshrl.u32 %v993, 16
  %v998 = vrot.slane %v996, 6
  %v999 = vshll.u32 %v993, 16
  %v1001 = vrot.slane %v999, 7
  %v1002 = vor.u32 %v998, %v1001
  %v1003 = vrot.slane %v1002, 4
  %v1005 = vshrl.u32 %v994, 16
  %v1007 = vrot.slane %v1005, 6
  %v1008 = vshll.u32 %v994, 16
  %v1010 = vrot.slane %v1008, 7
  %v1011 = vor.u32 %v1007, %v1010
  %v1012 = vsel %vm841, %v1003, %v1011
  %v1013 = vrot.slane %v1011, 4
  %v1017 = vld [vmem:[#allocation2 + $0x2c] sm:$0xe]
  %v1018 = vsel %vm866, %v1002, %v1017
  %1019 = vst [vmem:[#allocation2 + $0x2c] sm:$0xe] %v1018
  %1020 = vst.msk [vmem:[#allocation2 + $0x30] sm:$0xf] %vm748, %v1012
  %v1021 = vld [vmem:[#allocation2 + $0x34] sm:$0x3]
  %v1022 = vsel %vm753, %v1013, %v1021
  %1023 = vst [vmem:[#allocation2 + $0x34] sm:$0x3] %v1022
  %v1025 = vunpack.c.l.b16 %v721
  %v1026 = vunpack.c.h.b16 %v721
  %v1027 = vpack.c.b16 %v1025, %v1025
  %v1028 = vpack.c.b16 %v1026, %v1026
  %v1030 = vshrl.u32 %v1027, 16
  %v1032 = vrot.slane %v1030, 5
  %v1033 = vshll.u32 %v1027, 16
  %v1035 = vrot.slane %v1033, 6
  %v1036 = vor.u32 %v1032, %v1035
  %v1037 = vrot.slane %v1036, 4
  %v1039 = vshrl.u32 %v1028, 16
  %v1041 = vrot.slane %v1039, 5
  %v1042 = vshll.u32 %v1028, 16
  %v1044 = vrot.slane %v1042, 6
  %v1045 = vor.u32 %v1041, %v1044
  %v1046 = vsel %vm881, %v1037, %v1045
  %v1047 = vrot.slane %v1045, 4
  %v1051 = vld [vmem:[#allocation2 + $0x34] sm:$0xc]
  %v1052 = vsel %vm905, %v1036, %v1051
  %1053 = vst [vmem:[#allocation2 + $0x34] sm:$0xc] %v1052
  %1054 = vst.msk [vmem:[#allocation2 + $0x38] sm:$0xf] %vm748, %v1046
  %v1055 = vld [vmem:[#allocation2 + $0x3c] sm:$0x7]
  %v1056 = vsel %vm911, %v1047, %v1055
  %1057 = vst [vmem:[#allocation2 + $0x3c] sm:$0x7] %v1056
  %v1059 = vunpack.c.l.b16 %v722
  %v1060 = vunpack.c.h.b16 %v722
  %v1061 = vpack.c.b16 %v1059, %v1059
  %v1062 = vpack.c.b16 %v1060, %v1060
  %v1064 = vshll.u32 %v1061, 16
  %v1066 = vrot.slane %v1064, 5
  %v1067 = vshrl.u32 %v1061, 16
  %v1069 = vrot.slane %v1067, 4
  %v1070 = vor.u32 %v1069, %v1066
  %v1071 = vrot.slane %v1070, 4
  %v1073 = vshll.u32 %v1062, 16
  %v1075 = vrot.slane %v1073, 5
  %v1076 = vsel %vm922, %v1071, %v1075
  %v1077 = vshrl.u32 %v1062, 16
  %v1079 = vrot.slane %v1077, 4
  %v1080 = vor.u32 %v1079, %v1075
  %v1081 = vrot.slane %v1080, 4
  %v1085 = vld [vmem:[#allocation2 + $0x3c] sm:$0x8]
  %v1086 = vsel %vm775, %v1066, %v1085
  %1087 = vst [vmem:[#allocation2 + $0x3c] sm:$0x8] %v1086
  %1088 = vst.msk [vmem:[#allocation2 + $0x40] sm:$0xf] %vm748, %v1076
  %v1089 = vld [vmem:[#allocation2 + $0x44] sm:$0xf]
  %v1090 = vsel %vm950, %v1081, %v1089
  %1091 = vst [vmem:[#allocation2 + $0x44] sm:$0xf] %v1090
  %v1093 = vunpack.c.l.b16 %v723
  %v1094 = vunpack.c.h.b16 %v723
  %v1095 = vpack.c.b16 %v1093, %v1093
  %v1096 = vpack.c.b16 %v1094, %v1094
  %v1098 = vshrl.u32 %v1095, 16
  %v1100 = vrot.slane %v1098, 7
  %v1101 = vshll.u32 %v1095, 16
  %v1103 = vor.u32 %v1100, %v1101
  %v1104 = vrot.slane %v1100, 4
  %v1106 = vshrl.u32 %v1096, 16
  %v1108 = vrot.slane %v1106, 7
  %v1109 = vshll.u32 %v1096, 16
  %v1111 = vor.u32 %v1108, %v1109
  %v1112 = vsel %vm960, %v1104, %v1111
  %v1113 = vrot.slane %v1108, 4
  %v1117 = vld [vmem:[#allocation2 + $0x48] sm:$0xf]
  %v1118 = vsel %vm982, %v1103, %v1117
  %1119 = vst [vmem:[#allocation2 + $0x48] sm:$0xf] %v1118
  %1120 = vst.msk [vmem:[#allocation2 + $0x4c] sm:$0xf] %vm748, %v1112
  %v1121 = vld [vmem:[#allocation2 + $0x50] sm:$0x1]
  %v1122 = vsel %vm781, %v1113, %v1121
  %1123 = vst [vmem:[#allocation2 + $0x50] sm:$0x1] %v1122
  %v1125 = vunpack.c.l.b16 %v724
  %v1126 = vunpack.c.h.b16 %v724
  %v1127 = vpack.c.b16 %v1125, %v1125
  %v1128 = vpack.c.b16 %v1126, %v1126
  %v1130 = vshrl.u32 %v1127, 16
  %v1132 = vrot.slane %v1130, 6
  %v1133 = vshll.u32 %v1127, 16
  %v1135 = vrot.slane %v1133, 7
  %v1136 = vor.u32 %v1132, %v1135
  %v1137 = vrot.slane %v1136, 4
  %v1139 = vshrl.u32 %v1128, 16
  %v1141 = vrot.slane %v1139, 6
  %v1142 = vshll.u32 %v1128, 16
  %v1144 = vrot.slane %v1142, 7
  %v1145 = vor.u32 %v1141, %v1144
  %v1146 = vsel %vm841, %v1137, %v1145
  %v1147 = vrot.slane %v1145, 4
  %v1151 = vld [vmem:[#allocation2 + $0x50] sm:$0xe]
  %v1152 = vsel %vm866, %v1136, %v1151
  %1153 = vst [vmem:[#allocation2 + $0x50] sm:$0xe] %v1152
  %1154 = vst.msk [vmem:[#allocation2 + $0x54] sm:$0xf] %vm748, %v1146
  %v1155 = vld [vmem:[#allocation2 + $0x58] sm:$0x3]
  %v1156 = vsel %vm753, %v1147, %v1155
  %1157 = vst [vmem:[#allocation2 + $0x58] sm:$0x3] %v1156
  %v1159 = vunpack.c.l.b16 %v725
  %v1160 = vunpack.c.h.b16 %v725
  %v1161 = vpack.c.b16 %v1159, %v1159
  %v1162 = vpack.c.b16 %v1160, %v1160
  %v1164 = vshrl.u32 %v1161, 16
  %v1166 = vrot.slane %v1164, 5
  %v1167 = vshll.u32 %v1161, 16
  %v1169 = vrot.slane %v1167, 6
  %v1170 = vor.u32 %v1166, %v1169
  %v1171 = vrot.slane %v1170, 4
  %v1173 = vshrl.u32 %v1162, 16
  %v1175 = vrot.slane %v1173, 5
  %v1176 = vshll.u32 %v1162, 16
  %v1178 = vrot.slane %v1176, 6
  %v1179 = vor.u32 %v1175, %v1178
  %v1180 = vsel %vm881, %v1171, %v1179
  %v1181 = vrot.slane %v1179, 4
  %v1185 = vld [vmem:[#allocation2 + $0x58] sm:$0xc]
  %v1186 = vsel %vm905, %v1170, %v1185
  %1187 = vst [vmem:[#allocation2 + $0x58] sm:$0xc] %v1186
  %1188 = vst.msk [vmem:[#allocation2 + $0x5c] sm:$0xf] %vm748, %v1180
  %v1189 = vld [vmem:[#allocation2 + $0x60] sm:$0x7]
  %v1190 = vsel %vm911, %v1181, %v1189
  %1191 = vst [vmem:[#allocation2 + $0x60] sm:$0x7] %v1190
  %v1193 = vunpack.c.l.b16 %v726
  %v1194 = vunpack.c.h.b16 %v726
  %v1195 = vpack.c.b16 %v1193, %v1193
  %v1196 = vpack.c.b16 %v1194, %v1194
  %v1198 = vshll.u32 %v1195, 16
  %v1200 = vrot.slane %v1198, 5
  %v1201 = vshrl.u32 %v1195, 16
  %v1203 = vrot.slane %v1201, 4
  %v1204 = vor.u32 %v1203, %v1200
  %v1205 = vrot.slane %v1204, 4
  %v1207 = vshll.u32 %v1196, 16
  %v1209 = vrot.slane %v1207, 5
  %v1210 = vsel %vm922, %v1205, %v1209
  %v1211 = vshrl.u32 %v1196, 16
  %v1213 = vrot.slane %v1211, 4
  %v1214 = vor.u32 %v1213, %v1209
  %v1215 = vrot.slane %v1214, 4
  %v1219 = vld [vmem:[#allocation2 + $0x60] sm:$0x8]
  %v1220 = vsel %vm775, %v1200, %v1219
  %1221 = vst [vmem:[#allocation2 + $0x60] sm:$0x8] %v1220
  %1222 = vst.msk [vmem:[#allocation2 + $0x64] sm:$0xf] %vm748, %v1210
  %v1223 = vld [vmem:[#allocation2 + $0x68] sm:$0xf]
  %v1224 = vsel %vm950, %v1215, %v1223
  %1225 = vst [vmem:[#allocation2 + $0x68] sm:$0xf] %v1224
  %v1227 = vunpack.c.l.b16 %v727
  %v1228 = vunpack.c.h.b16 %v727
  %v1229 = vpack.c.b16 %v1227, %v1227
  %v1230 = vpack.c.b16 %v1228, %v1228
  %v1232 = vshrl.u32 %v1229, 16
  %v1234 = vrot.slane %v1232, 7
  %v1235 = vshll.u32 %v1229, 16
  %v1237 = vor.u32 %v1234, %v1235
  %v1238 = vrot.slane %v1234, 4
  %v1240 = vshrl.u32 %v1230, 16
  %v1242 = vrot.slane %v1240, 7
  %v1243 = vshll.u32 %v1230, 16
  %v1245 = vor.u32 %v1242, %v1243
  %v1246 = vsel %vm960, %v1238, %v1245
  %v1247 = vrot.slane %v1242, 4
  %v1251 = vld [vmem:[#allocation2 + $0x6c] sm:$0xf]
  %v1252 = vsel %vm982, %v1237, %v1251
  %1253 = vst [vmem:[#allocation2 + $0x6c] sm:$0xf] %v1252
  %1254 = vst.msk [vmem:[#allocation2 + $0x70] sm:$0xf] %vm748, %v1246
  %v1255 = vld [vmem:[#allocation2 + $0x74] sm:$0x1]
  %v1256 = vsel %vm781, %v1247, %v1255
  %1257 = vst [vmem:[#allocation2 + $0x74] sm:$0x1] %v1256
  %v1259 = vunpack.c.l.b16 %v728
  %v1260 = vunpack.c.h.b16 %v728
  %v1261 = vpack.c.b16 %v1259, %v1259
  %v1262 = vpack.c.b16 %v1260, %v1260
  %v1264 = vshrl.u32 %v1261, 16
  %v1266 = vrot.slane %v1264, 6
  %v1267 = vshll.u32 %v1261, 16
  %v1269 = vrot.slane %v1267, 7
  %v1270 = vor.u32 %v1266, %v1269
  %v1271 = vrot.slane %v1270, 4
  %v1273 = vshrl.u32 %v1262, 16
  %v1275 = vrot.slane %v1273, 6
  %v1276 = vshll.u32 %v1262, 16
  %v1278 = vrot.slane %v1276, 7
  %v1279 = vor.u32 %v1275, %v1278
  %v1280 = vsel %vm841, %v1271, %v1279
  %v1281 = vrot.slane %v1279, 4
  %v1285 = vld [vmem:[#allocation2 + $0x74] sm:$0xe]
  %v1286 = vsel %vm866, %v1270, %v1285
  %1287 = vst [vmem:[#allocation2 + $0x74] sm:$0xe] %v1286
  %1288 = vst.msk [vmem:[#allocation2 + $0x78] sm:$0xf] %vm748, %v1280
  %v1289 = vld [vmem:[#allocation2 + $0x7c] sm:$0x3]
  %v1290 = vsel %vm753, %v1281, %v1289
  %1291 = vst [vmem:[#allocation2 + $0x7c] sm:$0x3] %v1290
  %v1293 = vunpack.c.l.b16 %v729
  %v1294 = vunpack.c.h.b16 %v729
  %v1295 = vpack.c.b16 %v1293, %v1293
  %v1296 = vpack.c.b16 %v1294, %v1294
  %v1298 = vshrl.u32 %v1295, 16
  %v1300 = vrot.slane %v1298, 5
  %v1301 = vshll.u32 %v1295, 16
  %v1303 = vrot.slane %v1301, 6
  %v1304 = vor.u32 %v1300, %v1303
  %v1305 = vrot.slane %v1304, 4
  %v1307 = vshrl.u32 %v1296, 16
  %v1309 = vrot.slane %v1307, 5
  %v1310 = vshll.u32 %v1296, 16
  %v1312 = vrot.slane %v1310, 6
  %v1313 = vor.u32 %v1309, %v1312
  %v1314 = vsel %vm881, %v1305, %v1313
  %v1315 = vrot.slane %v1313, 4
  %v1319 = vld [vmem:[#allocation2 + $0x7c] sm:$0xc]
  %v1320 = vsel %vm905, %v1304, %v1319
  %1321 = vst [vmem:[#allocation2 + $0x7c] sm:$0xc] %v1320
  %1322 = vst.msk [vmem:[#allocation2 + $0x80] sm:$0xf] %vm748, %v1314
  %v1323 = vld [vmem:[#allocation2 + $0x84] sm:$0x7]
  %v1324 = vsel %vm911, %v1315, %v1323
  %1325 = vst [vmem:[#allocation2 + $0x84] sm:$0x7] %v1324
  %v1327 = vunpack.c.l.b16 %v730
  %v1328 = vunpack.c.h.b16 %v730
  %v1329 = vpack.c.b16 %v1327, %v1327
  %v1330 = vpack.c.b16 %v1328, %v1328
  %v1332 = vshll.u32 %v1329, 16
  %v1334 = vrot.slane %v1332, 5
  %v1335 = vshrl.u32 %v1329, 16
  %v1337 = vrot.slane %v1335, 4
  %v1338 = vor.u32 %v1337, %v1334
  %v1339 = vrot.slane %v1338, 4
  %v1341 = vshll.u32 %v1330, 16
  %v1343 = vrot.slane %v1341, 5
  %v1344 = vsel %vm922, %v1339, %v1343
  %v1345 = vshrl.u32 %v1330, 16
  %v1347 = vrot.slane %v1345, 4
  %v1348 = vor.u32 %v1347, %v1343
  %v1349 = vrot.slane %v1348, 4
  %v1353 = vld [vmem:[#allocation2 + $0x84] sm:$0x8]
  %v1354 = vsel %vm775, %v1334, %v1353
  %1355 = vst [vmem:[#allocation2 + $0x84] sm:$0x8] %v1354
  %1356 = vst.msk [vmem:[#allocation2 + $0x88] sm:$0xf] %vm748, %v1344
  %v1357 = vld [vmem:[#allocation2 + $0x8c] sm:$0xf]
  %v1358 = vsel %vm950, %v1349, %v1357
  %1359 = vst [vmem:[#allocation2 + $0x8c] sm:$0xf] %v1358
  %v1361 = vunpack.c.l.b16 %v731
  %v1362 = vunpack.c.h.b16 %v731
  %v1363 = vpack.c.b16 %v1361, %v1361
  %v1364 = vpack.c.b16 %v1362, %v1362
  %v1366 = vshrl.u32 %v1363, 16
  %v1368 = vrot.slane %v1366, 7
  %v1369 = vshll.u32 %v1363, 16
  %v1371 = vor.u32 %v1368, %v1369
  %v1372 = vrot.slane %v1368, 4
  %v1374 = vshrl.u32 %v1364, 16
  %v1376 = vrot.slane %v1374, 7
  %v1377 = vshll.u32 %v1364, 16
  %v1379 = vor.u32 %v1376, %v1377
  %v1380 = vsel %vm960, %v1372, %v1379
  %v1381 = vrot.slane %v1376, 4
  %v1385 = vld [vmem:[#allocation2 + $0x90] sm:$0xf]
  %v1386 = vsel %vm982, %v1371, %v1385
  %1387 = vst [vmem:[#allocation2 + $0x90] sm:$0xf] %v1386
  %1388 = vst.msk [vmem:[#allocation2 + $0x94] sm:$0xf] %vm748, %v1380
  %v1389 = vld [vmem:[#allocation2 + $0x98] sm:$0x1]
  %v1390 = vsel %vm781, %v1381, %v1389
  %1391 = vst [vmem:[#allocation2 + $0x98] sm:$0x1] %v1390
  %v1392 = vld [vmem:[#allocation2] sm:$0xf]
  %v1393 = vld [vmem:[#allocation2 + $0x4] sm:$0xf]
  %v1394 = vld [vmem:[#allocation2 + $0x8] sm:$0xf]
  %v1395 = vld [vmem:[#allocation2 + $0xc] sm:$0xf]
  %v1396 = vld [vmem:[#allocation2 + $0x10] sm:$0xf]
  %v1397 = vld [vmem:[#allocation2 + $0x14] sm:$0xf]
  %v1398 = vld [vmem:[#allocation2 + $0x18] sm:$0xf]
  %v1399 = vld [vmem:[#allocation2 + $0x1c] sm:$0xf]
  %v1400 = vld [vmem:[#allocation2 + $0x20] sm:$0xf]
  %v1401 = vld [vmem:[#allocation2 + $0x24] sm:$0xf]
  %v1402 = vld [vmem:[#allocation2 + $0x28] sm:$0xf]
  %v1403 = vld [vmem:[#allocation2 + $0x2c] sm:$0xf]
  %v1404 = vld [vmem:[#allocation2 + $0x30] sm:$0xf]
  %v1405 = vld [vmem:[#allocation2 + $0x34] sm:$0xf]
  %v1406 = vld [vmem:[#allocation2 + $0x38] sm:$0xf]
  %v1407 = vld [vmem:[#allocation2 + $0x3c] sm:$0xf]
  %v1408 = vld [vmem:[#allocation2 + $0x40] sm:$0xf]
  %v1409 = vld [vmem:[#allocation2 + $0x44] sm:$0xf]
  %v1410 = vld [vmem:[#allocation2 + $0x48] sm:$0xf]
  %v1411 = vld [vmem:[#allocation2 + $0x4c] sm:$0xf]
  %v1412 = vld [vmem:[#allocation2 + $0x50] sm:$0xf]
  %v1413 = vld [vmem:[#allocation2 + $0x54] sm:$0xf]
  %v1414 = vld [vmem:[#allocation2 + $0x58] sm:$0xf]
  %v1415 = vld [vmem:[#allocation2 + $0x5c] sm:$0xf]
  %v1416 = vld [vmem:[#allocation2 + $0x60] sm:$0xf]
  %v1417 = vld [vmem:[#allocation2 + $0x64] sm:$0xf]
  %v1418 = vld [vmem:[#allocation2 + $0x68] sm:$0xf]
  %v1419 = vld [vmem:[#allocation2 + $0x6c] sm:$0xf]
  %v1420 = vld [vmem:[#allocation2 + $0x70] sm:$0xf]
  %v1421 = vld [vmem:[#allocation2 + $0x74] sm:$0xf]
  %v1422 = vld [vmem:[#allocation2 + $0x78] sm:$0xf]
  %v1423 = vld [vmem:[#allocation2 + $0x7c] sm:$0xf]
  %v1424 = vld [vmem:[#allocation2 + $0x80] sm:$0xf]
  %v1425 = vld [vmem:[#allocation2 + $0x84] sm:$0xf]
  %v1426 = vld [vmem:[#allocation2 + $0x88] sm:$0xf]
  %v1427 = vld [vmem:[#allocation2 + $0x8c] sm:$0xf]
  %v1428 = vld [vmem:[%s3] sm:$0x3]
  %v1429 = vld [vmem:[#allocation2 + $0x90] sm:$0x1]
  %s1430 = scalar_lea.vmem %s3, 2
  %v1431 = vld [vmem:[%s1430] sm:$0x3]
  %v1469 = vunpack.c.l.b16 %v1392
  %v1470 = vunpack.c.l.b16 %v1393
  %v1471 = vunpack.c.l.b16 %v1394
  %v1472 = vunpack.c.l.b16 %v1395
  %v1473 = vunpack.c.l.b16 %v1396
  %v1474 = vunpack.c.l.b16 %v1397
  %v1475 = vunpack.c.l.b16 %v1398
  %v1476 = vunpack.c.l.b16 %v1399
  %v1477 = vunpack.c.l.b16 %v1400
  %v1478 = vunpack.c.l.b16 %v1401
  %v1479 = vunpack.c.l.b16 %v1402
  %v1480 = vunpack.c.l.b16 %v1403
  %v1481 = vunpack.c.l.b16 %v1404
  %v1482 = vunpack.c.l.b16 %v1405
  %v1483 = vunpack.c.l.b16 %v1406
  %v1484 = vunpack.c.l.b16 %v1407
  %v1485 = vunpack.c.l.b16 %v1408
  %v1486 = vunpack.c.l.b16 %v1409
  %v1487 = vunpack.c.l.b16 %v1410
  %v1488 = vunpack.c.l.b16 %v1411
  %v1489 = vunpack.c.l.b16 %v1412
  %v1490 = vunpack.c.l.b16 %v1413
  %v1491 = vunpack.c.l.b16 %v1414
  %v1492 = vunpack.c.l.b16 %v1415
  %v1493 = vunpack.c.l.b16 %v1416
  %v1494 = vunpack.c.l.b16 %v1417
  %v1495 = vunpack.c.l.b16 %v1418
  %v1496 = vunpack.c.l.b16 %v1419
  %v1497 = vunpack.c.l.b16 %v1420
  %v1498 = vunpack.c.l.b16 %v1421
  %v1499 = vunpack.c.l.b16 %v1422
  %v1500 = vunpack.c.l.b16 %v1423
  %v1501 = vunpack.c.l.b16 %v1424
  %v1502 = vunpack.c.l.b16 %v1425
  %v1503 = vunpack.c.l.b16 %v1426
  %v1504 = vunpack.c.l.b16 %v1427
  %v1505 = vunpack.c.l.b16 %v1429
  %v1506 = vpack.c.b16 %v1470, %v1469
  %v1507 = vpack.c.b16 %v1472, %v1471
  %v1508 = vpack.c.b16 %v1474, %v1473
  %v1509 = vpack.c.b16 %v1476, %v1475
  %v1510 = vpack.c.b16 %v1478, %v1477
  %v1511 = vpack.c.b16 %v1480, %v1479
  %v1512 = vpack.c.b16 %v1482, %v1481
  %v1513 = vpack.c.b16 %v1484, %v1483
  %v1514 = vpack.c.b16 %v1486, %v1485
  %v1515 = vpack.c.b16 %v1488, %v1487
  %v1516 = vpack.c.b16 %v1490, %v1489
  %v1517 = vpack.c.b16 %v1492, %v1491
  %v1518 = vpack.c.b16 %v1494, %v1493
  %v1519 = vpack.c.b16 %v1496, %v1495
  %v1520 = vpack.c.b16 %v1498, %v1497
  %v1521 = vpack.c.b16 %v1500, %v1499
  %v1522 = vpack.c.b16 %v1502, %v1501
  %v1523 = vpack.c.b16 %v1504, %v1503
  %v1524 = vpack.c.b16 %v1505, %v1505
  %vm1525 = vsmask.f32 7424
  %v1527 = vshrl.u32 %v1506, 16
  %v1529 = vshll.u32 %v1506, 16
  %v1531 = vrot.slane %v1529, 1
  %v1532 = vor.u32 %v1527, %v1531
  %v1534 = vshll.u32 %v1507, 16
  %v1536 = vrot.slane %v1534, 1
  %v1537 = vsel %vm1525, %v1532, %v1536
  %v1538 = vshrl.u32 %v1507, 16
  %v1540 = vor.u32 %v1538, %v1536
  %v1542 = vshll.u32 %v1508, 16
  %v1544 = vrot.slane %v1542, 1
  %v1545 = vsel %vm1525, %v1540, %v1544
  %v1546 = vshrl.u32 %v1508, 16
  %v1548 = vor.u32 %v1546, %v1544
  %v1550 = vshll.u32 %v1509, 16
  %v1552 = vrot.slane %v1550, 1
  %v1553 = vsel %vm1525, %v1548, %v1552
  %v1554 = vshrl.u32 %v1509, 16
  %v1556 = vor.u32 %v1554, %v1552
  %v1558 = vshll.u32 %v1510, 16
  %v1560 = vrot.slane %v1558, 1
  %v1561 = vsel %vm1525, %v1556, %v1560
  %v1562 = vshrl.u32 %v1510, 16
  %v1564 = vor.u32 %v1562, %v1560
  %v1566 = vshll.u32 %v1511, 16
  %v1568 = vrot.slane %v1566, 1
  %v1569 = vsel %vm1525, %v1564, %v1568
  %v1570 = vshrl.u32 %v1511, 16
  %v1572 = vor.u32 %v1570, %v1568
  %v1574 = vshll.u32 %v1512, 16
  %v1576 = vrot.slane %v1574, 1
  %v1577 = vsel %vm1525, %v1572, %v1576
  %v1578 = vshrl.u32 %v1512, 16
  %v1580 = vor.u32 %v1578, %v1576
  %v1582 = vshll.u32 %v1513, 16
  %v1584 = vrot.slane %v1582, 1
  %v1585 = vsel %vm1525, %v1580, %v1584
  %v1586 = vshrl.u32 %v1513, 16
  %v1588 = vor.u32 %v1586, %v1584
  %v1590 = vshll.u32 %v1514, 16
  %v1592 = vrot.slane %v1590, 1
  %v1593 = vsel %vm1525, %v1588, %v1592
  %v1594 = vshrl.u32 %v1514, 16
  %v1596 = vor.u32 %v1594, %v1592
  %v1598 = vshll.u32 %v1515, 16
  %v1600 = vrot.slane %v1598, 1
  %v1601 = vsel %vm1525, %v1596, %v1600
  %v1602 = vshrl.u32 %v1515, 16
  %v1604 = vor.u32 %v1602, %v1600
  %v1606 = vshll.u32 %v1516, 16
  %v1608 = vrot.slane %v1606, 1
  %v1609 = vsel %vm1525, %v1604, %v1608
  %v1610 = vshrl.u32 %v1516, 16
  %v1612 = vor.u32 %v1610, %v1608
  %v1614 = vshll.u32 %v1517, 16
  %v1616 = vrot.slane %v1614, 1
  %v1617 = vsel %vm1525, %v1612, %v1616
  %v1618 = vshrl.u32 %v1517, 16
  %v1620 = vor.u32 %v1618, %v1616
  %v1622 = vshll.u32 %v1518, 16
  %v1624 = vrot.slane %v1622, 1
  %v1625 = vsel %vm1525, %v1620, %v1624
  %v1626 = vshrl.u32 %v1518, 16
  %v1628 = vor.u32 %v1626, %v1624
  %v1630 = vshll.u32 %v1519, 16
  %v1632 = vrot.slane %v1630, 1
  %v1633 = vsel %vm1525, %v1628, %v1632
  %v1634 = vshrl.u32 %v1519, 16
  %v1636 = vor.u32 %v1634, %v1632
  %v1638 = vshll.u32 %v1520, 16
  %v1640 = vrot.slane %v1638, 1
  %v1641 = vsel %vm1525, %v1636, %v1640
  %v1642 = vshrl.u32 %v1520, 16
  %v1644 = vor.u32 %v1642, %v1640
  %v1646 = vshll.u32 %v1521, 16
  %v1648 = vrot.slane %v1646, 1
  %v1649 = vsel %vm1525, %v1644, %v1648
  %v1650 = vshrl.u32 %v1521, 16
  %v1652 = vor.u32 %v1650, %v1648
  %v1654 = vshll.u32 %v1522, 16
  %v1656 = vrot.slane %v1654, 1
  %v1657 = vsel %vm1525, %v1652, %v1656
  %v1658 = vshrl.u32 %v1522, 16
  %v1660 = vor.u32 %v1658, %v1656
  %v1662 = vshll.u32 %v1523, 16
  %v1664 = vrot.slane %v1662, 1
  %v1665 = vsel %vm1525, %v1660, %v1664
  %v1666 = vshrl.u32 %v1523, 16
  %v1668 = vor.u32 %v1666, %v1664
  %v1670 = vshll.u32 %v1524, 16
  %v1672 = vrot.slane %v1670, 1
  %v1673 = vsel %vm1525, %v1668, %v1672
  %vm1674 = vcmask 31744
  %v1676 = vsel %vm1674, %v1537, 0
  %v1679 = vsel %vm1674, %v1545, 0
  %v1682 = vsel %vm1674, %v1553, 0
  %v1685 = vsel %vm1674, %v1561, 0
  %v1688 = vsel %vm1674, %v1569, 0
  %v1691 = vsel %vm1674, %v1577, 0
  %v1694 = vsel %vm1674, %v1585, 0
  %v1697 = vsel %vm1674, %v1593, 0
  %v1700 = vsel %vm1674, %v1601, 0
  %v1703 = vsel %vm1674, %v1609, 0
  %v1706 = vsel %vm1674, %v1617, 0
  %v1709 = vsel %vm1674, %v1625, 0
  %v1712 = vsel %vm1674, %v1633, 0
  %v1715 = vsel %vm1674, %v1641, 0
  %v1718 = vsel %vm1674, %v1649, 0
  %v1721 = vsel %vm1674, %v1657, 0
  %v1724 = vsel %vm1674, %v1665, 0
  %v1727 = vsel %vm1674, %v1673, 0
  %vm1729 = vcmask 1041408
  %v1731 = vsel %vm1729, %v1431, 0
  %1733 = vmatprep.subr.bf16.mxu0 0
  %1734 = vmatpush1.bf16.msra.mxu0 0
  %1735 = vmatprep.subr.bf16.mxu0 0
  %1736 = vmatpush1.bf16.msra.mxu0 0
  %1737 = vmatprep.subr.bf16.mxu0 0
  %1738 = vmatpush1.bf16.msra.mxu0 0
  %1739 = vmatprep.subr.bf16.mxu0 0
  %1740 = vmatpush1.bf16.msra.mxu0 0
  %1741 = vmatprep.subr.bf16.mxu0 0
  %1742 = vmatpush1.bf16.msra.mxu0 0
  %1743 = vmatprep.subr.bf16.mxu0 0
  %1744 = vmatpush1.bf16.msra.mxu0 0
  %1745 = vmatprep.subr.bf16.mxu0 0
  %1746 = vmatpush1.bf16.msra.mxu0 0
  %1747 = vmatprep.subr.bf16.mxu0 0
  %1748 = vmatpush1.bf16.msra.mxu0 %v1731
  %1749 = vmatprep.subr.bf16.mxu0 0
  %1750 = vmatpush2.bf16.msra.mxu0 0
  %1751 = vmatprep.subr.bf16.mxu0 0
  %1752 = vmatpush2.bf16.msra.mxu0 0
  %1753 = vmatprep.subr.bf16.mxu0 0
  %1754 = vmatpush2.bf16.msra.mxu0 0
  %1755 = vmatprep.subr.bf16.mxu0 0
  %1756 = vmatpush2.bf16.msra.mxu0 0
  %1757 = vmatprep.subr.bf16.mxu0 0
  %1758 = vmatpush2.bf16.msra.mxu0 0
  %1759 = vmatprep.subr.bf16.mxu0 0
  %1760 = vmatpush2.bf16.msra.mxu0 0
  %1761 = vmatprep.subr.bf16.mxu0 0
  %1762 = vmatpush2.bf16.msra.mxu0 0
  %1763 = vmatprep.subr.bf16.mxu0 0
  %1764 = vmatpush2.bf16.msra.mxu0 0
  %1765 = vmatprep.mubr.bf16.mxu0 0
  %1766 = vmatmul.mubr.bf16.gmra.mxu0 %v1676
  %v1767 = vpop.f32.mrf.mxu0
  %v1768 = vadd.f32 0.0, %v1767
  %v1769 = vpop.f32.mrf.mxu0
  %v1770 = vpop.f32.mrf.mxu0
  %v1771 = vadd.f32 0.0, %v1770
  %v1772 = vpop.f32.mrf.mxu0
  %1773 = vmatprep.mubr.bf16.mxu0 0
  %1774 = vmatmul.mubr.bf16.gmra.mxu0 %v1679
  %v1775 = vpop.f32.mrf.mxu0
  %v1776 = vadd.f32 0.0, %v1775
  %v1777 = vpop.f32.mrf.mxu0
  %v1778 = vpop.f32.mrf.mxu0
  %v1779 = vadd.f32 0.0, %v1778
  %v1780 = vpop.f32.mrf.mxu0
  %1781 = vmatprep.mubr.bf16.mxu0 0
  %1782 = vmatmul.mubr.bf16.gmra.mxu0 %v1682
  %v1783 = vpop.f32.mrf.mxu0
  %v1784 = vadd.f32 0.0, %v1783
  %v1785 = vpop.f32.mrf.mxu0
  %v1786 = vpop.f32.mrf.mxu0
  %v1787 = vadd.f32 0.0, %v1786
  %v1788 = vpop.f32.mrf.mxu0
  %1789 = vmatprep.mubr.bf16.mxu0 0
  %1790 = vmatmul.mubr.bf16.gmra.mxu0 %v1685
  %v1791 = vpop.f32.mrf.mxu0
  %v1792 = vadd.f32 0.0, %v1791
  %v1793 = vpop.f32.mrf.mxu0
  %v1794 = vpop.f32.mrf.mxu0
  %v1795 = vadd.f32 0.0, %v1794
  %v1796 = vpop.f32.mrf.mxu0
  %1797 = vmatprep.mubr.bf16.mxu0 0
  %1798 = vmatmul.mubr.bf16.gmra.mxu0 %v1688
  %v1799 = vpop.f32.mrf.mxu0
  %v1800 = vadd.f32 0.0, %v1799
  %v1801 = vpop.f32.mrf.mxu0
  %v1802 = vpop.f32.mrf.mxu0
  %v1803 = vadd.f32 0.0, %v1802
  %v1804 = vpop.f32.mrf.mxu0
  %1805 = vmatprep.mubr.bf16.mxu0 0
  %1806 = vmatmul.mubr.bf16.gmra.mxu0 %v1691
  %v1807 = vpop.f32.mrf.mxu0
  %v1808 = vadd.f32 0.0, %v1807
  %v1809 = vpop.f32.mrf.mxu0
  %v1810 = vpop.f32.mrf.mxu0
  %v1811 = vadd.f32 0.0, %v1810
  %v1812 = vpop.f32.mrf.mxu0
  %1813 = vmatprep.mubr.bf16.mxu0 0
  %1814 = vmatmul.mubr.bf16.gmra.mxu0 %v1694
  %v1815 = vpop.f32.mrf.mxu0
  %v1816 = vadd.f32 0.0, %v1815
  %v1817 = vpop.f32.mrf.mxu0
  %v1818 = vpop.f32.mrf.mxu0
  %v1819 = vadd.f32 0.0, %v1818
  %v1820 = vpop.f32.mrf.mxu0
  %1821 = vmatprep.mubr.bf16.mxu0 0
  %1822 = vmatmul.mubr.bf16.gmra.mxu0 %v1697
  %v1823 = vpop.f32.mrf.mxu0
  %v1824 = vadd.f32 0.0, %v1823
  %v1825 = vpop.f32.mrf.mxu0
  %v1826 = vpop.f32.mrf.mxu0
  %v1827 = vadd.f32 0.0, %v1826
  %v1828 = vpop.f32.mrf.mxu0
  %1829 = vmatprep.mubr.bf16.mxu0 0
  %1830 = vmatmul.mubr.bf16.gmra.mxu0 %v1700
  %v1831 = vpop.f32.mrf.mxu0
  %v1832 = vadd.f32 0.0, %v1831
  %v1833 = vpop.f32.mrf.mxu0
  %v1834 = vpop.f32.mrf.mxu0
  %v1835 = vadd.f32 0.0, %v1834
  %v1836 = vpop.f32.mrf.mxu0
  %1837 = vmatprep.mubr.bf16.mxu0 0
  %1838 = vmatmul.mubr.bf16.gmra.mxu0 %v1703
  %v1839 = vpop.f32.mrf.mxu0
  %v1840 = vadd.f32 0.0, %v1839
  %v1841 = vpop.f32.mrf.mxu0
  %v1842 = vpop.f32.mrf.mxu0
  %v1843 = vadd.f32 0.0, %v1842
  %v1844 = vpop.f32.mrf.mxu0
  %1845 = vmatprep.mubr.bf16.mxu0 0
  %1846 = vmatmul.mubr.bf16.gmra.mxu0 %v1706
  %v1847 = vpop.f32.mrf.mxu0
  %v1848 = vadd.f32 0.0, %v1847
  %v1849 = vpop.f32.mrf.mxu0
  %v1850 = vpop.f32.mrf.mxu0
  %v1851 = vadd.f32 0.0, %v1850
  %v1852 = vpop.f32.mrf.mxu0
  %1853 = vmatprep.mubr.bf16.mxu0 0
  %1854 = vmatmul.mubr.bf16.gmra.mxu0 %v1709
  %v1855 = vpop.f32.mrf.mxu0
  %v1856 = vadd.f32 0.0, %v1855
  %v1857 = vpop.f32.mrf.mxu0
  %v1858 = vpop.f32.mrf.mxu0
  %v1859 = vadd.f32 0.0, %v1858
  %v1860 = vpop.f32.mrf.mxu0
  %1861 = vmatprep.mubr.bf16.mxu0 0
  %1862 = vmatmul.mubr.bf16.gmra.mxu0 %v1712
  %v1863 = vpop.f32.mrf.mxu0
  %v1864 = vadd.f32 0.0, %v1863
  %v1865 = vpop.f32.mrf.mxu0
  %v1866 = vpop.f32.mrf.mxu0
  %v1867 = vadd.f32 0.0, %v1866
  %v1868 = vpop.f32.mrf.mxu0
  %1869 = vmatprep.mubr.bf16.mxu0 0
  %1870 = vmatmul.mubr.bf16.gmra.mxu0 %v1715
  %v1871 = vpop.f32.mrf.mxu0
  %v1872 = vadd.f32 0.0, %v1871
  %v1873 = vpop.f32.mrf.mxu0
  %v1874 = vpop.f32.mrf.mxu0
  %v1875 = vadd.f32 0.0, %v1874
  %v1876 = vpop.f32.mrf.mxu0
  %1877 = vmatprep.mubr.bf16.mxu0 0
  %1878 = vmatmul.mubr.bf16.gmra.mxu0 %v1718
  %v1879 = vpop.f32.mrf.mxu0
  %v1880 = vadd.f32 0.0, %v1879
  %v1881 = vpop.f32.mrf.mxu0
  %v1882 = vpop.f32.mrf.mxu0
  %v1883 = vadd.f32 0.0, %v1882
  %v1884 = vpop.f32.mrf.mxu0
  %1885 = vmatprep.mubr.bf16.mxu0 0
  %1886 = vmatmul.mubr.bf16.gmra.mxu0 %v1721
  %v1887 = vpop.f32.mrf.mxu0
  %v1888 = vadd.f32 0.0, %v1887
  %v1889 = vpop.f32.mrf.mxu0
  %v1890 = vpop.f32.mrf.mxu0
  %v1891 = vadd.f32 0.0, %v1890
  %v1892 = vpop.f32.mrf.mxu0
  %1893 = vmatprep.mubr.bf16.mxu0 0
  %1894 = vmatmul.mubr.bf16.gmra.mxu0 %v1724
  %v1895 = vpop.f32.mrf.mxu0
  %v1896 = vadd.f32 0.0, %v1895
  %v1897 = vpop.f32.mrf.mxu0
  %v1898 = vpop.f32.mrf.mxu0
  %v1899 = vadd.f32 0.0, %v1898
  %v1900 = vpop.f32.mrf.mxu0
  %1901 = vmatprep.mubr.bf16.mxu0 0
  %1902 = vmatmul.mubr.bf16.gmra.mxu0 %v1727
  %v1903 = vpop.f32.mrf.mxu0
  %v1904 = vadd.f32 0.0, %v1903
  %v1905 = vpop.f32.mrf.mxu0
  %v1906 = vpop.f32.mrf.mxu0
  %v1907 = vadd.f32 0.0, %v1906
  %v1908 = vpop.f32.mrf.mxu0
  %1909 = vdwg.mxu0
  %v1910 = vsel %vm1674, %v1506, 0
  %v1912 = vsel %vm1674, %v1507, 0
  %v1914 = vsel %vm1674, %v1508, 0
  %v1916 = vsel %vm1674, %v1509, 0
  %v1918 = vsel %vm1674, %v1510, 0
  %v1920 = vsel %vm1674, %v1511, 0
  %v1922 = vsel %vm1674, %v1512, 0
  %v1924 = vsel %vm1674, %v1513, 0
  %v1926 = vsel %vm1674, %v1514, 0
  %v1928 = vsel %vm1674, %v1515, 0
  %v1930 = vsel %vm1674, %v1516, 0
  %v1932 = vsel %vm1674, %v1517, 0
  %v1934 = vsel %vm1674, %v1518, 0
  %v1936 = vsel %vm1674, %v1519, 0
  %v1938 = vsel %vm1674, %v1520, 0
  %v1940 = vsel %vm1674, %v1521, 0
  %v1942 = vsel %vm1674, %v1522, 0
  %v1944 = vsel %vm1674, %v1523, 0
  %v1947 = vsel %vm1729, %v1428, 0
  %1949 = vmatprep.subr.bf16.mxu0 0
  %1950 = vmatpush1.bf16.msra.mxu0 0
  %1951 = vmatprep.subr.bf16.mxu0 0
  %1952 = vmatpush1.bf16.msra.mxu0 0
  %1953 = vmatprep.subr.bf16.mxu0 0
  %1954 = vmatpush1.bf16.msra.mxu0 0
  %1955 = vmatprep.subr.bf16.mxu0 0
  %1956 = vmatpush1.bf16.msra.mxu0 0
  %1957 = vmatprep.subr.bf16.mxu0 0
  %1958 = vmatpush1.bf16.msra.mxu0 0
  %1959 = vmatprep.subr.bf16.mxu0 0
  %1960 = vmatpush1.bf16.msra.mxu0 0
  %1961 = vmatprep.subr.bf16.mxu0 0
  %1962 = vmatpush1.bf16.msra.mxu0 0
  %1963 = vmatprep.subr.bf16.mxu0 0
  %1964 = vmatpush1.bf16.msra.mxu0 %v1947
  %1965 = vmatprep.subr.bf16.mxu0 0
  %1966 = vmatpush2.bf16.msra.mxu0 0
  %1967 = vmatprep.subr.bf16.mxu0 0
  %1968 = vmatpush2.bf16.msra.mxu0 0
  %1969 = vmatprep.subr.bf16.mxu0 0
  %1970 = vmatpush2.bf16.msra.mxu0 0
  %1971 = vmatprep.subr.bf16.mxu0 0
  %1972 = vmatpush2.bf16.msra.mxu0 0
  %1973 = vmatprep.subr.bf16.mxu0 0
  %1974 = vmatpush2.bf16.msra.mxu0 0
  %1975 = vmatprep.subr.bf16.mxu0 0
  %1976 = vmatpush2.bf16.msra.mxu0 0
  %1977 = vmatprep.subr.bf16.mxu0 0
  %1978 = vmatpush2.bf16.msra.mxu0 0
  %1979 = vmatprep.subr.bf16.mxu0 0
  %1980 = vmatpush2.bf16.msra.mxu0 0
  %1981 = vmatprep.mubr.bf16.mxu0 0
  %1982 = vmatmul.mubr.bf16.gmra.mxu0 %v1910
  %v1983 = vpop.f32.mrf.mxu0
  %v1984 = vadd.f32 %v1768, %v1983
  %v1985 = vpop.f32.mrf.mxu0
  %v1986 = vpop.f32.mrf.mxu0
  %v1987 = vadd.f32 %v1771, %v1986
  %v1988 = vpop.f32.mrf.mxu0
  %1989 = vmatprep.mubr.bf16.mxu0 0
  %1990 = vmatmul.mubr.bf16.gmra.mxu0 %v1912
  %v1991 = vpop.f32.mrf.mxu0
  %v1992 = vadd.f32 %v1776, %v1991
  %v1993 = vpop.f32.mrf.mxu0
  %v1994 = vpop.f32.mrf.mxu0
  %v1995 = vadd.f32 %v1779, %v1994
  %v1996 = vpop.f32.mrf.mxu0
  %1997 = vmatprep.mubr.bf16.mxu0 0
  %1998 = vmatmul.mubr.bf16.gmra.mxu0 %v1914
  %v1999 = vpop.f32.mrf.mxu0
  %v2000 = vadd.f32 %v1784, %v1999
  %v2001 = vpop.f32.mrf.mxu0
  %v2002 = vpop.f32.mrf.mxu0
  %v2003 = vadd.f32 %v1787, %v2002
  %v2004 = vpop.f32.mrf.mxu0
  %2005 = vmatprep.mubr.bf16.mxu0 0
  %2006 = vmatmul.mubr.bf16.gmra.mxu0 %v1916
  %v2007 = vpop.f32.mrf.mxu0
  %v2008 = vadd.f32 %v1792, %v2007
  %v2009 = vpop.f32.mrf.mxu0
  %v2010 = vpop.f32.mrf.mxu0
  %v2011 = vadd.f32 %v1795, %v2010
  %v2012 = vpop.f32.mrf.mxu0
  %2013 = vmatprep.mubr.bf16.mxu0 0
  %2014 = vmatmul.mubr.bf16.gmra.mxu0 %v1918
  %v2015 = vpop.f32.mrf.mxu0
  %v2016 = vadd.f32 %v1800, %v2015
  %v2017 = vpop.f32.mrf.mxu0
  %v2018 = vpop.f32.mrf.mxu0
  %v2019 = vadd.f32 %v1803, %v2018
  %v2020 = vpop.f32.mrf.mxu0
  %2021 = vmatprep.mubr.bf16.mxu0 0
  %2022 = vmatmul.mubr.bf16.gmra.mxu0 %v1920
  %v2023 = vpop.f32.mrf.mxu0
  %v2024 = vadd.f32 %v1808, %v2023
  %v2025 = vpop.f32.mrf.mxu0
  %v2026 = vpop.f32.mrf.mxu0
  %v2027 = vadd.f32 %v1811, %v2026
  %v2028 = vpop.f32.mrf.mxu0
  %2029 = vmatprep.mubr.bf16.mxu0 0
  %2030 = vmatmul.mubr.bf16.gmra.mxu0 %v1922
  %v2031 = vpop.f32.mrf.mxu0
  %v2032 = vadd.f32 %v1816, %v2031
  %v2033 = vpop.f32.mrf.mxu0
  %v2034 = vpop.f32.mrf.mxu0
  %v2035 = vadd.f32 %v1819, %v2034
  %v2036 = vpop.f32.mrf.mxu0
  %2037 = vmatprep.mubr.bf16.mxu0 0
  %2038 = vmatmul.mubr.bf16.gmra.mxu0 %v1924
  %v2039 = vpop.f32.mrf.mxu0
  %v2040 = vadd.f32 %v1824, %v2039
  %v2041 = vpop.f32.mrf.mxu0
  %v2042 = vpop.f32.mrf.mxu0
  %v2043 = vadd.f32 %v1827, %v2042
  %v2044 = vpop.f32.mrf.mxu0
  %2045 = vmatprep.mubr.bf16.mxu0 0
  %2046 = vmatmul.mubr.bf16.gmra.mxu0 %v1926
  %v2047 = vpop.f32.mrf.mxu0
  %v2048 = vadd.f32 %v1832, %v2047
  %v2049 = vpop.f32.mrf.mxu0
  %v2050 = vpop.f32.mrf.mxu0
  %v2051 = vadd.f32 %v1835, %v2050
  %v2052 = vpop.f32.mrf.mxu0
  %2053 = vmatprep.mubr.bf16.mxu0 0
  %2054 = vmatmul.mubr.bf16.gmra.mxu0 %v1928
  %v2055 = vpop.f32.mrf.mxu0
  %v2056 = vadd.f32 %v1840, %v2055
  %v2057 = vpop.f32.mrf.mxu0
  %v2058 = vpop.f32.mrf.mxu0
  %v2059 = vadd.f32 %v1843, %v2058
  %v2060 = vpop.f32.mrf.mxu0
  %2061 = vmatprep.mubr.bf16.mxu0 0
  %2062 = vmatmul.mubr.bf16.gmra.mxu0 %v1930
  %v2063 = vpop.f32.mrf.mxu0
  %v2064 = vadd.f32 %v1848, %v2063
  %v2065 = vpop.f32.mrf.mxu0
  %v2066 = vpop.f32.mrf.mxu0
  %v2067 = vadd.f32 %v1851, %v2066
  %v2068 = vpop.f32.mrf.mxu0
  %2069 = vmatprep.mubr.bf16.mxu0 0
  %2070 = vmatmul.mubr.bf16.gmra.mxu0 %v1932
  %v2071 = vpop.f32.mrf.mxu0
  %v2072 = vadd.f32 %v1856, %v2071
  %v2073 = vpop.f32.mrf.mxu0
  %v2074 = vpop.f32.mrf.mxu0
  %v2075 = vadd.f32 %v1859, %v2074
  %v2076 = vpop.f32.mrf.mxu0
  %2077 = vmatprep.mubr.bf16.mxu0 0
  %2078 = vmatmul.mubr.bf16.gmra.mxu0 %v1934
  %v2079 = vpop.f32.mrf.mxu0
  %v2080 = vadd.f32 %v1864, %v2079
  %v2081 = vpop.f32.mrf.mxu0
  %v2082 = vpop.f32.mrf.mxu0
  %v2083 = vadd.f32 %v1867, %v2082
  %v2084 = vpop.f32.mrf.mxu0
  %2085 = vmatprep.mubr.bf16.mxu0 0
  %2086 = vmatmul.mubr.bf16.gmra.mxu0 %v1936
  %v2087 = vpop.f32.mrf.mxu0
  %v2088 = vadd.f32 %v1872, %v2087
  %v2089 = vpop.f32.mrf.mxu0
  %v2090 = vpop.f32.mrf.mxu0
  %v2091 = vadd.f32 %v1875, %v2090
  %v2092 = vpop.f32.mrf.mxu0
  %2093 = vmatprep.mubr.bf16.mxu0 0
  %2094 = vmatmul.mubr.bf16.gmra.mxu0 %v1938
  %v2095 = vpop.f32.mrf.mxu0
  %v2096 = vadd.f32 %v1880, %v2095
  %v2097 = vpop.f32.mrf.mxu0
  %v2098 = vpop.f32.mrf.mxu0
  %v2099 = vadd.f32 %v1883, %v2098
  %v2100 = vpop.f32.mrf.mxu0
  %2101 = vmatprep.mubr.bf16.mxu0 0
  %2102 = vmatmul.mubr.bf16.gmra.mxu0 %v1940
  %v2103 = vpop.f32.mrf.mxu0
  %v2104 = vadd.f32 %v1888, %v2103
  %v2105 = vpop.f32.mrf.mxu0
  %v2106 = vpop.f32.mrf.mxu0
  %v2107 = vadd.f32 %v1891, %v2106
  %v2108 = vpop.f32.mrf.mxu0
  %2109 = vmatprep.mubr.bf16.mxu0 0
  %2110 = vmatmul.mubr.bf16.gmra.mxu0 %v1942
  %v2111 = vpop.f32.mrf.mxu0
  %v2112 = vadd.f32 %v1896, %v2111
  %v2113 = vpop.f32.mrf.mxu0
  %v2114 = vpop.f32.mrf.mxu0
  %v2115 = vadd.f32 %v1899, %v2114
  %v2116 = vpop.f32.mrf.mxu0
  %2117 = vmatprep.mubr.bf16.mxu0 0
  %2118 = vmatmul.mubr.bf16.gmra.mxu0 %v1944
  %v2119 = vpop.f32.mrf.mxu0
  %v2120 = vadd.f32 %v1904, %v2119
  %v2121 = vpop.f32.mrf.mxu0
  %v2122 = vpop.f32.mrf.mxu0
  %v2123 = vadd.f32 %v1907, %v2122
  %v2124 = vpop.f32.mrf.mxu0
  %2125 = vdwg.mxu0
  %v2126 = vld [vmem:[#allocation2] sm:$0xe]
  %s2127 = scalar_lea.vmem %s3, 4
  %v2128 = vld [vmem:[%s2127] sm:$0x3]
  %v2130 = vunpack.c.l.b16 %v2126
  %v2131 = vpack.c.b16 %v1470, %v2130
  %vm2132 = vcmask 1046528
  %v2133 = vrot.slane %v2131, 1
  %v2134 = vrot.slane %v1507, 1
  %v2135 = vsel %vm2132, %v2133, %v2134
  %v2136 = vrot.slane %v1508, 1
  %v2137 = vsel %vm2132, %v2134, %v2136
  %v2138 = vrot.slane %v1509, 1
  %v2139 = vsel %vm2132, %v2136, %v2138
  %v2140 = vrot.slane %v1510, 1
  %v2141 = vsel %vm2132, %v2138, %v2140
  %v2142 = vrot.slane %v1511, 1
  %v2143 = vsel %vm2132, %v2140, %v2142
  %v2144 = vrot.slane %v1512, 1
  %v2145 = vsel %vm2132, %v2142, %v2144
  %v2146 = vrot.slane %v1513, 1
  %v2147 = vsel %vm2132, %v2144, %v2146
  %v2148 = vrot.slane %v1514, 1
  %v2149 = vsel %vm2132, %v2146, %v2148
  %v2150 = vrot.slane %v1515, 1
  %v2151 = vsel %vm2132, %v2148, %v2150
  %v2152 = vrot.slane %v1516, 1
  %v2153 = vsel %vm2132, %v2150, %v2152
  %v2154 = vrot.slane %v1517, 1
  %v2155 = vsel %vm2132, %v2152, %v2154
  %v2156 = vrot.slane %v1518, 1
  %v2157 = vsel %vm2132, %v2154, %v2156
  %v2158 = vrot.slane %v1519, 1
  %v2159 = vsel %vm2132, %v2156, %v2158
  %v2160 = vrot.slane %v1520, 1
  %v2161 = vsel %vm2132, %v2158, %v2160
  %v2162 = vrot.slane %v1521, 1
  %v2163 = vsel %vm2132, %v2160, %v2162
  %v2164 = vrot.slane %v1522, 1
  %v2165 = vsel %vm2132, %v2162, %v2164
  %v2166 = vrot.slane %v1523, 1
  %v2167 = vsel %vm2132, %v2164, %v2166
  %v2168 = vrot.slane %v1524, 1
  %v2169 = vsel %vm2132, %v2166, %v2168
  %v2171 = vsel %vm1674, %v2135, 0
  %v2174 = vsel %vm1674, %v2137, 0
  %v2177 = vsel %vm1674, %v2139, 0
  %v2180 = vsel %vm1674, %v2141, 0
  %v2183 = vsel %vm1674, %v2143, 0
  %v2186 = vsel %vm1674, %v2145, 0
  %v2189 = vsel %vm1674, %v2147, 0
  %v2192 = vsel %vm1674, %v2149, 0
  %v2195 = vsel %vm1674, %v2151, 0
  %v2198 = vsel %vm1674, %v2153, 0
  %v2201 = vsel %vm1674, %v2155, 0
  %v2204 = vsel %vm1674, %v2157, 0
  %v2207 = vsel %vm1674, %v2159, 0
  %v2210 = vsel %vm1674, %v2161, 0
  %v2213 = vsel %vm1674, %v2163, 0
  %v2216 = vsel %vm1674, %v2165, 0
  %v2219 = vsel %vm1674, %v2167, 0
  %v2222 = vsel %vm1674, %v2169, 0
  %v2225 = vsel %vm1729, %v2128, 0
  %2227 = vmatprep.subr.bf16.mxu0 0
  %2228 = vmatpush1.bf16.msra.mxu0 0
  %2229 = vmatprep.subr.bf16.mxu0 0
  %2230 = vmatpush1.bf16.msra.mxu0 0
  %2231 = vmatprep.subr.bf16.mxu0 0
  %2232 = vmatpush1.bf16.msra.mxu0 0
  %2233 = vmatprep.subr.bf16.mxu0 0
  %2234 = vmatpush1.bf16.msra.mxu0 0
  %2235 = vmatprep.subr.bf16.mxu0 0
  %2236 = vmatpush1.bf16.msra.mxu0 0
  %2237 = vmatprep.subr.bf16.mxu0 0
  %2238 = vmatpush1.bf16.msra.mxu0 0
  %2239 = vmatprep.subr.bf16.mxu0 0
  %2240 = vmatpush1.bf16.msra.mxu0 0
  %2241 = vmatprep.subr.bf16.mxu0 0
  %2242 = vmatpush1.bf16.msra.mxu0 %v2225
  %2243 = vmatprep.subr.bf16.mxu0 0
  %2244 = vmatpush2.bf16.msra.mxu0 0
  %2245 = vmatprep.subr.bf16.mxu0 0
  %2246 = vmatpush2.bf16.msra.mxu0 0
  %2247 = vmatprep.subr.bf16.mxu0 0
  %2248 = vmatpush2.bf16.msra.mxu0 0
  %2249 = vmatprep.subr.bf16.mxu0 0
  %2250 = vmatpush2.bf16.msra.mxu0 0
  %2251 = vmatprep.subr.bf16.mxu0 0
  %2252 = vmatpush2.bf16.msra.mxu0 0
  %2253 = vmatprep.subr.bf16.mxu0 0
  %2254 = vmatpush2.bf16.msra.mxu0 0
  %2255 = vmatprep.subr.bf16.mxu0 0
  %2256 = vmatpush2.bf16.msra.mxu0 0
  %2257 = vmatprep.subr.bf16.mxu0 0
  %2258 = vmatpush2.bf16.msra.mxu0 0
  %2259 = vmatprep.mubr.bf16.mxu0 0
  %2260 = vmatmul.mubr.bf16.gmra.mxu0 %v2171
  %v2261 = vpop.f32.mrf.mxu0
  %v2262 = vadd.f32 0.0, %v2261
  %v2263 = vpop.f32.mrf.mxu0
  %v2264 = vpop.f32.mrf.mxu0
  %v2265 = vadd.f32 0.0, %v2264
  %v2266 = vpop.f32.mrf.mxu0
  %2267 = vmatprep.mubr.bf16.mxu0 0
  %2268 = vmatmul.mubr.bf16.gmra.mxu0 %v2174
  %v2269 = vpop.f32.mrf.mxu0
  %v2270 = vadd.f32 0.0, %v2269
  %v2271 = vpop.f32.mrf.mxu0
  %v2272 = vpop.f32.mrf.mxu0
  %v2273 = vadd.f32 0.0, %v2272
  %v2274 = vpop.f32.mrf.mxu0
  %2275 = vmatprep.mubr.bf16.mxu0 0
  %2276 = vmatmul.mubr.bf16.gmra.mxu0 %v2177
  %v2277 = vpop.f32.mrf.mxu0
  %v2278 = vadd.f32 0.0, %v2277
  %v2279 = vpop.f32.mrf.mxu0
  %v2280 = vpop.f32.mrf.mxu0
  %v2281 = vadd.f32 0.0, %v2280
  %v2282 = vpop.f32.mrf.mxu0
  %2283 = vmatprep.mubr.bf16.mxu0 0
  %2284 = vmatmul.mubr.bf16.gmra.mxu0 %v2180
  %v2285 = vpop.f32.mrf.mxu0
  %v2286 = vadd.f32 0.0, %v2285
  %v2287 = vpop.f32.mrf.mxu0
  %v2288 = vpop.f32.mrf.mxu0
  %v2289 = vadd.f32 0.0, %v2288
  %v2290 = vpop.f32.mrf.mxu0
  %2291 = vmatprep.mubr.bf16.mxu0 0
  %2292 = vmatmul.mubr.bf16.gmra.mxu0 %v2183
  %v2293 = vpop.f32.mrf.mxu0
  %v2294 = vadd.f32 0.0, %v2293
  %v2295 = vpop.f32.mrf.mxu0
  %v2296 = vpop.f32.mrf.mxu0
  %v2297 = vadd.f32 0.0, %v2296
  %v2298 = vpop.f32.mrf.mxu0
  %2299 = vmatprep.mubr.bf16.mxu0 0
  %2300 = vmatmul.mubr.bf16.gmra.mxu0 %v2186
  %v2301 = vpop.f32.mrf.mxu0
  %v2302 = vadd.f32 0.0, %v2301
  %v2303 = vpop.f32.mrf.mxu0
  %v2304 = vpop.f32.mrf.mxu0
  %v2305 = vadd.f32 0.0, %v2304
  %v2306 = vpop.f32.mrf.mxu0
  %2307 = vmatprep.mubr.bf16.mxu0 0
  %2308 = vmatmul.mubr.bf16.gmra.mxu0 %v2189
  %v2309 = vpop.f32.mrf.mxu0
  %v2310 = vadd.f32 0.0, %v2309
  %v2311 = vpop.f32.mrf.mxu0
  %v2312 = vpop.f32.mrf.mxu0
  %v2313 = vadd.f32 0.0, %v2312
  %v2314 = vpop.f32.mrf.mxu0
  %2315 = vmatprep.mubr.bf16.mxu0 0
  %2316 = vmatmul.mubr.bf16.gmra.mxu0 %v2192
  %v2317 = vpop.f32.mrf.mxu0
  %v2318 = vadd.f32 0.0, %v2317
  %v2319 = vpop.f32.mrf.mxu0
  %v2320 = vpop.f32.mrf.mxu0
  %v2321 = vadd.f32 0.0, %v2320
  %v2322 = vpop.f32.mrf.mxu0
  %2323 = vmatprep.mubr.bf16.mxu0 0
  %2324 = vmatmul.mubr.bf16.gmra.mxu0 %v2195
  %v2325 = vpop.f32.mrf.mxu0
  %v2326 = vadd.f32 0.0, %v2325
  %v2327 = vpop.f32.mrf.mxu0
  %v2328 = vpop.f32.mrf.mxu0
  %v2329 = vadd.f32 0.0, %v2328
  %v2330 = vpop.f32.mrf.mxu0
  %2331 = vmatprep.mubr.bf16.mxu0 0
  %2332 = vmatmul.mubr.bf16.gmra.mxu0 %v2198
  %v2333 = vpop.f32.mrf.mxu0
  %v2334 = vadd.f32 0.0, %v2333
  %v2335 = vpop.f32.mrf.mxu0
  %v2336 = vpop.f32.mrf.mxu0
  %v2337 = vadd.f32 0.0, %v2336
  %v2338 = vpop.f32.mrf.mxu0
  %2339 = vmatprep.mubr.bf16.mxu0 0
  %2340 = vmatmul.mubr.bf16.gmra.mxu0 %v2201
  %v2341 = vpop.f32.mrf.mxu0
  %v2342 = vadd.f32 0.0, %v2341
  %v2343 = vpop.f32.mrf.mxu0
  %v2344 = vpop.f32.mrf.mxu0
  %v2345 = vadd.f32 0.0, %v2344
  %v2346 = vpop.f32.mrf.mxu0
  %2347 = vmatprep.mubr.bf16.mxu0 0
  %2348 = vmatmul.mubr.bf16.gmra.mxu0 %v2204
  %v2349 = vpop.f32.mrf.mxu0
  %v2350 = vadd.f32 0.0, %v2349
  %v2351 = vpop.f32.mrf.mxu0
  %v2352 = vpop.f32.mrf.mxu0
  %v2353 = vadd.f32 0.0, %v2352
  %v2354 = vpop.f32.mrf.mxu0
  %2355 = vmatprep.mubr.bf16.mxu0 0
  %2356 = vmatmul.mubr.bf16.gmra.mxu0 %v2207
  %v2357 = vpop.f32.mrf.mxu0
  %v2358 = vadd.f32 0.0, %v2357
  %v2359 = vpop.f32.mrf.mxu0
  %v2360 = vpop.f32.mrf.mxu0
  %v2361 = vadd.f32 0.0, %v2360
  %v2362 = vpop.f32.mrf.mxu0
  %2363 = vmatprep.mubr.bf16.mxu0 0
  %2364 = vmatmul.mubr.bf16.gmra.mxu0 %v2210
  %v2365 = vpop.f32.mrf.mxu0
  %v2366 = vadd.f32 0.0, %v2365
  %v2367 = vpop.f32.mrf.mxu0
  %v2368 = vpop.f32.mrf.mxu0
  %v2369 = vadd.f32 0.0, %v2368
  %v2370 = vpop.f32.mrf.mxu0
  %2371 = vmatprep.mubr.bf16.mxu0 0
  %2372 = vmatmul.mubr.bf16.gmra.mxu0 %v2213
  %v2373 = vpop.f32.mrf.mxu0
  %v2374 = vadd.f32 0.0, %v2373
  %v2375 = vpop.f32.mrf.mxu0
  %v2376 = vpop.f32.mrf.mxu0
  %v2377 = vadd.f32 0.0, %v2376
  %v2378 = vpop.f32.mrf.mxu0
  %2379 = vmatprep.mubr.bf16.mxu0 0
  %2380 = vmatmul.mubr.bf16.gmra.mxu0 %v2216
  %v2381 = vpop.f32.mrf.mxu0
  %v2382 = vadd.f32 0.0, %v2381
  %v2383 = vpop.f32.mrf.mxu0
  %v2384 = vpop.f32.mrf.mxu0
  %v2385 = vadd.f32 0.0, %v2384
  %v2386 = vpop.f32.mrf.mxu0
  %2387 = vmatprep.mubr.bf16.mxu0 0
  %2388 = vmatmul.mubr.bf16.gmra.mxu0 %v2219
  %v2389 = vpop.f32.mrf.mxu0
  %v2390 = vadd.f32 0.0, %v2389
  %v2391 = vpop.f32.mrf.mxu0
  %v2392 = vpop.f32.mrf.mxu0
  %v2393 = vadd.f32 0.0, %v2392
  %v2394 = vpop.f32.mrf.mxu0
  %2395 = vmatprep.mubr.bf16.mxu0 0
  %2396 = vmatmul.mubr.bf16.gmra.mxu0 %v2222
  %v2397 = vpop.f32.mrf.mxu0
  %v2398 = vadd.f32 0.0, %v2397
  %v2399 = vpop.f32.mrf.mxu0
  %v2400 = vpop.f32.mrf.mxu0
  %v2401 = vadd.f32 0.0, %v2400
  %v2402 = vpop.f32.mrf.mxu0
  %2403 = vdwg.mxu0
  %v2404 = vadd.f32 %v1984, %v2262
  %v2405 = vadd.f32 %v1987, %v2265
  %v2406 = vadd.f32 %v1992, %v2270
  %v2407 = vadd.f32 %v1995, %v2273
  %v2408 = vadd.f32 %v2000, %v2278
  %v2409 = vadd.f32 %v2003, %v2281
  %v2410 = vadd.f32 %v2008, %v2286
  %v2411 = vadd.f32 %v2011, %v2289
  %v2412 = vadd.f32 %v2016, %v2294
  %v2413 = vadd.f32 %v2019, %v2297
  %v2414 = vadd.f32 %v2024, %v2302
  %v2415 = vadd.f32 %v2027, %v2305
  %v2416 = vadd.f32 %v2032, %v2310
  %v2417 = vadd.f32 %v2035, %v2313
  %v2418 = vadd.f32 %v2040, %v2318
  %v2419 = vadd.f32 %v2043, %v2321
  %v2420 = vadd.f32 %v2048, %v2326
  %v2421 = vadd.f32 %v2051, %v2329
  %v2422 = vadd.f32 %v2056, %v2334
  %v2423 = vadd.f32 %v2059, %v2337
  %v2424 = vadd.f32 %v2064, %v2342
  %v2425 = vadd.f32 %v2067, %v2345
  %v2426 = vadd.f32 %v2072, %v2350
  %v2427 = vadd.f32 %v2075, %v2353
  %v2428 = vadd.f32 %v2080, %v2358
  %v2429 = vadd.f32 %v2083, %v2361
  %v2430 = vadd.f32 %v2088, %v2366
  %v2431 = vadd.f32 %v2091, %v2369
  %v2432 = vadd.f32 %v2096, %v2374
  %v2433 = vadd.f32 %v2099, %v2377
  %v2434 = vadd.f32 %v2104, %v2382
  %v2435 = vadd.f32 %v2107, %v2385
  %v2436 = vadd.f32 %v2112, %v2390
  %v2437 = vadd.f32 %v2115, %v2393
  %v2438 = vadd.f32 %v2120, %v2398
  %v2439 = vadd.f32 %v2123, %v2401
  %v2440 = vld [vmem:[#allocation2 + $0x8] sm:$0xe]
  %v2441 = vld [vmem:[#allocation2 + $0xc] sm:$0xf]
  %v2442 = vld [vmem:[#allocation2 + $0x10] sm:$0xf]
  %v2443 = vld [vmem:[#allocation2 + $0x14] sm:$0xf]
  %v2444 = vld [vmem:[#allocation2 + $0x18] sm:$0xf]
  %v2445 = vld [vmem:[#allocation2 + $0x1c] sm:$0xf]
  %v2446 = vld [vmem:[#allocation2 + $0x20] sm:$0xf]
  %v2447 = vld [vmem:[#allocation2 + $0x24] sm:$0xf]
  %v2448 = vld [vmem:[#allocation2 + $0x28] sm:$0xf]
  %v2449 = vld [vmem:[#allocation2 + $0x2c] sm:$0xf]
  %v2450 = vld [vmem:[#allocation2 + $0x30] sm:$0xf]
  %v2451 = vld [vmem:[#allocation2 + $0x34] sm:$0xf]
  %v2452 = vld [vmem:[#allocation2 + $0x38] sm:$0xf]
  %v2453 = vld [vmem:[#allocation2 + $0x3c] sm:$0xf]
  %v2454 = vld [vmem:[#allocation2 + $0x40] sm:$0xf]
  %v2455 = vld [vmem:[#allocation2 + $0x44] sm:$0xf]
  %v2456 = vld [vmem:[#allocation2 + $0x48] sm:$0xf]
  %v2457 = vld [vmem:[#allocation2 + $0x4c] sm:$0xf]
  %v2458 = vld [vmem:[#allocation2 + $0x50] sm:$0xf]
  %v2459 = vld [vmem:[#allocation2 + $0x54] sm:$0xf]
  %v2460 = vld [vmem:[#allocation2 + $0x58] sm:$0xf]
  %v2461 = vld [vmem:[#allocation2 + $0x5c] sm:$0xf]
  %v2462 = vld [vmem:[#allocation2 + $0x60] sm:$0xf]
  %v2463 = vld [vmem:[#allocation2 + $0x64] sm:$0xf]
  %v2464 = vld [vmem:[#allocation2 + $0x68] sm:$0xf]
  %v2465 = vld [vmem:[#allocation2 + $0x6c] sm:$0xf]
  %v2466 = vld [vmem:[#allocation2 + $0x70] sm:$0xf]
  %v2467 = vld [vmem:[#allocation2 + $0x74] sm:$0xf]
  %v2468 = vld [vmem:[#allocation2 + $0x78] sm:$0xf]
  %v2469 = vld [vmem:[#allocation2 + $0x7c] sm:$0xf]
  %v2470 = vld [vmem:[#allocation2 + $0x80] sm:$0xf]
  %v2471 = vld [vmem:[#allocation2 + $0x84] sm:$0xf]
  %v2472 = vld [vmem:[#allocation2 + $0x88] sm:$0xf]
  %v2473 = vld [vmem:[#allocation2 + $0x8c] sm:$0xf]
  %v2474 = vld [vmem:[#allocation2 + $0x90] sm:$0xf]
  %v2475 = vld [vmem:[#allocation2 + $0x94] sm:$0xf]
  %v2476 = vld [vmem:[#allocation2 + $0x98] sm:$0x1]
  %s2477 = scalar_lea.vmem %s3, 6
  %v2478 = vld [vmem:[%s2477] sm:$0x3]
  %v2516 = vunpack.c.l.b16 %v2440
  %v2517 = vunpack.c.l.b16 %v2441
  %v2518 = vunpack.c.l.b16 %v2442
  %v2519 = vunpack.c.l.b16 %v2443
  %v2520 = vunpack.c.l.b16 %v2444
  %v2521 = vunpack.c.l.b16 %v2445
  %v2522 = vunpack.c.l.b16 %v2446
  %v2523 = vunpack.c.l.b16 %v2447
  %v2524 = vunpack.c.l.b16 %v2448
  %v2525 = vunpack.c.l.b16 %v2449
  %v2526 = vunpack.c.l.b16 %v2450
  %v2527 = vunpack.c.l.b16 %v2451
  %v2528 = vunpack.c.l.b16 %v2452
  %v2529 = vunpack.c.l.b16 %v2453
  %v2530 = vunpack.c.l.b16 %v2454
  %v2531 = vunpack.c.l.b16 %v2455
  %v2532 = vunpack.c.l.b16 %v2456
  %v2533 = vunpack.c.l.b16 %v2457
  %v2534 = vunpack.c.l.b16 %v2458
  %v2535 = vunpack.c.l.b16 %v2459
  %v2536 = vunpack.c.l.b16 %v2460
  %v2537 = vunpack.c.l.b16 %v2461
  %v2538 = vunpack.c.l.b16 %v2462
  %v2539 = vunpack.c.l.b16 %v2463
  %v2540 = vunpack.c.l.b16 %v2464
  %v2541 = vunpack.c.l.b16 %v2465
  %v2542 = vunpack.c.l.b16 %v2466
  %v2543 = vunpack.c.l.b16 %v2467
  %v2544 = vunpack.c.l.b16 %v2468
  %v2545 = vunpack.c.l.b16 %v2469
  %v2546 = vunpack.c.l.b16 %v2470
  %v2547 = vunpack.c.l.b16 %v2471
  %v2548 = vunpack.c.l.b16 %v2472
  %v2549 = vunpack.c.l.b16 %v2473
  %v2550 = vunpack.c.l.b16 %v2474
  %v2551 = vunpack.c.l.b16 %v2475
  %v2552 = vunpack.c.l.b16 %v2476
  %v2553 = vpack.c.b16 %v2517, %v2516
  %v2554 = vpack.c.b16 %v2519, %v2518
  %v2555 = vpack.c.b16 %v2521, %v2520
  %v2556 = vpack.c.b16 %v2523, %v2522
  %v2557 = vpack.c.b16 %v2525, %v2524
  %v2558 = vpack.c.b16 %v2527, %v2526
  %v2559 = vpack.c.b16 %v2529, %v2528
  %v2560 = vpack.c.b16 %v2531, %v2530
  %v2561 = vpack.c.b16 %v2533, %v2532
  %v2562 = vpack.c.b16 %v2535, %v2534
  %v2563 = vpack.c.b16 %v2537, %v2536
  %v2564 = vpack.c.b16 %v2539, %v2538
  %v2565 = vpack.c.b16 %v2541, %v2540
  %v2566 = vpack.c.b16 %v2543, %v2542
  %v2567 = vpack.c.b16 %v2545, %v2544
  %v2568 = vpack.c.b16 %v2547, %v2546
  %v2569 = vpack.c.b16 %v2549, %v2548
  %v2570 = vpack.c.b16 %v2551, %v2550
  %v2571 = vpack.c.b16 %v2552, %v2552
  %v2572 = vrot.slane %v2553, 1
  %v2573 = vrot.slane %v2554, 1
  %v2574 = vsel %vm2132, %v2572, %v2573
  %v2575 = vrot.slane %v2555, 1
  %v2576 = vsel %vm2132, %v2573, %v2575
  %v2577 = vrot.slane %v2556, 1
  %v2578 = vsel %vm2132, %v2575, %v2577
  %v2579 = vrot.slane %v2557, 1
  %v2580 = vsel %vm2132, %v2577, %v2579
  %v2581 = vrot.slane %v2558, 1
  %v2582 = vsel %vm2132, %v2579, %v2581
  %v2583 = vrot.slane %v2559, 1
  %v2584 = vsel %vm2132, %v2581, %v2583
  %v2585 = vrot.slane %v2560, 1
  %v2586 = vsel %vm2132, %v2583, %v2585
  %v2587 = vrot.slane %v2561, 1
  %v2588 = vsel %vm2132, %v2585, %v2587
  %v2589 = vrot.slane %v2562, 1
  %v2590 = vsel %vm2132, %v2587, %v2589
  %v2591 = vrot.slane %v2563, 1
  %v2592 = vsel %vm2132, %v2589, %v2591
  %v2593 = vrot.slane %v2564, 1
  %v2594 = vsel %vm2132, %v2591, %v2593
  %v2595 = vrot.slane %v2565, 1
  %v2596 = vsel %vm2132, %v2593, %v2595
  %v2597 = vrot.slane %v2566, 1
  %v2598 = vsel %vm2132, %v2595, %v2597
  %v2599 = vrot.slane %v2567, 1
  %v2600 = vsel %vm2132, %v2597, %v2599
  %v2601 = vrot.slane %v2568, 1
  %v2602 = vsel %vm2132, %v2599, %v2601
  %v2603 = vrot.slane %v2569, 1
  %v2604 = vsel %vm2132, %v2601, %v2603
  %v2605 = vrot.slane %v2570, 1
  %v2606 = vsel %vm2132, %v2603, %v2605
  %v2607 = vrot.slane %v2571, 1
  %v2608 = vsel %vm2132, %v2605, %v2607
  %v2610 = vsel %vm1674, %v2574, 0
  %v2613 = vsel %vm1674, %v2576, 0
  %v2616 = vsel %vm1674, %v2578, 0
  %v2619 = vsel %vm1674, %v2580, 0
  %v2622 = vsel %vm1674, %v2582, 0
  %v2625 = vsel %vm1674, %v2584, 0
  %v2628 = vsel %vm1674, %v2586, 0
  %v2631 = vsel %vm1674, %v2588, 0
  %v2634 = vsel %vm1674, %v2590, 0
  %v2637 = vsel %vm1674, %v2592, 0
  %v2640 = vsel %vm1674, %v2594, 0
  %v2643 = vsel %vm1674, %v2596, 0
  %v2646 = vsel %vm1674, %v2598, 0
  %v2649 = vsel %vm1674, %v2600, 0
  %v2652 = vsel %vm1674, %v2602, 0
  %v2655 = vsel %vm1674, %v2604, 0
  %v2658 = vsel %vm1674, %v2606, 0
  %v2661 = vsel %vm1674, %v2608, 0
  %v2664 = vsel %vm1729, %v2478, 0
  %2666 = vmatprep.subr.bf16.mxu0 0
  %2667 = vmatpush1.bf16.msra.mxu0 0
  %2668 = vmatprep.subr.bf16.mxu0 0
  %2669 = vmatpush1.bf16.msra.mxu0 0
  %2670 = vmatprep.subr.bf16.mxu0 0
  %2671 = vmatpush1.bf16.msra.mxu0 0
  %2672 = vmatprep.subr.bf16.mxu0 0
  %2673 = vmatpush1.bf16.msra.mxu0 0
  %2674 = vmatprep.subr.bf16.mxu0 0
  %2675 = vmatpush1.bf16.msra.mxu0 0
  %2676 = vmatprep.subr.bf16.mxu0 0
  %2677 = vmatpush1.bf16.msra.mxu0 0
  %2678 = vmatprep.subr.bf16.mxu0 0
  %2679 = vmatpush1.bf16.msra.mxu0 0
  %2680 = vmatprep.subr.bf16.mxu0 0
  %2681 = vmatpush1.bf16.msra.mxu0 %v2664
  %2682 = vmatprep.subr.bf16.mxu0 0
  %2683 = vmatpush2.bf16.msra.mxu0 0
  %2684 = vmatprep.subr.bf16.mxu0 0
  %2685 = vmatpush2.bf16.msra.mxu0 0
  %2686 = vmatprep.subr.bf16.mxu0 0
  %2687 = vmatpush2.bf16.msra.mxu0 0
  %2688 = vmatprep.subr.bf16.mxu0 0
  %2689 = vmatpush2.bf16.msra.mxu0 0
  %2690 = vmatprep.subr.bf16.mxu0 0
  %2691 = vmatpush2.bf16.msra.mxu0 0
  %2692 = vmatprep.subr.bf16.mxu0 0
  %2693 = vmatpush2.bf16.msra.mxu0 0
  %2694 = vmatprep.subr.bf16.mxu0 0
  %2695 = vmatpush2.bf16.msra.mxu0 0
  %2696 = vmatprep.subr.bf16.mxu0 0
  %2697 = vmatpush2.bf16.msra.mxu0 0
  %2698 = vmatprep.mubr.bf16.mxu0 0
  %2699 = vmatmul.mubr.bf16.gmra.mxu0 %v2610
  %v2700 = vpop.f32.mrf.mxu0
  %v2701 = vadd.f32 0.0, %v2700
  %v2702 = vpop.f32.mrf.mxu0
  %v2703 = vpop.f32.mrf.mxu0
  %v2704 = vadd.f32 0.0, %v2703
  %v2705 = vpop.f32.mrf.mxu0
  %2706 = vmatprep.mubr.bf16.mxu0 0
  %2707 = vmatmul.mubr.bf16.gmra.mxu0 %v2613
  %v2708 = vpop.f32.mrf.mxu0
  %v2709 = vadd.f32 0.0, %v2708
  %v2710 = vpop.f32.mrf.mxu0
  %v2711 = vpop.f32.mrf.mxu0
  %v2712 = vadd.f32 0.0, %v2711
  %v2713 = vpop.f32.mrf.mxu0
  %2714 = vmatprep.mubr.bf16.mxu0 0
  %2715 = vmatmul.mubr.bf16.gmra.mxu0 %v2616
  %v2716 = vpop.f32.mrf.mxu0
  %v2717 = vadd.f32 0.0, %v2716
  %v2718 = vpop.f32.mrf.mxu0
  %v2719 = vpop.f32.mrf.mxu0
  %v2720 = vadd.f32 0.0, %v2719
  %v2721 = vpop.f32.mrf.mxu0
  %2722 = vmatprep.mubr.bf16.mxu0 0
  %2723 = vmatmul.mubr.bf16.gmra.mxu0 %v2619
  %v2724 = vpop.f32.mrf.mxu0
  %v2725 = vadd.f32 0.0, %v2724
  %v2726 = vpop.f32.mrf.mxu0
  %v2727 = vpop.f32.mrf.mxu0
  %v2728 = vadd.f32 0.0, %v2727
  %v2729 = vpop.f32.mrf.mxu0
  %2730 = vmatprep.mubr.bf16.mxu0 0
  %2731 = vmatmul.mubr.bf16.gmra.mxu0 %v2622
  %v2732 = vpop.f32.mrf.mxu0
  %v2733 = vadd.f32 0.0, %v2732
  %v2734 = vpop.f32.mrf.mxu0
  %v2735 = vpop.f32.mrf.mxu0
  %v2736 = vadd.f32 0.0, %v2735
  %v2737 = vpop.f32.mrf.mxu0
  %2738 = vmatprep.mubr.bf16.mxu0 0
  %2739 = vmatmul.mubr.bf16.gmra.mxu0 %v2625
  %v2740 = vpop.f32.mrf.mxu0
  %v2741 = vadd.f32 0.0, %v2740
  %v2742 = vpop.f32.mrf.mxu0
  %v2743 = vpop.f32.mrf.mxu0
  %v2744 = vadd.f32 0.0, %v2743
  %v2745 = vpop.f32.mrf.mxu0
  %2746 = vmatprep.mubr.bf16.mxu0 0
  %2747 = vmatmul.mubr.bf16.gmra.mxu0 %v2628
  %v2748 = vpop.f32.mrf.mxu0
  %v2749 = vadd.f32 0.0, %v2748
  %v2750 = vpop.f32.mrf.mxu0
  %v2751 = vpop.f32.mrf.mxu0
  %v2752 = vadd.f32 0.0, %v2751
  %v2753 = vpop.f32.mrf.mxu0
  %2754 = vmatprep.mubr.bf16.mxu0 0
  %2755 = vmatmul.mubr.bf16.gmra.mxu0 %v2631
  %v2756 = vpop.f32.mrf.mxu0
  %v2757 = vadd.f32 0.0, %v2756
  %v2758 = vpop.f32.mrf.mxu0
  %v2759 = vpop.f32.mrf.mxu0
  %v2760 = vadd.f32 0.0, %v2759
  %v2761 = vpop.f32.mrf.mxu0
  %2762 = vmatprep.mubr.bf16.mxu0 0
  %2763 = vmatmul.mubr.bf16.gmra.mxu0 %v2634
  %v2764 = vpop.f32.mrf.mxu0
  %v2765 = vadd.f32 0.0, %v2764
  %v2766 = vpop.f32.mrf.mxu0
  %v2767 = vpop.f32.mrf.mxu0
  %v2768 = vadd.f32 0.0, %v2767
  %v2769 = vpop.f32.mrf.mxu0
  %2770 = vmatprep.mubr.bf16.mxu0 0
  %2771 = vmatmul.mubr.bf16.gmra.mxu0 %v2637
  %v2772 = vpop.f32.mrf.mxu0
  %v2773 = vadd.f32 0.0, %v2772
  %v2774 = vpop.f32.mrf.mxu0
  %v2775 = vpop.f32.mrf.mxu0
  %v2776 = vadd.f32 0.0, %v2775
  %v2777 = vpop.f32.mrf.mxu0
  %2778 = vmatprep.mubr.bf16.mxu0 0
  %2779 = vmatmul.mubr.bf16.gmra.mxu0 %v2640
  %v2780 = vpop.f32.mrf.mxu0
  %v2781 = vadd.f32 0.0, %v2780
  %v2782 = vpop.f32.mrf.mxu0
  %v2783 = vpop.f32.mrf.mxu0
  %v2784 = vadd.f32 0.0, %v2783
  %v2785 = vpop.f32.mrf.mxu0
  %2786 = vmatprep.mubr.bf16.mxu0 0
  %2787 = vmatmul.mubr.bf16.gmra.mxu0 %v2643
  %v2788 = vpop.f32.mrf.mxu0
  %v2789 = vadd.f32 0.0, %v2788
  %v2790 = vpop.f32.mrf.mxu0
  %v2791 = vpop.f32.mrf.mxu0
  %v2792 = vadd.f32 0.0, %v2791
  %v2793 = vpop.f32.mrf.mxu0
  %2794 = vmatprep.mubr.bf16.mxu0 0
  %2795 = vmatmul.mubr.bf16.gmra.mxu0 %v2646
  %v2796 = vpop.f32.mrf.mxu0
  %v2797 = vadd.f32 0.0, %v2796
  %v2798 = vpop.f32.mrf.mxu0
  %v2799 = vpop.f32.mrf.mxu0
  %v2800 = vadd.f32 0.0, %v2799
  %v2801 = vpop.f32.mrf.mxu0
  %2802 = vmatprep.mubr.bf16.mxu0 0
  %2803 = vmatmul.mubr.bf16.gmra.mxu0 %v2649
  %v2804 = vpop.f32.mrf.mxu0
  %v2805 = vadd.f32 0.0, %v2804
  %v2806 = vpop.f32.mrf.mxu0
  %v2807 = vpop.f32.mrf.mxu0
  %v2808 = vadd.f32 0.0, %v2807
  %v2809 = vpop.f32.mrf.mxu0
  %2810 = vmatprep.mubr.bf16.mxu0 0
  %2811 = vmatmul.mubr.bf16.gmra.mxu0 %v2652
  %v2812 = vpop.f32.mrf.mxu0
  %v2813 = vadd.f32 0.0, %v2812
  %v2814 = vpop.f32.mrf.mxu0
  %v2815 = vpop.f32.mrf.mxu0
  %v2816 = vadd.f32 0.0, %v2815
  %v2817 = vpop.f32.mrf.mxu0
  %2818 = vmatprep.mubr.bf16.mxu0 0
  %2819 = vmatmul.mubr.bf16.gmra.mxu0 %v2655
  %v2820 = vpop.f32.mrf.mxu0
  %v2821 = vadd.f32 0.0, %v2820
  %v2822 = vpop.f32.mrf.mxu0
  %v2823 = vpop.f32.mrf.mxu0
  %v2824 = vadd.f32 0.0, %v2823
  %v2825 = vpop.f32.mrf.mxu0
  %2826 = vmatprep.mubr.bf16.mxu0 0
  %2827 = vmatmul.mubr.bf16.gmra.mxu0 %v2658
  %v2828 = vpop.f32.mrf.mxu0
  %v2829 = vadd.f32 0.0, %v2828
  %v2830 = vpop.f32.mrf.mxu0
  %v2831 = vpop.f32.mrf.mxu0
  %v2832 = vadd.f32 0.0, %v2831
  %v2833 = vpop.f32.mrf.mxu0
  %2834 = vmatprep.mubr.bf16.mxu0 0
  %2835 = vmatmul.mubr.bf16.gmra.mxu0 %v2661
  %v2836 = vpop.f32.mrf.mxu0
  %v2837 = vadd.f32 0.0, %v2836
  %v2838 = vpop.f32.mrf.mxu0
  %v2839 = vpop.f32.mrf.mxu0
  %v2840 = vadd.f32 0.0, %v2839
  %v2841 = vpop.f32.mrf.mxu0
  %2842 = vdwg.mxu0
  %v2843 = vadd.f32 %v2404, %v2701
  %v2844 = vadd.f32 %v2405, %v2704
  %v2845 = vadd.f32 %v2406, %v2709
  %v2846 = vadd.f32 %v2407, %v2712
  %v2847 = vadd.f32 %v2408, %v2717
  %v2848 = vadd.f32 %v2409, %v2720
  %v2849 = vadd.f32 %v2410, %v2725
  %v2850 = vadd.f32 %v2411, %v2728
  %v2851 = vadd.f32 %v2412, %v2733
  %v2852 = vadd.f32 %v2413, %v2736
  %v2853 = vadd.f32 %v2414, %v2741
  %v2854 = vadd.f32 %v2415, %v2744
  %v2855 = vadd.f32 %v2416, %v2749
  %v2856 = vadd.f32 %v2417, %v2752
  %v2857 = vadd.f32 %v2418, %v2757
  %v2858 = vadd.f32 %v2419, %v2760
  %v2859 = vadd.f32 %v2420, %v2765
  %v2860 = vadd.f32 %v2421, %v2768
  %v2861 = vadd.f32 %v2422, %v2773
  %v2862 = vadd.f32 %v2423, %v2776
  %v2863 = vadd.f32 %v2424, %v2781
  %v2864 = vadd.f32 %v2425, %v2784
  %v2865 = vadd.f32 %v2426, %v2789
  %v2866 = vadd.f32 %v2427, %v2792
  %v2867 = vadd.f32 %v2428, %v2797
  %v2868 = vadd.f32 %v2429, %v2800
  %v2869 = vadd.f32 %v2430, %v2805
  %v2870 = vadd.f32 %v2431, %v2808
  %v2871 = vadd.f32 %v2432, %v2813
  %v2872 = vadd.f32 %v2433, %v2816
  %v2873 = vadd.f32 %v2434, %v2821
  %v2874 = vadd.f32 %v2435, %v2824
  %v2875 = vadd.f32 %v2436, %v2829
  %v2876 = vadd.f32 %v2437, %v2832
  %v2877 = vadd.f32 %v2438, %v2837
  %v2878 = vadd.f32 %v2439, %v2840
  %v2879 = vld [vmem:[#allocation2 + $0x98] sm:$0x3]
  %s2880 = scalar_lea.vmem %s3, 8
  %v2881 = vld [vmem:[%s2880] sm:$0x3]
  %v2883 = vunpack.c.l.b16 %v2879
  %v2884 = vpack.c.b16 %v2883, %v2883
  %vm2885 = vsmask.f32 6400
  %v2887 = vshrl.u32 %v2553, 16
  %v2889 = vrot.slane %v2887, 1
  %v2890 = vshll.u32 %v2553, 16
  %v2892 = vrot.slane %v2890, 2
  %v2893 = vor.u32 %v2889, %v2892
  %v2895 = vshrl.u32 %v2554, 16
  %v2897 = vrot.slane %v2895, 1
  %v2898 = vshll.u32 %v2554, 16
  %v2900 = vrot.slane %v2898, 2
  %v2901 = vor.u32 %v2897, %v2900
  %v2902 = vsel %vm2885, %v2893, %v2901
  %v2904 = vshrl.u32 %v2555, 16
  %v2906 = vrot.slane %v2904, 1
  %v2907 = vshll.u32 %v2555, 16
  %v2909 = vrot.slane %v2907, 2
  %v2910 = vor.u32 %v2906, %v2909
  %v2911 = vsel %vm2885, %v2901, %v2910
  %v2913 = vshrl.u32 %v2556, 16
  %v2915 = vrot.slane %v2913, 1
  %v2916 = vshll.u32 %v2556, 16
  %v2918 = vrot.slane %v2916, 2
  %v2919 = vor.u32 %v2915, %v2918
  %v2920 = vsel %vm2885, %v2910, %v2919
  %v2922 = vshrl.u32 %v2557, 16
  %v2924 = vrot.slane %v2922, 1
  %v2925 = vshll.u32 %v2557, 16
  %v2927 = vrot.slane %v2925, 2
  %v2928 = vor.u32 %v2924, %v2927
  %v2929 = vsel %vm2885, %v2919, %v2928
  %v2931 = vshrl.u32 %v2558, 16
  %v2933 = vrot.slane %v2931, 1
  %v2934 = vshll.u32 %v2558, 16
  %v2936 = vrot.slane %v2934, 2
  %v2937 = vor.u32 %v2933, %v2936
  %v2938 = vsel %vm2885, %v2928, %v2937
  %v2940 = vshrl.u32 %v2559, 16
  %v2942 = vrot.slane %v2940, 1
  %v2943 = vshll.u32 %v2559, 16
  %v2945 = vrot.slane %v2943, 2
  %v2946 = vor.u32 %v2942, %v2945
  %v2947 = vsel %vm2885, %v2937, %v2946
  %v2949 = vshrl.u32 %v2560, 16
  %v2951 = vrot.slane %v2949, 1
  %v2952 = vshll.u32 %v2560, 16
  %v2954 = vrot.slane %v2952, 2
  %v2955 = vor.u32 %v2951, %v2954
  %v2956 = vsel %vm2885, %v2946, %v2955
  %v2958 = vshrl.u32 %v2561, 16
  %v2960 = vrot.slane %v2958, 1
  %v2961 = vshll.u32 %v2561, 16
  %v2963 = vrot.slane %v2961, 2
  %v2964 = vor.u32 %v2960, %v2963
  %v2965 = vsel %vm2885, %v2955, %v2964
  %v2967 = vshrl.u32 %v2562, 16
  %v2969 = vrot.slane %v2967, 1
  %v2970 = vshll.u32 %v2562, 16
  %v2972 = vrot.slane %v2970, 2
  %v2973 = vor.u32 %v2969, %v2972
  %v2974 = vsel %vm2885, %v2964, %v2973
  %v2976 = vshrl.u32 %v2563, 16
  %v2978 = vrot.slane %v2976, 1
  %v2979 = vshll.u32 %v2563, 16
  %v2981 = vrot.slane %v2979, 2
  %v2982 = vor.u32 %v2978, %v2981
  %v2983 = vsel %vm2885, %v2973, %v2982
  %v2985 = vshrl.u32 %v2564, 16
  %v2987 = vrot.slane %v2985, 1
  %v2988 = vshll.u32 %v2564, 16
  %v2990 = vrot.slane %v2988, 2
  %v2991 = vor.u32 %v2987, %v2990
  %v2992 = vsel %vm2885, %v2982, %v2991
  %v2994 = vshrl.u32 %v2565, 16
  %v2996 = vrot.slane %v2994, 1
  %v2997 = vshll.u32 %v2565, 16
  %v2999 = vrot.slane %v2997, 2
  %v3000 = vor.u32 %v2996, %v2999
  %v3001 = vsel %vm2885, %v2991, %v3000
  %v3003 = vshrl.u32 %v2566, 16
  %v3005 = vrot.slane %v3003, 1
  %v3006 = vshll.u32 %v2566, 16
  %v3008 = vrot.slane %v3006, 2
  %v3009 = vor.u32 %v3005, %v3008
  %v3010 = vsel %vm2885, %v3000, %v3009
  %v3012 = vshrl.u32 %v2567, 16
  %v3014 = vrot.slane %v3012, 1
  %v3015 = vshll.u32 %v2567, 16
  %v3017 = vrot.slane %v3015, 2
  %v3018 = vor.u32 %v3014, %v3017
  %v3019 = vsel %vm2885, %v3009, %v3018
  %v3021 = vshrl.u32 %v2568, 16
  %v3023 = vrot.slane %v3021, 1
  %v3024 = vshll.u32 %v2568, 16
  %v3026 = vrot.slane %v3024, 2
  %v3027 = vor.u32 %v3023, %v3026
  %v3028 = vsel %vm2885, %v3018, %v3027
  %v3030 = vshrl.u32 %v2569, 16
  %v3032 = vrot.slane %v3030, 1
  %v3033 = vshll.u32 %v2569, 16
  %v3035 = vrot.slane %v3033, 2
  %v3036 = vor.u32 %v3032, %v3035
  %v3037 = vsel %vm2885, %v3027, %v3036
  %v3039 = vshrl.u32 %v2570, 16
  %v3041 = vrot.slane %v3039, 1
  %v3042 = vshll.u32 %v2570, 16
  %v3044 = vrot.slane %v3042, 2
  %v3045 = vor.u32 %v3041, %v3044
  %v3046 = vsel %vm2885, %v3036, %v3045
  %v3048 = vshrl.u32 %v2884, 16
  %v3050 = vrot.slane %v3048, 1
  %v3051 = vshll.u32 %v2884, 16
  %v3053 = vrot.slane %v3051, 2
  %v3054 = vor.u32 %v3050, %v3053
  %v3055 = vsel %vm2885, %v3045, %v3054
  %v3057 = vsel %vm1674, %v2902, 0
  %v3060 = vsel %vm1674, %v2911, 0
  %v3063 = vsel %vm1674, %v2920, 0
  %v3066 = vsel %vm1674, %v2929, 0
  %v3069 = vsel %vm1674, %v2938, 0
  %v3072 = vsel %vm1674, %v2947, 0
  %v3075 = vsel %vm1674, %v2956, 0
  %v3078 = vsel %vm1674, %v2965, 0
  %v3081 = vsel %vm1674, %v2974, 0
  %v3084 = vsel %vm1674, %v2983, 0
  %v3087 = vsel %vm1674, %v2992, 0
  %v3090 = vsel %vm1674, %v3001, 0
  %v3093 = vsel %vm1674, %v3010, 0
  %v3096 = vsel %vm1674, %v3019, 0
  %v3099 = vsel %vm1674, %v3028, 0
  %v3102 = vsel %vm1674, %v3037, 0
  %v3105 = vsel %vm1674, %v3046, 0
  %v3108 = vsel %vm1674, %v3055, 0
  %v3111 = vsel %vm1729, %v2881, 0
  %3113 = vmatprep.subr.bf16.mxu0 0
  %3114 = vmatpush1.bf16.msra.mxu0 0
  %3115 = vmatprep.subr.bf16.mxu0 0
  %3116 = vmatpush1.bf16.msra.mxu0 0
  %3117 = vmatprep.subr.bf16.mxu0 0
  %3118 = vmatpush1.bf16.msra.mxu0 0
  %3119 = vmatprep.subr.bf16.mxu0 0
  %3120 = vmatpush1.bf16.msra.mxu0 0
  %3121 = vmatprep.subr.bf16.mxu0 0
  %3122 = vmatpush1.bf16.msra.mxu0 0
  %3123 = vmatprep.subr.bf16.mxu0 0
  %3124 = vmatpush1.bf16.msra.mxu0 0
  %3125 = vmatprep.subr.bf16.mxu0 0
  %3126 = vmatpush1.bf16.msra.mxu0 0
  %3127 = vmatprep.subr.bf16.mxu0 0
  %3128 = vmatpush1.bf16.msra.mxu0 %v3111
  %3129 = vmatprep.subr.bf16.mxu0 0
  %3130 = vmatpush2.bf16.msra.mxu0 0
  %3131 = vmatprep.subr.bf16.mxu0 0
  %3132 = vmatpush2.bf16.msra.mxu0 0
  %3133 = vmatprep.subr.bf16.mxu0 0
  %3134 = vmatpush2.bf16.msra.mxu0 0
  %3135 = vmatprep.subr.bf16.mxu0 0
  %3136 = vmatpush2.bf16.msra.mxu0 0
  %3137 = vmatprep.subr.bf16.mxu0 0
  %3138 = vmatpush2.bf16.msra.mxu0 0
  %3139 = vmatprep.subr.bf16.mxu0 0
  %3140 = vmatpush2.bf16.msra.mxu0 0
  %3141 = vmatprep.subr.bf16.mxu0 0
  %3142 = vmatpush2.bf16.msra.mxu0 0
  %3143 = vmatprep.subr.bf16.mxu0 0
  %3144 = vmatpush2.bf16.msra.mxu0 0
  %3145 = vmatprep.mubr.bf16.mxu0 0
  %3146 = vmatmul.mubr.bf16.gmra.mxu0 %v3057
  %v3147 = vpop.f32.mrf.mxu0
  %v3148 = vadd.f32 0.0, %v3147
  %v3149 = vpop.f32.mrf.mxu0
  %v3150 = vpop.f32.mrf.mxu0
  %v3151 = vadd.f32 0.0, %v3150
  %v3152 = vpop.f32.mrf.mxu0
  %3153 = vmatprep.mubr.bf16.mxu0 0
  %3154 = vmatmul.mubr.bf16.gmra.mxu0 %v3060
  %v3155 = vpop.f32.mrf.mxu0
  %v3156 = vadd.f32 0.0, %v3155
  %v3157 = vpop.f32.mrf.mxu0
  %v3158 = vpop.f32.mrf.mxu0
  %v3159 = vadd.f32 0.0, %v3158
  %v3160 = vpop.f32.mrf.mxu0
  %3161 = vmatprep.mubr.bf16.mxu0 0
  %3162 = vmatmul.mubr.bf16.gmra.mxu0 %v3063
  %v3163 = vpop.f32.mrf.mxu0
  %v3164 = vadd.f32 0.0, %v3163
  %v3165 = vpop.f32.mrf.mxu0
  %v3166 = vpop.f32.mrf.mxu0
  %v3167 = vadd.f32 0.0, %v3166
  %v3168 = vpop.f32.mrf.mxu0
  %3169 = vmatprep.mubr.bf16.mxu0 0
  %3170 = vmatmul.mubr.bf16.gmra.mxu0 %v3066
  %v3171 = vpop.f32.mrf.mxu0
  %v3172 = vadd.f32 0.0, %v3171
  %v3173 = vpop.f32.mrf.mxu0
  %v3174 = vpop.f32.mrf.mxu0
  %v3175 = vadd.f32 0.0, %v3174
  %v3176 = vpop.f32.mrf.mxu0
  %3177 = vmatprep.mubr.bf16.mxu0 0
  %3178 = vmatmul.mubr.bf16.gmra.mxu0 %v3069
  %v3179 = vpop.f32.mrf.mxu0
  %v3180 = vadd.f32 0.0, %v3179
  %v3181 = vpop.f32.mrf.mxu0
  %v3182 = vpop.f32.mrf.mxu0
  %v3183 = vadd.f32 0.0, %v3182
  %v3184 = vpop.f32.mrf.mxu0
  %3185 = vmatprep.mubr.bf16.mxu0 0
  %3186 = vmatmul.mubr.bf16.gmra.mxu0 %v3072
  %v3187 = vpop.f32.mrf.mxu0
  %v3188 = vadd.f32 0.0, %v3187
  %v3189 = vpop.f32.mrf.mxu0
  %v3190 = vpop.f32.mrf.mxu0
  %v3191 = vadd.f32 0.0, %v3190
  %v3192 = vpop.f32.mrf.mxu0
  %3193 = vmatprep.mubr.bf16.mxu0 0
  %3194 = vmatmul.mubr.bf16.gmra.mxu0 %v3075
  %v3195 = vpop.f32.mrf.mxu0
  %v3196 = vadd.f32 0.0, %v3195
  %v3197 = vpop.f32.mrf.mxu0
  %v3198 = vpop.f32.mrf.mxu0
  %v3199 = vadd.f32 0.0, %v3198
  %v3200 = vpop.f32.mrf.mxu0
  %3201 = vmatprep.mubr.bf16.mxu0 0
  %3202 = vmatmul.mubr.bf16.gmra.mxu0 %v3078
  %v3203 = vpop.f32.mrf.mxu0
  %v3204 = vadd.f32 0.0, %v3203
  %v3205 = vpop.f32.mrf.mxu0
  %v3206 = vpop.f32.mrf.mxu0
  %v3207 = vadd.f32 0.0, %v3206
  %v3208 = vpop.f32.mrf.mxu0
  %3209 = vmatprep.mubr.bf16.mxu0 0
  %3210 = vmatmul.mubr.bf16.gmra.mxu0 %v3081
  %v3211 = vpop.f32.mrf.mxu0
  %v3212 = vadd.f32 0.0, %v3211
  %v3213 = vpop.f32.mrf.mxu0
  %v3214 = vpop.f32.mrf.mxu0
  %v3215 = vadd.f32 0.0, %v3214
  %v3216 = vpop.f32.mrf.mxu0
  %3217 = vmatprep.mubr.bf16.mxu0 0
  %3218 = vmatmul.mubr.bf16.gmra.mxu0 %v3084
  %v3219 = vpop.f32.mrf.mxu0
  %v3220 = vadd.f32 0.0, %v3219
  %v3221 = vpop.f32.mrf.mxu0
  %v3222 = vpop.f32.mrf.mxu0
  %v3223 = vadd.f32 0.0, %v3222
  %v3224 = vpop.f32.mrf.mxu0
  %3225 = vmatprep.mubr.bf16.mxu0 0
  %3226 = vmatmul.mubr.bf16.gmra.mxu0 %v3087
  %v3227 = vpop.f32.mrf.mxu0
  %v3228 = vadd.f32 0.0, %v3227
  %v3229 = vpop.f32.mrf.mxu0
  %v3230 = vpop.f32.mrf.mxu0
  %v3231 = vadd.f32 0.0, %v3230
  %v3232 = vpop.f32.mrf.mxu0
  %3233 = vmatprep.mubr.bf16.mxu0 0
  %3234 = vmatmul.mubr.bf16.gmra.mxu0 %v3090
  %v3235 = vpop.f32.mrf.mxu0
  %v3236 = vadd.f32 0.0, %v3235
  %v3237 = vpop.f32.mrf.mxu0
  %v3238 = vpop.f32.mrf.mxu0
  %v3239 = vadd.f32 0.0, %v3238
  %v3240 = vpop.f32.mrf.mxu0
  %3241 = vmatprep.mubr.bf16.mxu0 0
  %3242 = vmatmul.mubr.bf16.gmra.mxu0 %v3093
  %v3243 = vpop.f32.mrf.mxu0
  %v3244 = vadd.f32 0.0, %v3243
  %v3245 = vpop.f32.mrf.mxu0
  %v3246 = vpop.f32.mrf.mxu0
  %v3247 = vadd.f32 0.0, %v3246
  %v3248 = vpop.f32.mrf.mxu0
  %3249 = vmatprep.mubr.bf16.mxu0 0
  %3250 = vmatmul.mubr.bf16.gmra.mxu0 %v3096
  %v3251 = vpop.f32.mrf.mxu0
  %v3252 = vadd.f32 0.0, %v3251
  %v3253 = vpop.f32.mrf.mxu0
  %v3254 = vpop.f32.mrf.mxu0
  %v3255 = vadd.f32 0.0, %v3254
  %v3256 = vpop.f32.mrf.mxu0
  %3257 = vmatprep.mubr.bf16.mxu0 0
  %3258 = vmatmul.mubr.bf16.gmra.mxu0 %v3099
  %v3259 = vpop.f32.mrf.mxu0
  %v3260 = vadd.f32 0.0, %v3259
  %v3261 = vpop.f32.mrf.mxu0
  %v3262 = vpop.f32.mrf.mxu0
  %v3263 = vadd.f32 0.0, %v3262
  %v3264 = vpop.f32.mrf.mxu0
  %3265 = vmatprep.mubr.bf16.mxu0 0
  %3266 = vmatmul.mubr.bf16.gmra.mxu0 %v3102
  %v3267 = vpop.f32.mrf.mxu0
  %v3268 = vadd.f32 0.0, %v3267
  %v3269 = vpop.f32.mrf.mxu0
  %v3270 = vpop.f32.mrf.mxu0
  %v3271 = vadd.f32 0.0, %v3270
  %v3272 = vpop.f32.mrf.mxu0
  %3273 = vmatprep.mubr.bf16.mxu0 0
  %3274 = vmatmul.mubr.bf16.gmra.mxu0 %v3105
  %v3275 = vpop.f32.mrf.mxu0
  %v3276 = vadd.f32 0.0, %v3275
  %v3277 = vpop.f32.mrf.mxu0
  %v3278 = vpop.f32.mrf.mxu0
  %v3279 = vadd.f32 0.0, %v3278
  %v3280 = vpop.f32.mrf.mxu0
  %3281 = vmatprep.mubr.bf16.mxu0 0
  %3282 = vmatmul.mubr.bf16.gmra.mxu0 %v3108
  %v3283 = vpop.f32.mrf.mxu0
  %v3284 = vadd.f32 0.0, %v3283
  %v3285 = vpop.f32.mrf.mxu0
  %v3286 = vpop.f32.mrf.mxu0
  %v3287 = vadd.f32 0.0, %v3286
  %v3288 = vpop.f32.mrf.mxu0
  %3289 = vdwg.mxu0
  %v3290 = vadd.f32 %v2843, %v3148
  %v3291 = vadd.f32 %v2844, %v3151
  %v3292 = vadd.f32 %v2845, %v3156
  %v3293 = vadd.f32 %v2846, %v3159
  %v3294 = vadd.f32 %v2847, %v3164
  %v3295 = vadd.f32 %v2848, %v3167
  %v3296 = vadd.f32 %v2849, %v3172
  %v3297 = vadd.f32 %v2850, %v3175
  %v3298 = vadd.f32 %v2851, %v3180
  %v3299 = vadd.f32 %v2852, %v3183
  %v3300 = vadd.f32 %v2853, %v3188
  %v3301 = vadd.f32 %v2854, %v3191
  %v3302 = vadd.f32 %v2855, %v3196
  %v3303 = vadd.f32 %v2856, %v3199
  %v3304 = vadd.f32 %v2857, %v3204
  %v3305 = vadd.f32 %v2858, %v3207
  %v3306 = vadd.f32 %v2859, %v3212
  %v3307 = vadd.f32 %v2860, %v3215
  %v3308 = vadd.f32 %v2861, %v3220
  %v3309 = vadd.f32 %v2862, %v3223
  %v3310 = vadd.f32 %v2863, %v3228
  %v3311 = vadd.f32 %v2864, %v3231
  %v3312 = vadd.f32 %v2865, %v3236
  %v3313 = vadd.f32 %v2866, %v3239
  %v3314 = vadd.f32 %v2867, %v3244
  %v3315 = vadd.f32 %v2868, %v3247
  %v3316 = vadd.f32 %v2869, %v3252
  %v3317 = vadd.f32 %v2870, %v3255
  %v3318 = vadd.f32 %v2871, %v3260
  %v3319 = vadd.f32 %v2872, %v3263
  %v3320 = vadd.f32 %v2873, %v3268
  %v3321 = vadd.f32 %v2874, %v3271
  %v3322 = vadd.f32 %v2875, %v3276
  %v3323 = vadd.f32 %v2876, %v3279
  %v3324 = vadd.f32 %v2877, %v3284
  %v3325 = vadd.f32 %v2878, %v3287
  %v3326 = vld [vmem:[#allocation2 + $0x8] sm:$0xc]
  %s3327 = scalar_lea.vmem %s3, 10
  %v3328 = vld [vmem:[%s3327] sm:$0x3]
  %v3330 = vunpack.c.l.b16 %v3326
  %v3331 = vpack.c.b16 %v2517, %v3330
  %vm3332 = vcmask 1045504
  %v3333 = vrot.slane %v3331, 2
  %v3334 = vrot.slane %v2554, 2
  %v3335 = vsel %vm3332, %v3333, %v3334
  %v3336 = vrot.slane %v2555, 2
  %v3337 = vsel %vm3332, %v3334, %v3336
  %v3338 = vrot.slane %v2556, 2
  %v3339 = vsel %vm3332, %v3336, %v3338
  %v3340 = vrot.slane %v2557, 2
  %v3341 = vsel %vm3332, %v3338, %v3340
  %v3342 = vrot.slane %v2558, 2
  %v3343 = vsel %vm3332, %v3340, %v3342
  %v3344 = vrot.slane %v2559, 2
  %v3345 = vsel %vm3332, %v3342, %v3344
  %v3346 = vrot.slane %v2560, 2
  %v3347 = vsel %vm3332, %v3344, %v3346
  %v3348 = vrot.slane %v2561, 2
  %v3349 = vsel %vm3332, %v3346, %v3348
  %v3350 = vrot.slane %v2562, 2
  %v3351 = vsel %vm3332, %v3348, %v3350
  %v3352 = vrot.slane %v2563, 2
  %v3353 = vsel %vm3332, %v3350, %v3352
  %v3354 = vrot.slane %v2564, 2
  %v3355 = vsel %vm3332, %v3352, %v3354
  %v3356 = vrot.slane %v2565, 2
  %v3357 = vsel %vm3332, %v3354, %v3356
  %v3358 = vrot.slane %v2566, 2
  %v3359 = vsel %vm3332, %v3356, %v3358
  %v3360 = vrot.slane %v2567, 2
  %v3361 = vsel %vm3332, %v3358, %v3360
  %v3362 = vrot.slane %v2568, 2
  %v3363 = vsel %vm3332, %v3360, %v3362
  %v3364 = vrot.slane %v2569, 2
  %v3365 = vsel %vm3332, %v3362, %v3364
  %v3366 = vrot.slane %v2570, 2
  %v3367 = vsel %vm3332, %v3364, %v3366
  %v3368 = vrot.slane %v2884, 2
  %v3369 = vsel %vm3332, %v3366, %v3368
  %v3371 = vsel %vm1674, %v3335, 0
  %v3374 = vsel %vm1674, %v3337, 0
  %v3377 = vsel %vm1674, %v3339, 0
  %v3380 = vsel %vm1674, %v3341, 0
  %v3383 = vsel %vm1674, %v3343, 0
  %v3386 = vsel %vm1674, %v3345, 0
  %v3389 = vsel %vm1674, %v3347, 0
  %v3392 = vsel %vm1674, %v3349, 0
  %v3395 = vsel %vm1674, %v3351, 0
  %v3398 = vsel %vm1674, %v3353, 0
  %v3401 = vsel %vm1674, %v3355, 0
  %v3404 = vsel %vm1674, %v3357, 0
  %v3407 = vsel %vm1674, %v3359, 0
  %v3410 = vsel %vm1674, %v3361, 0
  %v3413 = vsel %vm1674, %v3363, 0
  %v3416 = vsel %vm1674, %v3365, 0
  %v3419 = vsel %vm1674, %v3367, 0
  %v3422 = vsel %vm1674, %v3369, 0
  %v3425 = vsel %vm1729, %v3328, 0
  %3427 = vmatprep.subr.bf16.mxu0 0
  %3428 = vmatpush1.bf16.msra.mxu0 0
  %3429 = vmatprep.subr.bf16.mxu0 0
  %3430 = vmatpush1.bf16.msra.mxu0 0
  %3431 = vmatprep.subr.bf16.mxu0 0
  %3432 = vmatpush1.bf16.msra.mxu0 0
  %3433 = vmatprep.subr.bf16.mxu0 0
  %3434 = vmatpush1.bf16.msra.mxu0 0
  %3435 = vmatprep.subr.bf16.mxu0 0
  %3436 = vmatpush1.bf16.msra.mxu0 0
  %3437 = vmatprep.subr.bf16.mxu0 0
  %3438 = vmatpush1.bf16.msra.mxu0 0
  %3439 = vmatprep.subr.bf16.mxu0 0
  %3440 = vmatpush1.bf16.msra.mxu0 0
  %3441 = vmatprep.subr.bf16.mxu0 0
  %3442 = vmatpush1.bf16.msra.mxu0 %v3425
  %3443 = vmatprep.subr.bf16.mxu0 0
  %3444 = vmatpush2.bf16.msra.mxu0 0
  %3445 = vmatprep.subr.bf16.mxu0 0
  %3446 = vmatpush2.bf16.msra.mxu0 0
  %3447 = vmatprep.subr.bf16.mxu0 0
  %3448 = vmatpush2.bf16.msra.mxu0 0
  %3449 = vmatprep.subr.bf16.mxu0 0
  %3450 = vmatpush2.bf16.msra.mxu0 0
  %3451 = vmatprep.subr.bf16.mxu0 0
  %3452 = vmatpush2.bf16.msra.mxu0 0
  %3453 = vmatprep.subr.bf16.mxu0 0
  %3454 = vmatpush2.bf16.msra.mxu0 0
  %3455 = vmatprep.subr.bf16.mxu0 0
  %3456 = vmatpush2.bf16.msra.mxu0 0
  %3457 = vmatprep.subr.bf16.mxu0 0
  %3458 = vmatpush2.bf16.msra.mxu0 0
  %3459 = vmatprep.mubr.bf16.mxu0 0
  %3460 = vmatmul.mubr.bf16.gmra.mxu0 %v3371
  %v3461 = vpop.f32.mrf.mxu0
  %v3462 = vadd.f32 0.0, %v3461
  %v3463 = vpop.f32.mrf.mxu0
  %v3464 = vpop.f32.mrf.mxu0
  %v3465 = vadd.f32 0.0, %v3464
  %v3466 = vpop.f32.mrf.mxu0
  %3467 = vmatprep.mubr.bf16.mxu0 0
  %3468 = vmatmul.mubr.bf16.gmra.mxu0 %v3374
  %v3469 = vpop.f32.mrf.mxu0
  %v3470 = vadd.f32 0.0, %v3469
  %v3471 = vpop.f32.mrf.mxu0
  %v3472 = vpop.f32.mrf.mxu0
  %v3473 = vadd.f32 0.0, %v3472
  %v3474 = vpop.f32.mrf.mxu0
  %3475 = vmatprep.mubr.bf16.mxu0 0
  %3476 = vmatmul.mubr.bf16.gmra.mxu0 %v3377
  %v3477 = vpop.f32.mrf.mxu0
  %v3478 = vadd.f32 0.0, %v3477
  %v3479 = vpop.f32.mrf.mxu0
  %v3480 = vpop.f32.mrf.mxu0
  %v3481 = vadd.f32 0.0, %v3480
  %v3482 = vpop.f32.mrf.mxu0
  %3483 = vmatprep.mubr.bf16.mxu0 0
  %3484 = vmatmul.mubr.bf16.gmra.mxu0 %v3380
  %v3485 = vpop.f32.mrf.mxu0
  %v3486 = vadd.f32 0.0, %v3485
  %v3487 = vpop.f32.mrf.mxu0
  %v3488 = vpop.f32.mrf.mxu0
  %v3489 = vadd.f32 0.0, %v3488
  %v3490 = vpop.f32.mrf.mxu0
  %3491 = vmatprep.mubr.bf16.mxu0 0
  %3492 = vmatmul.mubr.bf16.gmra.mxu0 %v3383
  %v3493 = vpop.f32.mrf.mxu0
  %v3494 = vadd.f32 0.0, %v3493
  %v3495 = vpop.f32.mrf.mxu0
  %v3496 = vpop.f32.mrf.mxu0
  %v3497 = vadd.f32 0.0, %v3496
  %v3498 = vpop.f32.mrf.mxu0
  %3499 = vmatprep.mubr.bf16.mxu0 0
  %3500 = vmatmul.mubr.bf16.gmra.mxu0 %v3386
  %v3501 = vpop.f32.mrf.mxu0
  %v3502 = vadd.f32 0.0, %v3501
  %v3503 = vpop.f32.mrf.mxu0
  %v3504 = vpop.f32.mrf.mxu0
  %v3505 = vadd.f32 0.0, %v3504
  %v3506 = vpop.f32.mrf.mxu0
  %3507 = vmatprep.mubr.bf16.mxu0 0
  %3508 = vmatmul.mubr.bf16.gmra.mxu0 %v3389
  %v3509 = vpop.f32.mrf.mxu0
  %v3510 = vadd.f32 0.0, %v3509
  %v3511 = vpop.f32.mrf.mxu0
  %v3512 = vpop.f32.mrf.mxu0
  %v3513 = vadd.f32 0.0, %v3512
  %v3514 = vpop.f32.mrf.mxu0
  %3515 = vmatprep.mubr.bf16.mxu0 0
  %3516 = vmatmul.mubr.bf16.gmra.mxu0 %v3392
  %v3517 = vpop.f32.mrf.mxu0
  %v3518 = vadd.f32 0.0, %v3517
  %v3519 = vpop.f32.mrf.mxu0
  %v3520 = vpop.f32.mrf.mxu0
  %v3521 = vadd.f32 0.0, %v3520
  %v3522 = vpop.f32.mrf.mxu0
  %3523 = vmatprep.mubr.bf16.mxu0 0
  %3524 = vmatmul.mubr.bf16.gmra.mxu0 %v3395
  %v3525 = vpop.f32.mrf.mxu0
  %v3526 = vadd.f32 0.0, %v3525
  %v3527 = vpop.f32.mrf.mxu0
  %v3528 = vpop.f32.mrf.mxu0
  %v3529 = vadd.f32 0.0, %v3528
  %v3530 = vpop.f32.mrf.mxu0
  %3531 = vmatprep.mubr.bf16.mxu0 0
  %3532 = vmatmul.mubr.bf16.gmra.mxu0 %v3398
  %v3533 = vpop.f32.mrf.mxu0
  %v3534 = vadd.f32 0.0, %v3533
  %v3535 = vpop.f32.mrf.mxu0
  %v3536 = vpop.f32.mrf.mxu0
  %v3537 = vadd.f32 0.0, %v3536
  %v3538 = vpop.f32.mrf.mxu0
  %3539 = vmatprep.mubr.bf16.mxu0 0
  %3540 = vmatmul.mubr.bf16.gmra.mxu0 %v3401
  %v3541 = vpop.f32.mrf.mxu0
  %v3542 = vadd.f32 0.0, %v3541
  %v3543 = vpop.f32.mrf.mxu0
  %v3544 = vpop.f32.mrf.mxu0
  %v3545 = vadd.f32 0.0, %v3544
  %v3546 = vpop.f32.mrf.mxu0
  %3547 = vmatprep.mubr.bf16.mxu0 0
  %3548 = vmatmul.mubr.bf16.gmra.mxu0 %v3404
  %v3549 = vpop.f32.mrf.mxu0
  %v3550 = vadd.f32 0.0, %v3549
  %v3551 = vpop.f32.mrf.mxu0
  %v3552 = vpop.f32.mrf.mxu0
  %v3553 = vadd.f32 0.0, %v3552
  %v3554 = vpop.f32.mrf.mxu0
  %3555 = vmatprep.mubr.bf16.mxu0 0
  %3556 = vmatmul.mubr.bf16.gmra.mxu0 %v3407
  %v3557 = vpop.f32.mrf.mxu0
  %v3558 = vadd.f32 0.0, %v3557
  %v3559 = vpop.f32.mrf.mxu0
  %v3560 = vpop.f32.mrf.mxu0
  %v3561 = vadd.f32 0.0, %v3560
  %v3562 = vpop.f32.mrf.mxu0
  %3563 = vmatprep.mubr.bf16.mxu0 0
  %3564 = vmatmul.mubr.bf16.gmra.mxu0 %v3410
  %v3565 = vpop.f32.mrf.mxu0
  %v3566 = vadd.f32 0.0, %v3565
  %v3567 = vpop.f32.mrf.mxu0
  %v3568 = vpop.f32.mrf.mxu0
  %v3569 = vadd.f32 0.0, %v3568
  %v3570 = vpop.f32.mrf.mxu0
  %3571 = vmatprep.mubr.bf16.mxu0 0
  %3572 = vmatmul.mubr.bf16.gmra.mxu0 %v3413
  %v3573 = vpop.f32.mrf.mxu0
  %v3574 = vadd.f32 0.0, %v3573
  %v3575 = vpop.f32.mrf.mxu0
  %v3576 = vpop.f32.mrf.mxu0
  %v3577 = vadd.f32 0.0, %v3576
  %v3578 = vpop.f32.mrf.mxu0
  %3579 = vmatprep.mubr.bf16.mxu0 0
  %3580 = vmatmul.mubr.bf16.gmra.mxu0 %v3416
  %v3581 = vpop.f32.mrf.mxu0
  %v3582 = vadd.f32 0.0, %v3581
  %v3583 = vpop.f32.mrf.mxu0
  %v3584 = vpop.f32.mrf.mxu0
  %v3585 = vadd.f32 0.0, %v3584
  %v3586 = vpop.f32.mrf.mxu0
  %3587 = vmatprep.mubr.bf16.mxu0 0
  %3588 = vmatmul.mubr.bf16.gmra.mxu0 %v3419
  %v3589 = vpop.f32.mrf.mxu0
  %v3590 = vadd.f32 0.0, %v3589
  %v3591 = vpop.f32.mrf.mxu0
  %v3592 = vpop.f32.mrf.mxu0
  %v3593 = vadd.f32 0.0, %v3592
  %v3594 = vpop.f32.mrf.mxu0
  %3595 = vmatprep.mubr.bf16.mxu0 0
  %3596 = vmatmul.mubr.bf16.gmra.mxu0 %v3422
  %v3597 = vpop.f32.mrf.mxu0
  %v3598 = vadd.f32 0.0, %v3597
  %v3599 = vpop.f32.mrf.mxu0
  %v3600 = vpop.f32.mrf.mxu0
  %v3601 = vadd.f32 0.0, %v3600
  %v3602 = vpop.f32.mrf.mxu0
  %3603 = vdwg.mxu0
  %v3604 = vadd.f32 %v3290, %v3462
  %v3605 = vadd.f32 %v3291, %v3465
  %v3606 = vadd.f32 %v3292, %v3470
  %v3607 = vadd.f32 %v3293, %v3473
  %v3608 = vadd.f32 %v3294, %v3478
  %v3609 = vadd.f32 %v3295, %v3481
  %v3610 = vadd.f32 %v3296, %v3486
  %v3611 = vadd.f32 %v3297, %v3489
  %v3612 = vadd.f32 %v3298, %v3494
  %v3613 = vadd.f32 %v3299, %v3497
  %v3614 = vadd.f32 %v3300, %v3502
  %v3615 = vadd.f32 %v3301, %v3505
  %v3616 = vadd.f32 %v3302, %v3510
  %v3617 = vadd.f32 %v3303, %v3513
  %v3618 = vadd.f32 %v3304, %v3518
  %v3619 = vadd.f32 %v3305, %v3521
  %v3620 = vadd.f32 %v3306, %v3526
  %v3621 = vadd.f32 %v3307, %v3529
  %v3622 = vadd.f32 %v3308, %v3534
  %v3623 = vadd.f32 %v3309, %v3537
  %v3624 = vadd.f32 %v3310, %v3542
  %v3625 = vadd.f32 %v3311, %v3545
  %v3626 = vadd.f32 %v3312, %v3550
  %v3627 = vadd.f32 %v3313, %v3553
  %v3628 = vadd.f32 %v3314, %v3558
  %v3629 = vadd.f32 %v3315, %v3561
  %v3630 = vadd.f32 %v3316, %v3566
  %v3631 = vadd.f32 %v3317, %v3569
  %v3632 = vadd.f32 %v3318, %v3574
  %v3633 = vadd.f32 %v3319, %v3577
  %v3634 = vadd.f32 %v3320, %v3582
  %v3635 = vadd.f32 %v3321, %v3585
  %v3636 = vadd.f32 %v3322, %v3590
  %v3637 = vadd.f32 %v3323, %v3593
  %v3638 = vadd.f32 %v3324, %v3598
  %v3639 = vadd.f32 %v3325, %v3601
  %v3640 = vld [vmem:[#allocation2 + $0x10] sm:$0xc]
  %v3641 = vld [vmem:[#allocation2 + $0x14] sm:$0xf]
  %v3642 = vld [vmem:[#allocation2 + $0x18] sm:$0xf]
  %v3643 = vld [vmem:[#allocation2 + $0x1c] sm:$0xf]
  %v3644 = vld [vmem:[#allocation2 + $0x20] sm:$0xf]
  %v3645 = vld [vmem:[#allocation2 + $0x24] sm:$0xf]
  %v3646 = vld [vmem:[#allocation2 + $0x28] sm:$0xf]
  %v3647 = vld [vmem:[#allocation2 + $0x2c] sm:$0xf]
  %v3648 = vld [vmem:[#allocation2 + $0x30] sm:$0xf]
  %v3649 = vld [vmem:[#allocation2 + $0x34] sm:$0xf]
  %v3650 = vld [vmem:[#allocation2 + $0x38] sm:$0xf]
  %v3651 = vld [vmem:[#allocation2 + $0x3c] sm:$0xf]
  %v3652 = vld [vmem:[#allocation2 + $0x40] sm:$0xf]
  %v3653 = vld [vmem:[#allocation2 + $0x44] sm:$0xf]
  %v3654 = vld [vmem:[#allocation2 + $0x48] sm:$0xf]
  %v3655 = vld [vmem:[#allocation2 + $0x4c] sm:$0xf]
  %v3656 = vld [vmem:[#allocation2 + $0x50] sm:$0xf]
  %v3657 = vld [vmem:[#allocation2 + $0x54] sm:$0xf]
  %v3658 = vld [vmem:[#allocation2 + $0x58] sm:$0xf]
  %v3659 = vld [vmem:[#allocation2 + $0x5c] sm:$0xf]
  %v3660 = vld [vmem:[#allocation2 + $0x60] sm:$0xf]
  %v3661 = vld [vmem:[#allocation2 + $0x64] sm:$0xf]
  %v3662 = vld [vmem:[#allocation2 + $0x68] sm:$0xf]
  %v3663 = vld [vmem:[#allocation2 + $0x6c] sm:$0xf]
  %v3664 = vld [vmem:[#allocation2 + $0x70] sm:$0xf]
  %v3665 = vld [vmem:[#allocation2 + $0x74] sm:$0xf]
  %v3666 = vld [vmem:[#allocation2 + $0x78] sm:$0xf]
  %v3667 = vld [vmem:[#allocation2 + $0x7c] sm:$0xf]
  %v3668 = vld [vmem:[#allocation2 + $0x80] sm:$0xf]
  %v3669 = vld [vmem:[#allocation2 + $0x84] sm:$0xf]
  %v3670 = vld [vmem:[#allocation2 + $0x88] sm:$0xf]
  %v3671 = vld [vmem:[#allocation2 + $0x8c] sm:$0xf]
  %v3672 = vld [vmem:[#allocation2 + $0x90] sm:$0xf]
  %v3673 = vld [vmem:[#allocation2 + $0x94] sm:$0xf]
  %v3674 = vld [vmem:[#allocation2 + $0x98] sm:$0xf]
  %v3675 = vld [vmem:[#allocation2 + $0x9c] sm:$0xf]
  %v3676 = vld [vmem:[#allocation2 + $0xa0] sm:$0x3]
  %s3677 = scalar_lea.vmem %s3, 12
  %v3678 = vld [vmem:[%s3677] sm:$0x3]
  %v3716 = vunpack.c.l.b16 %v3640
  %v3717 = vunpack.c.l.b16 %v3641
  %v3718 = vunpack.c.l.b16 %v3642
  %v3719 = vunpack.c.l.b16 %v3643
  %v3720 = vunpack.c.l.b16 %v3644
  %v3721 = vunpack.c.l.b16 %v3645
  %v3722 = vunpack.c.l.b16 %v3646
  %v3723 = vunpack.c.l.b16 %v3647
  %v3724 = vunpack.c.l.b16 %v3648
  %v3725 = vunpack.c.l.b16 %v3649
  %v3726 = vunpack.c.l.b16 %v3650
  %v3727 = vunpack.c.l.b16 %v3651
  %v3728 = vunpack.c.l.b16 %v3652
  %v3729 = vunpack.c.l.b16 %v3653
  %v3730 = vunpack.c.l.b16 %v3654
  %v3731 = vunpack.c.l.b16 %v3655
  %v3732 = vunpack.c.l.b16 %v3656
  %v3733 = vunpack.c.l.b16 %v3657
  %v3734 = vunpack.c.l.b16 %v3658
  %v3735 = vunpack.c.l.b16 %v3659
  %v3736 = vunpack.c.l.b16 %v3660
  %v3737 = vunpack.c.l.b16 %v3661
  %v3738 = vunpack.c.l.b16 %v3662
  %v3739 = vunpack.c.l.b16 %v3663
  %v3740 = vunpack.c.l.b16 %v3664
  %v3741 = vunpack.c.l.b16 %v3665
  %v3742 = vunpack.c.l.b16 %v3666
  %v3743 = vunpack.c.l.b16 %v3667
  %v3744 = vunpack.c.l.b16 %v3668
  %v3745 = vunpack.c.l.b16 %v3669
  %v3746 = vunpack.c.l.b16 %v3670
  %v3747 = vunpack.c.l.b16 %v3671
  %v3748 = vunpack.c.l.b16 %v3672
  %v3749 = vunpack.c.l.b16 %v3673
  %v3750 = vunpack.c.l.b16 %v3674
  %v3751 = vunpack.c.l.b16 %v3675
  %v3752 = vunpack.c.l.b16 %v3676
  %v3753 = vpack.c.b16 %v3717, %v3716
  %v3754 = vpack.c.b16 %v3719, %v3718
  %v3755 = vpack.c.b16 %v3721, %v3720
  %v3756 = vpack.c.b16 %v3723, %v3722
  %v3757 = vpack.c.b16 %v3725, %v3724
  %v3758 = vpack.c.b16 %v3727, %v3726
  %v3759 = vpack.c.b16 %v3729, %v3728
  %v3760 = vpack.c.b16 %v3731, %v3730
  %v3761 = vpack.c.b16 %v3733, %v3732
  %v3762 = vpack.c.b16 %v3735, %v3734
  %v3763 = vpack.c.b16 %v3737, %v3736
  %v3764 = vpack.c.b16 %v3739, %v3738
  %v3765 = vpack.c.b16 %v3741, %v3740
  %v3766 = vpack.c.b16 %v3743, %v3742
  %v3767 = vpack.c.b16 %v3745, %v3744
  %v3768 = vpack.c.b16 %v3747, %v3746
  %v3769 = vpack.c.b16 %v3749, %v3748
  %v3770 = vpack.c.b16 %v3751, %v3750
  %v3771 = vpack.c.b16 %v3752, %v3752
  %v3772 = vrot.slane %v3753, 2
  %v3773 = vrot.slane %v3754, 2
  %v3774 = vsel %vm3332, %v3772, %v3773
  %v3775 = vrot.slane %v3755, 2
  %v3776 = vsel %vm3332, %v3773, %v3775
  %v3777 = vrot.slane %v3756, 2
  %v3778 = vsel %vm3332, %v3775, %v3777
  %v3779 = vrot.slane %v3757, 2
  %v3780 = vsel %vm3332, %v3777, %v3779
  %v3781 = vrot.slane %v3758, 2
  %v3782 = vsel %vm3332, %v3779, %v3781
  %v3783 = vrot.slane %v3759, 2
  %v3784 = vsel %vm3332, %v3781, %v3783
  %v3785 = vrot.slane %v3760, 2
  %v3786 = vsel %vm3332, %v3783, %v3785
  %v3787 = vrot.slane %v3761, 2
  %v3788 = vsel %vm3332, %v3785, %v3787
  %v3789 = vrot.slane %v3762, 2
  %v3790 = vsel %vm3332, %v3787, %v3789
  %v3791 = vrot.slane %v3763, 2
  %v3792 = vsel %vm3332, %v3789, %v3791
  %v3793 = vrot.slane %v3764, 2
  %v3794 = vsel %vm3332, %v3791, %v3793
  %v3795 = vrot.slane %v3765, 2
  %v3796 = vsel %vm3332, %v3793, %v3795
  %v3797 = vrot.slane %v3766, 2
  %v3798 = vsel %vm3332, %v3795, %v3797
  %v3799 = vrot.slane %v3767, 2
  %v3800 = vsel %vm3332, %v3797, %v3799
  %v3801 = vrot.slane %v3768, 2
  %v3802 = vsel %vm3332, %v3799, %v3801
  %v3803 = vrot.slane %v3769, 2
  %v3804 = vsel %vm3332, %v3801, %v3803
  %v3805 = vrot.slane %v3770, 2
  %v3806 = vsel %vm3332, %v3803, %v3805
  %v3807 = vrot.slane %v3771, 2
  %v3808 = vsel %vm3332, %v3805, %v3807
  %v3810 = vsel %vm1674, %v3774, 0
  %v3813 = vsel %vm1674, %v3776, 0
  %v3816 = vsel %vm1674, %v3778, 0
  %v3819 = vsel %vm1674, %v3780, 0
  %v3822 = vsel %vm1674, %v3782, 0
  %v3825 = vsel %vm1674, %v3784, 0
  %v3828 = vsel %vm1674, %v3786, 0
  %v3831 = vsel %vm1674, %v3788, 0
  %v3834 = vsel %vm1674, %v3790, 0
  %v3837 = vsel %vm1674, %v3792, 0
  %v3840 = vsel %vm1674, %v3794, 0
  %v3843 = vsel %vm1674, %v3796, 0
  %v3846 = vsel %vm1674, %v3798, 0
  %v3849 = vsel %vm1674, %v3800, 0
  %v3852 = vsel %vm1674, %v3802, 0
  %v3855 = vsel %vm1674, %v3804, 0
  %v3858 = vsel %vm1674, %v3806, 0
  %v3861 = vsel %vm1674, %v3808, 0
  %v3864 = vsel %vm1729, %v3678, 0
  %3866 = vmatprep.subr.bf16.mxu0 0
  %3867 = vmatpush1.bf16.msra.mxu0 0
  %3868 = vmatprep.subr.bf16.mxu0 0
  %3869 = vmatpush1.bf16.msra.mxu0 0
  %3870 = vmatprep.subr.bf16.mxu0 0
  %3871 = vmatpush1.bf16.msra.mxu0 0
  %3872 = vmatprep.subr.bf16.mxu0 0
  %3873 = vmatpush1.bf16.msra.mxu0 0
  %3874 = vmatprep.subr.bf16.mxu0 0
  %3875 = vmatpush1.bf16.msra.mxu0 0
  %3876 = vmatprep.subr.bf16.mxu0 0
  %3877 = vmatpush1.bf16.msra.mxu0 0
  %3878 = vmatprep.subr.bf16.mxu0 0
  %3879 = vmatpush1.bf16.msra.mxu0 0
  %3880 = vmatprep.subr.bf16.mxu0 0
  %3881 = vmatpush1.bf16.msra.mxu0 %v3864
  %3882 = vmatprep.subr.bf16.mxu0 0
  %3883 = vmatpush2.bf16.msra.mxu0 0
  %3884 = vmatprep.subr.bf16.mxu0 0
  %3885 = vmatpush2.bf16.msra.mxu0 0
  %3886 = vmatprep.subr.bf16.mxu0 0
  %3887 = vmatpush2.bf16.msra.mxu0 0
  %3888 = vmatprep.subr.bf16.mxu0 0
  %3889 = vmatpush2.bf16.msra.mxu0 0
  %3890 = vmatprep.subr.bf16.mxu0 0
  %3891 = vmatpush2.bf16.msra.mxu0 0
  %3892 = vmatprep.subr.bf16.mxu0 0
  %3893 = vmatpush2.bf16.msra.mxu0 0
  %3894 = vmatprep.subr.bf16.mxu0 0
  %3895 = vmatpush2.bf16.msra.mxu0 0
  %3896 = vmatprep.subr.bf16.mxu0 0
  %3897 = vmatpush2.bf16.msra.mxu0 0
  %3898 = vmatprep.mubr.bf16.mxu0 0
  %3899 = vmatmul.mubr.bf16.gmra.mxu0 %v3810
  %v3900 = vpop.f32.mrf.mxu0
  %v3901 = vadd.f32 0.0, %v3900
  %v3902 = vpop.f32.mrf.mxu0
  %v3903 = vpop.f32.mrf.mxu0
  %v3904 = vadd.f32 0.0, %v3903
  %v3905 = vpop.f32.mrf.mxu0
  %3906 = vmatprep.mubr.bf16.mxu0 0
  %3907 = vmatmul.mubr.bf16.gmra.mxu0 %v3813
  %v3908 = vpop.f32.mrf.mxu0
  %v3909 = vadd.f32 0.0, %v3908
  %v3910 = vpop.f32.mrf.mxu0
  %v3911 = vpop.f32.mrf.mxu0
  %v3912 = vadd.f32 0.0, %v3911
  %v3913 = vpop.f32.mrf.mxu0
  %3914 = vmatprep.mubr.bf16.mxu0 0
  %3915 = vmatmul.mubr.bf16.gmra.mxu0 %v3816
  %v3916 = vpop.f32.mrf.mxu0
  %v3917 = vadd.f32 0.0, %v3916
  %v3918 = vpop.f32.mrf.mxu0
  %v3919 = vpop.f32.mrf.mxu0
  %v3920 = vadd.f32 0.0, %v3919
  %v3921 = vpop.f32.mrf.mxu0
  %3922 = vmatprep.mubr.bf16.mxu0 0
  %3923 = vmatmul.mubr.bf16.gmra.mxu0 %v3819
  %v3924 = vpop.f32.mrf.mxu0
  %v3925 = vadd.f32 0.0, %v3924
  %v3926 = vpop.f32.mrf.mxu0
  %v3927 = vpop.f32.mrf.mxu0
  %v3928 = vadd.f32 0.0, %v3927
  %v3929 = vpop.f32.mrf.mxu0
  %3930 = vmatprep.mubr.bf16.mxu0 0
  %3931 = vmatmul.mubr.bf16.gmra.mxu0 %v3822
  %v3932 = vpop.f32.mrf.mxu0
  %v3933 = vadd.f32 0.0, %v3932
  %v3934 = vpop.f32.mrf.mxu0
  %v3935 = vpop.f32.mrf.mxu0
  %v3936 = vadd.f32 0.0, %v3935
  %v3937 = vpop.f32.mrf.mxu0
  %3938 = vmatprep.mubr.bf16.mxu0 0
  %3939 = vmatmul.mubr.bf16.gmra.mxu0 %v3825
  %v3940 = vpop.f32.mrf.mxu0
  %v3941 = vadd.f32 0.0, %v3940
  %v3942 = vpop.f32.mrf.mxu0
  %v3943 = vpop.f32.mrf.mxu0
  %v3944 = vadd.f32 0.0, %v3943
  %v3945 = vpop.f32.mrf.mxu0
  %3946 = vmatprep.mubr.bf16.mxu0 0
  %3947 = vmatmul.mubr.bf16.gmra.mxu0 %v3828
  %v3948 = vpop.f32.mrf.mxu0
  %v3949 = vadd.f32 0.0, %v3948
  %v3950 = vpop.f32.mrf.mxu0
  %v3951 = vpop.f32.mrf.mxu0
  %v3952 = vadd.f32 0.0, %v3951
  %v3953 = vpop.f32.mrf.mxu0
  %3954 = vmatprep.mubr.bf16.mxu0 0
  %3955 = vmatmul.mubr.bf16.gmra.mxu0 %v3831
  %v3956 = vpop.f32.mrf.mxu0
  %v3957 = vadd.f32 0.0, %v3956
  %v3958 = vpop.f32.mrf.mxu0
  %v3959 = vpop.f32.mrf.mxu0
  %v3960 = vadd.f32 0.0, %v3959
  %v3961 = vpop.f32.mrf.mxu0
  %3962 = vmatprep.mubr.bf16.mxu0 0
  %3963 = vmatmul.mubr.bf16.gmra.mxu0 %v3834
  %v3964 = vpop.f32.mrf.mxu0
  %v3965 = vadd.f32 0.0, %v3964
  %v3966 = vpop.f32.mrf.mxu0
  %v3967 = vpop.f32.mrf.mxu0
  %v3968 = vadd.f32 0.0, %v3967
  %v3969 = vpop.f32.mrf.mxu0
  %3970 = vmatprep.mubr.bf16.mxu0 0
  %3971 = vmatmul.mubr.bf16.gmra.mxu0 %v3837
  %v3972 = vpop.f32.mrf.mxu0
  %v3973 = vadd.f32 0.0, %v3972
  %v3974 = vpop.f32.mrf.mxu0
  %v3975 = vpop.f32.mrf.mxu0
  %v3976 = vadd.f32 0.0, %v3975
  %v3977 = vpop.f32.mrf.mxu0
  %3978 = vmatprep.mubr.bf16.mxu0 0
  %3979 = vmatmul.mubr.bf16.gmra.mxu0 %v3840
  %v3980 = vpop.f32.mrf.mxu0
  %v3981 = vadd.f32 0.0, %v3980
  %v3982 = vpop.f32.mrf.mxu0
  %v3983 = vpop.f32.mrf.mxu0
  %v3984 = vadd.f32 0.0, %v3983
  %v3985 = vpop.f32.mrf.mxu0
  %3986 = vmatprep.mubr.bf16.mxu0 0
  %3987 = vmatmul.mubr.bf16.gmra.mxu0 %v3843
  %v3988 = vpop.f32.mrf.mxu0
  %v3989 = vadd.f32 0.0, %v3988
  %v3990 = vpop.f32.mrf.mxu0
  %v3991 = vpop.f32.mrf.mxu0
  %v3992 = vadd.f32 0.0, %v3991
  %v3993 = vpop.f32.mrf.mxu0
  %3994 = vmatprep.mubr.bf16.mxu0 0
  %3995 = vmatmul.mubr.bf16.gmra.mxu0 %v3846
  %v3996 = vpop.f32.mrf.mxu0
  %v3997 = vadd.f32 0.0, %v3996
  %v3998 = vpop.f32.mrf.mxu0
  %v3999 = vpop.f32.mrf.mxu0
  %v4000 = vadd.f32 0.0, %v3999
  %v4001 = vpop.f32.mrf.mxu0
  %4002 = vmatprep.mubr.bf16.mxu0 0
  %4003 = vmatmul.mubr.bf16.gmra.mxu0 %v3849
  %v4004 = vpop.f32.mrf.mxu0
  %v4005 = vadd.f32 0.0, %v4004
  %v4006 = vpop.f32.mrf.mxu0
  %v4007 = vpop.f32.mrf.mxu0
  %v4008 = vadd.f32 0.0, %v4007
  %v4009 = vpop.f32.mrf.mxu0
  %4010 = vmatprep.mubr.bf16.mxu0 0
  %4011 = vmatmul.mubr.bf16.gmra.mxu0 %v3852
  %v4012 = vpop.f32.mrf.mxu0
  %v4013 = vadd.f32 0.0, %v4012
  %v4014 = vpop.f32.mrf.mxu0
  %v4015 = vpop.f32.mrf.mxu0
  %v4016 = vadd.f32 0.0, %v4015
  %v4017 = vpop.f32.mrf.mxu0
  %4018 = vmatprep.mubr.bf16.mxu0 0
  %4019 = vmatmul.mubr.bf16.gmra.mxu0 %v3855
  %v4020 = vpop.f32.mrf.mxu0
  %v4021 = vadd.f32 0.0, %v4020
  %v4022 = vpop.f32.mrf.mxu0
  %v4023 = vpop.f32.mrf.mxu0
  %v4024 = vadd.f32 0.0, %v4023
  %v4025 = vpop.f32.mrf.mxu0
  %4026 = vmatprep.mubr.bf16.mxu0 0
  %4027 = vmatmul.mubr.bf16.gmra.mxu0 %v3858
  %v4028 = vpop.f32.mrf.mxu0
  %v4029 = vadd.f32 0.0, %v4028
  %v4030 = vpop.f32.mrf.mxu0
  %v4031 = vpop.f32.mrf.mxu0
  %v4032 = vadd.f32 0.0, %v4031
  %v4033 = vpop.f32.mrf.mxu0
  %4034 = vmatprep.mubr.bf16.mxu0 0
  %4035 = vmatmul.mubr.bf16.gmra.mxu0 %v3861
  %v4036 = vpop.f32.mrf.mxu0
  %v4037 = vadd.f32 0.0, %v4036
  %v4038 = vpop.f32.mrf.mxu0
  %v4039 = vpop.f32.mrf.mxu0
  %v4040 = vadd.f32 0.0, %v4039
  %v4041 = vpop.f32.mrf.mxu0
  %4042 = vdwg.mxu0
  %v4043 = vadd.f32 %v3604, %v3901
  %v4044 = vadd.f32 %v3605, %v3904
  %v4045 = vadd.f32 %v3606, %v3909
  %v4046 = vadd.f32 %v3607, %v3912
  %v4047 = vadd.f32 %v3608, %v3917
  %v4048 = vadd.f32 %v3609, %v3920
  %v4049 = vadd.f32 %v3610, %v3925
  %v4050 = vadd.f32 %v3611, %v3928
  %v4051 = vadd.f32 %v3612, %v3933
  %v4052 = vadd.f32 %v3613, %v3936
  %v4053 = vadd.f32 %v3614, %v3941
  %v4054 = vadd.f32 %v3615, %v3944
  %v4055 = vadd.f32 %v3616, %v3949
  %v4056 = vadd.f32 %v3617, %v3952
  %v4057 = vadd.f32 %v3618, %v3957
  %v4058 = vadd.f32 %v3619, %v3960
  %v4059 = vadd.f32 %v3620, %v3965
  %v4060 = vadd.f32 %v3621, %v3968
  %v4061 = vadd.f32 %v3622, %v3973
  %v4062 = vadd.f32 %v3623, %v3976
  %v4063 = vadd.f32 %v3624, %v3981
  %v4064 = vadd.f32 %v3625, %v3984
  %v4065 = vadd.f32 %v3626, %v3989
  %v4066 = vadd.f32 %v3627, %v3992
  %v4067 = vadd.f32 %v3628, %v3997
  %v4068 = vadd.f32 %v3629, %v4000
  %v4069 = vadd.f32 %v3630, %v4005
  %v4070 = vadd.f32 %v3631, %v4008
  %v4071 = vadd.f32 %v3632, %v4013
  %v4072 = vadd.f32 %v3633, %v4016
  %v4073 = vadd.f32 %v3634, %v4021
  %v4074 = vadd.f32 %v3635, %v4024
  %v4075 = vadd.f32 %v3636, %v4029
  %v4076 = vadd.f32 %v3637, %v4032
  %v4077 = vadd.f32 %v3638, %v4037
  %v4078 = vadd.f32 %v3639, %v4040
  %v4079 = vld [vmem:[#allocation2 + $0xa0] sm:$0x7]
  %s4080 = scalar_lea.vmem %s3, 14
  %v4081 = vld [vmem:[%s4080] sm:$0x3]
  %v4083 = vunpack.c.l.b16 %v4079
  %v4084 = vpack.c.b16 %v4083, %v4083
  %vm4085 = vsmask.f32 5376
  %v4087 = vshrl.u32 %v3753, 16
  %v4089 = vrot.slane %v4087, 2
  %v4090 = vshll.u32 %v3753, 16
  %v4092 = vrot.slane %v4090, 3
  %v4093 = vor.u32 %v4089, %v4092
  %v4095 = vshrl.u32 %v3754, 16
  %v4097 = vrot.slane %v4095, 2
  %v4098 = vshll.u32 %v3754, 16
  %v4100 = vrot.slane %v4098, 3
  %v4101 = vor.u32 %v4097, %v4100
  %v4102 = vsel %vm4085, %v4093, %v4101
  %v4104 = vshrl.u32 %v3755, 16
  %v4106 = vrot.slane %v4104, 2
  %v4107 = vshll.u32 %v3755, 16
  %v4109 = vrot.slane %v4107, 3
  %v4110 = vor.u32 %v4106, %v4109
  %v4111 = vsel %vm4085, %v4101, %v4110
  %v4113 = vshrl.u32 %v3756, 16
  %v4115 = vrot.slane %v4113, 2
  %v4116 = vshll.u32 %v3756, 16
  %v4118 = vrot.slane %v4116, 3
  %v4119 = vor.u32 %v4115, %v4118
  %v4120 = vsel %vm4085, %v4110, %v4119
  %v4122 = vshrl.u32 %v3757, 16
  %v4124 = vrot.slane %v4122, 2
  %v4125 = vshll.u32 %v3757, 16
  %v4127 = vrot.slane %v4125, 3
  %v4128 = vor.u32 %v4124, %v4127
  %v4129 = vsel %vm4085, %v4119, %v4128
  %v4131 = vshrl.u32 %v3758, 16
  %v4133 = vrot.slane %v4131, 2
  %v4134 = vshll.u32 %v3758, 16
  %v4136 = vrot.slane %v4134, 3
  %v4137 = vor.u32 %v4133, %v4136
  %v4138 = vsel %vm4085, %v4128, %v4137
  %v4140 = vshrl.u32 %v3759, 16
  %v4142 = vrot.slane %v4140, 2
  %v4143 = vshll.u32 %v3759, 16
  %v4145 = vrot.slane %v4143, 3
  %v4146 = vor.u32 %v4142, %v4145
  %v4147 = vsel %vm4085, %v4137, %v4146
  %v4149 = vshrl.u32 %v3760, 16
  %v4151 = vrot.slane %v4149, 2
  %v4152 = vshll.u32 %v3760, 16
  %v4154 = vrot.slane %v4152, 3
  %v4155 = vor.u32 %v4151, %v4154
  %v4156 = vsel %vm4085, %v4146, %v4155
  %v4158 = vshrl.u32 %v3761, 16
  %v4160 = vrot.slane %v4158, 2
  %v4161 = vshll.u32 %v3761, 16
  %v4163 = vrot.slane %v4161, 3
  %v4164 = vor.u32 %v4160, %v4163
  %v4165 = vsel %vm4085, %v4155, %v4164
  %v4167 = vshrl.u32 %v3762, 16
  %v4169 = vrot.slane %v4167, 2
  %v4170 = vshll.u32 %v3762, 16
  %v4172 = vrot.slane %v4170, 3
  %v4173 = vor.u32 %v4169, %v4172
  %v4174 = vsel %vm4085, %v4164, %v4173
  %v4176 = vshrl.u32 %v3763, 16
  %v4178 = vrot.slane %v4176, 2
  %v4179 = vshll.u32 %v3763, 16
  %v4181 = vrot.slane %v4179, 3
  %v4182 = vor.u32 %v4178, %v4181
  %v4183 = vsel %vm4085, %v4173, %v4182
  %v4185 = vshrl.u32 %v3764, 16
  %v4187 = vrot.slane %v4185, 2
  %v4188 = vshll.u32 %v3764, 16
  %v4190 = vrot.slane %v4188, 3
  %v4191 = vor.u32 %v4187, %v4190
  %v4192 = vsel %vm4085, %v4182, %v4191
  %v4194 = vshrl.u32 %v3765, 16
  %v4196 = vrot.slane %v4194, 2
  %v4197 = vshll.u32 %v3765, 16
  %v4199 = vrot.slane %v4197, 3
  %v4200 = vor.u32 %v4196, %v4199
  %v4201 = vsel %vm4085, %v4191, %v4200
  %v4203 = vshrl.u32 %v3766, 16
  %v4205 = vrot.slane %v4203, 2
  %v4206 = vshll.u32 %v3766, 16
  %v4208 = vrot.slane %v4206, 3
  %v4209 = vor.u32 %v4205, %v4208
  %v4210 = vsel %vm4085, %v4200, %v4209
  %v4212 = vshrl.u32 %v3767, 16
  %v4214 = vrot.slane %v4212, 2
  %v4215 = vshll.u32 %v3767, 16
  %v4217 = vrot.slane %v4215, 3
  %v4218 = vor.u32 %v4214, %v4217
  %v4219 = vsel %vm4085, %v4209, %v4218
  %v4221 = vshrl.u32 %v3768, 16
  %v4223 = vrot.slane %v4221, 2
  %v4224 = vshll.u32 %v3768, 16
  %v4226 = vrot.slane %v4224, 3
  %v4227 = vor.u32 %v4223, %v4226
  %v4228 = vsel %vm4085, %v4218, %v4227
  %v4230 = vshrl.u32 %v3769, 16
  %v4232 = vrot.slane %v4230, 2
  %v4233 = vshll.u32 %v3769, 16
  %v4235 = vrot.slane %v4233, 3
  %v4236 = vor.u32 %v4232, %v4235
  %v4237 = vsel %vm4085, %v4227, %v4236
  %v4239 = vshrl.u32 %v3770, 16
  %v4241 = vrot.slane %v4239, 2
  %v4242 = vshll.u32 %v3770, 16
  %v4244 = vrot.slane %v4242, 3
  %v4245 = vor.u32 %v4241, %v4244
  %v4246 = vsel %vm4085, %v4236, %v4245
  %v4248 = vshrl.u32 %v4084, 16
  %v4250 = vrot.slane %v4248, 2
  %v4251 = vshll.u32 %v4084, 16
  %v4253 = vrot.slane %v4251, 3
  %v4254 = vor.u32 %v4250, %v4253
  %v4255 = vsel %vm4085, %v4245, %v4254
  %v4257 = vsel %vm1674, %v4102, 0
  %v4260 = vsel %vm1674, %v4111, 0
  %v4263 = vsel %vm1674, %v4120, 0
  %v4266 = vsel %vm1674, %v4129, 0
  %v4269 = vsel %vm1674, %v4138, 0
  %v4272 = vsel %vm1674, %v4147, 0
  %v4275 = vsel %vm1674, %v4156, 0
  %v4278 = vsel %vm1674, %v4165, 0
  %v4281 = vsel %vm1674, %v4174, 0
  %v4284 = vsel %vm1674, %v4183, 0
  %v4287 = vsel %vm1674, %v4192, 0
  %v4290 = vsel %vm1674, %v4201, 0
  %v4293 = vsel %vm1674, %v4210, 0
  %v4296 = vsel %vm1674, %v4219, 0
  %v4299 = vsel %vm1674, %v4228, 0
  %v4302 = vsel %vm1674, %v4237, 0
  %v4305 = vsel %vm1674, %v4246, 0
  %v4308 = vsel %vm1674, %v4255, 0
  %v4311 = vsel %vm1729, %v4081, 0
  %4313 = vmatprep.subr.bf16.mxu0 0
  %4314 = vmatpush1.bf16.msra.mxu0 0
  %4315 = vmatprep.subr.bf16.mxu0 0
  %4316 = vmatpush1.bf16.msra.mxu0 0
  %4317 = vmatprep.subr.bf16.mxu0 0
  %4318 = vmatpush1.bf16.msra.mxu0 0
  %4319 = vmatprep.subr.bf16.mxu0 0
  %4320 = vmatpush1.bf16.msra.mxu0 0
  %4321 = vmatprep.subr.bf16.mxu0 0
  %4322 = vmatpush1.bf16.msra.mxu0 0
  %4323 = vmatprep.subr.bf16.mxu0 0
  %4324 = vmatpush1.bf16.msra.mxu0 0
  %4325 = vmatprep.subr.bf16.mxu0 0
  %4326 = vmatpush1.bf16.msra.mxu0 0
  %4327 = vmatprep.subr.bf16.mxu0 0
  %4328 = vmatpush1.bf16.msra.mxu0 %v4311
  %4329 = vmatprep.subr.bf16.mxu0 0
  %4330 = vmatpush2.bf16.msra.mxu0 0
  %4331 = vmatprep.subr.bf16.mxu0 0
  %4332 = vmatpush2.bf16.msra.mxu0 0
  %4333 = vmatprep.subr.bf16.mxu0 0
  %4334 = vmatpush2.bf16.msra.mxu0 0
  %4335 = vmatprep.subr.bf16.mxu0 0
  %4336 = vmatpush2.bf16.msra.mxu0 0
  %4337 = vmatprep.subr.bf16.mxu0 0
  %4338 = vmatpush2.bf16.msra.mxu0 0
  %4339 = vmatprep.subr.bf16.mxu0 0
  %4340 = vmatpush2.bf16.msra.mxu0 0
  %4341 = vmatprep.subr.bf16.mxu0 0
  %4342 = vmatpush2.bf16.msra.mxu0 0
  %4343 = vmatprep.subr.bf16.mxu0 0
  %4344 = vmatpush2.bf16.msra.mxu0 0
  %4345 = vmatprep.mubr.bf16.mxu0 0
  %4346 = vmatmul.mubr.bf16.gmra.mxu0 %v4257
  %v4347 = vpop.f32.mrf.mxu0
  %v4348 = vadd.f32 0.0, %v4347
  %v4349 = vpop.f32.mrf.mxu0
  %v4350 = vpop.f32.mrf.mxu0
  %v4351 = vadd.f32 0.0, %v4350
  %v4352 = vpop.f32.mrf.mxu0
  %4353 = vmatprep.mubr.bf16.mxu0 0
  %4354 = vmatmul.mubr.bf16.gmra.mxu0 %v4260
  %v4355 = vpop.f32.mrf.mxu0
  %v4356 = vadd.f32 0.0, %v4355
  %v4357 = vpop.f32.mrf.mxu0
  %v4358 = vpop.f32.mrf.mxu0
  %v4359 = vadd.f32 0.0, %v4358
  %v4360 = vpop.f32.mrf.mxu0
  %4361 = vmatprep.mubr.bf16.mxu0 0
  %4362 = vmatmul.mubr.bf16.gmra.mxu0 %v4263
  %v4363 = vpop.f32.mrf.mxu0
  %v4364 = vadd.f32 0.0, %v4363
  %v4365 = vpop.f32.mrf.mxu0
  %v4366 = vpop.f32.mrf.mxu0
  %v4367 = vadd.f32 0.0, %v4366
  %v4368 = vpop.f32.mrf.mxu0
  %4369 = vmatprep.mubr.bf16.mxu0 0
  %4370 = vmatmul.mubr.bf16.gmra.mxu0 %v4266
  %v4371 = vpop.f32.mrf.mxu0
  %v4372 = vadd.f32 0.0, %v4371
  %v4373 = vpop.f32.mrf.mxu0
  %v4374 = vpop.f32.mrf.mxu0
  %v4375 = vadd.f32 0.0, %v4374
  %v4376 = vpop.f32.mrf.mxu0
  %4377 = vmatprep.mubr.bf16.mxu0 0
  %4378 = vmatmul.mubr.bf16.gmra.mxu0 %v4269
  %v4379 = vpop.f32.mrf.mxu0
  %v4380 = vadd.f32 0.0, %v4379
  %v4381 = vpop.f32.mrf.mxu0
  %v4382 = vpop.f32.mrf.mxu0
  %v4383 = vadd.f32 0.0, %v4382
  %v4384 = vpop.f32.mrf.mxu0
  %4385 = vmatprep.mubr.bf16.mxu0 0
  %4386 = vmatmul.mubr.bf16.gmra.mxu0 %v4272
  %v4387 = vpop.f32.mrf.mxu0
  %v4388 = vadd.f32 0.0, %v4387
  %v4389 = vpop.f32.mrf.mxu0
  %v4390 = vpop.f32.mrf.mxu0
  %v4391 = vadd.f32 0.0, %v4390
  %v4392 = vpop.f32.mrf.mxu0
  %4393 = vmatprep.mubr.bf16.mxu0 0
  %4394 = vmatmul.mubr.bf16.gmra.mxu0 %v4275
  %v4395 = vpop.f32.mrf.mxu0
  %v4396 = vadd.f32 0.0, %v4395
  %v4397 = vpop.f32.mrf.mxu0
  %v4398 = vpop.f32.mrf.mxu0
  %v4399 = vadd.f32 0.0, %v4398
  %v4400 = vpop.f32.mrf.mxu0
  %4401 = vmatprep.mubr.bf16.mxu0 0
  %4402 = vmatmul.mubr.bf16.gmra.mxu0 %v4278
  %v4403 = vpop.f32.mrf.mxu0
  %v4404 = vadd.f32 0.0, %v4403
  %v4405 = vpop.f32.mrf.mxu0
  %v4406 = vpop.f32.mrf.mxu0
  %v4407 = vadd.f32 0.0, %v4406
  %v4408 = vpop.f32.mrf.mxu0
  %4409 = vmatprep.mubr.bf16.mxu0 0
  %4410 = vmatmul.mubr.bf16.gmra.mxu0 %v4281
  %v4411 = vpop.f32.mrf.mxu0
  %v4412 = vadd.f32 0.0, %v4411
  %v4413 = vpop.f32.mrf.mxu0
  %v4414 = vpop.f32.mrf.mxu0
  %v4415 = vadd.f32 0.0, %v4414
  %v4416 = vpop.f32.mrf.mxu0
  %4417 = vmatprep.mubr.bf16.mxu0 0
  %4418 = vmatmul.mubr.bf16.gmra.mxu0 %v4284
  %v4419 = vpop.f32.mrf.mxu0
  %v4420 = vadd.f32 0.0, %v4419
  %v4421 = vpop.f32.mrf.mxu0
  %v4422 = vpop.f32.mrf.mxu0
  %v4423 = vadd.f32 0.0, %v4422
  %v4424 = vpop.f32.mrf.mxu0
  %4425 = vmatprep.mubr.bf16.mxu0 0
  %4426 = vmatmul.mubr.bf16.gmra.mxu0 %v4287
  %v4427 = vpop.f32.mrf.mxu0
  %v4428 = vadd.f32 0.0, %v4427
  %v4429 = vpop.f32.mrf.mxu0
  %v4430 = vpop.f32.mrf.mxu0
  %v4431 = vadd.f32 0.0, %v4430
  %v4432 = vpop.f32.mrf.mxu0
  %4433 = vmatprep.mubr.bf16.mxu0 0
  %4434 = vmatmul.mubr.bf16.gmra.mxu0 %v4290
  %v4435 = vpop.f32.mrf.mxu0
  %v4436 = vadd.f32 0.0, %v4435
  %v4437 = vpop.f32.mrf.mxu0
  %v4438 = vpop.f32.mrf.mxu0
  %v4439 = vadd.f32 0.0, %v4438
  %v4440 = vpop.f32.mrf.mxu0
  %4441 = vmatprep.mubr.bf16.mxu0 0
  %4442 = vmatmul.mubr.bf16.gmra.mxu0 %v4293
  %v4443 = vpop.f32.mrf.mxu0
  %v4444 = vadd.f32 0.0, %v4443
  %v4445 = vpop.f32.mrf.mxu0
  %v4446 = vpop.f32.mrf.mxu0
  %v4447 = vadd.f32 0.0, %v4446
  %v4448 = vpop.f32.mrf.mxu0
  %4449 = vmatprep.mubr.bf16.mxu0 0
  %4450 = vmatmul.mubr.bf16.gmra.mxu0 %v4296
  %v4451 = vpop.f32.mrf.mxu0
  %v4452 = vadd.f32 0.0, %v4451
  %v4453 = vpop.f32.mrf.mxu0
  %v4454 = vpop.f32.mrf.mxu0
  %v4455 = vadd.f32 0.0, %v4454
  %v4456 = vpop.f32.mrf.mxu0
  %4457 = vmatprep.mubr.bf16.mxu0 0
  %4458 = vmatmul.mubr.bf16.gmra.mxu0 %v4299
  %v4459 = vpop.f32.mrf.mxu0
  %v4460 = vadd.f32 0.0, %v4459
  %v4461 = vpop.f32.mrf.mxu0
  %v4462 = vpop.f32.mrf.mxu0
  %v4463 = vadd.f32 0.0, %v4462
  %v4464 = vpop.f32.mrf.mxu0
  %4465 = vmatprep.mubr.bf16.mxu0 0
  %4466 = vmatmul.mubr.bf16.gmra.mxu0 %v4302
  %v4467 = vpop.f32.mrf.mxu0
  %v4468 = vadd.f32 0.0, %v4467
  %v4469 = vpop.f32.mrf.mxu0
  %v4470 = vpop.f32.mrf.mxu0
  %v4471 = vadd.f32 0.0, %v4470
  %v4472 = vpop.f32.mrf.mxu0
  %4473 = vmatprep.mubr.bf16.mxu0 0
  %4474 = vmatmul.mubr.bf16.gmra.mxu0 %v4305
  %v4475 = vpop.f32.mrf.mxu0
  %v4476 = vadd.f32 0.0, %v4475
  %v4477 = vpop.f32.mrf.mxu0
  %v4478 = vpop.f32.mrf.mxu0
  %v4479 = vadd.f32 0.0, %v4478
  %v4480 = vpop.f32.mrf.mxu0
  %4481 = vmatprep.mubr.bf16.mxu0 0
  %4482 = vmatmul.mubr.bf16.gmra.mxu0 %v4308
  %v4483 = vpop.f32.mrf.mxu0
  %v4484 = vadd.f32 0.0, %v4483
  %v4485 = vpop.f32.mrf.mxu0
  %v4486 = vpop.f32.mrf.mxu0
  %v4487 = vadd.f32 0.0, %v4486
  %v4488 = vpop.f32.mrf.mxu0
  %4489 = vdwg.mxu0
  %v4490 = vadd.f32 %v4043, %v4348
  %v4491 = vadd.f32 %v4044, %v4351
  %v4492 = vadd.f32 %v4045, %v4356
  %v4493 = vadd.f32 %v4046, %v4359
  %v4494 = vadd.f32 %v4047, %v4364
  %v4495 = vadd.f32 %v4048, %v4367
  %v4496 = vadd.f32 %v4049, %v4372
  %v4497 = vadd.f32 %v4050, %v4375
  %v4498 = vadd.f32 %v4051, %v4380
  %v4499 = vadd.f32 %v4052, %v4383
  %v4500 = vadd.f32 %v4053, %v4388
  %v4501 = vadd.f32 %v4054, %v4391
  %v4502 = vadd.f32 %v4055, %v4396
  %v4503 = vadd.f32 %v4056, %v4399
  %v4504 = vadd.f32 %v4057, %v4404
  %v4505 = vadd.f32 %v4058, %v4407
  %v4506 = vadd.f32 %v4059, %v4412
  %v4507 = vadd.f32 %v4060, %v4415
  %v4508 = vadd.f32 %v4061, %v4420
  %v4509 = vadd.f32 %v4062, %v4423
  %v4510 = vadd.f32 %v4063, %v4428
  %v4511 = vadd.f32 %v4064, %v4431
  %v4512 = vadd.f32 %v4065, %v4436
  %v4513 = vadd.f32 %v4066, %v4439
  %v4514 = vadd.f32 %v4067, %v4444
  %v4515 = vadd.f32 %v4068, %v4447
  %v4516 = vadd.f32 %v4069, %v4452
  %v4517 = vadd.f32 %v4070, %v4455
  %v4518 = vadd.f32 %v4071, %v4460
  %v4519 = vadd.f32 %v4072, %v4463
  %v4520 = vadd.f32 %v4073, %v4468
  %v4521 = vadd.f32 %v4074, %v4471
  %v4522 = vadd.f32 %v4075, %v4476
  %v4523 = vadd.f32 %v4076, %v4479
  %v4524 = vadd.f32 %v4077, %v4484
  %v4525 = vadd.f32 %v4078, %v4487
  %v4526 = vld [vmem:[#allocation2 + $0x10] sm:$0x8]
  %s4527 = scalar_lea.vmem %s3, 16
  %v4528 = vld [vmem:[%s4527] sm:$0x3]
  %v4530 = vunpack.c.l.b16 %v4526
  %v4531 = vpack.c.b16 %v3717, %v4530
  %vm4532 = vcmask 1044480
  %v4533 = vrot.slane %v4531, 3
  %v4534 = vrot.slane %v3754, 3
  %v4535 = vsel %vm4532, %v4533, %v4534
  %v4536 = vrot.slane %v3755, 3
  %v4537 = vsel %vm4532, %v4534, %v4536
  %v4538 = vrot.slane %v3756, 3
  %v4539 = vsel %vm4532, %v4536, %v4538
  %v4540 = vrot.slane %v3757, 3
  %v4541 = vsel %vm4532, %v4538, %v4540
  %v4542 = vrot.slane %v3758, 3
  %v4543 = vsel %vm4532, %v4540, %v4542
  %v4544 = vrot.slane %v3759, 3
  %v4545 = vsel %vm4532, %v4542, %v4544
  %v4546 = vrot.slane %v3760, 3
  %v4547 = vsel %vm4532, %v4544, %v4546
  %v4548 = vrot.slane %v3761, 3
  %v4549 = vsel %vm4532, %v4546, %v4548
  %v4550 = vrot.slane %v3762, 3
  %v4551 = vsel %vm4532, %v4548, %v4550
  %v4552 = vrot.slane %v3763, 3
  %v4553 = vsel %vm4532, %v4550, %v4552
  %v4554 = vrot.slane %v3764, 3
  %v4555 = vsel %vm4532, %v4552, %v4554
  %v4556 = vrot.slane %v3765, 3
  %v4557 = vsel %vm4532, %v4554, %v4556
  %v4558 = vrot.slane %v3766, 3
  %v4559 = vsel %vm4532, %v4556, %v4558
  %v4560 = vrot.slane %v3767, 3
  %v4561 = vsel %vm4532, %v4558, %v4560
  %v4562 = vrot.slane %v3768, 3
  %v4563 = vsel %vm4532, %v4560, %v4562
  %v4564 = vrot.slane %v3769, 3
  %v4565 = vsel %vm4532, %v4562, %v4564
  %v4566 = vrot.slane %v3770, 3
  %v4567 = vsel %vm4532, %v4564, %v4566
  %v4568 = vrot.slane %v4084, 3
  %v4569 = vsel %vm4532, %v4566, %v4568
  %v4571 = vsel %vm1674, %v4535, 0
  %v4574 = vsel %vm1674, %v4537, 0
  %v4577 = vsel %vm1674, %v4539, 0
  %v4580 = vsel %vm1674, %v4541, 0
  %v4583 = vsel %vm1674, %v4543, 0
  %v4586 = vsel %vm1674, %v4545, 0
  %v4589 = vsel %vm1674, %v4547, 0
  %v4592 = vsel %vm1674, %v4549, 0
  %v4595 = vsel %vm1674, %v4551, 0
  %v4598 = vsel %vm1674, %v4553, 0
  %v4601 = vsel %vm1674, %v4555, 0
  %v4604 = vsel %vm1674, %v4557, 0
  %v4607 = vsel %vm1674, %v4559, 0
  %v4610 = vsel %vm1674, %v4561, 0
  %v4613 = vsel %vm1674, %v4563, 0
  %v4616 = vsel %vm1674, %v4565, 0
  %v4619 = vsel %vm1674, %v4567, 0
  %v4622 = vsel %vm1674, %v4569, 0
  %v4625 = vsel %vm1729, %v4528, 0
  %4627 = vmatprep.subr.bf16.mxu0 0
  %4628 = vmatpush1.bf16.msra.mxu0 0
  %4629 = vmatprep.subr.bf16.mxu0 0
  %4630 = vmatpush1.bf16.msra.mxu0 0
  %4631 = vmatprep.subr.bf16.mxu0 0
  %4632 = vmatpush1.bf16.msra.mxu0 0
  %4633 = vmatprep.subr.bf16.mxu0 0
  %4634 = vmatpush1.bf16.msra.mxu0 0
  %4635 = vmatprep.subr.bf16.mxu0 0
  %4636 = vmatpush1.bf16.msra.mxu0 0
  %4637 = vmatprep.subr.bf16.mxu0 0
  %4638 = vmatpush1.bf16.msra.mxu0 0
  %4639 = vmatprep.subr.bf16.mxu0 0
  %4640 = vmatpush1.bf16.msra.mxu0 0
  %4641 = vmatprep.subr.bf16.mxu0 0
  %4642 = vmatpush1.bf16.msra.mxu0 %v4625
  %4643 = vmatprep.subr.bf16.mxu0 0
  %4644 = vmatpush2.bf16.msra.mxu0 0
  %4645 = vmatprep.subr.bf16.mxu0 0
  %4646 = vmatpush2.bf16.msra.mxu0 0
  %4647 = vmatprep.subr.bf16.mxu0 0
  %4648 = vmatpush2.bf16.msra.mxu0 0
  %4649 = vmatprep.subr.bf16.mxu0 0
  %4650 = vmatpush2.bf16.msra.mxu0 0
  %4651 = vmatprep.subr.bf16.mxu0 0
  %4652 = vmatpush2.bf16.msra.mxu0 0
  %4653 = vmatprep.subr.bf16.mxu0 0
  %4654 = vmatpush2.bf16.msra.mxu0 0
  %4655 = vmatprep.subr.bf16.mxu0 0
  %4656 = vmatpush2.bf16.msra.mxu0 0
  %4657 = vmatprep.subr.bf16.mxu0 0
  %4658 = vmatpush2.bf16.msra.mxu0 0
  %4659 = vmatprep.mubr.bf16.mxu0 0
  %4660 = vmatmul.mubr.bf16.gmra.mxu0 %v4571
  %v4661 = vpop.f32.mrf.mxu0
  %v4662 = vadd.f32 0.0, %v4661
  %v4663 = vpop.f32.mrf.mxu0
  %v4664 = vpop.f32.mrf.mxu0
  %v4665 = vadd.f32 0.0, %v4664
  %v4666 = vpop.f32.mrf.mxu0
  %4667 = vmatprep.mubr.bf16.mxu0 0
  %4668 = vmatmul.mubr.bf16.gmra.mxu0 %v4574
  %v4669 = vpop.f32.mrf.mxu0
  %v4670 = vadd.f32 0.0, %v4669
  %v4671 = vpop.f32.mrf.mxu0
  %v4672 = vpop.f32.mrf.mxu0
  %v4673 = vadd.f32 0.0, %v4672
  %v4674 = vpop.f32.mrf.mxu0
  %4675 = vmatprep.mubr.bf16.mxu0 0
  %4676 = vmatmul.mubr.bf16.gmra.mxu0 %v4577
  %v4677 = vpop.f32.mrf.mxu0
  %v4678 = vadd.f32 0.0, %v4677
  %v4679 = vpop.f32.mrf.mxu0
  %v4680 = vpop.f32.mrf.mxu0
  %v4681 = vadd.f32 0.0, %v4680
  %v4682 = vpop.f32.mrf.mxu0
  %4683 = vmatprep.mubr.bf16.mxu0 0
  %4684 = vmatmul.mubr.bf16.gmra.mxu0 %v4580
  %v4685 = vpop.f32.mrf.mxu0
  %v4686 = vadd.f32 0.0, %v4685
  %v4687 = vpop.f32.mrf.mxu0
  %v4688 = vpop.f32.mrf.mxu0
  %v4689 = vadd.f32 0.0, %v4688
  %v4690 = vpop.f32.mrf.mxu0
  %4691 = vmatprep.mubr.bf16.mxu0 0
  %4692 = vmatmul.mubr.bf16.gmra.mxu0 %v4583
  %v4693 = vpop.f32.mrf.mxu0
  %v4694 = vadd.f32 0.0, %v4693
  %v4695 = vpop.f32.mrf.mxu0
  %v4696 = vpop.f32.mrf.mxu0
  %v4697 = vadd.f32 0.0, %v4696
  %v4698 = vpop.f32.mrf.mxu0
  %4699 = vmatprep.mubr.bf16.mxu0 0
  %4700 = vmatmul.mubr.bf16.gmra.mxu0 %v4586
  %v4701 = vpop.f32.mrf.mxu0
  %v4702 = vadd.f32 0.0, %v4701
  %v4703 = vpop.f32.mrf.mxu0
  %v4704 = vpop.f32.mrf.mxu0
  %v4705 = vadd.f32 0.0, %v4704
  %v4706 = vpop.f32.mrf.mxu0
  %4707 = vmatprep.mubr.bf16.mxu0 0
  %4708 = vmatmul.mubr.bf16.gmra.mxu0 %v4589
  %v4709 = vpop.f32.mrf.mxu0
  %v4710 = vadd.f32 0.0, %v4709
  %v4711 = vpop.f32.mrf.mxu0
  %v4712 = vpop.f32.mrf.mxu0
  %v4713 = vadd.f32 0.0, %v4712
  %v4714 = vpop.f32.mrf.mxu0
  %4715 = vmatprep.mubr.bf16.mxu0 0
  %4716 = vmatmul.mubr.bf16.gmra.mxu0 %v4592
  %v4717 = vpop.f32.mrf.mxu0
  %v4718 = vadd.f32 0.0, %v4717
  %v4719 = vpop.f32.mrf.mxu0
  %v4720 = vpop.f32.mrf.mxu0
  %v4721 = vadd.f32 0.0, %v4720
  %v4722 = vpop.f32.mrf.mxu0
  %4723 = vmatprep.mubr.bf16.mxu0 0
  %4724 = vmatmul.mubr.bf16.gmra.mxu0 %v4595
  %v4725 = vpop.f32.mrf.mxu0
  %v4726 = vadd.f32 0.0, %v4725
  %v4727 = vpop.f32.mrf.mxu0
  %v4728 = vpop.f32.mrf.mxu0
  %v4729 = vadd.f32 0.0, %v4728
  %v4730 = vpop.f32.mrf.mxu0
  %4731 = vmatprep.mubr.bf16.mxu0 0
  %4732 = vmatmul.mubr.bf16.gmra.mxu0 %v4598
  %v4733 = vpop.f32.mrf.mxu0
  %v4734 = vadd.f32 0.0, %v4733
  %v4735 = vpop.f32.mrf.mxu0
  %v4736 = vpop.f32.mrf.mxu0
  %v4737 = vadd.f32 0.0, %v4736
  %v4738 = vpop.f32.mrf.mxu0
  %4739 = vmatprep.mubr.bf16.mxu0 0
  %4740 = vmatmul.mubr.bf16.gmra.mxu0 %v4601
  %v4741 = vpop.f32.mrf.mxu0
  %v4742 = vadd.f32 0.0, %v4741
  %v4743 = vpop.f32.mrf.mxu0
  %v4744 = vpop.f32.mrf.mxu0
  %v4745 = vadd.f32 0.0, %v4744
  %v4746 = vpop.f32.mrf.mxu0
  %4747 = vmatprep.mubr.bf16.mxu0 0
  %4748 = vmatmul.mubr.bf16.gmra.mxu0 %v4604
  %v4749 = vpop.f32.mrf.mxu0
  %v4750 = vadd.f32 0.0, %v4749
  %v4751 = vpop.f32.mrf.mxu0
  %v4752 = vpop.f32.mrf.mxu0
  %v4753 = vadd.f32 0.0, %v4752
  %v4754 = vpop.f32.mrf.mxu0
  %4755 = vmatprep.mubr.bf16.mxu0 0
  %4756 = vmatmul.mubr.bf16.gmra.mxu0 %v4607
  %v4757 = vpop.f32.mrf.mxu0
  %v4758 = vadd.f32 0.0, %v4757
  %v4759 = vpop.f32.mrf.mxu0
  %v4760 = vpop.f32.mrf.mxu0
  %v4761 = vadd.f32 0.0, %v4760
  %v4762 = vpop.f32.mrf.mxu0
  %4763 = vmatprep.mubr.bf16.mxu0 0
  %4764 = vmatmul.mubr.bf16.gmra.mxu0 %v4610
  %v4765 = vpop.f32.mrf.mxu0
  %v4766 = vadd.f32 0.0, %v4765
  %v4767 = vpop.f32.mrf.mxu0
  %v4768 = vpop.f32.mrf.mxu0
  %v4769 = vadd.f32 0.0, %v4768
  %v4770 = vpop.f32.mrf.mxu0
  %4771 = vmatprep.mubr.bf16.mxu0 0
  %4772 = vmatmul.mubr.bf16.gmra.mxu0 %v4613
  %v4773 = vpop.f32.mrf.mxu0
  %v4774 = vadd.f32 0.0, %v4773
  %v4775 = vpop.f32.mrf.mxu0
  %v4776 = vpop.f32.mrf.mxu0
  %v4777 = vadd.f32 0.0, %v4776
  %v4778 = vpop.f32.mrf.mxu0
  %4779 = vmatprep.mubr.bf16.mxu0 0
  %4780 = vmatmul.mubr.bf16.gmra.mxu0 %v4616
  %v4781 = vpop.f32.mrf.mxu0
  %v4782 = vadd.f32 0.0, %v4781
  %v4783 = vpop.f32.mrf.mxu0
  %v4784 = vpop.f32.mrf.mxu0
  %v4785 = vadd.f32 0.0, %v4784
  %v4786 = vpop.f32.mrf.mxu0
  %4787 = vmatprep.mubr.bf16.mxu0 0
  %4788 = vmatmul.mubr.bf16.gmra.mxu0 %v4619
  %v4789 = vpop.f32.mrf.mxu0
  %v4790 = vadd.f32 0.0, %v4789
  %v4791 = vpop.f32.mrf.mxu0
  %v4792 = vpop.f32.mrf.mxu0
  %v4793 = vadd.f32 0.0, %v4792
  %v4794 = vpop.f32.mrf.mxu0
  %4795 = vmatprep.mubr.bf16.mxu0 0
  %4796 = vmatmul.mubr.bf16.gmra.mxu0 %v4622
  %v4797 = vpop.f32.mrf.mxu0
  %v4798 = vadd.f32 0.0, %v4797
  %v4799 = vpop.f32.mrf.mxu0
  %v4800 = vpop.f32.mrf.mxu0
  %v4801 = vadd.f32 0.0, %v4800
  %v4802 = vpop.f32.mrf.mxu0
  %4803 = vdwg.mxu0
  %v4804 = vadd.f32 %v4490, %v4662
  %v4805 = vadd.f32 %v4491, %v4665
  %v4806 = vadd.f32 %v4492, %v4670
  %v4807 = vadd.f32 %v4493, %v4673
  %v4808 = vadd.f32 %v4494, %v4678
  %v4809 = vadd.f32 %v4495, %v4681
  %v4810 = vadd.f32 %v4496, %v4686
  %v4811 = vadd.f32 %v4497, %v4689
  %v4812 = vadd.f32 %v4498, %v4694
  %v4813 = vadd.f32 %v4499, %v4697
  %v4814 = vadd.f32 %v4500, %v4702
  %v4815 = vadd.f32 %v4501, %v4705
  %v4816 = vadd.f32 %v4502, %v4710
  %v4817 = vadd.f32 %v4503, %v4713
  %v4818 = vadd.f32 %v4504, %v4718
  %v4819 = vadd.f32 %v4505, %v4721
  %v4820 = vadd.f32 %v4506, %v4726
  %v4821 = vadd.f32 %v4507, %v4729
  %v4822 = vadd.f32 %v4508, %v4734
  %v4823 = vadd.f32 %v4509, %v4737
  %v4824 = vadd.f32 %v4510, %v4742
  %v4825 = vadd.f32 %v4511, %v4745
  %v4826 = vadd.f32 %v4512, %v4750
  %v4827 = vadd.f32 %v4513, %v4753
  %v4828 = vadd.f32 %v4514, %v4758
  %v4829 = vadd.f32 %v4515, %v4761
  %v4830 = vadd.f32 %v4516, %v4766
  %v4831 = vadd.f32 %v4517, %v4769
  %v4832 = vadd.f32 %v4518, %v4774
  %v4833 = vadd.f32 %v4519, %v4777
  %v4834 = vadd.f32 %v4520, %v4782
  %v4835 = vadd.f32 %v4521, %v4785
  %v4836 = vadd.f32 %v4522, %v4790
  %v4837 = vadd.f32 %v4523, %v4793
  %v4838 = vadd.f32 %v4524, %v4798
  %v4839 = vadd.f32 %v4525, %v4801
  %v4840 = vld [vmem:[%s4] sm:$0x1]
  %v4842 = vlaneseq
  %v4843 = vshrl.u32 %v4842, 7
  %v4844 = vsub.s32 0, %v4843
  %v4845 = vrot.slane %v4840, %v4844
  %v4847 = vadd.f32 %v4804, %v4845
  %v4848 = vadd.f32 %v4805, %v4845
  %v4849 = vadd.f32 %v4806, %v4845
  %v4850 = vadd.f32 %v4807, %v4845
  %v4851 = vadd.f32 %v4808, %v4845
  %v4852 = vadd.f32 %v4809, %v4845
  %v4853 = vadd.f32 %v4810, %v4845
  %v4854 = vadd.f32 %v4811, %v4845
  %v4855 = vadd.f32 %v4812, %v4845
  %v4856 = vadd.f32 %v4813, %v4845
  %v4857 = vadd.f32 %v4814, %v4845
  %v4858 = vadd.f32 %v4815, %v4845
  %v4859 = vadd.f32 %v4816, %v4845
  %v4860 = vadd.f32 %v4817, %v4845
  %v4861 = vadd.f32 %v4818, %v4845
  %v4862 = vadd.f32 %v4819, %v4845
  %v4863 = vadd.f32 %v4820, %v4845
  %v4864 = vadd.f32 %v4821, %v4845
  %v4865 = vadd.f32 %v4822, %v4845
  %v4866 = vadd.f32 %v4823, %v4845
  %v4867 = vadd.f32 %v4824, %v4845
  %v4868 = vadd.f32 %v4825, %v4845
  %v4869 = vadd.f32 %v4826, %v4845
  %v4870 = vadd.f32 %v4827, %v4845
  %v4871 = vadd.f32 %v4828, %v4845
  %v4872 = vadd.f32 %v4829, %v4845
  %v4873 = vadd.f32 %v4830, %v4845
  %v4874 = vadd.f32 %v4831, %v4845
  %v4875 = vadd.f32 %v4832, %v4845
  %v4876 = vadd.f32 %v4833, %v4845
  %v4877 = vadd.f32 %v4834, %v4845
  %v4878 = vadd.f32 %v4835, %v4845
  %v4879 = vadd.f32 %v4836, %v4845
  %v4880 = vadd.f32 %v4837, %v4845
  %v4881 = vadd.f32 %v4838, %v4845
  %v4882 = vadd.f32 %v4839, %v4845
  %v4883 = vmax.f32 %v4847, 0.0
  %v4884 = vmax.f32 %v4848, 0.0
  %v4885 = vmax.f32 %v4849, 0.0
  %v4886 = vmax.f32 %v4850, 0.0
  %v4887 = vmax.f32 %v4851, 0.0
  %v4888 = vmax.f32 %v4852, 0.0
  %v4889 = vmax.f32 %v4853, 0.0
  %v4890 = vmax.f32 %v4854, 0.0
  %v4891 = vmax.f32 %v4855, 0.0
  %v4892 = vmax.f32 %v4856, 0.0
  %v4893 = vmax.f32 %v4857, 0.0
  %v4894 = vmax.f32 %v4858, 0.0
  %v4895 = vmax.f32 %v4859, 0.0
  %v4896 = vmax.f32 %v4860, 0.0
  %v4897 = vmax.f32 %v4861, 0.0
  %v4898 = vmax.f32 %v4862, 0.0
  %v4899 = vmax.f32 %v4863, 0.0
  %v4900 = vmax.f32 %v4864, 0.0
  %v4901 = vmax.f32 %v4865, 0.0
  %v4902 = vmax.f32 %v4866, 0.0
  %v4903 = vmax.f32 %v4867, 0.0
  %v4904 = vmax.f32 %v4868, 0.0
  %v4905 = vmax.f32 %v4869, 0.0
  %v4906 = vmax.f32 %v4870, 0.0
  %v4907 = vmax.f32 %v4871, 0.0
  %v4908 = vmax.f32 %v4872, 0.0
  %v4909 = vmax.f32 %v4873, 0.0
  %v4910 = vmax.f32 %v4874, 0.0
  %v4911 = vmax.f32 %v4875, 0.0
  %v4912 = vmax.f32 %v4876, 0.0
  %v4913 = vmax.f32 %v4877, 0.0
  %v4914 = vmax.f32 %v4878, 0.0
  %v4915 = vmax.f32 %v4879, 0.0
  %v4916 = vmax.f32 %v4880, 0.0
  %v4917 = vmax.f32 %v4881, 0.0
  %v4918 = vmax.f32 %v4882, 0.0
  %v4919 = vpack.c.bf16 %v4884, %v4883
  %v4920 = vpack.c.bf16 %v4886, %v4885
  %v4921 = vpack.c.bf16 %v4888, %v4887
  %v4922 = vpack.c.bf16 %v4890, %v4889
  %v4923 = vpack.c.bf16 %v4892, %v4891
  %v4924 = vpack.c.bf16 %v4894, %v4893
  %v4925 = vpack.c.bf16 %v4896, %v4895
  %v4926 = vpack.c.bf16 %v4898, %v4897
  %v4927 = vpack.c.bf16 %v4900, %v4899
  %v4928 = vpack.c.bf16 %v4902, %v4901
  %v4929 = vpack.c.bf16 %v4904, %v4903
  %v4930 = vpack.c.bf16 %v4906, %v4905
  %v4931 = vpack.c.bf16 %v4908, %v4907
  %v4932 = vpack.c.bf16 %v4910, %v4909
  %v4933 = vpack.c.bf16 %v4912, %v4911
  %v4934 = vpack.c.bf16 %v4914, %v4913
  %v4935 = vpack.c.bf16 %v4916, %v4915
  %v4936 = vpack.c.bf16 %v4918, %v4917
  %v4938 = vunpack.c.l.b16 %v4919
  %v4939 = vunpack.c.h.b16 %v4919
  %v4940 = vpack.c.b16 %v4938, %v4938
  %v4941 = vpack.c.b16 %v4939, %v4939
  %4944 = vst.msk [vmem:[#allocation3] sm:$0xf] %vm748, %v4940
  %4945 = vst.msk [vmem:[#allocation3 + $0x4] sm:$0xf] %vm748, %v4941
  %v4948 = vunpack.c.l.b16 %v4920
  %v4949 = vunpack.c.h.b16 %v4920
  %v4950 = vunpack.c.l.b16 %v4921
  %v4951 = vpack.c.b16 %v4948, %v4948
  %v4952 = vpack.c.b16 %v4949, %v4949
  %v4953 = vpack.c.b16 %v4950, %v4950
  %vm4954 = vcmask 1042432
  %vm4955 = vcmask 1046532
  %vm4956 = vmor %vm4954, %vm4955
  %v4957 = vrot.slane %v4951, 5
  %v4958 = vrot.slane %v4957, 4
  %v4959 = vrot.slane %v4952, 5
  %v4960 = vsel %vm4956, %v4958, %v4959
  %v4961 = vrot.slane %v4959, 4
  %v4962 = vrot.slane %v4953, 5
  %v4963 = vsel %vm4956, %v4961, %v4962
  %4966 = vst.msk [vmem:[#allocation3 + $0x8] sm:$0xf] %vm748, %v4960
  %4967 = vst.msk [vmem:[#allocation3 + $0xc] sm:$0xf] %vm748, %v4963
  %v4969 = vunpack.c.h.b16 %v4921
  %v4970 = vunpack.c.l.b16 %v4922
  %v4971 = vpack.c.b16 %v4969, %v4969
  %v4972 = vpack.c.b16 %v4970, %v4970
  %vm4973 = vcmask 1041408
  %vm4974 = vcmask 1045508
  %vm4975 = vmor %vm4973, %vm4974
  %v4976 = vrot.slane %v4953, 6
  %v4977 = vrot.slane %v4976, 4
  %v4978 = vrot.slane %v4971, 6
  %v4979 = vsel %vm4975, %v4977, %v4978
  %v4980 = vrot.slane %v4978, 4
  %v4981 = vrot.slane %v4972, 6
  %v4982 = vsel %vm4975, %v4980, %v4981
  %4985 = vst.msk [vmem:[#allocation3 + $0x10] sm:$0xf] %vm748, %v4979
  %4986 = vst.msk [vmem:[#allocation3 + $0x14] sm:$0xf] %vm748, %v4982
  %v4988 = vunpack.c.h.b16 %v4922
  %v4989 = vunpack.c.l.b16 %v4923
  %v4990 = vpack.c.b16 %v4988, %v4988
  %v4991 = vpack.c.b16 %v4989, %v4989
  %vm4992 = vcmask 1040384
  %vm4993 = vcmask 1044484
  %vm4994 = vmor %vm4992, %vm4993
  %v4995 = vrot.slane %v4972, 7
  %v4996 = vrot.slane %v4995, 4
  %v4997 = vrot.slane %v4990, 7
  %v4998 = vsel %vm4994, %v4996, %v4997
  %v4999 = vrot.slane %v4997, 4
  %v5000 = vrot.slane %v4991, 7
  %v5001 = vsel %vm4994, %v4999, %v5000
  %5004 = vst.msk [vmem:[#allocation3 + $0x18] sm:$0xf] %vm748, %v4998
  %5005 = vst.msk [vmem:[#allocation3 + $0x1c] sm:$0xf] %vm748, %v5001
  %v5007 = vunpack.c.h.b16 %v4923
  %v5008 = vunpack.c.l.b16 %v4924
  %v5009 = vpack.c.b16 %v5007, %v5007
  %v5010 = vpack.c.b16 %v5008, %v5008
  %5013 = vst.msk [vmem:[#allocation3 + $0x20] sm:$0xf] %vm748, %v5009
  %5014 = vst.msk [vmem:[#allocation3 + $0x24] sm:$0xf] %vm748, %v5010
  %v5016 = vunpack.c.h.b16 %v4924
  %v5017 = vunpack.c.l.b16 %v4925
  %v5018 = vunpack.c.h.b16 %v4925
  %v5019 = vpack.c.b16 %v5016, %v5016
  %v5020 = vpack.c.b16 %v5017, %v5017
  %v5021 = vpack.c.b16 %v5018, %v5018
  %v5022 = vrot.slane %v5019, 5
  %v5023 = vrot.slane %v5022, 4
  %v5024 = vrot.slane %v5020, 5
  %v5025 = vsel %vm4956, %v5023, %v5024
  %v5026 = vrot.slane %v5024, 4
  %v5027 = vrot.slane %v5021, 5
  %v5028 = vsel %vm4956, %v5026, %v5027
  %5031 = vst.msk [vmem:[#allocation3 + $0x28] sm:$0xf] %vm748, %v5025
  %5032 = vst.msk [vmem:[#allocation3 + $0x2c] sm:$0xf] %vm748, %v5028
  %v5034 = vunpack.c.l.b16 %v4926
  %v5035 = vunpack.c.h.b16 %v4926
  %v5036 = vpack.c.b16 %v5034, %v5034
  %v5037 = vpack.c.b16 %v5035, %v5035
  %v5038 = vrot.slane %v5021, 6
  %v5039 = vrot.slane %v5038, 4
  %v5040 = vrot.slane %v5036, 6
  %v5041 = vsel %vm4975, %v5039, %v5040
  %v5042 = vrot.slane %v5040, 4
  %v5043 = vrot.slane %v5037, 6
  %v5044 = vsel %vm4975, %v5042, %v5043
  %5047 = vst.msk [vmem:[#allocation3 + $0x30] sm:$0xf] %vm748, %v5041
  %5048 = vst.msk [vmem:[#allocation3 + $0x34] sm:$0xf] %vm748, %v5044
  %v5050 = vunpack.c.l.b16 %v4927
  %v5051 = vunpack.c.h.b16 %v4927
  %v5052 = vpack.c.b16 %v5050, %v5050
  %v5053 = vpack.c.b16 %v5051, %v5051
  %v5054 = vrot.slane %v5037, 7
  %v5055 = vrot.slane %v5054, 4
  %v5056 = vrot.slane %v5052, 7
  %v5057 = vsel %vm4994, %v5055, %v5056
  %v5058 = vrot.slane %v5056, 4
  %v5059 = vrot.slane %v5053, 7
  %v5060 = vsel %vm4994, %v5058, %v5059
  %5063 = vst.msk [vmem:[#allocation3 + $0x38] sm:$0xf] %vm748, %v5057
  %5064 = vst.msk [vmem:[#allocation3 + $0x3c] sm:$0xf] %vm748, %v5060
  %v5066 = vunpack.c.l.b16 %v4928
  %v5067 = vunpack.c.h.b16 %v4928
  %v5068 = vpack.c.b16 %v5066, %v5066
  %v5069 = vpack.c.b16 %v5067, %v5067
  %5072 = vst.msk [vmem:[#allocation3 + $0x40] sm:$0xf] %vm748, %v5068
  %5073 = vst.msk [vmem:[#allocation3 + $0x44] sm:$0xf] %vm748, %v5069
  %v5076 = vunpack.c.l.b16 %v4929
  %v5077 = vunpack.c.h.b16 %v4929
  %v5078 = vunpack.c.l.b16 %v4930
  %v5079 = vpack.c.b16 %v5076, %v5076
  %v5080 = vpack.c.b16 %v5077, %v5077
  %v5081 = vpack.c.b16 %v5078, %v5078
  %v5082 = vrot.slane %v5079, 5
  %v5083 = vrot.slane %v5082, 4
  %v5084 = vrot.slane %v5080, 5
  %v5085 = vsel %vm4956, %v5083, %v5084
  %v5086 = vrot.slane %v5084, 4
  %v5087 = vrot.slane %v5081, 5
  %v5088 = vsel %vm4956, %v5086, %v5087
  %5091 = vst.msk [vmem:[#allocation3 + $0x48] sm:$0xf] %vm748, %v5085
  %5092 = vst.msk [vmem:[#allocation3 + $0x4c] sm:$0xf] %vm748, %v5088
  %v5094 = vunpack.c.h.b16 %v4930
  %v5095 = vunpack.c.l.b16 %v4931
  %v5096 = vpack.c.b16 %v5094, %v5094
  %v5097 = vpack.c.b16 %v5095, %v5095
  %v5098 = vrot.slane %v5081, 6
  %v5099 = vrot.slane %v5098, 4
  %v5100 = vrot.slane %v5096, 6
  %v5101 = vsel %vm4975, %v5099, %v5100
  %v5102 = vrot.slane %v5100, 4
  %v5103 = vrot.slane %v5097, 6
  %v5104 = vsel %vm4975, %v5102, %v5103
  %5107 = vst.msk [vmem:[#allocation3 + $0x50] sm:$0xf] %vm748, %v5101
  %5108 = vst.msk [vmem:[#allocation3 + $0x54] sm:$0xf] %vm748, %v5104
  %v5110 = vunpack.c.h.b16 %v4931
  %v5111 = vunpack.c.l.b16 %v4932
  %v5112 = vpack.c.b16 %v5110, %v5110
  %v5113 = vpack.c.b16 %v5111, %v5111
  %v5114 = vrot.slane %v5097, 7
  %v5115 = vrot.slane %v5114, 4
  %v5116 = vrot.slane %v5112, 7
  %v5117 = vsel %vm4994, %v5115, %v5116
  %v5118 = vrot.slane %v5116, 4
  %v5119 = vrot.slane %v5113, 7
  %v5120 = vsel %vm4994, %v5118, %v5119
  %5123 = vst.msk [vmem:[#allocation3 + $0x58] sm:$0xf] %vm748, %v5117
  %5124 = vst.msk [vmem:[#allocation3 + $0x5c] sm:$0xf] %vm748, %v5120
  %v5126 = vunpack.c.h.b16 %v4932
  %v5127 = vunpack.c.l.b16 %v4933
  %v5128 = vpack.c.b16 %v5126, %v5126
  %v5129 = vpack.c.b16 %v5127, %v5127
  %5132 = vst.msk [vmem:[#allocation3 + $0x60] sm:$0xf] %vm748, %v5128
  %5133 = vst.msk [vmem:[#allocation3 + $0x64] sm:$0xf] %vm748, %v5129
  %v5135 = vunpack.c.h.b16 %v4933
  %v5136 = vunpack.c.l.b16 %v4934
  %v5137 = vunpack.c.h.b16 %v4934
  %v5138 = vpack.c.b16 %v5135, %v5135
  %v5139 = vpack.c.b16 %v5136, %v5136
  %v5140 = vpack.c.b16 %v5137, %v5137
  %v5141 = vrot.slane %v5138, 5
  %v5142 = vrot.slane %v5141, 4
  %v5143 = vrot.slane %v5139, 5
  %v5144 = vsel %vm4956, %v5142, %v5143
  %v5145 = vrot.slane %v5143, 4
  %v5146 = vrot.slane %v5140, 5
  %v5147 = vsel %vm4956, %v5145, %v5146
  %5150 = vst.msk [vmem:[#allocation3 + $0x68] sm:$0xf] %vm748, %v5144
  %5151 = vst.msk [vmem:[#allocation3 + $0x6c] sm:$0xf] %vm748, %v5147
  %v5153 = vunpack.c.l.b16 %v4935
  %v5154 = vunpack.c.h.b16 %v4935
  %v5155 = vpack.c.b16 %v5153, %v5153
  %v5156 = vpack.c.b16 %v5154, %v5154
  %v5157 = vrot.slane %v5140, 6
  %v5158 = vrot.slane %v5157, 4
  %v5159 = vrot.slane %v5155, 6
  %v5160 = vsel %vm4975, %v5158, %v5159
  %v5161 = vrot.slane %v5159, 4
  %v5162 = vrot.slane %v5156, 6
  %v5163 = vsel %vm4975, %v5161, %v5162
  %5166 = vst.msk [vmem:[#allocation3 + $0x70] sm:$0xf] %vm748, %v5160
  %5167 = vst.msk [vmem:[#allocation3 + $0x74] sm:$0xf] %vm748, %v5163
  %v5169 = vunpack.c.l.b16 %v4936
  %v5170 = vunpack.c.h.b16 %v4936
  %v5171 = vpack.c.b16 %v5169, %v5169
  %v5172 = vpack.c.b16 %v5170, %v5170
  %v5173 = vrot.slane %v5156, 7
  %v5174 = vrot.slane %v5173, 4
  %v5175 = vrot.slane %v5171, 7
  %v5176 = vsel %vm4994, %v5174, %v5175
  %v5177 = vrot.slane %v5175, 4
  %v5178 = vrot.slane %v5172, 7
  %v5179 = vsel %vm4994, %v5177, %v5178
  %5182 = vst.msk [vmem:[#allocation3 + $0x78] sm:$0xf] %vm748, %v5176
  %5183 = vst.msk [vmem:[#allocation3 + $0x7c] sm:$0xf] %vm748, %v5179
  %v5185 = vunpack.c.l.b16 %v732
  %v5186 = vunpack.c.h.b16 %v732
  %v5187 = vpack.c.b16 %v5185, %v5185
  %v5188 = vpack.c.b16 %v5186, %v5186
  %v5190 = vshrl.u32 %v5187, 16
  %v5192 = vrot.slane %v5190, 6
  %v5193 = vshll.u32 %v5187, 16
  %v5195 = vrot.slane %v5193, 7
  %v5196 = vor.u32 %v5192, %v5195
  %v5197 = vrot.slane %v5196, 4
  %v5199 = vshrl.u32 %v5188, 16
  %v5201 = vrot.slane %v5199, 6
  %v5202 = vshll.u32 %v5188, 16
  %v5204 = vrot.slane %v5202, 7
  %v5205 = vor.u32 %v5201, %v5204
  %v5206 = vsel %vm841, %v5197, %v5205
  %v5207 = vrot.slane %v5205, 4
  %v5211 = vld [vmem:[#allocation2 + $0x8] sm:$0xe]
  %v5212 = vsel %vm866, %v5196, %v5211
  %5213 = vst [vmem:[#allocation2 + $0x8] sm:$0xe] %v5212
  %5214 = vst.msk [vmem:[#allocation2 + $0xc] sm:$0xf] %vm748, %v5206
  %v5215 = vld [vmem:[#allocation2 + $0x10] sm:$0x3]
  %v5216 = vsel %vm753, %v5207, %v5215
  %5217 = vst [vmem:[#allocation2 + $0x10] sm:$0x3] %v5216
  %v5219 = vunpack.c.l.b16 %v733
  %v5220 = vunpack.c.h.b16 %v733
  %v5221 = vpack.c.b16 %v5219, %v5219
  %v5222 = vpack.c.b16 %v5220, %v5220
  %v5224 = vshrl.u32 %v5221, 16
  %v5226 = vrot.slane %v5224, 5
  %v5227 = vshll.u32 %v5221, 16
  %v5229 = vrot.slane %v5227, 6
  %v5230 = vor.u32 %v5226, %v5229
  %v5231 = vrot.slane %v5230, 4
  %v5233 = vshrl.u32 %v5222, 16
  %v5235 = vrot.slane %v5233, 5
  %v5236 = vshll.u32 %v5222, 16
  %v5238 = vrot.slane %v5236, 6
  %v5239 = vor.u32 %v5235, %v5238
  %v5240 = vsel %vm881, %v5231, %v5239
  %v5241 = vrot.slane %v5239, 4
  %v5245 = vld [vmem:[#allocation2 + $0x10] sm:$0xc]
  %v5246 = vsel %vm905, %v5230, %v5245
  %5247 = vst [vmem:[#allocation2 + $0x10] sm:$0xc] %v5246
  %5248 = vst.msk [vmem:[#allocation2 + $0x14] sm:$0xf] %vm748, %v5240
  %v5249 = vld [vmem:[#allocation2 + $0x18] sm:$0x7]
  %v5250 = vsel %vm911, %v5241, %v5249
  %5251 = vst [vmem:[#allocation2 + $0x18] sm:$0x7] %v5250
  %v5253 = vunpack.c.l.b16 %v734
  %v5254 = vunpack.c.h.b16 %v734
  %v5255 = vpack.c.b16 %v5253, %v5253
  %v5256 = vpack.c.b16 %v5254, %v5254
  %v5258 = vshll.u32 %v5255, 16
  %v5260 = vrot.slane %v5258, 5
  %v5261 = vshrl.u32 %v5255, 16
  %v5263 = vrot.slane %v5261, 4
  %v5264 = vor.u32 %v5263, %v5260
  %v5265 = vrot.slane %v5264, 4
  %v5267 = vshll.u32 %v5256, 16
  %v5269 = vrot.slane %v5267, 5
  %v5270 = vsel %vm922, %v5265, %v5269
  %v5271 = vshrl.u32 %v5256, 16
  %v5273 = vrot.slane %v5271, 4
  %v5274 = vor.u32 %v5273, %v5269
  %v5275 = vrot.slane %v5274, 4
  %v5279 = vld [vmem:[#allocation2 + $0x18] sm:$0x8]
  %v5280 = vsel %vm775, %v5260, %v5279
  %5281 = vst [vmem:[#allocation2 + $0x18] sm:$0x8] %v5280
  %5282 = vst.msk [vmem:[#allocation2 + $0x1c] sm:$0xf] %vm748, %v5270
  %v5283 = vld [vmem:[#allocation2 + $0x20] sm:$0xf]
  %v5284 = vsel %vm950, %v5275, %v5283
  %5285 = vst [vmem:[#allocation2 + $0x20] sm:$0xf] %v5284
  %v5287 = vunpack.c.l.b16 %v735
  %v5288 = vunpack.c.h.b16 %v735
  %v5289 = vpack.c.b16 %v5287, %v5287
  %v5290 = vpack.c.b16 %v5288, %v5288
  %v5292 = vshrl.u32 %v5289, 16
  %v5294 = vrot.slane %v5292, 7
  %v5295 = vshll.u32 %v5289, 16
  %v5297 = vor.u32 %v5294, %v5295
  %v5298 = vrot.slane %v5294, 4
  %v5300 = vshrl.u32 %v5290, 16
  %v5302 = vrot.slane %v5300, 7
  %v5303 = vshll.u32 %v5290, 16
  %v5305 = vor.u32 %v5302, %v5303
  %v5306 = vsel %vm960, %v5298, %v5305
  %v5307 = vrot.slane %v5302, 4
  %v5311 = vld [vmem:[#allocation2 + $0x24] sm:$0xf]
  %v5312 = vsel %vm982, %v5297, %v5311
  %5313 = vst [vmem:[#allocation2 + $0x24] sm:$0xf] %v5312
  %5314 = vst.msk [vmem:[#allocation2 + $0x28] sm:$0xf] %vm748, %v5306
  %v5315 = vld [vmem:[#allocation2 + $0x2c] sm:$0x1]
  %v5316 = vsel %vm781, %v5307, %v5315
  %5317 = vst [vmem:[#allocation2 + $0x2c] sm:$0x1] %v5316
  %v5319 = vunpack.c.l.b16 %v736
  %v5320 = vunpack.c.h.b16 %v736
  %v5321 = vpack.c.b16 %v5319, %v5319
  %v5322 = vpack.c.b16 %v5320, %v5320
  %v5324 = vshrl.u32 %v5321, 16
  %v5326 = vrot.slane %v5324, 6
  %v5327 = vshll.u32 %v5321, 16
  %v5329 = vrot.slane %v5327, 7
  %v5330 = vor.u32 %v5326, %v5329
  %v5331 = vrot.slane %v5330, 4
  %v5333 = vshrl.u32 %v5322, 16
  %v5335 = vrot.slane %v5333, 6
  %v5336 = vshll.u32 %v5322, 16
  %v5338 = vrot.slane %v5336, 7
  %v5339 = vor.u32 %v5335, %v5338
  %v5340 = vsel %vm841, %v5331, %v5339
  %v5341 = vrot.slane %v5339, 4
  %v5345 = vld [vmem:[#allocation2 + $0x2c] sm:$0xe]
  %v5346 = vsel %vm866, %v5330, %v5345
  %5347 = vst [vmem:[#allocation2 + $0x2c] sm:$0xe] %v5346
  %5348 = vst.msk [vmem:[#allocation2 + $0x30] sm:$0xf] %vm748, %v5340
  %v5349 = vld [vmem:[#allocation2 + $0x34] sm:$0x3]
  %v5350 = vsel %vm753, %v5341, %v5349
  %5351 = vst [vmem:[#allocation2 + $0x34] sm:$0x3] %v5350
  %v5353 = vunpack.c.l.b16 %v737
  %v5354 = vunpack.c.h.b16 %v737
  %v5355 = vpack.c.b16 %v5353, %v5353
  %v5356 = vpack.c.b16 %v5354, %v5354
  %v5358 = vshrl.u32 %v5355, 16
  %v5360 = vrot.slane %v5358, 5
  %v5361 = vshll.u32 %v5355, 16
  %v5363 = vrot.slane %v5361, 6
  %v5364 = vor.u32 %v5360, %v5363
  %v5365 = vrot.slane %v5364, 4
  %v5367 = vshrl.u32 %v5356, 16
  %v5369 = vrot.slane %v5367, 5
  %v5370 = vshll.u32 %v5356, 16
  %v5372 = vrot.slane %v5370, 6
  %v5373 = vor.u32 %v5369, %v5372
  %v5374 = vsel %vm881, %v5365, %v5373
  %v5375 = vrot.slane %v5373, 4
  %v5379 = vld [vmem:[#allocation2 + $0x34] sm:$0xc]
  %v5380 = vsel %vm905, %v5364, %v5379
  %5381 = vst [vmem:[#allocation2 + $0x34] sm:$0xc] %v5380
  %5382 = vst.msk [vmem:[#allocation2 + $0x38] sm:$0xf] %vm748, %v5374
  %v5383 = vld [vmem:[#allocation2 + $0x3c] sm:$0x7]
  %v5384 = vsel %vm911, %v5375, %v5383
  %5385 = vst [vmem:[#allocation2 + $0x3c] sm:$0x7] %v5384
  %v5387 = vunpack.c.l.b16 %v738
  %v5388 = vunpack.c.h.b16 %v738
  %v5389 = vpack.c.b16 %v5387, %v5387
  %v5390 = vpack.c.b16 %v5388, %v5388
  %v5392 = vshll.u32 %v5389, 16
  %v5394 = vrot.slane %v5392, 5
  %v5395 = vshrl.u32 %v5389, 16
  %v5397 = vrot.slane %v5395, 4
  %v5398 = vor.u32 %v5397, %v5394
  %v5399 = vrot.slane %v5398, 4
  %v5401 = vshll.u32 %v5390, 16
  %v5403 = vrot.slane %v5401, 5
  %v5404 = vsel %vm922, %v5399, %v5403
  %v5405 = vshrl.u32 %v5390, 16
  %v5407 = vrot.slane %v5405, 4
  %v5408 = vor.u32 %v5407, %v5403
  %v5409 = vrot.slane %v5408, 4
  %v5413 = vld [vmem:[#allocation2 + $0x3c] sm:$0x8]
  %v5414 = vsel %vm775, %v5394, %v5413
  %5415 = vst [vmem:[#allocation2 + $0x3c] sm:$0x8] %v5414
  %5416 = vst.msk [vmem:[#allocation2 + $0x40] sm:$0xf] %vm748, %v5404
  %v5417 = vld [vmem:[#allocation2 + $0x44] sm:$0xf]
  %v5418 = vsel %vm950, %v5409, %v5417
  %5419 = vst [vmem:[#allocation2 + $0x44] sm:$0xf] %v5418
  %v5421 = vunpack.c.l.b16 %v739
  %v5422 = vunpack.c.h.b16 %v739
  %v5423 = vpack.c.b16 %v5421, %v5421
  %v5424 = vpack.c.b16 %v5422, %v5422
  %v5426 = vshrl.u32 %v5423, 16
  %v5428 = vrot.slane %v5426, 7
  %v5429 = vshll.u32 %v5423, 16
  %v5431 = vor.u32 %v5428, %v5429
  %v5432 = vrot.slane %v5428, 4
  %v5434 = vshrl.u32 %v5424, 16
  %v5436 = vrot.slane %v5434, 7
  %v5437 = vshll.u32 %v5424, 16
  %v5439 = vor.u32 %v5436, %v5437
  %v5440 = vsel %vm960, %v5432, %v5439
  %v5441 = vrot.slane %v5436, 4
  %v5445 = vld [vmem:[#allocation2 + $0x48] sm:$0xf]
  %v5446 = vsel %vm982, %v5431, %v5445
  %5447 = vst [vmem:[#allocation2 + $0x48] sm:$0xf] %v5446
  %5448 = vst.msk [vmem:[#allocation2 + $0x4c] sm:$0xf] %vm748, %v5440
  %v5449 = vld [vmem:[#allocation2 + $0x50] sm:$0x1]
  %v5450 = vsel %vm781, %v5441, %v5449
  %5451 = vst [vmem:[#allocation2 + $0x50] sm:$0x1] %v5450
  %v5453 = vunpack.c.l.b16 %v740
  %v5454 = vunpack.c.h.b16 %v740
  %v5455 = vpack.c.b16 %v5453, %v5453
  %v5456 = vpack.c.b16 %v5454, %v5454
  %v5458 = vshrl.u32 %v5455, 16
  %v5460 = vrot.slane %v5458, 6
  %v5461 = vshll.u32 %v5455, 16
  %v5463 = vrot.slane %v5461, 7
  %v5464 = vor.u32 %v5460, %v5463
  %v5465 = vrot.slane %v5464, 4
  %v5467 = vshrl.u32 %v5456, 16
  %v5469 = vrot.slane %v5467, 6
  %v5470 = vshll.u32 %v5456, 16
  %v5472 = vrot.slane %v5470, 7
  %v5473 = vor.u32 %v5469, %v5472
  %v5474 = vsel %vm841, %v5465, %v5473
  %v5475 = vrot.slane %v5473, 4
  %v5479 = vld [vmem:[#allocation2 + $0x50] sm:$0xe]
  %v5480 = vsel %vm866, %v5464, %v5479
  %5481 = vst [vmem:[#allocation2 + $0x50] sm:$0xe] %v5480
  %5482 = vst.msk [vmem:[#allocation2 + $0x54] sm:$0xf] %vm748, %v5474
  %v5483 = vld [vmem:[#allocation2 + $0x58] sm:$0x3]
  %v5484 = vsel %vm753, %v5475, %v5483
  %5485 = vst [vmem:[#allocation2 + $0x58] sm:$0x3] %v5484
  %v5487 = vunpack.c.l.b16 %v741
  %v5488 = vunpack.c.h.b16 %v741
  %v5489 = vpack.c.b16 %v5487, %v5487
  %v5490 = vpack.c.b16 %v5488, %v5488
  %v5492 = vshrl.u32 %v5489, 16
  %v5494 = vrot.slane %v5492, 5
  %v5495 = vshll.u32 %v5489, 16
  %v5497 = vrot.slane %v5495, 6
  %v5498 = vor.u32 %v5494, %v5497
  %v5499 = vrot.slane %v5498, 4
  %v5501 = vshrl.u32 %v5490, 16
  %v5503 = vrot.slane %v5501, 5
  %v5504 = vshll.u32 %v5490, 16
  %v5506 = vrot.slane %v5504, 6
  %v5507 = vor.u32 %v5503, %v5506
  %v5508 = vsel %vm881, %v5499, %v5507
  %v5509 = vrot.slane %v5507, 4
  %v5513 = vld [vmem:[#allocation2 + $0x58] sm:$0xc]
  %v5514 = vsel %vm905, %v5498, %v5513
  %5515 = vst [vmem:[#allocation2 + $0x58] sm:$0xc] %v5514
  %5516 = vst.msk [vmem:[#allocation2 + $0x5c] sm:$0xf] %vm748, %v5508
  %v5517 = vld [vmem:[#allocation2 + $0x60] sm:$0x7]
  %v5518 = vsel %vm911, %v5509, %v5517
  %5519 = vst [vmem:[#allocation2 + $0x60] sm:$0x7] %v5518
  %v5521 = vunpack.c.l.b16 %v742
  %v5522 = vunpack.c.h.b16 %v742
  %v5523 = vpack.c.b16 %v5521, %v5521
  %v5524 = vpack.c.b16 %v5522, %v5522
  %v5526 = vshll.u32 %v5523, 16
  %v5528 = vrot.slane %v5526, 5
  %v5529 = vshrl.u32 %v5523, 16
  %v5531 = vrot.slane %v5529, 4
  %v5532 = vor.u32 %v5531, %v5528
  %v5533 = vrot.slane %v5532, 4
  %v5535 = vshll.u32 %v5524, 16
  %v5537 = vrot.slane %v5535, 5
  %v5538 = vsel %vm922, %v5533, %v5537
  %v5539 = vshrl.u32 %v5524, 16
  %v5541 = vrot.slane %v5539, 4
  %v5542 = vor.u32 %v5541, %v5537
  %v5543 = vrot.slane %v5542, 4
  %v5547 = vld [vmem:[#allocation2 + $0x60] sm:$0x8]
  %v5548 = vsel %vm775, %v5528, %v5547
  %5549 = vst [vmem:[#allocation2 + $0x60] sm:$0x8] %v5548
  %5550 = vst.msk [vmem:[#allocation2 + $0x64] sm:$0xf] %vm748, %v5538
  %v5551 = vld [vmem:[#allocation2 + $0x68] sm:$0xf]
  %v5552 = vsel %vm950, %v5543, %v5551
  %5553 = vst [vmem:[#allocation2 + $0x68] sm:$0xf] %v5552
  %v5555 = vunpack.c.l.b16 %v743
  %v5556 = vunpack.c.h.b16 %v743
  %v5557 = vpack.c.b16 %v5555, %v5555
  %v5558 = vpack.c.b16 %v5556, %v5556
  %v5560 = vshrl.u32 %v5557, 16
  %v5562 = vrot.slane %v5560, 7
  %v5563 = vshll.u32 %v5557, 16
  %v5565 = vor.u32 %v5562, %v5563
  %v5566 = vrot.slane %v5562, 4
  %v5568 = vshrl.u32 %v5558, 16
  %v5570 = vrot.slane %v5568, 7
  %v5571 = vshll.u32 %v5558, 16
  %v5573 = vor.u32 %v5570, %v5571
  %v5574 = vsel %vm960, %v5566, %v5573
  %v5575 = vrot.slane %v5570, 4
  %v5579 = vld [vmem:[#allocation2 + $0x6c] sm:$0xf]
  %v5580 = vsel %vm982, %v5565, %v5579
  %5581 = vst [vmem:[#allocation2 + $0x6c] sm:$0xf] %v5580
  %5582 = vst.msk [vmem:[#allocation2 + $0x70] sm:$0xf] %vm748, %v5574
  %v5583 = vld [vmem:[#allocation2 + $0x74] sm:$0x1]
  %v5584 = vsel %vm781, %v5575, %v5583
  %5585 = vst [vmem:[#allocation2 + $0x74] sm:$0x1] %v5584
  %v5587 = vunpack.c.l.b16 %v744
  %v5588 = vunpack.c.h.b16 %v744
  %v5589 = vpack.c.b16 %v5587, %v5587
  %v5590 = vpack.c.b16 %v5588, %v5588
  %v5592 = vshrl.u32 %v5589, 16
  %v5594 = vrot.slane %v5592, 6
  %v5595 = vshll.u32 %v5589, 16
  %v5597 = vrot.slane %v5595, 7
  %v5598 = vor.u32 %v5594, %v5597
  %v5599 = vrot.slane %v5598, 4
  %v5601 = vshrl.u32 %v5590, 16
  %v5603 = vrot.slane %v5601, 6
  %v5604 = vshll.u32 %v5590, 16
  %v5606 = vrot.slane %v5604, 7
  %v5607 = vor.u32 %v5603, %v5606
  %v5608 = vsel %vm841, %v5599, %v5607
  %v5609 = vrot.slane %v5607, 4
  %v5613 = vld [vmem:[#allocation2 + $0x74] sm:$0xe]
  %v5614 = vsel %vm866, %v5598, %v5613
  %5615 = vst [vmem:[#allocation2 + $0x74] sm:$0xe] %v5614
  %5616 = vst.msk [vmem:[#allocation2 + $0x78] sm:$0xf] %vm748, %v5608
  %v5617 = vld [vmem:[#allocation2 + $0x7c] sm:$0x3]
  %v5618 = vsel %vm753, %v5609, %v5617
  %5619 = vst [vmem:[#allocation2 + $0x7c] sm:$0x3] %v5618
  %v5621 = vunpack.c.l.b16 %v745
  %v5622 = vunpack.c.h.b16 %v745
  %v5623 = vpack.c.b16 %v5621, %v5621
  %v5624 = vpack.c.b16 %v5622, %v5622
  %v5626 = vshrl.u32 %v5623, 16
  %v5628 = vrot.slane %v5626, 5
  %v5629 = vshll.u32 %v5623, 16
  %v5631 = vrot.slane %v5629, 6
  %v5632 = vor.u32 %v5628, %v5631
  %v5633 = vrot.slane %v5632, 4
  %v5635 = vshrl.u32 %v5624, 16
  %v5637 = vrot.slane %v5635, 5
  %v5638 = vshll.u32 %v5624, 16
  %v5640 = vrot.slane %v5638, 6
  %v5641 = vor.u32 %v5637, %v5640
  %v5642 = vsel %vm881, %v5633, %v5641
  %v5643 = vrot.slane %v5641, 4
  %v5647 = vld [vmem:[#allocation2 + $0x7c] sm:$0xc]
  %v5648 = vsel %vm905, %v5632, %v5647
  %5649 = vst [vmem:[#allocation2 + $0x7c] sm:$0xc] %v5648
  %5650 = vst.msk [vmem:[#allocation2 + $0x80] sm:$0xf] %vm748, %v5642
  %v5651 = vld [vmem:[#allocation2 + $0x84] sm:$0x7]
  %v5652 = vsel %vm911, %v5643, %v5651
  %5653 = vst [vmem:[#allocation2 + $0x84] sm:$0x7] %v5652
  %v5655 = vunpack.c.l.b16 %v746
  %v5656 = vunpack.c.h.b16 %v746
  %v5657 = vpack.c.b16 %v5655, %v5655
  %v5658 = vpack.c.b16 %v5656, %v5656
  %v5660 = vshll.u32 %v5657, 16
  %v5662 = vrot.slane %v5660, 5
  %v5663 = vshrl.u32 %v5657, 16
  %v5665 = vrot.slane %v5663, 4
  %v5666 = vor.u32 %v5665, %v5662
  %v5667 = vrot.slane %v5666, 4
  %v5669 = vshll.u32 %v5658, 16
  %v5671 = vrot.slane %v5669, 5
  %v5672 = vsel %vm922, %v5667, %v5671
  %v5673 = vshrl.u32 %v5658, 16
  %v5675 = vrot.slane %v5673, 4
  %v5676 = vor.u32 %v5675, %v5671
  %v5677 = vrot.slane %v5676, 4
  %v5681 = vld [vmem:[#allocation2 + $0x84] sm:$0x8]
  %v5682 = vsel %vm775, %v5662, %v5681
  %5683 = vst [vmem:[#allocation2 + $0x84] sm:$0x8] %v5682
  %5684 = vst.msk [vmem:[#allocation2 + $0x88] sm:$0xf] %vm748, %v5672
  %v5685 = vld [vmem:[#allocation2 + $0x8c] sm:$0xf]
  %v5686 = vsel %vm950, %v5677, %v5685
  %5687 = vst [vmem:[#allocation2 + $0x8c] sm:$0xf] %v5686
  %v5689 = vunpack.c.l.b16 %v747
  %v5690 = vunpack.c.h.b16 %v747
  %v5691 = vpack.c.b16 %v5689, %v5689
  %v5692 = vpack.c.b16 %v5690, %v5690
  %v5694 = vshrl.u32 %v5691, 16
  %v5696 = vrot.slane %v5694, 7
  %v5697 = vshll.u32 %v5691, 16
  %v5699 = vor.u32 %v5696, %v5697
  %v5700 = vrot.slane %v5696, 4
  %v5702 = vshrl.u32 %v5692, 16
  %v5704 = vrot.slane %v5702, 7
  %v5705 = vshll.u32 %v5692, 16
  %v5707 = vor.u32 %v5704, %v5705
  %v5708 = vsel %vm960, %v5700, %v5707
  %v5709 = vrot.slane %v5704, 4
  %v5713 = vld [vmem:[#allocation2 + $0x90] sm:$0xf]
  %v5714 = vsel %vm982, %v5699, %v5713
  %5715 = vst [vmem:[#allocation2 + $0x90] sm:$0xf] %v5714
  %5716 = vst.msk [vmem:[#allocation2 + $0x94] sm:$0xf] %vm748, %v5708
  %v5717 = vld [vmem:[#allocation2 + $0x98] sm:$0x1]
  %v5718 = vsel %vm781, %v5709, %v5717
  %5719 = vst [vmem:[#allocation2 + $0x98] sm:$0x1] %v5718
  %v5720 = vld [vmem:[#allocation2] sm:$0xf]
  %v5721 = vld [vmem:[#allocation2 + $0x4] sm:$0xf]
  %v5722 = vld [vmem:[#allocation2 + $0x8] sm:$0xf]
  %v5723 = vld [vmem:[#allocation2 + $0xc] sm:$0xf]
  %v5724 = vld [vmem:[#allocation2 + $0x10] sm:$0xf]
  %v5725 = vld [vmem:[#allocation2 + $0x14] sm:$0xf]
  %v5726 = vld [vmem:[#allocation2 + $0x18] sm:$0xf]
  %v5727 = vld [vmem:[#allocation2 + $0x1c] sm:$0xf]
  %v5728 = vld [vmem:[#allocation2 + $0x20] sm:$0xf]
  %v5729 = vld [vmem:[#allocation2 + $0x24] sm:$0xf]
  %v5730 = vld [vmem:[#allocation2 + $0x28] sm:$0xf]
  %v5731 = vld [vmem:[#allocation2 + $0x2c] sm:$0xf]
  %v5732 = vld [vmem:[#allocation2 + $0x30] sm:$0xf]
  %v5733 = vld [vmem:[#allocation2 + $0x34] sm:$0xf]
  %v5734 = vld [vmem:[#allocation2 + $0x38] sm:$0xf]
  %v5735 = vld [vmem:[#allocation2 + $0x3c] sm:$0xf]
  %v5736 = vld [vmem:[#allocation2 + $0x40] sm:$0xf]
  %v5737 = vld [vmem:[#allocation2 + $0x44] sm:$0xf]
  %v5738 = vld [vmem:[#allocation2 + $0x48] sm:$0xf]
  %v5739 = vld [vmem:[#allocation2 + $0x4c] sm:$0xf]
  %v5740 = vld [vmem:[#allocation2 + $0x50] sm:$0xf]
  %v5741 = vld [vmem:[#allocation2 + $0x54] sm:$0xf]
  %v5742 = vld [vmem:[#allocation2 + $0x58] sm:$0xf]
  %v5743 = vld [vmem:[#allocation2 + $0x5c] sm:$0xf]
  %v5744 = vld [vmem:[#allocation2 + $0x60] sm:$0xf]
  %v5745 = vld [vmem:[#allocation2 + $0x64] sm:$0xf]
  %v5746 = vld [vmem:[#allocation2 + $0x68] sm:$0xf]
  %v5747 = vld [vmem:[#allocation2 + $0x6c] sm:$0xf]
  %v5748 = vld [vmem:[#allocation2 + $0x70] sm:$0xf]
  %v5749 = vld [vmem:[#allocation2 + $0x74] sm:$0xf]
  %v5750 = vld [vmem:[#allocation2 + $0x78] sm:$0xf]
  %v5751 = vld [vmem:[#allocation2 + $0x7c] sm:$0xf]
  %v5752 = vld [vmem:[#allocation2 + $0x80] sm:$0xf]
  %v5753 = vld [vmem:[#allocation2 + $0x84] sm:$0xf]
  %v5754 = vld [vmem:[#allocation2 + $0x88] sm:$0xf]
  %v5755 = vld [vmem:[#allocation2 + $0x8c] sm:$0xf]
  %v5756 = vld [vmem:[%s3] sm:$0x3]
  %v5757 = vld [vmem:[#allocation2 + $0x90] sm:$0x1]
  %v5758 = vld [vmem:[%s1430] sm:$0x3]
  %v5796 = vunpack.c.l.b16 %v5720
  %v5797 = vunpack.c.l.b16 %v5721
  %v5798 = vunpack.c.l.b16 %v5722
  %v5799 = vunpack.c.l.b16 %v5723
  %v5800 = vunpack.c.l.b16 %v5724
  %v5801 = vunpack.c.l.b16 %v5725
  %v5802 = vunpack.c.l.b16 %v5726
  %v5803 = vunpack.c.l.b16 %v5727
  %v5804 = vunpack.c.l.b16 %v5728
  %v5805 = vunpack.c.l.b16 %v5729
  %v5806 = vunpack.c.l.b16 %v5730
  %v5807 = vunpack.c.l.b16 %v5731
  %v5808 = vunpack.c.l.b16 %v5732
  %v5809 = vunpack.c.l.b16 %v5733
  %v5810 = vunpack.c.l.b16 %v5734
  %v5811 = vunpack.c.l.b16 %v5735
  %v5812 = vunpack.c.l.b16 %v5736
  %v5813 = vunpack.c.l.b16 %v5737
  %v5814 = vunpack.c.l.b16 %v5738
  %v5815 = vunpack.c.l.b16 %v5739
  %v5816 = vunpack.c.l.b16 %v5740
  %v5817 = vunpack.c.l.b16 %v5741
  %v5818 = vunpack.c.l.b16 %v5742
  %v5819 = vunpack.c.l.b16 %v5743
  %v5820 = vunpack.c.l.b16 %v5744
  %v5821 = vunpack.c.l.b16 %v5745
  %v5822 = vunpack.c.l.b16 %v5746
  %v5823 = vunpack.c.l.b16 %v5747
  %v5824 = vunpack.c.l.b16 %v5748
  %v5825 = vunpack.c.l.b16 %v5749
  %v5826 = vunpack.c.l.b16 %v5750
  %v5827 = vunpack.c.l.b16 %v5751
  %v5828 = vunpack.c.l.b16 %v5752
  %v5829 = vunpack.c.l.b16 %v5753
  %v5830 = vunpack.c.l.b16 %v5754
  %v5831 = vunpack.c.l.b16 %v5755
  %v5832 = vunpack.c.l.b16 %v5757
  %v5833 = vpack.c.b16 %v5797, %v5796
  %v5834 = vpack.c.b16 %v5799, %v5798
  %v5835 = vpack.c.b16 %v5801, %v5800
  %v5836 = vpack.c.b16 %v5803, %v5802
  %v5837 = vpack.c.b16 %v5805, %v5804
  %v5838 = vpack.c.b16 %v5807, %v5806
  %v5839 = vpack.c.b16 %v5809, %v5808
  %v5840 = vpack.c.b16 %v5811, %v5810
  %v5841 = vpack.c.b16 %v5813, %v5812
  %v5842 = vpack.c.b16 %v5815, %v5814
  %v5843 = vpack.c.b16 %v5817, %v5816
  %v5844 = vpack.c.b16 %v5819, %v5818
  %v5845 = vpack.c.b16 %v5821, %v5820
  %v5846 = vpack.c.b16 %v5823, %v5822
  %v5847 = vpack.c.b16 %v5825, %v5824
  %v5848 = vpack.c.b16 %v5827, %v5826
  %v5849 = vpack.c.b16 %v5829, %v5828
  %v5850 = vpack.c.b16 %v5831, %v5830
  %v5851 = vpack.c.b16 %v5832, %v5832
  %v5853 = vshrl.u32 %v5833, 16
  %v5855 = vshll.u32 %v5833, 16
  %v5857 = vrot.slane %v5855, 1
  %v5858 = vor.u32 %v5853, %v5857
  %v5860 = vshll.u32 %v5834, 16
  %v5862 = vrot.slane %v5860, 1
  %v5863 = vsel %vm1525, %v5858, %v5862
  %v5864 = vshrl.u32 %v5834, 16
  %v5866 = vor.u32 %v5864, %v5862
  %v5868 = vshll.u32 %v5835, 16
  %v5870 = vrot.slane %v5868, 1
  %v5871 = vsel %vm1525, %v5866, %v5870
  %v5872 = vshrl.u32 %v5835, 16
  %v5874 = vor.u32 %v5872, %v5870
  %v5876 = vshll.u32 %v5836, 16
  %v5878 = vrot.slane %v5876, 1
  %v5879 = vsel %vm1525, %v5874, %v5878
  %v5880 = vshrl.u32 %v5836, 16
  %v5882 = vor.u32 %v5880, %v5878
  %v5884 = vshll.u32 %v5837, 16
  %v5886 = vrot.slane %v5884, 1
  %v5887 = vsel %vm1525, %v5882, %v5886
  %v5888 = vshrl.u32 %v5837, 16
  %v5890 = vor.u32 %v5888, %v5886
  %v5892 = vshll.u32 %v5838, 16
  %v5894 = vrot.slane %v5892, 1
  %v5895 = vsel %vm1525, %v5890, %v5894
  %v5896 = vshrl.u32 %v5838, 16
  %v5898 = vor.u32 %v5896, %v5894
  %v5900 = vshll.u32 %v5839, 16
  %v5902 = vrot.slane %v5900, 1
  %v5903 = vsel %vm1525, %v5898, %v5902
  %v5904 = vshrl.u32 %v5839, 16
  %v5906 = vor.u32 %v5904, %v5902
  %v5908 = vshll.u32 %v5840, 16
  %v5910 = vrot.slane %v5908, 1
  %v5911 = vsel %vm1525, %v5906, %v5910
  %v5912 = vshrl.u32 %v5840, 16
  %v5914 = vor.u32 %v5912, %v5910
  %v5916 = vshll.u32 %v5841, 16
  %v5918 = vrot.slane %v5916, 1
  %v5919 = vsel %vm1525, %v5914, %v5918
  %v5920 = vshrl.u32 %v5841, 16
  %v5922 = vor.u32 %v5920, %v5918
  %v5924 = vshll.u32 %v5842, 16
  %v5926 = vrot.slane %v5924, 1
  %v5927 = vsel %vm1525, %v5922, %v5926
  %v5928 = vshrl.u32 %v5842, 16
  %v5930 = vor.u32 %v5928, %v5926
  %v5932 = vshll.u32 %v5843, 16
  %v5934 = vrot.slane %v5932, 1
  %v5935 = vsel %vm1525, %v5930, %v5934
  %v5936 = vshrl.u32 %v5843, 16
  %v5938 = vor.u32 %v5936, %v5934
  %v5940 = vshll.u32 %v5844, 16
  %v5942 = vrot.slane %v5940, 1
  %v5943 = vsel %vm1525, %v5938, %v5942
  %v5944 = vshrl.u32 %v5844, 16
  %v5946 = vor.u32 %v5944, %v5942
  %v5948 = vshll.u32 %v5845, 16
  %v5950 = vrot.slane %v5948, 1
  %v5951 = vsel %vm1525, %v5946, %v5950
  %v5952 = vshrl.u32 %v5845, 16
  %v5954 = vor.u32 %v5952, %v5950
  %v5956 = vshll.u32 %v5846, 16
  %v5958 = vrot.slane %v5956, 1
  %v5959 = vsel %vm1525, %v5954, %v5958
  %v5960 = vshrl.u32 %v5846, 16
  %v5962 = vor.u32 %v5960, %v5958
  %v5964 = vshll.u32 %v5847, 16
  %v5966 = vrot.slane %v5964, 1
  %v5967 = vsel %vm1525, %v5962, %v5966
  %v5968 = vshrl.u32 %v5847, 16
  %v5970 = vor.u32 %v5968, %v5966
  %v5972 = vshll.u32 %v5848, 16
  %v5974 = vrot.slane %v5972, 1
  %v5975 = vsel %vm1525, %v5970, %v5974
  %v5976 = vshrl.u32 %v5848, 16
  %v5978 = vor.u32 %v5976, %v5974
  %v5980 = vshll.u32 %v5849, 16
  %v5982 = vrot.slane %v5980, 1
  %v5983 = vsel %vm1525, %v5978, %v5982
  %v5984 = vshrl.u32 %v5849, 16
  %v5986 = vor.u32 %v5984, %v5982
  %v5988 = vshll.u32 %v5850, 16
  %v5990 = vrot.slane %v5988, 1
  %v5991 = vsel %vm1525, %v5986, %v5990
  %v5992 = vshrl.u32 %v5850, 16
  %v5994 = vor.u32 %v5992, %v5990
  %v5996 = vshll.u32 %v5851, 16
  %v5998 = vrot.slane %v5996, 1
  %v5999 = vsel %vm1525, %v5994, %v5998
  %v6001 = vsel %vm1674, %v5863, 0
  %v6004 = vsel %vm1674, %v5871, 0
  %v6007 = vsel %vm1674, %v5879, 0
  %v6010 = vsel %vm1674, %v5887, 0
  %v6013 = vsel %vm1674, %v5895, 0
  %v6016 = vsel %vm1674, %v5903, 0
  %v6019 = vsel %vm1674, %v5911, 0
  %v6022 = vsel %vm1674, %v5919, 0
  %v6025 = vsel %vm1674, %v5927, 0
  %v6028 = vsel %vm1674, %v5935, 0
  %v6031 = vsel %vm1674, %v5943, 0
  %v6034 = vsel %vm1674, %v5951, 0
  %v6037 = vsel %vm1674, %v5959, 0
  %v6040 = vsel %vm1674, %v5967, 0
  %v6043 = vsel %vm1674, %v5975, 0
  %v6046 = vsel %vm1674, %v5983, 0
  %v6049 = vsel %vm1674, %v5991, 0
  %v6052 = vsel %vm1674, %v5999, 0
  %v6055 = vsel %vm1729, %v5758, 0
  %6057 = vmatprep.subr.bf16.mxu0 0
  %6058 = vmatpush1.bf16.msra.mxu0 0
  %6059 = vmatprep.subr.bf16.mxu0 0
  %6060 = vmatpush1.bf16.msra.mxu0 0
  %6061 = vmatprep.subr.bf16.mxu0 0
  %6062 = vmatpush1.bf16.msra.mxu0 0
  %6063 = vmatprep.subr.bf16.mxu0 0
  %6064 = vmatpush1.bf16.msra.mxu0 0
  %6065 = vmatprep.subr.bf16.mxu0 0
  %6066 = vmatpush1.bf16.msra.mxu0 0
  %6067 = vmatprep.subr.bf16.mxu0 0
  %6068 = vmatpush1.bf16.msra.mxu0 0
  %6069 = vmatprep.subr.bf16.mxu0 0
  %6070 = vmatpush1.bf16.msra.mxu0 0
  %6071 = vmatprep.subr.bf16.mxu0 0
  %6072 = vmatpush1.bf16.msra.mxu0 %v6055
  %6073 = vmatprep.subr.bf16.mxu0 0
  %6074 = vmatpush2.bf16.msra.mxu0 0
  %6075 = vmatprep.subr.bf16.mxu0 0
  %6076 = vmatpush2.bf16.msra.mxu0 0
  %6077 = vmatprep.subr.bf16.mxu0 0
  %6078 = vmatpush2.bf16.msra.mxu0 0
  %6079 = vmatprep.subr.bf16.mxu0 0
  %6080 = vmatpush2.bf16.msra.mxu0 0
  %6081 = vmatprep.subr.bf16.mxu0 0
  %6082 = vmatpush2.bf16.msra.mxu0 0
  %6083 = vmatprep.subr.bf16.mxu0 0
  %6084 = vmatpush2.bf16.msra.mxu0 0
  %6085 = vmatprep.subr.bf16.mxu0 0
  %6086 = vmatpush2.bf16.msra.mxu0 0
  %6087 = vmatprep.subr.bf16.mxu0 0
  %6088 = vmatpush2.bf16.msra.mxu0 0
  %6089 = vmatprep.mubr.bf16.mxu0 0
  %6090 = vmatmul.mubr.bf16.gmra.mxu0 %v6001
  %v6091 = vpop.f32.mrf.mxu0
  %v6092 = vadd.f32 0.0, %v6091
  %v6093 = vpop.f32.mrf.mxu0
  %v6094 = vpop.f32.mrf.mxu0
  %v6095 = vadd.f32 0.0, %v6094
  %v6096 = vpop.f32.mrf.mxu0
  %6097 = vmatprep.mubr.bf16.mxu0 0
  %6098 = vmatmul.mubr.bf16.gmra.mxu0 %v6004
  %v6099 = vpop.f32.mrf.mxu0
  %v6100 = vadd.f32 0.0, %v6099
  %v6101 = vpop.f32.mrf.mxu0
  %v6102 = vpop.f32.mrf.mxu0
  %v6103 = vadd.f32 0.0, %v6102
  %v6104 = vpop.f32.mrf.mxu0
  %6105 = vmatprep.mubr.bf16.mxu0 0
  %6106 = vmatmul.mubr.bf16.gmra.mxu0 %v6007
  %v6107 = vpop.f32.mrf.mxu0
  %v6108 = vadd.f32 0.0, %v6107
  %v6109 = vpop.f32.mrf.mxu0
  %v6110 = vpop.f32.mrf.mxu0
  %v6111 = vadd.f32 0.0, %v6110
  %v6112 = vpop.f32.mrf.mxu0
  %6113 = vmatprep.mubr.bf16.mxu0 0
  %6114 = vmatmul.mubr.bf16.gmra.mxu0 %v6010
  %v6115 = vpop.f32.mrf.mxu0
  %v6116 = vadd.f32 0.0, %v6115
  %v6117 = vpop.f32.mrf.mxu0
  %v6118 = vpop.f32.mrf.mxu0
  %v6119 = vadd.f32 0.0, %v6118
  %v6120 = vpop.f32.mrf.mxu0
  %6121 = vmatprep.mubr.bf16.mxu0 0
  %6122 = vmatmul.mubr.bf16.gmra.mxu0 %v6013
  %v6123 = vpop.f32.mrf.mxu0
  %v6124 = vadd.f32 0.0, %v6123
  %v6125 = vpop.f32.mrf.mxu0
  %v6126 = vpop.f32.mrf.mxu0
  %v6127 = vadd.f32 0.0, %v6126
  %v6128 = vpop.f32.mrf.mxu0
  %6129 = vmatprep.mubr.bf16.mxu0 0
  %6130 = vmatmul.mubr.bf16.gmra.mxu0 %v6016
  %v6131 = vpop.f32.mrf.mxu0
  %v6132 = vadd.f32 0.0, %v6131
  %v6133 = vpop.f32.mrf.mxu0
  %v6134 = vpop.f32.mrf.mxu0
  %v6135 = vadd.f32 0.0, %v6134
  %v6136 = vpop.f32.mrf.mxu0
  %6137 = vmatprep.mubr.bf16.mxu0 0
  %6138 = vmatmul.mubr.bf16.gmra.mxu0 %v6019
  %v6139 = vpop.f32.mrf.mxu0
  %v6140 = vadd.f32 0.0, %v6139
  %v6141 = vpop.f32.mrf.mxu0
  %v6142 = vpop.f32.mrf.mxu0
  %v6143 = vadd.f32 0.0, %v6142
  %v6144 = vpop.f32.mrf.mxu0
  %6145 = vmatprep.mubr.bf16.mxu0 0
  %6146 = vmatmul.mubr.bf16.gmra.mxu0 %v6022
  %v6147 = vpop.f32.mrf.mxu0
  %v6148 = vadd.f32 0.0, %v6147
  %v6149 = vpop.f32.mrf.mxu0
  %v6150 = vpop.f32.mrf.mxu0
  %v6151 = vadd.f32 0.0, %v6150
  %v6152 = vpop.f32.mrf.mxu0
  %6153 = vmatprep.mubr.bf16.mxu0 0
  %6154 = vmatmul.mubr.bf16.gmra.mxu0 %v6025
  %v6155 = vpop.f32.mrf.mxu0
  %v6156 = vadd.f32 0.0, %v6155
  %v6157 = vpop.f32.mrf.mxu0
  %v6158 = vpop.f32.mrf.mxu0
  %v6159 = vadd.f32 0.0, %v6158
  %v6160 = vpop.f32.mrf.mxu0
  %6161 = vmatprep.mubr.bf16.mxu0 0
  %6162 = vmatmul.mubr.bf16.gmra.mxu0 %v6028
  %v6163 = vpop.f32.mrf.mxu0
  %v6164 = vadd.f32 0.0, %v6163
  %v6165 = vpop.f32.mrf.mxu0
  %v6166 = vpop.f32.mrf.mxu0
  %v6167 = vadd.f32 0.0, %v6166
  %v6168 = vpop.f32.mrf.mxu0
  %6169 = vmatprep.mubr.bf16.mxu0 0
  %6170 = vmatmul.mubr.bf16.gmra.mxu0 %v6031
  %v6171 = vpop.f32.mrf.mxu0
  %v6172 = vadd.f32 0.0, %v6171
  %v6173 = vpop.f32.mrf.mxu0
  %v6174 = vpop.f32.mrf.mxu0
  %v6175 = vadd.f32 0.0, %v6174
  %v6176 = vpop.f32.mrf.mxu0
  %6177 = vmatprep.mubr.bf16.mxu0 0
  %6178 = vmatmul.mubr.bf16.gmra.mxu0 %v6034
  %v6179 = vpop.f32.mrf.mxu0
  %v6180 = vadd.f32 0.0, %v6179
  %v6181 = vpop.f32.mrf.mxu0
  %v6182 = vpop.f32.mrf.mxu0
  %v6183 = vadd.f32 0.0, %v6182
  %v6184 = vpop.f32.mrf.mxu0
  %6185 = vmatprep.mubr.bf16.mxu0 0
  %6186 = vmatmul.mubr.bf16.gmra.mxu0 %v6037
  %v6187 = vpop.f32.mrf.mxu0
  %v6188 = vadd.f32 0.0, %v6187
  %v6189 = vpop.f32.mrf.mxu0
  %v6190 = vpop.f32.mrf.mxu0
  %v6191 = vadd.f32 0.0, %v6190
  %v6192 = vpop.f32.mrf.mxu0
  %6193 = vmatprep.mubr.bf16.mxu0 0
  %6194 = vmatmul.mubr.bf16.gmra.mxu0 %v6040
  %v6195 = vpop.f32.mrf.mxu0
  %v6196 = vadd.f32 0.0, %v6195
  %v6197 = vpop.f32.mrf.mxu0
  %v6198 = vpop.f32.mrf.mxu0
  %v6199 = vadd.f32 0.0, %v6198
  %v6200 = vpop.f32.mrf.mxu0
  %6201 = vmatprep.mubr.bf16.mxu0 0
  %6202 = vmatmul.mubr.bf16.gmra.mxu0 %v6043
  %v6203 = vpop.f32.mrf.mxu0
  %v6204 = vadd.f32 0.0, %v6203
  %v6205 = vpop.f32.mrf.mxu0
  %v6206 = vpop.f32.mrf.mxu0
  %v6207 = vadd.f32 0.0, %v6206
  %v6208 = vpop.f32.mrf.mxu0
  %6209 = vmatprep.mubr.bf16.mxu0 0
  %6210 = vmatmul.mubr.bf16.gmra.mxu0 %v6046
  %v6211 = vpop.f32.mrf.mxu0
  %v6212 = vadd.f32 0.0, %v6211
  %v6213 = vpop.f32.mrf.mxu0
  %v6214 = vpop.f32.mrf.mxu0
  %v6215 = vadd.f32 0.0, %v6214
  %v6216 = vpop.f32.mrf.mxu0
  %6217 = vmatprep.mubr.bf16.mxu0 0
  %6218 = vmatmul.mubr.bf16.gmra.mxu0 %v6049
  %v6219 = vpop.f32.mrf.mxu0
  %v6220 = vadd.f32 0.0, %v6219
  %v6221 = vpop.f32.mrf.mxu0
  %v6222 = vpop.f32.mrf.mxu0
  %v6223 = vadd.f32 0.0, %v6222
  %v6224 = vpop.f32.mrf.mxu0
  %6225 = vmatprep.mubr.bf16.mxu0 0
  %6226 = vmatmul.mubr.bf16.gmra.mxu0 %v6052
  %v6227 = vpop.f32.mrf.mxu0
  %v6228 = vadd.f32 0.0, %v6227
  %v6229 = vpop.f32.mrf.mxu0
  %v6230 = vpop.f32.mrf.mxu0
  %v6231 = vadd.f32 0.0, %v6230
  %v6232 = vpop.f32.mrf.mxu0
  %6233 = vdwg.mxu0
  %v6234 = vsel %vm1674, %v5833, 0
  %v6236 = vsel %vm1674, %v5834, 0
  %v6238 = vsel %vm1674, %v5835, 0
  %v6240 = vsel %vm1674, %v5836, 0
  %v6242 = vsel %vm1674, %v5837, 0
  %v6244 = vsel %vm1674, %v5838, 0
  %v6246 = vsel %vm1674, %v5839, 0
  %v6248 = vsel %vm1674, %v5840, 0
  %v6250 = vsel %vm1674, %v5841, 0
  %v6252 = vsel %vm1674, %v5842, 0
  %v6254 = vsel %vm1674, %v5843, 0
  %v6256 = vsel %vm1674, %v5844, 0
  %v6258 = vsel %vm1674, %v5845, 0
  %v6260 = vsel %vm1674, %v5846, 0
  %v6262 = vsel %vm1674, %v5847, 0
  %v6264 = vsel %vm1674, %v5848, 0
  %v6266 = vsel %vm1674, %v5849, 0
  %v6268 = vsel %vm1674, %v5850, 0
  %v6271 = vsel %vm1729, %v5756, 0
  %6273 = vmatprep.subr.bf16.mxu0 0
  %6274 = vmatpush1.bf16.msra.mxu0 0
  %6275 = vmatprep.subr.bf16.mxu0 0
  %6276 = vmatpush1.bf16.msra.mxu0 0
  %6277 = vmatprep.subr.bf16.mxu0 0
  %6278 = vmatpush1.bf16.msra.mxu0 0
  %6279 = vmatprep.subr.bf16.mxu0 0
  %6280 = vmatpush1.bf16.msra.mxu0 0
  %6281 = vmatprep.subr.bf16.mxu0 0
  %6282 = vmatpush1.bf16.msra.mxu0 0
  %6283 = vmatprep.subr.bf16.mxu0 0
  %6284 = vmatpush1.bf16.msra.mxu0 0
  %6285 = vmatprep.subr.bf16.mxu0 0
  %6286 = vmatpush1.bf16.msra.mxu0 0
  %6287 = vmatprep.subr.bf16.mxu0 0
  %6288 = vmatpush1.bf16.msra.mxu0 %v6271
  %6289 = vmatprep.subr.bf16.mxu0 0
  %6290 = vmatpush2.bf16.msra.mxu0 0
  %6291 = vmatprep.subr.bf16.mxu0 0
  %6292 = vmatpush2.bf16.msra.mxu0 0
  %6293 = vmatprep.subr.bf16.mxu0 0
  %6294 = vmatpush2.bf16.msra.mxu0 0
  %6295 = vmatprep.subr.bf16.mxu0 0
  %6296 = vmatpush2.bf16.msra.mxu0 0
  %6297 = vmatprep.subr.bf16.mxu0 0
  %6298 = vmatpush2.bf16.msra.mxu0 0
  %6299 = vmatprep.subr.bf16.mxu0 0
  %6300 = vmatpush2.bf16.msra.mxu0 0
  %6301 = vmatprep.subr.bf16.mxu0 0
  %6302 = vmatpush2.bf16.msra.mxu0 0
  %6303 = vmatprep.subr.bf16.mxu0 0
  %6304 = vmatpush2.bf16.msra.mxu0 0
  %6305 = vmatprep.mubr.bf16.mxu0 0
  %6306 = vmatmul.mubr.bf16.gmra.mxu0 %v6234
  %v6307 = vpop.f32.mrf.mxu0
  %v6308 = vadd.f32 %v6092, %v6307
  %v6309 = vpop.f32.mrf.mxu0
  %v6310 = vpop.f32.mrf.mxu0
  %v6311 = vadd.f32 %v6095, %v6310
  %v6312 = vpop.f32.mrf.mxu0
  %6313 = vmatprep.mubr.bf16.mxu0 0
  %6314 = vmatmul.mubr.bf16.gmra.mxu0 %v6236
  %v6315 = vpop.f32.mrf.mxu0
  %v6316 = vadd.f32 %v6100, %v6315
  %v6317 = vpop.f32.mrf.mxu0
  %v6318 = vpop.f32.mrf.mxu0
  %v6319 = vadd.f32 %v6103, %v6318
  %v6320 = vpop.f32.mrf.mxu0
  %6321 = vmatprep.mubr.bf16.mxu0 0
  %6322 = vmatmul.mubr.bf16.gmra.mxu0 %v6238
  %v6323 = vpop.f32.mrf.mxu0
  %v6324 = vadd.f32 %v6108, %v6323
  %v6325 = vpop.f32.mrf.mxu0
  %v6326 = vpop.f32.mrf.mxu0
  %v6327 = vadd.f32 %v6111, %v6326
  %v6328 = vpop.f32.mrf.mxu0
  %6329 = vmatprep.mubr.bf16.mxu0 0
  %6330 = vmatmul.mubr.bf16.gmra.mxu0 %v6240
  %v6331 = vpop.f32.mrf.mxu0
  %v6332 = vadd.f32 %v6116, %v6331
  %v6333 = vpop.f32.mrf.mxu0
  %v6334 = vpop.f32.mrf.mxu0
  %v6335 = vadd.f32 %v6119, %v6334
  %v6336 = vpop.f32.mrf.mxu0
  %6337 = vmatprep.mubr.bf16.mxu0 0
  %6338 = vmatmul.mubr.bf16.gmra.mxu0 %v6242
  %v6339 = vpop.f32.mrf.mxu0
  %v6340 = vadd.f32 %v6124, %v6339
  %v6341 = vpop.f32.mrf.mxu0
  %v6342 = vpop.f32.mrf.mxu0
  %v6343 = vadd.f32 %v6127, %v6342
  %v6344 = vpop.f32.mrf.mxu0
  %6345 = vmatprep.mubr.bf16.mxu0 0
  %6346 = vmatmul.mubr.bf16.gmra.mxu0 %v6244
  %v6347 = vpop.f32.mrf.mxu0
  %v6348 = vadd.f32 %v6132, %v6347
  %v6349 = vpop.f32.mrf.mxu0
  %v6350 = vpop.f32.mrf.mxu0
  %v6351 = vadd.f32 %v6135, %v6350
  %v6352 = vpop.f32.mrf.mxu0
  %6353 = vmatprep.mubr.bf16.mxu0 0
  %6354 = vmatmul.mubr.bf16.gmra.mxu0 %v6246
  %v6355 = vpop.f32.mrf.mxu0
  %v6356 = vadd.f32 %v6140, %v6355
  %v6357 = vpop.f32.mrf.mxu0
  %v6358 = vpop.f32.mrf.mxu0
  %v6359 = vadd.f32 %v6143, %v6358
  %v6360 = vpop.f32.mrf.mxu0
  %6361 = vmatprep.mubr.bf16.mxu0 0
  %6362 = vmatmul.mubr.bf16.gmra.mxu0 %v6248
  %v6363 = vpop.f32.mrf.mxu0
  %v6364 = vadd.f32 %v6148, %v6363
  %v6365 = vpop.f32.mrf.mxu0
  %v6366 = vpop.f32.mrf.mxu0
  %v6367 = vadd.f32 %v6151, %v6366
  %v6368 = vpop.f32.mrf.mxu0
  %6369 = vmatprep.mubr.bf16.mxu0 0
  %6370 = vmatmul.mubr.bf16.gmra.mxu0 %v6250
  %v6371 = vpop.f32.mrf.mxu0
  %v6372 = vadd.f32 %v6156, %v6371
  %v6373 = vpop.f32.mrf.mxu0
  %v6374 = vpop.f32.mrf.mxu0
  %v6375 = vadd.f32 %v6159, %v6374
  %v6376 = vpop.f32.mrf.mxu0
  %6377 = vmatprep.mubr.bf16.mxu0 0
  %6378 = vmatmul.mubr.bf16.gmra.mxu0 %v6252
  %v6379 = vpop.f32.mrf.mxu0
  %v6380 = vadd.f32 %v6164, %v6379
  %v6381 = vpop.f32.mrf.mxu0
  %v6382 = vpop.f32.mrf.mxu0
  %v6383 = vadd.f32 %v6167, %v6382
  %v6384 = vpop.f32.mrf.mxu0
  %6385 = vmatprep.mubr.bf16.mxu0 0
  %6386 = vmatmul.mubr.bf16.gmra.mxu0 %v6254
  %v6387 = vpop.f32.mrf.mxu0
  %v6388 = vadd.f32 %v6172, %v6387
  %v6389 = vpop.f32.mrf.mxu0
  %v6390 = vpop.f32.mrf.mxu0
  %v6391 = vadd.f32 %v6175, %v6390
  %v6392 = vpop.f32.mrf.mxu0
  %6393 = vmatprep.mubr.bf16.mxu0 0
  %6394 = vmatmul.mubr.bf16.gmra.mxu0 %v6256
  %v6395 = vpop.f32.mrf.mxu0
  %v6396 = vadd.f32 %v6180, %v6395
  %v6397 = vpop.f32.mrf.mxu0
  %v6398 = vpop.f32.mrf.mxu0
  %v6399 = vadd.f32 %v6183, %v6398
  %v6400 = vpop.f32.mrf.mxu0
  %6401 = vmatprep.mubr.bf16.mxu0 0
  %6402 = vmatmul.mubr.bf16.gmra.mxu0 %v6258
  %v6403 = vpop.f32.mrf.mxu0
  %v6404 = vadd.f32 %v6188, %v6403
  %v6405 = vpop.f32.mrf.mxu0
  %v6406 = vpop.f32.mrf.mxu0
  %v6407 = vadd.f32 %v6191, %v6406
  %v6408 = vpop.f32.mrf.mxu0
  %6409 = vmatprep.mubr.bf16.mxu0 0
  %6410 = vmatmul.mubr.bf16.gmra.mxu0 %v6260
  %v6411 = vpop.f32.mrf.mxu0
  %v6412 = vadd.f32 %v6196, %v6411
  %v6413 = vpop.f32.mrf.mxu0
  %v6414 = vpop.f32.mrf.mxu0
  %v6415 = vadd.f32 %v6199, %v6414
  %v6416 = vpop.f32.mrf.mxu0
  %6417 = vmatprep.mubr.bf16.mxu0 0
  %6418 = vmatmul.mubr.bf16.gmra.mxu0 %v6262
  %v6419 = vpop.f32.mrf.mxu0
  %v6420 = vadd.f32 %v6204, %v6419
  %v6421 = vpop.f32.mrf.mxu0
  %v6422 = vpop.f32.mrf.mxu0
  %v6423 = vadd.f32 %v6207, %v6422
  %v6424 = vpop.f32.mrf.mxu0
  %6425 = vmatprep.mubr.bf16.mxu0 0
  %6426 = vmatmul.mubr.bf16.gmra.mxu0 %v6264
  %v6427 = vpop.f32.mrf.mxu0
  %v6428 = vadd.f32 %v6212, %v6427
  %v6429 = vpop.f32.mrf.mxu0
  %v6430 = vpop.f32.mrf.mxu0
  %v6431 = vadd.f32 %v6215, %v6430
  %v6432 = vpop.f32.mrf.mxu0
  %6433 = vmatprep.mubr.bf16.mxu0 0
  %6434 = vmatmul.mubr.bf16.gmra.mxu0 %v6266
  %v6435 = vpop.f32.mrf.mxu0
  %v6436 = vadd.f32 %v6220, %v6435
  %v6437 = vpop.f32.mrf.mxu0
  %v6438 = vpop.f32.mrf.mxu0
  %v6439 = vadd.f32 %v6223, %v6438
  %v6440 = vpop.f32.mrf.mxu0
  %6441 = vmatprep.mubr.bf16.mxu0 0
  %6442 = vmatmul.mubr.bf16.gmra.mxu0 %v6268
  %v6443 = vpop.f32.mrf.mxu0
  %v6444 = vadd.f32 %v6228, %v6443
  %v6445 = vpop.f32.mrf.mxu0
  %v6446 = vpop.f32.mrf.mxu0
  %v6447 = vadd.f32 %v6231, %v6446
  %v6448 = vpop.f32.mrf.mxu0
  %6449 = vdwg.mxu0
  %v6450 = vld [vmem:[#allocation2] sm:$0xe]
  %v6451 = vld [vmem:[%s2127] sm:$0x3]
  %v6453 = vunpack.c.l.b16 %v6450
  %v6454 = vpack.c.b16 %v5797, %v6453
  %v6455 = vrot.slane %v6454, 1
  %v6456 = vrot.slane %v5834, 1
  %v6457 = vsel %vm2132, %v6455, %v6456
  %v6458 = vrot.slane %v5835, 1
  %v6459 = vsel %vm2132, %v6456, %v6458
  %v6460 = vrot.slane %v5836, 1
  %v6461 = vsel %vm2132, %v6458, %v6460
  %v6462 = vrot.slane %v5837, 1
  %v6463 = vsel %vm2132, %v6460, %v6462
  %v6464 = vrot.slane %v5838, 1
  %v6465 = vsel %vm2132, %v6462, %v6464
  %v6466 = vrot.slane %v5839, 1
  %v6467 = vsel %vm2132, %v6464, %v6466
  %v6468 = vrot.slane %v5840, 1
  %v6469 = vsel %vm2132, %v6466, %v6468
  %v6470 = vrot.slane %v5841, 1
  %v6471 = vsel %vm2132, %v6468, %v6470
  %v6472 = vrot.slane %v5842, 1
  %v6473 = vsel %vm2132, %v6470, %v6472
  %v6474 = vrot.slane %v5843, 1
  %v6475 = vsel %vm2132, %v6472, %v6474
  %v6476 = vrot.slane %v5844, 1
  %v6477 = vsel %vm2132, %v6474, %v6476
  %v6478 = vrot.slane %v5845, 1
  %v6479 = vsel %vm2132, %v6476, %v6478
  %v6480 = vrot.slane %v5846, 1
  %v6481 = vsel %vm2132, %v6478, %v6480
  %v6482 = vrot.slane %v5847, 1
  %v6483 = vsel %vm2132, %v6480, %v6482
  %v6484 = vrot.slane %v5848, 1
  %v6485 = vsel %vm2132, %v6482, %v6484
  %v6486 = vrot.slane %v5849, 1
  %v6487 = vsel %vm2132, %v6484, %v6486
  %v6488 = vrot.slane %v5850, 1
  %v6489 = vsel %vm2132, %v6486, %v6488
  %v6490 = vrot.slane %v5851, 1
  %v6491 = vsel %vm2132, %v6488, %v6490
  %v6493 = vsel %vm1674, %v6457, 0
  %v6496 = vsel %vm1674, %v6459, 0
  %v6499 = vsel %vm1674, %v6461, 0
  %v6502 = vsel %vm1674, %v6463, 0
  %v6505 = vsel %vm1674, %v6465, 0
  %v6508 = vsel %vm1674, %v6467, 0
  %v6511 = vsel %vm1674, %v6469, 0
  %v6514 = vsel %vm1674, %v6471, 0
  %v6517 = vsel %vm1674, %v6473, 0
  %v6520 = vsel %vm1674, %v6475, 0
  %v6523 = vsel %vm1674, %v6477, 0
  %v6526 = vsel %vm1674, %v6479, 0
  %v6529 = vsel %vm1674, %v6481, 0
  %v6532 = vsel %vm1674, %v6483, 0
  %v6535 = vsel %vm1674, %v6485, 0
  %v6538 = vsel %vm1674, %v6487, 0
  %v6541 = vsel %vm1674, %v6489, 0
  %v6544 = vsel %vm1674, %v6491, 0
  %v6547 = vsel %vm1729, %v6451, 0
  %6549 = vmatprep.subr.bf16.mxu0 0
  %6550 = vmatpush1.bf16.msra.mxu0 0
  %6551 = vmatprep.subr.bf16.mxu0 0
  %6552 = vmatpush1.bf16.msra.mxu0 0
  %6553 = vmatprep.subr.bf16.mxu0 0
  %6554 = vmatpush1.bf16.msra.mxu0 0
  %6555 = vmatprep.subr.bf16.mxu0 0
  %6556 = vmatpush1.bf16.msra.mxu0 0
  %6557 = vmatprep.subr.bf16.mxu0 0
  %6558 = vmatpush1.bf16.msra.mxu0 0
  %6559 = vmatprep.subr.bf16.mxu0 0
  %6560 = vmatpush1.bf16.msra.mxu0 0
  %6561 = vmatprep.subr.bf16.mxu0 0
  %6562 = vmatpush1.bf16.msra.mxu0 0
  %6563 = vmatprep.subr.bf16.mxu0 0
  %6564 = vmatpush1.bf16.msra.mxu0 %v6547
  %6565 = vmatprep.subr.bf16.mxu0 0
  %6566 = vmatpush2.bf16.msra.mxu0 0
  %6567 = vmatprep.subr.bf16.mxu0 0
  %6568 = vmatpush2.bf16.msra.mxu0 0
  %6569 = vmatprep.subr.bf16.mxu0 0
  %6570 = vmatpush2.bf16.msra.mxu0 0
  %6571 = vmatprep.subr.bf16.mxu0 0
  %6572 = vmatpush2.bf16.msra.mxu0 0
  %6573 = vmatprep.subr.bf16.mxu0 0
  %6574 = vmatpush2.bf16.msra.mxu0 0
  %6575 = vmatprep.subr.bf16.mxu0 0
  %6576 = vmatpush2.bf16.msra.mxu0 0
  %6577 = vmatprep.subr.bf16.mxu0 0
  %6578 = vmatpush2.bf16.msra.mxu0 0
  %6579 = vmatprep.subr.bf16.mxu0 0
  %6580 = vmatpush2.bf16.msra.mxu0 0
  %6581 = vmatprep.mubr.bf16.mxu0 0
  %6582 = vmatmul.mubr.bf16.gmra.mxu0 %v6493
  %v6583 = vpop.f32.mrf.mxu0
  %v6584 = vadd.f32 0.0, %v6583
  %v6585 = vpop.f32.mrf.mxu0
  %v6586 = vpop.f32.mrf.mxu0
  %v6587 = vadd.f32 0.0, %v6586
  %v6588 = vpop.f32.mrf.mxu0
  %6589 = vmatprep.mubr.bf16.mxu0 0
  %6590 = vmatmul.mubr.bf16.gmra.mxu0 %v6496
  %v6591 = vpop.f32.mrf.mxu0
  %v6592 = vadd.f32 0.0, %v6591
  %v6593 = vpop.f32.mrf.mxu0
  %v6594 = vpop.f32.mrf.mxu0
  %v6595 = vadd.f32 0.0, %v6594
  %v6596 = vpop.f32.mrf.mxu0
  %6597 = vmatprep.mubr.bf16.mxu0 0
  %6598 = vmatmul.mubr.bf16.gmra.mxu0 %v6499
  %v6599 = vpop.f32.mrf.mxu0
  %v6600 = vadd.f32 0.0, %v6599
  %v6601 = vpop.f32.mrf.mxu0
  %v6602 = vpop.f32.mrf.mxu0
  %v6603 = vadd.f32 0.0, %v6602
  %v6604 = vpop.f32.mrf.mxu0
  %6605 = vmatprep.mubr.bf16.mxu0 0
  %6606 = vmatmul.mubr.bf16.gmra.mxu0 %v6502
  %v6607 = vpop.f32.mrf.mxu0
  %v6608 = vadd.f32 0.0, %v6607
  %v6609 = vpop.f32.mrf.mxu0
  %v6610 = vpop.f32.mrf.mxu0
  %v6611 = vadd.f32 0.0, %v6610
  %v6612 = vpop.f32.mrf.mxu0
  %6613 = vmatprep.mubr.bf16.mxu0 0
  %6614 = vmatmul.mubr.bf16.gmra.mxu0 %v6505
  %v6615 = vpop.f32.mrf.mxu0
  %v6616 = vadd.f32 0.0, %v6615
  %v6617 = vpop.f32.mrf.mxu0
  %v6618 = vpop.f32.mrf.mxu0
  %v6619 = vadd.f32 0.0, %v6618
  %v6620 = vpop.f32.mrf.mxu0
  %6621 = vmatprep.mubr.bf16.mxu0 0
  %6622 = vmatmul.mubr.bf16.gmra.mxu0 %v6508
  %v6623 = vpop.f32.mrf.mxu0
  %v6624 = vadd.f32 0.0, %v6623
  %v6625 = vpop.f32.mrf.mxu0
  %v6626 = vpop.f32.mrf.mxu0
  %v6627 = vadd.f32 0.0, %v6626
  %v6628 = vpop.f32.mrf.mxu0
  %6629 = vmatprep.mubr.bf16.mxu0 0
  %6630 = vmatmul.mubr.bf16.gmra.mxu0 %v6511
  %v6631 = vpop.f32.mrf.mxu0
  %v6632 = vadd.f32 0.0, %v6631
  %v6633 = vpop.f32.mrf.mxu0
  %v6634 = vpop.f32.mrf.mxu0
  %v6635 = vadd.f32 0.0, %v6634
  %v6636 = vpop.f32.mrf.mxu0
  %6637 = vmatprep.mubr.bf16.mxu0 0
  %6638 = vmatmul.mubr.bf16.gmra.mxu0 %v6514
  %v6639 = vpop.f32.mrf.mxu0
  %v6640 = vadd.f32 0.0, %v6639
  %v6641 = vpop.f32.mrf.mxu0
  %v6642 = vpop.f32.mrf.mxu0
  %v6643 = vadd.f32 0.0, %v6642
  %v6644 = vpop.f32.mrf.mxu0
  %6645 = vmatprep.mubr.bf16.mxu0 0
  %6646 = vmatmul.mubr.bf16.gmra.mxu0 %v6517
  %v6647 = vpop.f32.mrf.mxu0
  %v6648 = vadd.f32 0.0, %v6647
  %v6649 = vpop.f32.mrf.mxu0
  %v6650 = vpop.f32.mrf.mxu0
  %v6651 = vadd.f32 0.0, %v6650
  %v6652 = vpop.f32.mrf.mxu0
  %6653 = vmatprep.mubr.bf16.mxu0 0
  %6654 = vmatmul.mubr.bf16.gmra.mxu0 %v6520
  %v6655 = vpop.f32.mrf.mxu0
  %v6656 = vadd.f32 0.0, %v6655
  %v6657 = vpop.f32.mrf.mxu0
  %v6658 = vpop.f32.mrf.mxu0
  %v6659 = vadd.f32 0.0, %v6658
  %v6660 = vpop.f32.mrf.mxu0
  %6661 = vmatprep.mubr.bf16.mxu0 0
  %6662 = vmatmul.mubr.bf16.gmra.mxu0 %v6523
  %v6663 = vpop.f32.mrf.mxu0
  %v6664 = vadd.f32 0.0, %v6663
  %v6665 = vpop.f32.mrf.mxu0
  %v6666 = vpop.f32.mrf.mxu0
  %v6667 = vadd.f32 0.0, %v6666
  %v6668 = vpop.f32.mrf.mxu0
  %6669 = vmatprep.mubr.bf16.mxu0 0
  %6670 = vmatmul.mubr.bf16.gmra.mxu0 %v6526
  %v6671 = vpop.f32.mrf.mxu0
  %v6672 = vadd.f32 0.0, %v6671
  %v6673 = vpop.f32.mrf.mxu0
  %v6674 = vpop.f32.mrf.mxu0
  %v6675 = vadd.f32 0.0, %v6674
  %v6676 = vpop.f32.mrf.mxu0
  %6677 = vmatprep.mubr.bf16.mxu0 0
  %6678 = vmatmul.mubr.bf16.gmra.mxu0 %v6529
  %v6679 = vpop.f32.mrf.mxu0
  %v6680 = vadd.f32 0.0, %v6679
  %v6681 = vpop.f32.mrf.mxu0
  %v6682 = vpop.f32.mrf.mxu0
  %v6683 = vadd.f32 0.0, %v6682
  %v6684 = vpop.f32.mrf.mxu0
  %6685 = vmatprep.mubr.bf16.mxu0 0
  %6686 = vmatmul.mubr.bf16.gmra.mxu0 %v6532
  %v6687 = vpop.f32.mrf.mxu0
  %v6688 = vadd.f32 0.0, %v6687
  %v6689 = vpop.f32.mrf.mxu0
  %v6690 = vpop.f32.mrf.mxu0
  %v6691 = vadd.f32 0.0, %v6690
  %v6692 = vpop.f32.mrf.mxu0
  %6693 = vmatprep.mubr.bf16.mxu0 0
  %6694 = vmatmul.mubr.bf16.gmra.mxu0 %v6535
  %v6695 = vpop.f32.mrf.mxu0
  %v6696 = vadd.f32 0.0, %v6695
  %v6697 = vpop.f32.mrf.mxu0
  %v6698 = vpop.f32.mrf.mxu0
  %v6699 = vadd.f32 0.0, %v6698
  %v6700 = vpop.f32.mrf.mxu0
  %6701 = vmatprep.mubr.bf16.mxu0 0
  %6702 = vmatmul.mubr.bf16.gmra.mxu0 %v6538
  %v6703 = vpop.f32.mrf.mxu0
  %v6704 = vadd.f32 0.0, %v6703
  %v6705 = vpop.f32.mrf.mxu0
  %v6706 = vpop.f32.mrf.mxu0
  %v6707 = vadd.f32 0.0, %v6706
  %v6708 = vpop.f32.mrf.mxu0
  %6709 = vmatprep.mubr.bf16.mxu0 0
  %6710 = vmatmul.mubr.bf16.gmra.mxu0 %v6541
  %v6711 = vpop.f32.mrf.mxu0
  %v6712 = vadd.f32 0.0, %v6711
  %v6713 = vpop.f32.mrf.mxu0
  %v6714 = vpop.f32.mrf.mxu0
  %v6715 = vadd.f32 0.0, %v6714
  %v6716 = vpop.f32.mrf.mxu0
  %6717 = vmatprep.mubr.bf16.mxu0 0
  %6718 = vmatmul.mubr.bf16.gmra.mxu0 %v6544
  %v6719 = vpop.f32.mrf.mxu0
  %v6720 = vadd.f32 0.0, %v6719
  %v6721 = vpop.f32.mrf.mxu0
  %v6722 = vpop.f32.mrf.mxu0
  %v6723 = vadd.f32 0.0, %v6722
  %v6724 = vpop.f32.mrf.mxu0
  %6725 = vdwg.mxu0
  %v6726 = vadd.f32 %v6308, %v6584
  %v6727 = vadd.f32 %v6311, %v6587
  %v6728 = vadd.f32 %v6316, %v6592
  %v6729 = vadd.f32 %v6319, %v6595
  %v6730 = vadd.f32 %v6324, %v6600
  %v6731 = vadd.f32 %v6327, %v6603
  %v6732 = vadd.f32 %v6332, %v6608
  %v6733 = vadd.f32 %v6335, %v6611
  %v6734 = vadd.f32 %v6340, %v6616
  %v6735 = vadd.f32 %v6343, %v6619
  %v6736 = vadd.f32 %v6348, %v6624
  %v6737 = vadd.f32 %v6351, %v6627
  %v6738 = vadd.f32 %v6356, %v6632
  %v6739 = vadd.f32 %v6359, %v6635
  %v6740 = vadd.f32 %v6364, %v6640
  %v6741 = vadd.f32 %v6367, %v6643
  %v6742 = vadd.f32 %v6372, %v6648
  %v6743 = vadd.f32 %v6375, %v6651
  %v6744 = vadd.f32 %v6380, %v6656
  %v6745 = vadd.f32 %v6383, %v6659
  %v6746 = vadd.f32 %v6388, %v6664
  %v6747 = vadd.f32 %v6391, %v6667
  %v6748 = vadd.f32 %v6396, %v6672
  %v6749 = vadd.f32 %v6399, %v6675
  %v6750 = vadd.f32 %v6404, %v6680
  %v6751 = vadd.f32 %v6407, %v6683
  %v6752 = vadd.f32 %v6412, %v6688
  %v6753 = vadd.f32 %v6415, %v6691
  %v6754 = vadd.f32 %v6420, %v6696
  %v6755 = vadd.f32 %v6423, %v6699
  %v6756 = vadd.f32 %v6428, %v6704
  %v6757 = vadd.f32 %v6431, %v6707
  %v6758 = vadd.f32 %v6436, %v6712
  %v6759 = vadd.f32 %v6439, %v6715
  %v6760 = vadd.f32 %v6444, %v6720
  %v6761 = vadd.f32 %v6447, %v6723
  %v6762 = vld [vmem:[#allocation2 + $0x8] sm:$0xe]
  %v6763 = vld [vmem:[#allocation2 + $0xc] sm:$0xf]
  %v6764 = vld [vmem:[#allocation2 + $0x10] sm:$0xf]
  %v6765 = vld [vmem:[#allocation2 + $0x14] sm:$0xf]
  %v6766 = vld [vmem:[#allocation2 + $0x18] sm:$0xf]
  %v6767 = vld [vmem:[#allocation2 + $0x1c] sm:$0xf]
  %v6768 = vld [vmem:[#allocation2 + $0x20] sm:$0xf]
  %v6769 = vld [vmem:[#allocation2 + $0x24] sm:$0xf]
  %v6770 = vld [vmem:[#allocation2 + $0x28] sm:$0xf]
  %v6771 = vld [vmem:[#allocation2 + $0x2c] sm:$0xf]
  %v6772 = vld [vmem:[#allocation2 + $0x30] sm:$0xf]
  %v6773 = vld [vmem:[#allocation2 + $0x34] sm:$0xf]
  %v6774 = vld [vmem:[#allocation2 + $0x38] sm:$0xf]
  %v6775 = vld [vmem:[#allocation2 + $0x3c] sm:$0xf]
  %v6776 = vld [vmem:[#allocation2 + $0x40] sm:$0xf]
  %v6777 = vld [vmem:[#allocation2 + $0x44] sm:$0xf]
  %v6778 = vld [vmem:[#allocation2 + $0x48] sm:$0xf]
  %v6779 = vld [vmem:[#allocation2 + $0x4c] sm:$0xf]
  %v6780 = vld [vmem:[#allocation2 + $0x50] sm:$0xf]
  %v6781 = vld [vmem:[#allocation2 + $0x54] sm:$0xf]
  %v6782 = vld [vmem:[#allocation2 + $0x58] sm:$0xf]
  %v6783 = vld [vmem:[#allocation2 + $0x5c] sm:$0xf]
  %v6784 = vld [vmem:[#allocation2 + $0x60] sm:$0xf]
  %v6785 = vld [vmem:[#allocation2 + $0x64] sm:$0xf]
  %v6786 = vld [vmem:[#allocation2 + $0x68] sm:$0xf]
  %v6787 = vld [vmem:[#allocation2 + $0x6c] sm:$0xf]
  %v6788 = vld [vmem:[#allocation2 + $0x70] sm:$0xf]
  %v6789 = vld [vmem:[#allocation2 + $0x74] sm:$0xf]
  %v6790 = vld [vmem:[#allocation2 + $0x78] sm:$0xf]
  %v6791 = vld [vmem:[#allocation2 + $0x7c] sm:$0xf]
  %v6792 = vld [vmem:[#allocation2 + $0x80] sm:$0xf]
  %v6793 = vld [vmem:[#allocation2 + $0x84] sm:$0xf]
  %v6794 = vld [vmem:[#allocation2 + $0x88] sm:$0xf]
  %v6795 = vld [vmem:[#allocation2 + $0x8c] sm:$0xf]
  %v6796 = vld [vmem:[#allocation2 + $0x90] sm:$0xf]
  %v6797 = vld [vmem:[#allocation2 + $0x94] sm:$0xf]
  %v6798 = vld [vmem:[#allocation2 + $0x98] sm:$0x1]
  %v6799 = vld [vmem:[%s2477] sm:$0x3]
  %v6837 = vunpack.c.l.b16 %v6762
  %v6838 = vunpack.c.l.b16 %v6763
  %v6839 = vunpack.c.l.b16 %v6764
  %v6840 = vunpack.c.l.b16 %v6765
  %v6841 = vunpack.c.l.b16 %v6766
  %v6842 = vunpack.c.l.b16 %v6767
  %v6843 = vunpack.c.l.b16 %v6768
  %v6844 = vunpack.c.l.b16 %v6769
  %v6845 = vunpack.c.l.b16 %v6770
  %v6846 = vunpack.c.l.b16 %v6771
  %v6847 = vunpack.c.l.b16 %v6772
  %v6848 = vunpack.c.l.b16 %v6773
  %v6849 = vunpack.c.l.b16 %v6774
  %v6850 = vunpack.c.l.b16 %v6775
  %v6851 = vunpack.c.l.b16 %v6776
  %v6852 = vunpack.c.l.b16 %v6777
  %v6853 = vunpack.c.l.b16 %v6778
  %v6854 = vunpack.c.l.b16 %v6779
  %v6855 = vunpack.c.l.b16 %v6780
  %v6856 = vunpack.c.l.b16 %v6781
  %v6857 = vunpack.c.l.b16 %v6782
  %v6858 = vunpack.c.l.b16 %v6783
  %v6859 = vunpack.c.l.b16 %v6784
  %v6860 = vunpack.c.l.b16 %v6785
  %v6861 = vunpack.c.l.b16 %v6786
  %v6862 = vunpack.c.l.b16 %v6787
  %v6863 = vunpack.c.l.b16 %v6788
  %v6864 = vunpack.c.l.b16 %v6789
  %v6865 = vunpack.c.l.b16 %v6790
  %v6866 = vunpack.c.l.b16 %v6791
  %v6867 = vunpack.c.l.b16 %v6792
  %v6868 = vunpack.c.l.b16 %v6793
  %v6869 = vunpack.c.l.b16 %v6794
  %v6870 = vunpack.c.l.b16 %v6795
  %v6871 = vunpack.c.l.b16 %v6796
  %v6872 = vunpack.c.l.b16 %v6797
  %v6873 = vunpack.c.l.b16 %v6798
  %v6874 = vpack.c.b16 %v6838, %v6837
  %v6875 = vpack.c.b16 %v6840, %v6839
  %v6876 = vpack.c.b16 %v6842, %v6841
  %v6877 = vpack.c.b16 %v6844, %v6843
  %v6878 = vpack.c.b16 %v6846, %v6845
  %v6879 = vpack.c.b16 %v6848, %v6847
  %v6880 = vpack.c.b16 %v6850, %v6849
  %v6881 = vpack.c.b16 %v6852, %v6851
  %v6882 = vpack.c.b16 %v6854, %v6853
  %v6883 = vpack.c.b16 %v6856, %v6855
  %v6884 = vpack.c.b16 %v6858, %v6857
  %v6885 = vpack.c.b16 %v6860, %v6859
  %v6886 = vpack.c.b16 %v6862, %v6861
  %v6887 = vpack.c.b16 %v6864, %v6863
  %v6888 = vpack.c.b16 %v6866, %v6865
  %v6889 = vpack.c.b16 %v6868, %v6867
  %v6890 = vpack.c.b16 %v6870, %v6869
  %v6891 = vpack.c.b16 %v6872, %v6871
  %v6892 = vpack.c.b16 %v6873, %v6873
  %v6893 = vrot.slane %v6874, 1
  %v6894 = vrot.slane %v6875, 1
  %v6895 = vsel %vm2132, %v6893, %v6894
  %v6896 = vrot.slane %v6876, 1
  %v6897 = vsel %vm2132, %v6894, %v6896
  %v6898 = vrot.slane %v6877, 1
  %v6899 = vsel %vm2132, %v6896, %v6898
  %v6900 = vrot.slane %v6878, 1
  %v6901 = vsel %vm2132, %v6898, %v6900
  %v6902 = vrot.slane %v6879, 1
  %v6903 = vsel %vm2132, %v6900, %v6902
  %v6904 = vrot.slane %v6880, 1
  %v6905 = vsel %vm2132, %v6902, %v6904
  %v6906 = vrot.slane %v6881, 1
  %v6907 = vsel %vm2132, %v6904, %v6906
  %v6908 = vrot.slane %v6882, 1
  %v6909 = vsel %vm2132, %v6906, %v6908
  %v6910 = vrot.slane %v6883, 1
  %v6911 = vsel %vm2132, %v6908, %v6910
  %v6912 = vrot.slane %v6884, 1
  %v6913 = vsel %vm2132, %v6910, %v6912
  %v6914 = vrot.slane %v6885, 1
  %v6915 = vsel %vm2132, %v6912, %v6914
  %v6916 = vrot.slane %v6886, 1
  %v6917 = vsel %vm2132, %v6914, %v6916
  %v6918 = vrot.slane %v6887, 1
  %v6919 = vsel %vm2132, %v6916, %v6918
  %v6920 = vrot.slane %v6888, 1
  %v6921 = vsel %vm2132, %v6918, %v6920
  %v6922 = vrot.slane %v6889, 1
  %v6923 = vsel %vm2132, %v6920, %v6922
  %v6924 = vrot.slane %v6890, 1
  %v6925 = vsel %vm2132, %v6922, %v6924
  %v6926 = vrot.slane %v6891, 1
  %v6927 = vsel %vm2132, %v6924, %v6926
  %v6928 = vrot.slane %v6892, 1
  %v6929 = vsel %vm2132, %v6926, %v6928
  %v6931 = vsel %vm1674, %v6895, 0
  %v6934 = vsel %vm1674, %v6897, 0
  %v6937 = vsel %vm1674, %v6899, 0
  %v6940 = vsel %vm1674, %v6901, 0
  %v6943 = vsel %vm1674, %v6903, 0
  %v6946 = vsel %vm1674, %v6905, 0
  %v6949 = vsel %vm1674, %v6907, 0
  %v6952 = vsel %vm1674, %v6909, 0
  %v6955 = vsel %vm1674, %v6911, 0
  %v6958 = vsel %vm1674, %v6913, 0
  %v6961 = vsel %vm1674, %v6915, 0
  %v6964 = vsel %vm1674, %v6917, 0
  %v6967 = vsel %vm1674, %v6919, 0
  %v6970 = vsel %vm1674, %v6921, 0
  %v6973 = vsel %vm1674, %v6923, 0
  %v6976 = vsel %vm1674, %v6925, 0
  %v6979 = vsel %vm1674, %v6927, 0
  %v6982 = vsel %vm1674, %v6929, 0
  %v6985 = vsel %vm1729, %v6799, 0
  %6987 = vmatprep.subr.bf16.mxu0 0
  %6988 = vmatpush1.bf16.msra.mxu0 0
  %6989 = vmatprep.subr.bf16.mxu0 0
  %6990 = vmatpush1.bf16.msra.mxu0 0
  %6991 = vmatprep.subr.bf16.mxu0 0
  %6992 = vmatpush1.bf16.msra.mxu0 0
  %6993 = vmatprep.subr.bf16.mxu0 0
  %6994 = vmatpush1.bf16.msra.mxu0 0
  %6995 = vmatprep.subr.bf16.mxu0 0
  %6996 = vmatpush1.bf16.msra.mxu0 0
  %6997 = vmatprep.subr.bf16.mxu0 0
  %6998 = vmatpush1.bf16.msra.mxu0 0
  %6999 = vmatprep.subr.bf16.mxu0 0
  %7000 = vmatpush1.bf16.msra.mxu0 0
  %7001 = vmatprep.subr.bf16.mxu0 0
  %7002 = vmatpush1.bf16.msra.mxu0 %v6985
  %7003 = vmatprep.subr.bf16.mxu0 0
  %7004 = vmatpush2.bf16.msra.mxu0 0
  %7005 = vmatprep.subr.bf16.mxu0 0
  %7006 = vmatpush2.bf16.msra.mxu0 0
  %7007 = vmatprep.subr.bf16.mxu0 0
  %7008 = vmatpush2.bf16.msra.mxu0 0
  %7009 = vmatprep.subr.bf16.mxu0 0
  %7010 = vmatpush2.bf16.msra.mxu0 0
  %7011 = vmatprep.subr.bf16.mxu0 0
  %7012 = vmatpush2.bf16.msra.mxu0 0
  %7013 = vmatprep.subr.bf16.mxu0 0
  %7014 = vmatpush2.bf16.msra.mxu0 0
  %7015 = vmatprep.subr.bf16.mxu0 0
  %7016 = vmatpush2.bf16.msra.mxu0 0
  %7017 = vmatprep.subr.bf16.mxu0 0
  %7018 = vmatpush2.bf16.msra.mxu0 0
  %7019 = vmatprep.mubr.bf16.mxu0 0
  %7020 = vmatmul.mubr.bf16.gmra.mxu0 %v6931
  %v7021 = vpop.f32.mrf.mxu0
  %v7022 = vadd.f32 0.0, %v7021
  %v7023 = vpop.f32.mrf.mxu0
  %v7024 = vpop.f32.mrf.mxu0
  %v7025 = vadd.f32 0.0, %v7024
  %v7026 = vpop.f32.mrf.mxu0
  %7027 = vmatprep.mubr.bf16.mxu0 0
  %7028 = vmatmul.mubr.bf16.gmra.mxu0 %v6934
  %v7029 = vpop.f32.mrf.mxu0
  %v7030 = vadd.f32 0.0, %v7029
  %v7031 = vpop.f32.mrf.mxu0
  %v7032 = vpop.f32.mrf.mxu0
  %v7033 = vadd.f32 0.0, %v7032
  %v7034 = vpop.f32.mrf.mxu0
  %7035 = vmatprep.mubr.bf16.mxu0 0
  %7036 = vmatmul.mubr.bf16.gmra.mxu0 %v6937
  %v7037 = vpop.f32.mrf.mxu0
  %v7038 = vadd.f32 0.0, %v7037
  %v7039 = vpop.f32.mrf.mxu0
  %v7040 = vpop.f32.mrf.mxu0
  %v7041 = vadd.f32 0.0, %v7040
  %v7042 = vpop.f32.mrf.mxu0
  %7043 = vmatprep.mubr.bf16.mxu0 0
  %7044 = vmatmul.mubr.bf16.gmra.mxu0 %v6940
  %v7045 = vpop.f32.mrf.mxu0
  %v7046 = vadd.f32 0.0, %v7045
  %v7047 = vpop.f32.mrf.mxu0
  %v7048 = vpop.f32.mrf.mxu0
  %v7049 = vadd.f32 0.0, %v7048
  %v7050 = vpop.f32.mrf.mxu0
  %7051 = vmatprep.mubr.bf16.mxu0 0
  %7052 = vmatmul.mubr.bf16.gmra.mxu0 %v6943
  %v7053 = vpop.f32.mrf.mxu0
  %v7054 = vadd.f32 0.0, %v7053
  %v7055 = vpop.f32.mrf.mxu0
  %v7056 = vpop.f32.mrf.mxu0
  %v7057 = vadd.f32 0.0, %v7056
  %v7058 = vpop.f32.mrf.mxu0
  %7059 = vmatprep.mubr.bf16.mxu0 0
  %7060 = vmatmul.mubr.bf16.gmra.mxu0 %v6946
  %v7061 = vpop.f32.mrf.mxu0
  %v7062 = vadd.f32 0.0, %v7061
  %v7063 = vpop.f32.mrf.mxu0
  %v7064 = vpop.f32.mrf.mxu0
  %v7065 = vadd.f32 0.0, %v7064
  %v7066 = vpop.f32.mrf.mxu0
  %7067 = vmatprep.mubr.bf16.mxu0 0
  %7068 = vmatmul.mubr.bf16.gmra.mxu0 %v6949
  %v7069 = vpop.f32.mrf.mxu0
  %v7070 = vadd.f32 0.0, %v7069
  %v7071 = vpop.f32.mrf.mxu0
  %v7072 = vpop.f32.mrf.mxu0
  %v7073 = vadd.f32 0.0, %v7072
  %v7074 = vpop.f32.mrf.mxu0
  %7075 = vmatprep.mubr.bf16.mxu0 0
  %7076 = vmatmul.mubr.bf16.gmra.mxu0 %v6952
  %v7077 = vpop.f32.mrf.mxu0
  %v7078 = vadd.f32 0.0, %v7077
  %v7079 = vpop.f32.mrf.mxu0
  %v7080 = vpop.f32.mrf.mxu0
  %v7081 = vadd.f32 0.0, %v7080
  %v7082 = vpop.f32.mrf.mxu0
  %7083 = vmatprep.mubr.bf16.mxu0 0
  %7084 = vmatmul.mubr.bf16.gmra.mxu0 %v6955
  %v7085 = vpop.f32.mrf.mxu0
  %v7086 = vadd.f32 0.0, %v7085
  %v7087 = vpop.f32.mrf.mxu0
  %v7088 = vpop.f32.mrf.mxu0
  %v7089 = vadd.f32 0.0, %v7088
  %v7090 = vpop.f32.mrf.mxu0
  %7091 = vmatprep.mubr.bf16.mxu0 0
  %7092 = vmatmul.mubr.bf16.gmra.mxu0 %v6958
  %v7093 = vpop.f32.mrf.mxu0
  %v7094 = vadd.f32 0.0, %v7093
  %v7095 = vpop.f32.mrf.mxu0
  %v7096 = vpop.f32.mrf.mxu0
  %v7097 = vadd.f32 0.0, %v7096
  %v7098 = vpop.f32.mrf.mxu0
  %7099 = vmatprep.mubr.bf16.mxu0 0
  %7100 = vmatmul.mubr.bf16.gmra.mxu0 %v6961
  %v7101 = vpop.f32.mrf.mxu0
  %v7102 = vadd.f32 0.0, %v7101
  %v7103 = vpop.f32.mrf.mxu0
  %v7104 = vpop.f32.mrf.mxu0
  %v7105 = vadd.f32 0.0, %v7104
  %v7106 = vpop.f32.mrf.mxu0
  %7107 = vmatprep.mubr.bf16.mxu0 0
  %7108 = vmatmul.mubr.bf16.gmra.mxu0 %v6964
  %v7109 = vpop.f32.mrf.mxu0
  %v7110 = vadd.f32 0.0, %v7109
  %v7111 = vpop.f32.mrf.mxu0
  %v7112 = vpop.f32.mrf.mxu0
  %v7113 = vadd.f32 0.0, %v7112
  %v7114 = vpop.f32.mrf.mxu0
  %7115 = vmatprep.mubr.bf16.mxu0 0
  %7116 = vmatmul.mubr.bf16.gmra.mxu0 %v6967
  %v7117 = vpop.f32.mrf.mxu0
  %v7118 = vadd.f32 0.0, %v7117
  %v7119 = vpop.f32.mrf.mxu0
  %v7120 = vpop.f32.mrf.mxu0
  %v7121 = vadd.f32 0.0, %v7120
  %v7122 = vpop.f32.mrf.mxu0
  %7123 = vmatprep.mubr.bf16.mxu0 0
  %7124 = vmatmul.mubr.bf16.gmra.mxu0 %v6970
  %v7125 = vpop.f32.mrf.mxu0
  %v7126 = vadd.f32 0.0, %v7125
  %v7127 = vpop.f32.mrf.mxu0
  %v7128 = vpop.f32.mrf.mxu0
  %v7129 = vadd.f32 0.0, %v7128
  %v7130 = vpop.f32.mrf.mxu0
  %7131 = vmatprep.mubr.bf16.mxu0 0
  %7132 = vmatmul.mubr.bf16.gmra.mxu0 %v6973
  %v7133 = vpop.f32.mrf.mxu0
  %v7134 = vadd.f32 0.0, %v7133
  %v7135 = vpop.f32.mrf.mxu0
  %v7136 = vpop.f32.mrf.mxu0
  %v7137 = vadd.f32 0.0, %v7136
  %v7138 = vpop.f32.mrf.mxu0
  %7139 = vmatprep.mubr.bf16.mxu0 0
  %7140 = vmatmul.mubr.bf16.gmra.mxu0 %v6976
  %v7141 = vpop.f32.mrf.mxu0
  %v7142 = vadd.f32 0.0, %v7141
  %v7143 = vpop.f32.mrf.mxu0
  %v7144 = vpop.f32.mrf.mxu0
  %v7145 = vadd.f32 0.0, %v7144
  %v7146 = vpop.f32.mrf.mxu0
  %7147 = vmatprep.mubr.bf16.mxu0 0
  %7148 = vmatmul.mubr.bf16.gmra.mxu0 %v6979
  %v7149 = vpop.f32.mrf.mxu0
  %v7150 = vadd.f32 0.0, %v7149
  %v7151 = vpop.f32.mrf.mxu0
  %v7152 = vpop.f32.mrf.mxu0
  %v7153 = vadd.f32 0.0, %v7152
  %v7154 = vpop.f32.mrf.mxu0
  %7155 = vmatprep.mubr.bf16.mxu0 0
  %7156 = vmatmul.mubr.bf16.gmra.mxu0 %v6982
  %v7157 = vpop.f32.mrf.mxu0
  %v7158 = vadd.f32 0.0, %v7157
  %v7159 = vpop.f32.mrf.mxu0
  %v7160 = vpop.f32.mrf.mxu0
  %v7161 = vadd.f32 0.0, %v7160
  %v7162 = vpop.f32.mrf.mxu0
  %7163 = vdwg.mxu0
  %v7164 = vadd.f32 %v6726, %v7022
  %v7165 = vadd.f32 %v6727, %v7025
  %v7166 = vadd.f32 %v6728, %v7030
  %v7167 = vadd.f32 %v6729, %v7033
  %v7168 = vadd.f32 %v6730, %v7038
  %v7169 = vadd.f32 %v6731, %v7041
  %v7170 = vadd.f32 %v6732, %v7046
  %v7171 = vadd.f32 %v6733, %v7049
  %v7172 = vadd.f32 %v6734, %v7054
  %v7173 = vadd.f32 %v6735, %v7057
  %v7174 = vadd.f32 %v6736, %v7062
  %v7175 = vadd.f32 %v6737, %v7065
  %v7176 = vadd.f32 %v6738, %v7070
  %v7177 = vadd.f32 %v6739, %v7073
  %v7178 = vadd.f32 %v6740, %v7078
  %v7179 = vadd.f32 %v6741, %v7081
  %v7180 = vadd.f32 %v6742, %v7086
  %v7181 = vadd.f32 %v6743, %v7089
  %v7182 = vadd.f32 %v6744, %v7094
  %v7183 = vadd.f32 %v6745, %v7097
  %v7184 = vadd.f32 %v6746, %v7102
  %v7185 = vadd.f32 %v6747, %v7105
  %v7186 = vadd.f32 %v6748, %v7110
  %v7187 = vadd.f32 %v6749, %v7113
  %v7188 = vadd.f32 %v6750, %v7118
  %v7189 = vadd.f32 %v6751, %v7121
  %v7190 = vadd.f32 %v6752, %v7126
  %v7191 = vadd.f32 %v6753, %v7129
  %v7192 = vadd.f32 %v6754, %v7134
  %v7193 = vadd.f32 %v6755, %v7137
  %v7194 = vadd.f32 %v6756, %v7142
  %v7195 = vadd.f32 %v6757, %v7145
  %v7196 = vadd.f32 %v6758, %v7150
  %v7197 = vadd.f32 %v6759, %v7153
  %v7198 = vadd.f32 %v6760, %v7158
  %v7199 = vadd.f32 %v6761, %v7161
  %v7200 = vld [vmem:[#allocation2 + $0x98] sm:$0x3]
  %v7201 = vld [vmem:[%s2880] sm:$0x3]
  %v7203 = vunpack.c.l.b16 %v7200
  %v7204 = vpack.c.b16 %v7203, %v7203
  %v7206 = vshrl.u32 %v6874, 16
  %v7208 = vrot.slane %v7206, 1
  %v7209 = vshll.u32 %v6874, 16
  %v7211 = vrot.slane %v7209, 2
  %v7212 = vor.u32 %v7208, %v7211
  %v7214 = vshrl.u32 %v6875, 16
  %v7216 = vrot.slane %v7214, 1
  %v7217 = vshll.u32 %v6875, 16
  %v7219 = vrot.slane %v7217, 2
  %v7220 = vor.u32 %v7216, %v7219
  %v7221 = vsel %vm2885, %v7212, %v7220
  %v7223 = vshrl.u32 %v6876, 16
  %v7225 = vrot.slane %v7223, 1
  %v7226 = vshll.u32 %v6876, 16
  %v7228 = vrot.slane %v7226, 2
  %v7229 = vor.u32 %v7225, %v7228
  %v7230 = vsel %vm2885, %v7220, %v7229
  %v7232 = vshrl.u32 %v6877, 16
  %v7234 = vrot.slane %v7232, 1
  %v7235 = vshll.u32 %v6877, 16
  %v7237 = vrot.slane %v7235, 2
  %v7238 = vor.u32 %v7234, %v7237
  %v7239 = vsel %vm2885, %v7229, %v7238
  %v7241 = vshrl.u32 %v6878, 16
  %v7243 = vrot.slane %v7241, 1
  %v7244 = vshll.u32 %v6878, 16
  %v7246 = vrot.slane %v7244, 2
  %v7247 = vor.u32 %v7243, %v7246
  %v7248 = vsel %vm2885, %v7238, %v7247
  %v7250 = vshrl.u32 %v6879, 16
  %v7252 = vrot.slane %v7250, 1
  %v7253 = vshll.u32 %v6879, 16
  %v7255 = vrot.slane %v7253, 2
  %v7256 = vor.u32 %v7252, %v7255
  %v7257 = vsel %vm2885, %v7247, %v7256
  %v7259 = vshrl.u32 %v6880, 16
  %v7261 = vrot.slane %v7259, 1
  %v7262 = vshll.u32 %v6880, 16
  %v7264 = vrot.slane %v7262, 2
  %v7265 = vor.u32 %v7261, %v7264
  %v7266 = vsel %vm2885, %v7256, %v7265
  %v7268 = vshrl.u32 %v6881, 16
  %v7270 = vrot.slane %v7268, 1
  %v7271 = vshll.u32 %v6881, 16
  %v7273 = vrot.slane %v7271, 2
  %v7274 = vor.u32 %v7270, %v7273
  %v7275 = vsel %vm2885, %v7265, %v7274
  %v7277 = vshrl.u32 %v6882, 16
  %v7279 = vrot.slane %v7277, 1
  %v7280 = vshll.u32 %v6882, 16
  %v7282 = vrot.slane %v7280, 2
  %v7283 = vor.u32 %v7279, %v7282
  %v7284 = vsel %vm2885, %v7274, %v7283
  %v7286 = vshrl.u32 %v6883, 16
  %v7288 = vrot.slane %v7286, 1
  %v7289 = vshll.u32 %v6883, 16
  %v7291 = vrot.slane %v7289, 2
  %v7292 = vor.u32 %v7288, %v7291
  %v7293 = vsel %vm2885, %v7283, %v7292
  %v7295 = vshrl.u32 %v6884, 16
  %v7297 = vrot.slane %v7295, 1
  %v7298 = vshll.u32 %v6884, 16
  %v7300 = vrot.slane %v7298, 2
  %v7301 = vor.u32 %v7297, %v7300
  %v7302 = vsel %vm2885, %v7292, %v7301
  %v7304 = vshrl.u32 %v6885, 16
  %v7306 = vrot.slane %v7304, 1
  %v7307 = vshll.u32 %v6885, 16
  %v7309 = vrot.slane %v7307, 2
  %v7310 = vor.u32 %v7306, %v7309
  %v7311 = vsel %vm2885, %v7301, %v7310
  %v7313 = vshrl.u32 %v6886, 16
  %v7315 = vrot.slane %v7313, 1
  %v7316 = vshll.u32 %v6886, 16
  %v7318 = vrot.slane %v7316, 2
  %v7319 = vor.u32 %v7315, %v7318
  %v7320 = vsel %vm2885, %v7310, %v7319
  %v7322 = vshrl.u32 %v6887, 16
  %v7324 = vrot.slane %v7322, 1
  %v7325 = vshll.u32 %v6887, 16
  %v7327 = vrot.slane %v7325, 2
  %v7328 = vor.u32 %v7324, %v7327
  %v7329 = vsel %vm2885, %v7319, %v7328
  %v7331 = vshrl.u32 %v6888, 16
  %v7333 = vrot.slane %v7331, 1
  %v7334 = vshll.u32 %v6888, 16
  %v7336 = vrot.slane %v7334, 2
  %v7337 = vor.u32 %v7333, %v7336
  %v7338 = vsel %vm2885, %v7328, %v7337
  %v7340 = vshrl.u32 %v6889, 16
  %v7342 = vrot.slane %v7340, 1
  %v7343 = vshll.u32 %v6889, 16
  %v7345 = vrot.slane %v7343, 2
  %v7346 = vor.u32 %v7342, %v7345
  %v7347 = vsel %vm2885, %v7337, %v7346
  %v7349 = vshrl.u32 %v6890, 16
  %v7351 = vrot.slane %v7349, 1
  %v7352 = vshll.u32 %v6890, 16
  %v7354 = vrot.slane %v7352, 2
  %v7355 = vor.u32 %v7351, %v7354
  %v7356 = vsel %vm2885, %v7346, %v7355
  %v7358 = vshrl.u32 %v6891, 16
  %v7360 = vrot.slane %v7358, 1
  %v7361 = vshll.u32 %v6891, 16
  %v7363 = vrot.slane %v7361, 2
  %v7364 = vor.u32 %v7360, %v7363
  %v7365 = vsel %vm2885, %v7355, %v7364
  %v7367 = vshrl.u32 %v7204, 16
  %v7369 = vrot.slane %v7367, 1
  %v7370 = vshll.u32 %v7204, 16
  %v7372 = vrot.slane %v7370, 2
  %v7373 = vor.u32 %v7369, %v7372
  %v7374 = vsel %vm2885, %v7364, %v7373
  %v7376 = vsel %vm1674, %v7221, 0
  %v7379 = vsel %vm1674, %v7230, 0
  %v7382 = vsel %vm1674, %v7239, 0
  %v7385 = vsel %vm1674, %v7248, 0
  %v7388 = vsel %vm1674, %v7257, 0
  %v7391 = vsel %vm1674, %v7266, 0
  %v7394 = vsel %vm1674, %v7275, 0
  %v7397 = vsel %vm1674, %v7284, 0
  %v7400 = vsel %vm1674, %v7293, 0
  %v7403 = vsel %vm1674, %v7302, 0
  %v7406 = vsel %vm1674, %v7311, 0
  %v7409 = vsel %vm1674, %v7320, 0
  %v7412 = vsel %vm1674, %v7329, 0
  %v7415 = vsel %vm1674, %v7338, 0
  %v7418 = vsel %vm1674, %v7347, 0
  %v7421 = vsel %vm1674, %v7356, 0
  %v7424 = vsel %vm1674, %v7365, 0
  %v7427 = vsel %vm1674, %v7374, 0
  %v7430 = vsel %vm1729, %v7201, 0
  %7432 = vmatprep.subr.bf16.mxu0 0
  %7433 = vmatpush1.bf16.msra.mxu0 0
  %7434 = vmatprep.subr.bf16.mxu0 0
  %7435 = vmatpush1.bf16.msra.mxu0 0
  %7436 = vmatprep.subr.bf16.mxu0 0
  %7437 = vmatpush1.bf16.msra.mxu0 0
  %7438 = vmatprep.subr.bf16.mxu0 0
  %7439 = vmatpush1.bf16.msra.mxu0 0
  %7440 = vmatprep.subr.bf16.mxu0 0
  %7441 = vmatpush1.bf16.msra.mxu0 0
  %7442 = vmatprep.subr.bf16.mxu0 0
  %7443 = vmatpush1.bf16.msra.mxu0 0
  %7444 = vmatprep.subr.bf16.mxu0 0
  %7445 = vmatpush1.bf16.msra.mxu0 0
  %7446 = vmatprep.subr.bf16.mxu0 0
  %7447 = vmatpush1.bf16.msra.mxu0 %v7430
  %7448 = vmatprep.subr.bf16.mxu0 0
  %7449 = vmatpush2.bf16.msra.mxu0 0
  %7450 = vmatprep.subr.bf16.mxu0 0
  %7451 = vmatpush2.bf16.msra.mxu0 0
  %7452 = vmatprep.subr.bf16.mxu0 0
  %7453 = vmatpush2.bf16.msra.mxu0 0
  %7454 = vmatprep.subr.bf16.mxu0 0
  %7455 = vmatpush2.bf16.msra.mxu0 0
  %7456 = vmatprep.subr.bf16.mxu0 0
  %7457 = vmatpush2.bf16.msra.mxu0 0
  %7458 = vmatprep.subr.bf16.mxu0 0
  %7459 = vmatpush2.bf16.msra.mxu0 0
  %7460 = vmatprep.subr.bf16.mxu0 0
  %7461 = vmatpush2.bf16.msra.mxu0 0
  %7462 = vmatprep.subr.bf16.mxu0 0
  %7463 = vmatpush2.bf16.msra.mxu0 0
  %7464 = vmatprep.mubr.bf16.mxu0 0
  %7465 = vmatmul.mubr.bf16.gmra.mxu0 %v7376
  %v7466 = vpop.f32.mrf.mxu0
  %v7467 = vadd.f32 0.0, %v7466
  %v7468 = vpop.f32.mrf.mxu0
  %v7469 = vpop.f32.mrf.mxu0
  %v7470 = vadd.f32 0.0, %v7469
  %v7471 = vpop.f32.mrf.mxu0
  %7472 = vmatprep.mubr.bf16.mxu0 0
  %7473 = vmatmul.mubr.bf16.gmra.mxu0 %v7379
  %v7474 = vpop.f32.mrf.mxu0
  %v7475 = vadd.f32 0.0, %v7474
  %v7476 = vpop.f32.mrf.mxu0
  %v7477 = vpop.f32.mrf.mxu0
  %v7478 = vadd.f32 0.0, %v7477
  %v7479 = vpop.f32.mrf.mxu0
  %7480 = vmatprep.mubr.bf16.mxu0 0
  %7481 = vmatmul.mubr.bf16.gmra.mxu0 %v7382
  %v7482 = vpop.f32.mrf.mxu0
  %v7483 = vadd.f32 0.0, %v7482
  %v7484 = vpop.f32.mrf.mxu0
  %v7485 = vpop.f32.mrf.mxu0
  %v7486 = vadd.f32 0.0, %v7485
  %v7487 = vpop.f32.mrf.mxu0
  %7488 = vmatprep.mubr.bf16.mxu0 0
  %7489 = vmatmul.mubr.bf16.gmra.mxu0 %v7385
  %v7490 = vpop.f32.mrf.mxu0
  %v7491 = vadd.f32 0.0, %v7490
  %v7492 = vpop.f32.mrf.mxu0
  %v7493 = vpop.f32.mrf.mxu0
  %v7494 = vadd.f32 0.0, %v7493
  %v7495 = vpop.f32.mrf.mxu0
  %7496 = vmatprep.mubr.bf16.mxu0 0
  %7497 = vmatmul.mubr.bf16.gmra.mxu0 %v7388
  %v7498 = vpop.f32.mrf.mxu0
  %v7499 = vadd.f32 0.0, %v7498
  %v7500 = vpop.f32.mrf.mxu0
  %v7501 = vpop.f32.mrf.mxu0
  %v7502 = vadd.f32 0.0, %v7501
  %v7503 = vpop.f32.mrf.mxu0
  %7504 = vmatprep.mubr.bf16.mxu0 0
  %7505 = vmatmul.mubr.bf16.gmra.mxu0 %v7391
  %v7506 = vpop.f32.mrf.mxu0
  %v7507 = vadd.f32 0.0, %v7506
  %v7508 = vpop.f32.mrf.mxu0
  %v7509 = vpop.f32.mrf.mxu0
  %v7510 = vadd.f32 0.0, %v7509
  %v7511 = vpop.f32.mrf.mxu0
  %7512 = vmatprep.mubr.bf16.mxu0 0
  %7513 = vmatmul.mubr.bf16.gmra.mxu0 %v7394
  %v7514 = vpop.f32.mrf.mxu0
  %v7515 = vadd.f32 0.0, %v7514
  %v7516 = vpop.f32.mrf.mxu0
  %v7517 = vpop.f32.mrf.mxu0
  %v7518 = vadd.f32 0.0, %v7517
  %v7519 = vpop.f32.mrf.mxu0
  %7520 = vmatprep.mubr.bf16.mxu0 0
  %7521 = vmatmul.mubr.bf16.gmra.mxu0 %v7397
  %v7522 = vpop.f32.mrf.mxu0
  %v7523 = vadd.f32 0.0, %v7522
  %v7524 = vpop.f32.mrf.mxu0
  %v7525 = vpop.f32.mrf.mxu0
  %v7526 = vadd.f32 0.0, %v7525
  %v7527 = vpop.f32.mrf.mxu0
  %7528 = vmatprep.mubr.bf16.mxu0 0
  %7529 = vmatmul.mubr.bf16.gmra.mxu0 %v7400
  %v7530 = vpop.f32.mrf.mxu0
  %v7531 = vadd.f32 0.0, %v7530
  %v7532 = vpop.f32.mrf.mxu0
  %v7533 = vpop.f32.mrf.mxu0
  %v7534 = vadd.f32 0.0, %v7533
  %v7535 = vpop.f32.mrf.mxu0
  %7536 = vmatprep.mubr.bf16.mxu0 0
  %7537 = vmatmul.mubr.bf16.gmra.mxu0 %v7403
  %v7538 = vpop.f32.mrf.mxu0
  %v7539 = vadd.f32 0.0, %v7538
  %v7540 = vpop.f32.mrf.mxu0
  %v7541 = vpop.f32.mrf.mxu0
  %v7542 = vadd.f32 0.0, %v7541
  %v7543 = vpop.f32.mrf.mxu0
  %7544 = vmatprep.mubr.bf16.mxu0 0
  %7545 = vmatmul.mubr.bf16.gmra.mxu0 %v7406
  %v7546 = vpop.f32.mrf.mxu0
  %v7547 = vadd.f32 0.0, %v7546
  %v7548 = vpop.f32.mrf.mxu0
  %v7549 = vpop.f32.mrf.mxu0
  %v7550 = vadd.f32 0.0, %v7549
  %v7551 = vpop.f32.mrf.mxu0
  %7552 = vmatprep.mubr.bf16.mxu0 0
  %7553 = vmatmul.mubr.bf16.gmra.mxu0 %v7409
  %v7554 = vpop.f32.mrf.mxu0
  %v7555 = vadd.f32 0.0, %v7554
  %v7556 = vpop.f32.mrf.mxu0
  %v7557 = vpop.f32.mrf.mxu0
  %v7558 = vadd.f32 0.0, %v7557
  %v7559 = vpop.f32.mrf.mxu0
  %7560 = vmatprep.mubr.bf16.mxu0 0
  %7561 = vmatmul.mubr.bf16.gmra.mxu0 %v7412
  %v7562 = vpop.f32.mrf.mxu0
  %v7563 = vadd.f32 0.0, %v7562
  %v7564 = vpop.f32.mrf.mxu0
  %v7565 = vpop.f32.mrf.mxu0
  %v7566 = vadd.f32 0.0, %v7565
  %v7567 = vpop.f32.mrf.mxu0
  %7568 = vmatprep.mubr.bf16.mxu0 0
  %7569 = vmatmul.mubr.bf16.gmra.mxu0 %v7415
  %v7570 = vpop.f32.mrf.mxu0
  %v7571 = vadd.f32 0.0, %v7570
  %v7572 = vpop.f32.mrf.mxu0
  %v7573 = vpop.f32.mrf.mxu0
  %v7574 = vadd.f32 0.0, %v7573
  %v7575 = vpop.f32.mrf.mxu0
  %7576 = vmatprep.mubr.bf16.mxu0 0
  %7577 = vmatmul.mubr.bf16.gmra.mxu0 %v7418
  %v7578 = vpop.f32.mrf.mxu0
  %v7579 = vadd.f32 0.0, %v7578
  %v7580 = vpop.f32.mrf.mxu0
  %v7581 = vpop.f32.mrf.mxu0
  %v7582 = vadd.f32 0.0, %v7581
  %v7583 = vpop.f32.mrf.mxu0
  %7584 = vmatprep.mubr.bf16.mxu0 0
  %7585 = vmatmul.mubr.bf16.gmra.mxu0 %v7421
  %v7586 = vpop.f32.mrf.mxu0
  %v7587 = vadd.f32 0.0, %v7586
  %v7588 = vpop.f32.mrf.mxu0
  %v7589 = vpop.f32.mrf.mxu0
  %v7590 = vadd.f32 0.0, %v7589
  %v7591 = vpop.f32.mrf.mxu0
  %7592 = vmatprep.mubr.bf16.mxu0 0
  %7593 = vmatmul.mubr.bf16.gmra.mxu0 %v7424
  %v7594 = vpop.f32.mrf.mxu0
  %v7595 = vadd.f32 0.0, %v7594
  %v7596 = vpop.f32.mrf.mxu0
  %v7597 = vpop.f32.mrf.mxu0
  %v7598 = vadd.f32 0.0, %v7597
  %v7599 = vpop.f32.mrf.mxu0
  %7600 = vmatprep.mubr.bf16.mxu0 0
  %7601 = vmatmul.mubr.bf16.gmra.mxu0 %v7427
  %v7602 = vpop.f32.mrf.mxu0
  %v7603 = vadd.f32 0.0, %v7602
  %v7604 = vpop.f32.mrf.mxu0
  %v7605 = vpop.f32.mrf.mxu0
  %v7606 = vadd.f32 0.0, %v7605
  %v7607 = vpop.f32.mrf.mxu0
  %7608 = vdwg.mxu0
  %v7609 = vadd.f32 %v7164, %v7467
  %v7610 = vadd.f32 %v7165, %v7470
  %v7611 = vadd.f32 %v7166, %v7475
  %v7612 = vadd.f32 %v7167, %v7478
  %v7613 = vadd.f32 %v7168, %v7483
  %v7614 = vadd.f32 %v7169, %v7486
  %v7615 = vadd.f32 %v7170, %v7491
  %v7616 = vadd.f32 %v7171, %v7494
  %v7617 = vadd.f32 %v7172, %v7499
  %v7618 = vadd.f32 %v7173, %v7502
  %v7619 = vadd.f32 %v7174, %v7507
  %v7620 = vadd.f32 %v7175, %v7510
  %v7621 = vadd.f32 %v7176, %v7515
  %v7622 = vadd.f32 %v7177, %v7518
  %v7623 = vadd.f32 %v7178, %v7523
  %v7624 = vadd.f32 %v7179, %v7526
  %v7625 = vadd.f32 %v7180, %v7531
  %v7626 = vadd.f32 %v7181, %v7534
  %v7627 = vadd.f32 %v7182, %v7539
  %v7628 = vadd.f32 %v7183, %v7542
  %v7629 = vadd.f32 %v7184, %v7547
  %v7630 = vadd.f32 %v7185, %v7550
  %v7631 = vadd.f32 %v7186, %v7555
  %v7632 = vadd.f32 %v7187, %v7558
  %v7633 = vadd.f32 %v7188, %v7563
  %v7634 = vadd.f32 %v7189, %v7566
  %v7635 = vadd.f32 %v7190, %v7571
  %v7636 = vadd.f32 %v7191, %v7574
  %v7637 = vadd.f32 %v7192, %v7579
  %v7638 = vadd.f32 %v7193, %v7582
  %v7639 = vadd.f32 %v7194, %v7587
  %v7640 = vadd.f32 %v7195, %v7590
  %v7641 = vadd.f32 %v7196, %v7595
  %v7642 = vadd.f32 %v7197, %v7598
  %v7643 = vadd.f32 %v7198, %v7603
  %v7644 = vadd.f32 %v7199, %v7606
  %v7645 = vld [vmem:[#allocation2 + $0x8] sm:$0xc]
  %v7646 = vld [vmem:[%s3327] sm:$0x3]
  %v7648 = vunpack.c.l.b16 %v7645
  %v7649 = vpack.c.b16 %v6838, %v7648
  %v7650 = vrot.slane %v7649, 2
  %v7651 = vrot.slane %v6875, 2
  %v7652 = vsel %vm3332, %v7650, %v7651
  %v7653 = vrot.slane %v6876, 2
  %v7654 = vsel %vm3332, %v7651, %v7653
  %v7655 = vrot.slane %v6877, 2
  %v7656 = vsel %vm3332, %v7653, %v7655
  %v7657 = vrot.slane %v6878, 2
  %v7658 = vsel %vm3332, %v7655, %v7657
  %v7659 = vrot.slane %v6879, 2
  %v7660 = vsel %vm3332, %v7657, %v7659
  %v7661 = vrot.slane %v6880, 2
  %v7662 = vsel %vm3332, %v7659, %v7661
  %v7663 = vrot.slane %v6881, 2
  %v7664 = vsel %vm3332, %v7661, %v7663
  %v7665 = vrot.slane %v6882, 2
  %v7666 = vsel %vm3332, %v7663, %v7665
  %v7667 = vrot.slane %v6883, 2
  %v7668 = vsel %vm3332, %v7665, %v7667
  %v7669 = vrot.slane %v6884, 2
  %v7670 = vsel %vm3332, %v7667, %v7669
  %v7671 = vrot.slane %v6885, 2
  %v7672 = vsel %vm3332, %v7669, %v7671
  %v7673 = vrot.slane %v6886, 2
  %v7674 = vsel %vm3332, %v7671, %v7673
  %v7675 = vrot.slane %v6887, 2
  %v7676 = vsel %vm3332, %v7673, %v7675
  %v7677 = vrot.slane %v6888, 2
  %v7678 = vsel %vm3332, %v7675, %v7677
  %v7679 = vrot.slane %v6889, 2
  %v7680 = vsel %vm3332, %v7677, %v7679
  %v7681 = vrot.slane %v6890, 2
  %v7682 = vsel %vm3332, %v7679, %v7681
  %v7683 = vrot.slane %v6891, 2
  %v7684 = vsel %vm3332, %v7681, %v7683
  %v7685 = vrot.slane %v7204, 2
  %v7686 = vsel %vm3332, %v7683, %v7685
  %v7688 = vsel %vm1674, %v7652, 0
  %v7691 = vsel %vm1674, %v7654, 0
  %v7694 = vsel %vm1674, %v7656, 0
  %v7697 = vsel %vm1674, %v7658, 0
  %v7700 = vsel %vm1674, %v7660, 0
  %v7703 = vsel %vm1674, %v7662, 0
  %v7706 = vsel %vm1674, %v7664, 0
  %v7709 = vsel %vm1674, %v7666, 0
  %v7712 = vsel %vm1674, %v7668, 0
  %v7715 = vsel %vm1674, %v7670, 0
  %v7718 = vsel %vm1674, %v7672, 0
  %v7721 = vsel %vm1674, %v7674, 0
  %v7724 = vsel %vm1674, %v7676, 0
  %v7727 = vsel %vm1674, %v7678, 0
  %v7730 = vsel %vm1674, %v7680, 0
  %v7733 = vsel %vm1674, %v7682, 0
  %v7736 = vsel %vm1674, %v7684, 0
  %v7739 = vsel %vm1674, %v7686, 0
  %v7742 = vsel %vm1729, %v7646, 0
  %7744 = vmatprep.subr.bf16.mxu0 0
  %7745 = vmatpush1.bf16.msra.mxu0 0
  %7746 = vmatprep.subr.bf16.mxu0 0
  %7747 = vmatpush1.bf16.msra.mxu0 0
  %7748 = vmatprep.subr.bf16.mxu0 0
  %7749 = vmatpush1.bf16.msra.mxu0 0
  %7750 = vmatprep.subr.bf16.mxu0 0
  %7751 = vmatpush1.bf16.msra.mxu0 0
  %7752 = vmatprep.subr.bf16.mxu0 0
  %7753 = vmatpush1.bf16.msra.mxu0 0
  %7754 = vmatprep.subr.bf16.mxu0 0
  %7755 = vmatpush1.bf16.msra.mxu0 0
  %7756 = vmatprep.subr.bf16.mxu0 0
  %7757 = vmatpush1.bf16.msra.mxu0 0
  %7758 = vmatprep.subr.bf16.mxu0 0
  %7759 = vmatpush1.bf16.msra.mxu0 %v7742
  %7760 = vmatprep.subr.bf16.mxu0 0
  %7761 = vmatpush2.bf16.msra.mxu0 0
  %7762 = vmatprep.subr.bf16.mxu0 0
  %7763 = vmatpush2.bf16.msra.mxu0 0
  %7764 = vmatprep.subr.bf16.mxu0 0
  %7765 = vmatpush2.bf16.msra.mxu0 0
  %7766 = vmatprep.subr.bf16.mxu0 0
  %7767 = vmatpush2.bf16.msra.mxu0 0
  %7768 = vmatprep.subr.bf16.mxu0 0
  %7769 = vmatpush2.bf16.msra.mxu0 0
  %7770 = vmatprep.subr.bf16.mxu0 0
  %7771 = vmatpush2.bf16.msra.mxu0 0
  %7772 = vmatprep.subr.bf16.mxu0 0
  %7773 = vmatpush2.bf16.msra.mxu0 0
  %7774 = vmatprep.subr.bf16.mxu0 0
  %7775 = vmatpush2.bf16.msra.mxu0 0
  %7776 = vmatprep.mubr.bf16.mxu0 0
  %7777 = vmatmul.mubr.bf16.gmra.mxu0 %v7688
  %v7778 = vpop.f32.mrf.mxu0
  %v7779 = vadd.f32 0.0, %v7778
  %v7780 = vpop.f32.mrf.mxu0
  %v7781 = vpop.f32.mrf.mxu0
  %v7782 = vadd.f32 0.0, %v7781
  %v7783 = vpop.f32.mrf.mxu0
  %7784 = vmatprep.mubr.bf16.mxu0 0
  %7785 = vmatmul.mubr.bf16.gmra.mxu0 %v7691
  %v7786 = vpop.f32.mrf.mxu0
  %v7787 = vadd.f32 0.0, %v7786
  %v7788 = vpop.f32.mrf.mxu0
  %v7789 = vpop.f32.mrf.mxu0
  %v7790 = vadd.f32 0.0, %v7789
  %v7791 = vpop.f32.mrf.mxu0
  %7792 = vmatprep.mubr.bf16.mxu0 0
  %7793 = vmatmul.mubr.bf16.gmra.mxu0 %v7694
  %v7794 = vpop.f32.mrf.mxu0
  %v7795 = vadd.f32 0.0, %v7794
  %v7796 = vpop.f32.mrf.mxu0
  %v7797 = vpop.f32.mrf.mxu0
  %v7798 = vadd.f32 0.0, %v7797
  %v7799 = vpop.f32.mrf.mxu0
  %7800 = vmatprep.mubr.bf16.mxu0 0
  %7801 = vmatmul.mubr.bf16.gmra.mxu0 %v7697
  %v7802 = vpop.f32.mrf.mxu0
  %v7803 = vadd.f32 0.0, %v7802
  %v7804 = vpop.f32.mrf.mxu0
  %v7805 = vpop.f32.mrf.mxu0
  %v7806 = vadd.f32 0.0, %v7805
  %v7807 = vpop.f32.mrf.mxu0
  %7808 = vmatprep.mubr.bf16.mxu0 0
  %7809 = vmatmul.mubr.bf16.gmra.mxu0 %v7700
  %v7810 = vpop.f32.mrf.mxu0
  %v7811 = vadd.f32 0.0, %v7810
  %v7812 = vpop.f32.mrf.mxu0
  %v7813 = vpop.f32.mrf.mxu0
  %v7814 = vadd.f32 0.0, %v7813
  %v7815 = vpop.f32.mrf.mxu0
  %7816 = vmatprep.mubr.bf16.mxu0 0
  %7817 = vmatmul.mubr.bf16.gmra.mxu0 %v7703
  %v7818 = vpop.f32.mrf.mxu0
  %v7819 = vadd.f32 0.0, %v7818
  %v7820 = vpop.f32.mrf.mxu0
  %v7821 = vpop.f32.mrf.mxu0
  %v7822 = vadd.f32 0.0, %v7821
  %v7823 = vpop.f32.mrf.mxu0
  %7824 = vmatprep.mubr.bf16.mxu0 0
  %7825 = vmatmul.mubr.bf16.gmra.mxu0 %v7706
  %v7826 = vpop.f32.mrf.mxu0
  %v7827 = vadd.f32 0.0, %v7826
  %v7828 = vpop.f32.mrf.mxu0
  %v7829 = vpop.f32.mrf.mxu0
  %v7830 = vadd.f32 0.0, %v7829
  %v7831 = vpop.f32.mrf.mxu0
  %7832 = vmatprep.mubr.bf16.mxu0 0
  %7833 = vmatmul.mubr.bf16.gmra.mxu0 %v7709
  %v7834 = vpop.f32.mrf.mxu0
  %v7835 = vadd.f32 0.0, %v7834
  %v7836 = vpop.f32.mrf.mxu0
  %v7837 = vpop.f32.mrf.mxu0
  %v7838 = vadd.f32 0.0, %v7837
  %v7839 = vpop.f32.mrf.mxu0
  %7840 = vmatprep.mubr.bf16.mxu0 0
  %7841 = vmatmul.mubr.bf16.gmra.mxu0 %v7712
  %v7842 = vpop.f32.mrf.mxu0
  %v7843 = vadd.f32 0.0, %v7842
  %v7844 = vpop.f32.mrf.mxu0
  %v7845 = vpop.f32.mrf.mxu0
  %v7846 = vadd.f32 0.0, %v7845
  %v7847 = vpop.f32.mrf.mxu0
  %7848 = vmatprep.mubr.bf16.mxu0 0
  %7849 = vmatmul.mubr.bf16.gmra.mxu0 %v7715
  %v7850 = vpop.f32.mrf.mxu0
  %v7851 = vadd.f32 0.0, %v7850
  %v7852 = vpop.f32.mrf.mxu0
  %v7853 = vpop.f32.mrf.mxu0
  %v7854 = vadd.f32 0.0, %v7853
  %v7855 = vpop.f32.mrf.mxu0
  %7856 = vmatprep.mubr.bf16.mxu0 0
  %7857 = vmatmul.mubr.bf16.gmra.mxu0 %v7718
  %v7858 = vpop.f32.mrf.mxu0
  %v7859 = vadd.f32 0.0, %v7858
  %v7860 = vpop.f32.mrf.mxu0
  %v7861 = vpop.f32.mrf.mxu0
  %v7862 = vadd.f32 0.0, %v7861
  %v7863 = vpop.f32.mrf.mxu0
  %7864 = vmatprep.mubr.bf16.mxu0 0
  %7865 = vmatmul.mubr.bf16.gmra.mxu0 %v7721
  %v7866 = vpop.f32.mrf.mxu0
  %v7867 = vadd.f32 0.0, %v7866
  %v7868 = vpop.f32.mrf.mxu0
  %v7869 = vpop.f32.mrf.mxu0
  %v7870 = vadd.f32 0.0, %v7869
  %v7871 = vpop.f32.mrf.mxu0
  %7872 = vmatprep.mubr.bf16.mxu0 0
  %7873 = vmatmul.mubr.bf16.gmra.mxu0 %v7724
  %v7874 = vpop.f32.mrf.mxu0
  %v7875 = vadd.f32 0.0, %v7874
  %v7876 = vpop.f32.mrf.mxu0
  %v7877 = vpop.f32.mrf.mxu0
  %v7878 = vadd.f32 0.0, %v7877
  %v7879 = vpop.f32.mrf.mxu0
  %7880 = vmatprep.mubr.bf16.mxu0 0
  %7881 = vmatmul.mubr.bf16.gmra.mxu0 %v7727
  %v7882 = vpop.f32.mrf.mxu0
  %v7883 = vadd.f32 0.0, %v7882
  %v7884 = vpop.f32.mrf.mxu0
  %v7885 = vpop.f32.mrf.mxu0
  %v7886 = vadd.f32 0.0, %v7885
  %v7887 = vpop.f32.mrf.mxu0
  %7888 = vmatprep.mubr.bf16.mxu0 0
  %7889 = vmatmul.mubr.bf16.gmra.mxu0 %v7730
  %v7890 = vpop.f32.mrf.mxu0
  %v7891 = vadd.f32 0.0, %v7890
  %v7892 = vpop.f32.mrf.mxu0
  %v7893 = vpop.f32.mrf.mxu0
  %v7894 = vadd.f32 0.0, %v7893
  %v7895 = vpop.f32.mrf.mxu0
  %7896 = vmatprep.mubr.bf16.mxu0 0
  %7897 = vmatmul.mubr.bf16.gmra.mxu0 %v7733
  %v7898 = vpop.f32.mrf.mxu0
  %v7899 = vadd.f32 0.0, %v7898
  %v7900 = vpop.f32.mrf.mxu0
  %v7901 = vpop.f32.mrf.mxu0
  %v7902 = vadd.f32 0.0, %v7901
  %v7903 = vpop.f32.mrf.mxu0
  %7904 = vmatprep.mubr.bf16.mxu0 0
  %7905 = vmatmul.mubr.bf16.gmra.mxu0 %v7736
  %v7906 = vpop.f32.mrf.mxu0
  %v7907 = vadd.f32 0.0, %v7906
  %v7908 = vpop.f32.mrf.mxu0
  %v7909 = vpop.f32.mrf.mxu0
  %v7910 = vadd.f32 0.0, %v7909
  %v7911 = vpop.f32.mrf.mxu0
  %7912 = vmatprep.mubr.bf16.mxu0 0
  %7913 = vmatmul.mubr.bf16.gmra.mxu0 %v7739
  %v7914 = vpop.f32.mrf.mxu0
  %v7915 = vadd.f32 0.0, %v7914
  %v7916 = vpop.f32.mrf.mxu0
  %v7917 = vpop.f32.mrf.mxu0
  %v7918 = vadd.f32 0.0, %v7917
  %v7919 = vpop.f32.mrf.mxu0
  %7920 = vdwg.mxu0
  %v7921 = vadd.f32 %v7609, %v7779
  %v7922 = vadd.f32 %v7610, %v7782
  %v7923 = vadd.f32 %v7611, %v7787
  %v7924 = vadd.f32 %v7612, %v7790
  %v7925 = vadd.f32 %v7613, %v7795
  %v7926 = vadd.f32 %v7614, %v7798
  %v7927 = vadd.f32 %v7615, %v7803
  %v7928 = vadd.f32 %v7616, %v7806
  %v7929 = vadd.f32 %v7617, %v7811
  %v7930 = vadd.f32 %v7618, %v7814
  %v7931 = vadd.f32 %v7619, %v7819
  %v7932 = vadd.f32 %v7620, %v7822
  %v7933 = vadd.f32 %v7621, %v7827
  %v7934 = vadd.f32 %v7622, %v7830
  %v7935 = vadd.f32 %v7623, %v7835
  %v7936 = vadd.f32 %v7624, %v7838
  %v7937 = vadd.f32 %v7625, %v7843
  %v7938 = vadd.f32 %v7626, %v7846
  %v7939 = vadd.f32 %v7627, %v7851
  %v7940 = vadd.f32 %v7628, %v7854
  %v7941 = vadd.f32 %v7629, %v7859
  %v7942 = vadd.f32 %v7630, %v7862
  %v7943 = vadd.f32 %v7631, %v7867
  %v7944 = vadd.f32 %v7632, %v7870
  %v7945 = vadd.f32 %v7633, %v7875
  %v7946 = vadd.f32 %v7634, %v7878
  %v7947 = vadd.f32 %v7635, %v7883
  %v7948 = vadd.f32 %v7636, %v7886
  %v7949 = vadd.f32 %v7637, %v7891
  %v7950 = vadd.f32 %v7638, %v7894
  %v7951 = vadd.f32 %v7639, %v7899
  %v7952 = vadd.f32 %v7640, %v7902
  %v7953 = vadd.f32 %v7641, %v7907
  %v7954 = vadd.f32 %v7642, %v7910
  %v7955 = vadd.f32 %v7643, %v7915
  %v7956 = vadd.f32 %v7644, %v7918
  %v7957 = vld [vmem:[#allocation2 + $0x10] sm:$0xc]
  %v7958 = vld [vmem:[#allocation2 + $0x14] sm:$0xf]
  %v7959 = vld [vmem:[#allocation2 + $0x18] sm:$0xf]
  %v7960 = vld [vmem:[#allocation2 + $0x1c] sm:$0xf]
  %v7961 = vld [vmem:[#allocation2 + $0x20] sm:$0xf]
  %v7962 = vld [vmem:[#allocation2 + $0x24] sm:$0xf]
  %v7963 = vld [vmem:[#allocation2 + $0x28] sm:$0xf]
  %v7964 = vld [vmem:[#allocation2 + $0x2c] sm:$0xf]
  %v7965 = vld [vmem:[#allocation2 + $0x30] sm:$0xf]
  %v7966 = vld [vmem:[#allocation2 + $0x34] sm:$0xf]
  %v7967 = vld [vmem:[#allocation2 + $0x38] sm:$0xf]
  %v7968 = vld [vmem:[#allocation2 + $0x3c] sm:$0xf]
  %v7969 = vld [vmem:[#allocation2 + $0x40] sm:$0xf]
  %v7970 = vld [vmem:[#allocation2 + $0x44] sm:$0xf]
  %v7971 = vld [vmem:[#allocation2 + $0x48] sm:$0xf]
  %v7972 = vld [vmem:[#allocation2 + $0x4c] sm:$0xf]
  %v7973 = vld [vmem:[#allocation2 + $0x50] sm:$0xf]
  %v7974 = vld [vmem:[#allocation2 + $0x54] sm:$0xf]
  %v7975 = vld [vmem:[#allocation2 + $0x58] sm:$0xf]
  %v7976 = vld [vmem:[#allocation2 + $0x5c] sm:$0xf]
  %v7977 = vld [vmem:[#allocation2 + $0x60] sm:$0xf]
  %v7978 = vld [vmem:[#allocation2 + $0x64] sm:$0xf]
  %v7979 = vld [vmem:[#allocation2 + $0x68] sm:$0xf]
  %v7980 = vld [vmem:[#allocation2 + $0x6c] sm:$0xf]
  %v7981 = vld [vmem:[#allocation2 + $0x70] sm:$0xf]
  %v7982 = vld [vmem:[#allocation2 + $0x74] sm:$0xf]
  %v7983 = vld [vmem:[#allocation2 + $0x78] sm:$0xf]
  %v7984 = vld [vmem:[#allocation2 + $0x7c] sm:$0xf]
  %v7985 = vld [vmem:[#allocation2 + $0x80] sm:$0xf]
  %v7986 = vld [vmem:[#allocation2 + $0x84] sm:$0xf]
  %v7987 = vld [vmem:[#allocation2 + $0x88] sm:$0xf]
  %v7988 = vld [vmem:[#allocation2 + $0x8c] sm:$0xf]
  %v7989 = vld [vmem:[#allocation2 + $0x90] sm:$0xf]
  %v7990 = vld [vmem:[#allocation2 + $0x94] sm:$0xf]
  %v7991 = vld [vmem:[#allocation2 + $0x98] sm:$0xf]
  %v7992 = vld [vmem:[#allocation2 + $0x9c] sm:$0xf]
  %v7993 = vld [vmem:[#allocation2 + $0xa0] sm:$0x3]
  %v7994 = vld [vmem:[%s3677] sm:$0x3]
  %v8032 = vunpack.c.l.b16 %v7957
  %v8033 = vunpack.c.l.b16 %v7958
  %v8034 = vunpack.c.l.b16 %v7959
  %v8035 = vunpack.c.l.b16 %v7960
  %v8036 = vunpack.c.l.b16 %v7961
  %v8037 = vunpack.c.l.b16 %v7962
  %v8038 = vunpack.c.l.b16 %v7963
  %v8039 = vunpack.c.l.b16 %v7964
  %v8040 = vunpack.c.l.b16 %v7965
  %v8041 = vunpack.c.l.b16 %v7966
  %v8042 = vunpack.c.l.b16 %v7967
  %v8043 = vunpack.c.l.b16 %v7968
  %v8044 = vunpack.c.l.b16 %v7969
  %v8045 = vunpack.c.l.b16 %v7970
  %v8046 = vunpack.c.l.b16 %v7971
  %v8047 = vunpack.c.l.b16 %v7972
  %v8048 = vunpack.c.l.b16 %v7973
  %v8049 = vunpack.c.l.b16 %v7974
  %v8050 = vunpack.c.l.b16 %v7975
  %v8051 = vunpack.c.l.b16 %v7976
  %v8052 = vunpack.c.l.b16 %v7977
  %v8053 = vunpack.c.l.b16 %v7978
  %v8054 = vunpack.c.l.b16 %v7979
  %v8055 = vunpack.c.l.b16 %v7980
  %v8056 = vunpack.c.l.b16 %v7981
  %v8057 = vunpack.c.l.b16 %v7982
  %v8058 = vunpack.c.l.b16 %v7983
  %v8059 = vunpack.c.l.b16 %v7984
  %v8060 = vunpack.c.l.b16 %v7985
  %v8061 = vunpack.c.l.b16 %v7986
  %v8062 = vunpack.c.l.b16 %v7987
  %v8063 = vunpack.c.l.b16 %v7988
  %v8064 = vunpack.c.l.b16 %v7989
  %v8065 = vunpack.c.l.b16 %v7990
  %v8066 = vunpack.c.l.b16 %v7991
  %v8067 = vunpack.c.l.b16 %v7992
  %v8068 = vunpack.c.l.b16 %v7993
  %v8069 = vpack.c.b16 %v8033, %v8032
  %v8070 = vpack.c.b16 %v8035, %v8034
  %v8071 = vpack.c.b16 %v8037, %v8036
  %v8072 = vpack.c.b16 %v8039, %v8038
  %v8073 = vpack.c.b16 %v8041, %v8040
  %v8074 = vpack.c.b16 %v8043, %v8042
  %v8075 = vpack.c.b16 %v8045, %v8044
  %v8076 = vpack.c.b16 %v8047, %v8046
  %v8077 = vpack.c.b16 %v8049, %v8048
  %v8078 = vpack.c.b16 %v8051, %v8050
  %v8079 = vpack.c.b16 %v8053, %v8052
  %v8080 = vpack.c.b16 %v8055, %v8054
  %v8081 = vpack.c.b16 %v8057, %v8056
  %v8082 = vpack.c.b16 %v8059, %v8058
  %v8083 = vpack.c.b16 %v8061, %v8060
  %v8084 = vpack.c.b16 %v8063, %v8062
  %v8085 = vpack.c.b16 %v8065, %v8064
  %v8086 = vpack.c.b16 %v8067, %v8066
  %v8087 = vpack.c.b16 %v8068, %v8068
  %v8088 = vrot.slane %v8069, 2
  %v8089 = vrot.slane %v8070, 2
  %v8090 = vsel %vm3332, %v8088, %v8089
  %v8091 = vrot.slane %v8071, 2
  %v8092 = vsel %vm3332, %v8089, %v8091
  %v8093 = vrot.slane %v8072, 2
  %v8094 = vsel %vm3332, %v8091, %v8093
  %v8095 = vrot.slane %v8073, 2
  %v8096 = vsel %vm3332, %v8093, %v8095
  %v8097 = vrot.slane %v8074, 2
  %v8098 = vsel %vm3332, %v8095, %v8097
  %v8099 = vrot.slane %v8075, 2
  %v8100 = vsel %vm3332, %v8097, %v8099
  %v8101 = vrot.slane %v8076, 2
  %v8102 = vsel %vm3332, %v8099, %v8101
  %v8103 = vrot.slane %v8077, 2
  %v8104 = vsel %vm3332, %v8101, %v8103
  %v8105 = vrot.slane %v8078, 2
  %v8106 = vsel %vm3332, %v8103, %v8105
  %v8107 = vrot.slane %v8079, 2
  %v8108 = vsel %vm3332, %v8105, %v8107
  %v8109 = vrot.slane %v8080, 2
  %v8110 = vsel %vm3332, %v8107, %v8109
  %v8111 = vrot.slane %v8081, 2
  %v8112 = vsel %vm3332, %v8109, %v8111
  %v8113 = vrot.slane %v8082, 2
  %v8114 = vsel %vm3332, %v8111, %v8113
  %v8115 = vrot.slane %v8083, 2
  %v8116 = vsel %vm3332, %v8113, %v8115
  %v8117 = vrot.slane %v8084, 2
  %v8118 = vsel %vm3332, %v8115, %v8117
  %v8119 = vrot.slane %v8085, 2
  %v8120 = vsel %vm3332, %v8117, %v8119
  %v8121 = vrot.slane %v8086, 2
  %v8122 = vsel %vm3332, %v8119, %v8121
  %v8123 = vrot.slane %v8087, 2
  %v8124 = vsel %vm3332, %v8121, %v8123
  %v8126 = vsel %vm1674, %v8090, 0
  %v8129 = vsel %vm1674, %v8092, 0
  %v8132 = vsel %vm1674, %v8094, 0
  %v8135 = vsel %vm1674, %v8096, 0
  %v8138 = vsel %vm1674, %v8098, 0
  %v8141 = vsel %vm1674, %v8100, 0
  %v8144 = vsel %vm1674, %v8102, 0
  %v8147 = vsel %vm1674, %v8104, 0
  %v8150 = vsel %vm1674, %v8106, 0
  %v8153 = vsel %vm1674, %v8108, 0
  %v8156 = vsel %vm1674, %v8110, 0
  %v8159 = vsel %vm1674, %v8112, 0
  %v8162 = vsel %vm1674, %v8114, 0
  %v8165 = vsel %vm1674, %v8116, 0
  %v8168 = vsel %vm1674, %v8118, 0
  %v8171 = vsel %vm1674, %v8120, 0
  %v8174 = vsel %vm1674, %v8122, 0
  %v8177 = vsel %vm1674, %v8124, 0
  %v8180 = vsel %vm1729, %v7994, 0
  %8182 = vmatprep.subr.bf16.mxu0 0
  %8183 = vmatpush1.bf16.msra.mxu0 0
  %8184 = vmatprep.subr.bf16.mxu0 0
  %8185 = vmatpush1.bf16.msra.mxu0 0
  %8186 = vmatprep.subr.bf16.mxu0 0
  %8187 = vmatpush1.bf16.msra.mxu0 0
  %8188 = vmatprep.subr.bf16.mxu0 0
  %8189 = vmatpush1.bf16.msra.mxu0 0
  %8190 = vmatprep.subr.bf16.mxu0 0
  %8191 = vmatpush1.bf16.msra.mxu0 0
  %8192 = vmatprep.subr.bf16.mxu0 0
  %8193 = vmatpush1.bf16.msra.mxu0 0
  %8194 = vmatprep.subr.bf16.mxu0 0
  %8195 = vmatpush1.bf16.msra.mxu0 0
  %8196 = vmatprep.subr.bf16.mxu0 0
  %8197 = vmatpush1.bf16.msra.mxu0 %v8180
  %8198 = vmatprep.subr.bf16.mxu0 0
  %8199 = vmatpush2.bf16.msra.mxu0 0
  %8200 = vmatprep.subr.bf16.mxu0 0
  %8201 = vmatpush2.bf16.msra.mxu0 0
  %8202 = vmatprep.subr.bf16.mxu0 0
  %8203 = vmatpush2.bf16.msra.mxu0 0
  %8204 = vmatprep.subr.bf16.mxu0 0
  %8205 = vmatpush2.bf16.msra.mxu0 0
  %8206 = vmatprep.subr.bf16.mxu0 0
  %8207 = vmatpush2.bf16.msra.mxu0 0
  %8208 = vmatprep.subr.bf16.mxu0 0
  %8209 = vmatpush2.bf16.msra.mxu0 0
  %8210 = vmatprep.subr.bf16.mxu0 0
  %8211 = vmatpush2.bf16.msra.mxu0 0
  %8212 = vmatprep.subr.bf16.mxu0 0
  %8213 = vmatpush2.bf16.msra.mxu0 0
  %8214 = vmatprep.mubr.bf16.mxu0 0
  %8215 = vmatmul.mubr.bf16.gmra.mxu0 %v8126
  %v8216 = vpop.f32.mrf.mxu0
  %v8217 = vadd.f32 0.0, %v8216
  %v8218 = vpop.f32.mrf.mxu0
  %v8219 = vpop.f32.mrf.mxu0
  %v8220 = vadd.f32 0.0, %v8219
  %v8221 = vpop.f32.mrf.mxu0
  %8222 = vmatprep.mubr.bf16.mxu0 0
  %8223 = vmatmul.mubr.bf16.gmra.mxu0 %v8129
  %v8224 = vpop.f32.mrf.mxu0
  %v8225 = vadd.f32 0.0, %v8224
  %v8226 = vpop.f32.mrf.mxu0
  %v8227 = vpop.f32.mrf.mxu0
  %v8228 = vadd.f32 0.0, %v8227
  %v8229 = vpop.f32.mrf.mxu0
  %8230 = vmatprep.mubr.bf16.mxu0 0
  %8231 = vmatmul.mubr.bf16.gmra.mxu0 %v8132
  %v8232 = vpop.f32.mrf.mxu0
  %v8233 = vadd.f32 0.0, %v8232
  %v8234 = vpop.f32.mrf.mxu0
  %v8235 = vpop.f32.mrf.mxu0
  %v8236 = vadd.f32 0.0, %v8235
  %v8237 = vpop.f32.mrf.mxu0
  %8238 = vmatprep.mubr.bf16.mxu0 0
  %8239 = vmatmul.mubr.bf16.gmra.mxu0 %v8135
  %v8240 = vpop.f32.mrf.mxu0
  %v8241 = vadd.f32 0.0, %v8240
  %v8242 = vpop.f32.mrf.mxu0
  %v8243 = vpop.f32.mrf.mxu0
  %v8244 = vadd.f32 0.0, %v8243
  %v8245 = vpop.f32.mrf.mxu0
  %8246 = vmatprep.mubr.bf16.mxu0 0
  %8247 = vmatmul.mubr.bf16.gmra.mxu0 %v8138
  %v8248 = vpop.f32.mrf.mxu0
  %v8249 = vadd.f32 0.0, %v8248
  %v8250 = vpop.f32.mrf.mxu0
  %v8251 = vpop.f32.mrf.mxu0
  %v8252 = vadd.f32 0.0, %v8251
  %v8253 = vpop.f32.mrf.mxu0
  %8254 = vmatprep.mubr.bf16.mxu0 0
  %8255 = vmatmul.mubr.bf16.gmra.mxu0 %v8141
  %v8256 = vpop.f32.mrf.mxu0
  %v8257 = vadd.f32 0.0, %v8256
  %v8258 = vpop.f32.mrf.mxu0
  %v8259 = vpop.f32.mrf.mxu0
  %v8260 = vadd.f32 0.0, %v8259
  %v8261 = vpop.f32.mrf.mxu0
  %8262 = vmatprep.mubr.bf16.mxu0 0
  %8263 = vmatmul.mubr.bf16.gmra.mxu0 %v8144
  %v8264 = vpop.f32.mrf.mxu0
  %v8265 = vadd.f32 0.0, %v8264
  %v8266 = vpop.f32.mrf.mxu0
  %v8267 = vpop.f32.mrf.mxu0
  %v8268 = vadd.f32 0.0, %v8267
  %v8269 = vpop.f32.mrf.mxu0
  %8270 = vmatprep.mubr.bf16.mxu0 0
  %8271 = vmatmul.mubr.bf16.gmra.mxu0 %v8147
  %v8272 = vpop.f32.mrf.mxu0
  %v8273 = vadd.f32 0.0, %v8272
  %v8274 = vpop.f32.mrf.mxu0
  %v8275 = vpop.f32.mrf.mxu0
  %v8276 = vadd.f32 0.0, %v8275
  %v8277 = vpop.f32.mrf.mxu0
  %8278 = vmatprep.mubr.bf16.mxu0 0
  %8279 = vmatmul.mubr.bf16.gmra.mxu0 %v8150
  %v8280 = vpop.f32.mrf.mxu0
  %v8281 = vadd.f32 0.0, %v8280
  %v8282 = vpop.f32.mrf.mxu0
  %v8283 = vpop.f32.mrf.mxu0
  %v8284 = vadd.f32 0.0, %v8283
  %v8285 = vpop.f32.mrf.mxu0
  %8286 = vmatprep.mubr.bf16.mxu0 0
  %8287 = vmatmul.mubr.bf16.gmra.mxu0 %v8153
  %v8288 = vpop.f32.mrf.mxu0
  %v8289 = vadd.f32 0.0, %v8288
  %v8290 = vpop.f32.mrf.mxu0
  %v8291 = vpop.f32.mrf.mxu0
  %v8292 = vadd.f32 0.0, %v8291
  %v8293 = vpop.f32.mrf.mxu0
  %8294 = vmatprep.mubr.bf16.mxu0 0
  %8295 = vmatmul.mubr.bf16.gmra.mxu0 %v8156
  %v8296 = vpop.f32.mrf.mxu0
  %v8297 = vadd.f32 0.0, %v8296
  %v8298 = vpop.f32.mrf.mxu0
  %v8299 = vpop.f32.mrf.mxu0
  %v8300 = vadd.f32 0.0, %v8299
  %v8301 = vpop.f32.mrf.mxu0
  %8302 = vmatprep.mubr.bf16.mxu0 0
  %8303 = vmatmul.mubr.bf16.gmra.mxu0 %v8159
  %v8304 = vpop.f32.mrf.mxu0
  %v8305 = vadd.f32 0.0, %v8304
  %v8306 = vpop.f32.mrf.mxu0
  %v8307 = vpop.f32.mrf.mxu0
  %v8308 = vadd.f32 0.0, %v8307
  %v8309 = vpop.f32.mrf.mxu0
  %8310 = vmatprep.mubr.bf16.mxu0 0
  %8311 = vmatmul.mubr.bf16.gmra.mxu0 %v8162
  %v8312 = vpop.f32.mrf.mxu0
  %v8313 = vadd.f32 0.0, %v8312
  %v8314 = vpop.f32.mrf.mxu0
  %v8315 = vpop.f32.mrf.mxu0
  %v8316 = vadd.f32 0.0, %v8315
  %v8317 = vpop.f32.mrf.mxu0
  %8318 = vmatprep.mubr.bf16.mxu0 0
  %8319 = vmatmul.mubr.bf16.gmra.mxu0 %v8165
  %v8320 = vpop.f32.mrf.mxu0
  %v8321 = vadd.f32 0.0, %v8320
  %v8322 = vpop.f32.mrf.mxu0
  %v8323 = vpop.f32.mrf.mxu0
  %v8324 = vadd.f32 0.0, %v8323
  %v8325 = vpop.f32.mrf.mxu0
  %8326 = vmatprep.mubr.bf16.mxu0 0
  %8327 = vmatmul.mubr.bf16.gmra.mxu0 %v8168
  %v8328 = vpop.f32.mrf.mxu0
  %v8329 = vadd.f32 0.0, %v8328
  %v8330 = vpop.f32.mrf.mxu0
  %v8331 = vpop.f32.mrf.mxu0
  %v8332 = vadd.f32 0.0, %v8331
  %v8333 = vpop.f32.mrf.mxu0
  %8334 = vmatprep.mubr.bf16.mxu0 0
  %8335 = vmatmul.mubr.bf16.gmra.mxu0 %v8171
  %v8336 = vpop.f32.mrf.mxu0
  %v8337 = vadd.f32 0.0, %v8336
  %v8338 = vpop.f32.mrf.mxu0
  %v8339 = vpop.f32.mrf.mxu0
  %v8340 = vadd.f32 0.0, %v8339
  %v8341 = vpop.f32.mrf.mxu0
  %8342 = vmatprep.mubr.bf16.mxu0 0
  %8343 = vmatmul.mubr.bf16.gmra.mxu0 %v8174
  %v8344 = vpop.f32.mrf.mxu0
  %v8345 = vadd.f32 0.0, %v8344
  %v8346 = vpop.f32.mrf.mxu0
  %v8347 = vpop.f32.mrf.mxu0
  %v8348 = vadd.f32 0.0, %v8347
  %v8349 = vpop.f32.mrf.mxu0
  %8350 = vmatprep.mubr.bf16.mxu0 0
  %8351 = vmatmul.mubr.bf16.gmra.mxu0 %v8177
  %v8352 = vpop.f32.mrf.mxu0
  %v8353 = vadd.f32 0.0, %v8352
  %v8354 = vpop.f32.mrf.mxu0
  %v8355 = vpop.f32.mrf.mxu0
  %v8356 = vadd.f32 0.0, %v8355
  %v8357 = vpop.f32.mrf.mxu0
  %8358 = vdwg.mxu0
  %v8359 = vadd.f32 %v7921, %v8217
  %v8360 = vadd.f32 %v7922, %v8220
  %v8361 = vadd.f32 %v7923, %v8225
  %v8362 = vadd.f32 %v7924, %v8228
  %v8363 = vadd.f32 %v7925, %v8233
  %v8364 = vadd.f32 %v7926, %v8236
  %v8365 = vadd.f32 %v7927, %v8241
  %v8366 = vadd.f32 %v7928, %v8244
  %v8367 = vadd.f32 %v7929, %v8249
  %v8368 = vadd.f32 %v7930, %v8252
  %v8369 = vadd.f32 %v7931, %v8257
  %v8370 = vadd.f32 %v7932, %v8260
  %v8371 = vadd.f32 %v7933, %v8265
  %v8372 = vadd.f32 %v7934, %v8268
  %v8373 = vadd.f32 %v7935, %v8273
  %v8374 = vadd.f32 %v7936, %v8276
  %v8375 = vadd.f32 %v7937, %v8281
  %v8376 = vadd.f32 %v7938, %v8284
  %v8377 = vadd.f32 %v7939, %v8289
  %v8378 = vadd.f32 %v7940, %v8292
  %v8379 = vadd.f32 %v7941, %v8297
  %v8380 = vadd.f32 %v7942, %v8300
  %v8381 = vadd.f32 %v7943, %v8305
  %v8382 = vadd.f32 %v7944, %v8308
  %v8383 = vadd.f32 %v7945, %v8313
  %v8384 = vadd.f32 %v7946, %v8316
  %v8385 = vadd.f32 %v7947, %v8321
  %v8386 = vadd.f32 %v7948, %v8324
  %v8387 = vadd.f32 %v7949, %v8329
  %v8388 = vadd.f32 %v7950, %v8332
  %v8389 = vadd.f32 %v7951, %v8337
  %v8390 = vadd.f32 %v7952, %v8340
  %v8391 = vadd.f32 %v7953, %v8345
  %v8392 = vadd.f32 %v7954, %v8348
  %v8393 = vadd.f32 %v7955, %v8353
  %v8394 = vadd.f32 %v7956, %v8356
  %v8395 = vld [vmem:[#allocation2 + $0xa0] sm:$0x7]
  %v8396 = vld [vmem:[%s4080] sm:$0x3]
  %v8398 = vunpack.c.l.b16 %v8395
  %v8399 = vpack.c.b16 %v8398, %v8398
  %v8401 = vshrl.u32 %v8069, 16
  %v8403 = vrot.slane %v8401, 2
  %v8404 = vshll.u32 %v8069, 16
  %v8406 = vrot.slane %v8404, 3
  %v8407 = vor.u32 %v8403, %v8406
  %v8409 = vshrl.u32 %v8070, 16
  %v8411 = vrot.slane %v8409, 2
  %v8412 = vshll.u32 %v8070, 16
  %v8414 = vrot.slane %v8412, 3
  %v8415 = vor.u32 %v8411, %v8414
  %v8416 = vsel %vm4085, %v8407, %v8415
  %v8418 = vshrl.u32 %v8071, 16
  %v8420 = vrot.slane %v8418, 2
  %v8421 = vshll.u32 %v8071, 16
  %v8423 = vrot.slane %v8421, 3
  %v8424 = vor.u32 %v8420, %v8423
  %v8425 = vsel %vm4085, %v8415, %v8424
  %v8427 = vshrl.u32 %v8072, 16
  %v8429 = vrot.slane %v8427, 2
  %v8430 = vshll.u32 %v8072, 16
  %v8432 = vrot.slane %v8430, 3
  %v8433 = vor.u32 %v8429, %v8432
  %v8434 = vsel %vm4085, %v8424, %v8433
  %v8436 = vshrl.u32 %v8073, 16
  %v8438 = vrot.slane %v8436, 2
  %v8439 = vshll.u32 %v8073, 16
  %v8441 = vrot.slane %v8439, 3
  %v8442 = vor.u32 %v8438, %v8441
  %v8443 = vsel %vm4085, %v8433, %v8442
  %v8445 = vshrl.u32 %v8074, 16
  %v8447 = vrot.slane %v8445, 2
  %v8448 = vshll.u32 %v8074, 16
  %v8450 = vrot.slane %v8448, 3
  %v8451 = vor.u32 %v8447, %v8450
  %v8452 = vsel %vm4085, %v8442, %v8451
  %v8454 = vshrl.u32 %v8075, 16
  %v8456 = vrot.slane %v8454, 2
  %v8457 = vshll.u32 %v8075, 16
  %v8459 = vrot.slane %v8457, 3
  %v8460 = vor.u32 %v8456, %v8459
  %v8461 = vsel %vm4085, %v8451, %v8460
  %v8463 = vshrl.u32 %v8076, 16
  %v8465 = vrot.slane %v8463, 2
  %v8466 = vshll.u32 %v8076, 16
  %v8468 = vrot.slane %v8466, 3
  %v8469 = vor.u32 %v8465, %v8468
  %v8470 = vsel %vm4085, %v8460, %v8469
  %v8472 = vshrl.u32 %v8077, 16
  %v8474 = vrot.slane %v8472, 2
  %v8475 = vshll.u32 %v8077, 16
  %v8477 = vrot.slane %v8475, 3
  %v8478 = vor.u32 %v8474, %v8477
  %v8479 = vsel %vm4085, %v8469, %v8478
  %v8481 = vshrl.u32 %v8078, 16
  %v8483 = vrot.slane %v8481, 2
  %v8484 = vshll.u32 %v8078, 16
  %v8486 = vrot.slane %v8484, 3
  %v8487 = vor.u32 %v8483, %v8486
  %v8488 = vsel %vm4085, %v8478, %v8487
  %v8490 = vshrl.u32 %v8079, 16
  %v8492 = vrot.slane %v8490, 2
  %v8493 = vshll.u32 %v8079, 16
  %v8495 = vrot.slane %v8493, 3
  %v8496 = vor.u32 %v8492, %v8495
  %v8497 = vsel %vm4085, %v8487, %v8496
  %v8499 = vshrl.u32 %v8080, 16
  %v8501 = vrot.slane %v8499, 2
  %v8502 = vshll.u32 %v8080, 16
  %v8504 = vrot.slane %v8502, 3
  %v8505 = vor.u32 %v8501, %v8504
  %v8506 = vsel %vm4085, %v8496, %v8505
  %v8508 = vshrl.u32 %v8081, 16
  %v8510 = vrot.slane %v8508, 2
  %v8511 = vshll.u32 %v8081, 16
  %v8513 = vrot.slane %v8511, 3
  %v8514 = vor.u32 %v8510, %v8513
  %v8515 = vsel %vm4085, %v8505, %v8514
  %v8517 = vshrl.u32 %v8082, 16
  %v8519 = vrot.slane %v8517, 2
  %v8520 = vshll.u32 %v8082, 16
  %v8522 = vrot.slane %v8520, 3
  %v8523 = vor.u32 %v8519, %v8522
  %v8524 = vsel %vm4085, %v8514, %v8523
  %v8526 = vshrl.u32 %v8083, 16
  %v8528 = vrot.slane %v8526, 2
  %v8529 = vshll.u32 %v8083, 16
  %v8531 = vrot.slane %v8529, 3
  %v8532 = vor.u32 %v8528, %v8531
  %v8533 = vsel %vm4085, %v8523, %v8532
  %v8535 = vshrl.u32 %v8084, 16
  %v8537 = vrot.slane %v8535, 2
  %v8538 = vshll.u32 %v8084, 16
  %v8540 = vrot.slane %v8538, 3
  %v8541 = vor.u32 %v8537, %v8540
  %v8542 = vsel %vm4085, %v8532, %v8541
  %v8544 = vshrl.u32 %v8085, 16
  %v8546 = vrot.slane %v8544, 2
  %v8547 = vshll.u32 %v8085, 16
  %v8549 = vrot.slane %v8547, 3
  %v8550 = vor.u32 %v8546, %v8549
  %v8551 = vsel %vm4085, %v8541, %v8550
  %v8553 = vshrl.u32 %v8086, 16
  %v8555 = vrot.slane %v8553, 2
  %v8556 = vshll.u32 %v8086, 16
  %v8558 = vrot.slane %v8556, 3
  %v8559 = vor.u32 %v8555, %v8558
  %v8560 = vsel %vm4085, %v8550, %v8559
  %v8562 = vshrl.u32 %v8399, 16
  %v8564 = vrot.slane %v8562, 2
  %v8565 = vshll.u32 %v8399, 16
  %v8567 = vrot.slane %v8565, 3
  %v8568 = vor.u32 %v8564, %v8567
  %v8569 = vsel %vm4085, %v8559, %v8568
  %v8571 = vsel %vm1674, %v8416, 0
  %v8574 = vsel %vm1674, %v8425, 0
  %v8577 = vsel %vm1674, %v8434, 0
  %v8580 = vsel %vm1674, %v8443, 0
  %v8583 = vsel %vm1674, %v8452, 0
  %v8586 = vsel %vm1674, %v8461, 0
  %v8589 = vsel %vm1674, %v8470, 0
  %v8592 = vsel %vm1674, %v8479, 0
  %v8595 = vsel %vm1674, %v8488, 0
  %v8598 = vsel %vm1674, %v8497, 0
  %v8601 = vsel %vm1674, %v8506, 0
  %v8604 = vsel %vm1674, %v8515, 0
  %v8607 = vsel %vm1674, %v8524, 0
  %v8610 = vsel %vm1674, %v8533, 0
  %v8613 = vsel %vm1674, %v8542, 0
  %v8616 = vsel %vm1674, %v8551, 0
  %v8619 = vsel %vm1674, %v8560, 0
  %v8622 = vsel %vm1674, %v8569, 0
  %v8625 = vsel %vm1729, %v8396, 0
  %8627 = vmatprep.subr.bf16.mxu0 0
  %8628 = vmatpush1.bf16.msra.mxu0 0
  %8629 = vmatprep.subr.bf16.mxu0 0
  %8630 = vmatpush1.bf16.msra.mxu0 0
  %8631 = vmatprep.subr.bf16.mxu0 0
  %8632 = vmatpush1.bf16.msra.mxu0 0
  %8633 = vmatprep.subr.bf16.mxu0 0
  %8634 = vmatpush1.bf16.msra.mxu0 0
  %8635 = vmatprep.subr.bf16.mxu0 0
  %8636 = vmatpush1.bf16.msra.mxu0 0
  %8637 = vmatprep.subr.bf16.mxu0 0
  %8638 = vmatpush1.bf16.msra.mxu0 0
  %8639 = vmatprep.subr.bf16.mxu0 0
  %8640 = vmatpush1.bf16.msra.mxu0 0
  %8641 = vmatprep.subr.bf16.mxu0 0
  %8642 = vmatpush1.bf16.msra.mxu0 %v8625
  %8643 = vmatprep.subr.bf16.mxu0 0
  %8644 = vmatpush2.bf16.msra.mxu0 0
  %8645 = vmatprep.subr.bf16.mxu0 0
  %8646 = vmatpush2.bf16.msra.mxu0 0
  %8647 = vmatprep.subr.bf16.mxu0 0
  %8648 = vmatpush2.bf16.msra.mxu0 0
  %8649 = vmatprep.subr.bf16.mxu0 0
  %8650 = vmatpush2.bf16.msra.mxu0 0
  %8651 = vmatprep.subr.bf16.mxu0 0
  %8652 = vmatpush2.bf16.msra.mxu0 0
  %8653 = vmatprep.subr.bf16.mxu0 0
  %8654 = vmatpush2.bf16.msra.mxu0 0
  %8655 = vmatprep.subr.bf16.mxu0 0
  %8656 = vmatpush2.bf16.msra.mxu0 0
  %8657 = vmatprep.subr.bf16.mxu0 0
  %8658 = vmatpush2.bf16.msra.mxu0 0
  %8659 = vmatprep.mubr.bf16.mxu0 0
  %8660 = vmatmul.mubr.bf16.gmra.mxu0 %v8571
  %v8661 = vpop.f32.mrf.mxu0
  %v8662 = vadd.f32 0.0, %v8661
  %v8663 = vpop.f32.mrf.mxu0
  %v8664 = vpop.f32.mrf.mxu0
  %v8665 = vadd.f32 0.0, %v8664
  %v8666 = vpop.f32.mrf.mxu0
  %8667 = vmatprep.mubr.bf16.mxu0 0
  %8668 = vmatmul.mubr.bf16.gmra.mxu0 %v8574
  %v8669 = vpop.f32.mrf.mxu0
  %v8670 = vadd.f32 0.0, %v8669
  %v8671 = vpop.f32.mrf.mxu0
  %v8672 = vpop.f32.mrf.mxu0
  %v8673 = vadd.f32 0.0, %v8672
  %v8674 = vpop.f32.mrf.mxu0
  %8675 = vmatprep.mubr.bf16.mxu0 0
  %8676 = vmatmul.mubr.bf16.gmra.mxu0 %v8577
  %v8677 = vpop.f32.mrf.mxu0
  %v8678 = vadd.f32 0.0, %v8677
  %v8679 = vpop.f32.mrf.mxu0
  %v8680 = vpop.f32.mrf.mxu0
  %v8681 = vadd.f32 0.0, %v8680
  %v8682 = vpop.f32.mrf.mxu0
  %8683 = vmatprep.mubr.bf16.mxu0 0
  %8684 = vmatmul.mubr.bf16.gmra.mxu0 %v8580
  %v8685 = vpop.f32.mrf.mxu0
  %v8686 = vadd.f32 0.0, %v8685
  %v8687 = vpop.f32.mrf.mxu0
  %v8688 = vpop.f32.mrf.mxu0
  %v8689 = vadd.f32 0.0, %v8688
  %v8690 = vpop.f32.mrf.mxu0
  %8691 = vmatprep.mubr.bf16.mxu0 0
  %8692 = vmatmul.mubr.bf16.gmra.mxu0 %v8583
  %v8693 = vpop.f32.mrf.mxu0
  %v8694 = vadd.f32 0.0, %v8693
  %v8695 = vpop.f32.mrf.mxu0
  %v8696 = vpop.f32.mrf.mxu0
  %v8697 = vadd.f32 0.0, %v8696
  %v8698 = vpop.f32.mrf.mxu0
  %8699 = vmatprep.mubr.bf16.mxu0 0
  %8700 = vmatmul.mubr.bf16.gmra.mxu0 %v8586
  %v8701 = vpop.f32.mrf.mxu0
  %v8702 = vadd.f32 0.0, %v8701
  %v8703 = vpop.f32.mrf.mxu0
  %v8704 = vpop.f32.mrf.mxu0
  %v8705 = vadd.f32 0.0, %v8704
  %v8706 = vpop.f32.mrf.mxu0
  %8707 = vmatprep.mubr.bf16.mxu0 0
  %8708 = vmatmul.mubr.bf16.gmra.mxu0 %v8589
  %v8709 = vpop.f32.mrf.mxu0
  %v8710 = vadd.f32 0.0, %v8709
  %v8711 = vpop.f32.mrf.mxu0
  %v8712 = vpop.f32.mrf.mxu0
  %v8713 = vadd.f32 0.0, %v8712
  %v8714 = vpop.f32.mrf.mxu0
  %8715 = vmatprep.mubr.bf16.mxu0 0
  %8716 = vmatmul.mubr.bf16.gmra.mxu0 %v8592
  %v8717 = vpop.f32.mrf.mxu0
  %v8718 = vadd.f32 0.0, %v8717
  %v8719 = vpop.f32.mrf.mxu0
  %v8720 = vpop.f32.mrf.mxu0
  %v8721 = vadd.f32 0.0, %v8720
  %v8722 = vpop.f32.mrf.mxu0
  %8723 = vmatprep.mubr.bf16.mxu0 0
  %8724 = vmatmul.mubr.bf16.gmra.mxu0 %v8595
  %v8725 = vpop.f32.mrf.mxu0
  %v8726 = vadd.f32 0.0, %v8725
  %v8727 = vpop.f32.mrf.mxu0
  %v8728 = vpop.f32.mrf.mxu0
  %v8729 = vadd.f32 0.0, %v8728
  %v8730 = vpop.f32.mrf.mxu0
  %8731 = vmatprep.mubr.bf16.mxu0 0
  %8732 = vmatmul.mubr.bf16.gmra.mxu0 %v8598
  %v8733 = vpop.f32.mrf.mxu0
  %v8734 = vadd.f32 0.0, %v8733
  %v8735 = vpop.f32.mrf.mxu0
  %v8736 = vpop.f32.mrf.mxu0
  %v8737 = vadd.f32 0.0, %v8736
  %v8738 = vpop.f32.mrf.mxu0
  %8739 = vmatprep.mubr.bf16.mxu0 0
  %8740 = vmatmul.mubr.bf16.gmra.mxu0 %v8601
  %v8741 = vpop.f32.mrf.mxu0
  %v8742 = vadd.f32 0.0, %v8741
  %v8743 = vpop.f32.mrf.mxu0
  %v8744 = vpop.f32.mrf.mxu0
  %v8745 = vadd.f32 0.0, %v8744
  %v8746 = vpop.f32.mrf.mxu0
  %8747 = vmatprep.mubr.bf16.mxu0 0
  %8748 = vmatmul.mubr.bf16.gmra.mxu0 %v8604
  %v8749 = vpop.f32.mrf.mxu0
  %v8750 = vadd.f32 0.0, %v8749
  %v8751 = vpop.f32.mrf.mxu0
  %v8752 = vpop.f32.mrf.mxu0
  %v8753 = vadd.f32 0.0, %v8752
  %v8754 = vpop.f32.mrf.mxu0
  %8755 = vmatprep.mubr.bf16.mxu0 0
  %8756 = vmatmul.mubr.bf16.gmra.mxu0 %v8607
  %v8757 = vpop.f32.mrf.mxu0
  %v8758 = vadd.f32 0.0, %v8757
  %v8759 = vpop.f32.mrf.mxu0
  %v8760 = vpop.f32.mrf.mxu0
  %v8761 = vadd.f32 0.0, %v8760
  %v8762 = vpop.f32.mrf.mxu0
  %8763 = vmatprep.mubr.bf16.mxu0 0
  %8764 = vmatmul.mubr.bf16.gmra.mxu0 %v8610
  %v8765 = vpop.f32.mrf.mxu0
  %v8766 = vadd.f32 0.0, %v8765
  %v8767 = vpop.f32.mrf.mxu0
  %v8768 = vpop.f32.mrf.mxu0
  %v8769 = vadd.f32 0.0, %v8768
  %v8770 = vpop.f32.mrf.mxu0
  %8771 = vmatprep.mubr.bf16.mxu0 0
  %8772 = vmatmul.mubr.bf16.gmra.mxu0 %v8613
  %v8773 = vpop.f32.mrf.mxu0
  %v8774 = vadd.f32 0.0, %v8773
  %v8775 = vpop.f32.mrf.mxu0
  %v8776 = vpop.f32.mrf.mxu0
  %v8777 = vadd.f32 0.0, %v8776
  %v8778 = vpop.f32.mrf.mxu0
  %8779 = vmatprep.mubr.bf16.mxu0 0
  %8780 = vmatmul.mubr.bf16.gmra.mxu0 %v8616
  %v8781 = vpop.f32.mrf.mxu0
  %v8782 = vadd.f32 0.0, %v8781
  %v8783 = vpop.f32.mrf.mxu0
  %v8784 = vpop.f32.mrf.mxu0
  %v8785 = vadd.f32 0.0, %v8784
  %v8786 = vpop.f32.mrf.mxu0
  %8787 = vmatprep.mubr.bf16.mxu0 0
  %8788 = vmatmul.mubr.bf16.gmra.mxu0 %v8619
  %v8789 = vpop.f32.mrf.mxu0
  %v8790 = vadd.f32 0.0, %v8789
  %v8791 = vpop.f32.mrf.mxu0
  %v8792 = vpop.f32.mrf.mxu0
  %v8793 = vadd.f32 0.0, %v8792
  %v8794 = vpop.f32.mrf.mxu0
  %8795 = vmatprep.mubr.bf16.mxu0 0
  %8796 = vmatmul.mubr.bf16.gmra.mxu0 %v8622
  %v8797 = vpop.f32.mrf.mxu0
  %v8798 = vadd.f32 0.0, %v8797
  %v8799 = vpop.f32.mrf.mxu0
  %v8800 = vpop.f32.mrf.mxu0
  %v8801 = vadd.f32 0.0, %v8800
  %v8802 = vpop.f32.mrf.mxu0
  %8803 = vdwg.mxu0
  %v8804 = vadd.f32 %v8359, %v8662
  %v8805 = vadd.f32 %v8360, %v8665
  %v8806 = vadd.f32 %v8361, %v8670
  %v8807 = vadd.f32 %v8362, %v8673
  %v8808 = vadd.f32 %v8363, %v8678
  %v8809 = vadd.f32 %v8364, %v8681
  %v8810 = vadd.f32 %v8365, %v8686
  %v8811 = vadd.f32 %v8366, %v8689
  %v8812 = vadd.f32 %v8367, %v8694
  %v8813 = vadd.f32 %v8368, %v8697
  %v8814 = vadd.f32 %v8369, %v8702
  %v8815 = vadd.f32 %v8370, %v8705
  %v8816 = vadd.f32 %v8371, %v8710
  %v8817 = vadd.f32 %v8372, %v8713
  %v8818 = vadd.f32 %v8373, %v8718
  %v8819 = vadd.f32 %v8374, %v8721
  %v8820 = vadd.f32 %v8375, %v8726
  %v8821 = vadd.f32 %v8376, %v8729
  %v8822 = vadd.f32 %v8377, %v8734
  %v8823 = vadd.f32 %v8378, %v8737
  %v8824 = vadd.f32 %v8379, %v8742
  %v8825 = vadd.f32 %v8380, %v8745
  %v8826 = vadd.f32 %v8381, %v8750
  %v8827 = vadd.f32 %v8382, %v8753
  %v8828 = vadd.f32 %v8383, %v8758
  %v8829 = vadd.f32 %v8384, %v8761
  %v8830 = vadd.f32 %v8385, %v8766
  %v8831 = vadd.f32 %v8386, %v8769
  %v8832 = vadd.f32 %v8387, %v8774
  %v8833 = vadd.f32 %v8388, %v8777
  %v8834 = vadd.f32 %v8389, %v8782
  %v8835 = vadd.f32 %v8390, %v8785
  %v8836 = vadd.f32 %v8391, %v8790
  %v8837 = vadd.f32 %v8392, %v8793
  %v8838 = vadd.f32 %v8393, %v8798
  %v8839 = vadd.f32 %v8394, %v8801
  %v8840 = vld [vmem:[#allocation2 + $0x10] sm:$0x8]
  %v8841 = vld [vmem:[%s4527] sm:$0x3]
  %v8843 = vunpack.c.l.b16 %v8840
  %v8844 = vpack.c.b16 %v8033, %v8843
  %v8845 = vrot.slane %v8844, 3
  %v8846 = vrot.slane %v8070, 3
  %v8847 = vsel %vm4532, %v8845, %v8846
  %v8848 = vrot.slane %v8071, 3
  %v8849 = vsel %vm4532, %v8846, %v8848
  %v8850 = vrot.slane %v8072, 3
  %v8851 = vsel %vm4532, %v8848, %v8850
  %v8852 = vrot.slane %v8073, 3
  %v8853 = vsel %vm4532, %v8850, %v8852
  %v8854 = vrot.slane %v8074, 3
  %v8855 = vsel %vm4532, %v8852, %v8854
  %v8856 = vrot.slane %v8075, 3
  %v8857 = vsel %vm4532, %v8854, %v8856
  %v8858 = vrot.slane %v8076, 3
  %v8859 = vsel %vm4532, %v8856, %v8858
  %v8860 = vrot.slane %v8077, 3
  %v8861 = vsel %vm4532, %v8858, %v8860
  %v8862 = vrot.slane %v8078, 3
  %v8863 = vsel %vm4532, %v8860, %v8862
  %v8864 = vrot.slane %v8079, 3
  %v8865 = vsel %vm4532, %v8862, %v8864
  %v8866 = vrot.slane %v8080, 3
  %v8867 = vsel %vm4532, %v8864, %v8866
  %v8868 = vrot.slane %v8081, 3
  %v8869 = vsel %vm4532, %v8866, %v8868
  %v8870 = vrot.slane %v8082, 3
  %v8871 = vsel %vm4532, %v8868, %v8870
  %v8872 = vrot.slane %v8083, 3
  %v8873 = vsel %vm4532, %v8870, %v8872
  %v8874 = vrot.slane %v8084, 3
  %v8875 = vsel %vm4532, %v8872, %v8874
  %v8876 = vrot.slane %v8085, 3
  %v8877 = vsel %vm4532, %v8874, %v8876
  %v8878 = vrot.slane %v8086, 3
  %v8879 = vsel %vm4532, %v8876, %v8878
  %v8880 = vrot.slane %v8399, 3
  %v8881 = vsel %vm4532, %v8878, %v8880
  %v8883 = vsel %vm1674, %v8847, 0
  %v8886 = vsel %vm1674, %v8849, 0
  %v8889 = vsel %vm1674, %v8851, 0
  %v8892 = vsel %vm1674, %v8853, 0
  %v8895 = vsel %vm1674, %v8855, 0
  %v8898 = vsel %vm1674, %v8857, 0
  %v8901 = vsel %vm1674, %v8859, 0
  %v8904 = vsel %vm1674, %v8861, 0
  %v8907 = vsel %vm1674, %v8863, 0
  %v8910 = vsel %vm1674, %v8865, 0
  %v8913 = vsel %vm1674, %v8867, 0
  %v8916 = vsel %vm1674, %v8869, 0
  %v8919 = vsel %vm1674, %v8871, 0
  %v8922 = vsel %vm1674, %v8873, 0
  %v8925 = vsel %vm1674, %v8875, 0
  %v8928 = vsel %vm1674, %v8877, 0
  %v8931 = vsel %vm1674, %v8879, 0
  %v8934 = vsel %vm1674, %v8881, 0
  %v8937 = vsel %vm1729, %v8841, 0
  %8939 = vmatprep.subr.bf16.mxu0 0
  %8940 = vmatpush1.bf16.msra.mxu0 0
  %8941 = vmatprep.subr.bf16.mxu0 0
  %8942 = vmatpush1.bf16.msra.mxu0 0
  %8943 = vmatprep.subr.bf16.mxu0 0
  %8944 = vmatpush1.bf16.msra.mxu0 0
  %8945 = vmatprep.subr.bf16.mxu0 0
  %8946 = vmatpush1.bf16.msra.mxu0 0
  %8947 = vmatprep.subr.bf16.mxu0 0
  %8948 = vmatpush1.bf16.msra.mxu0 0
  %8949 = vmatprep.subr.bf16.mxu0 0
  %8950 = vmatpush1.bf16.msra.mxu0 0
  %8951 = vmatprep.subr.bf16.mxu0 0
  %8952 = vmatpush1.bf16.msra.mxu0 0
  %8953 = vmatprep.subr.bf16.mxu0 0
  %8954 = vmatpush1.bf16.msra.mxu0 %v8937
  %8955 = vmatprep.subr.bf16.mxu0 0
  %8956 = vmatpush2.bf16.msra.mxu0 0
  %8957 = vmatprep.subr.bf16.mxu0 0
  %8958 = vmatpush2.bf16.msra.mxu0 0
  %8959 = vmatprep.subr.bf16.mxu0 0
  %8960 = vmatpush2.bf16.msra.mxu0 0
  %8961 = vmatprep.subr.bf16.mxu0 0
  %8962 = vmatpush2.bf16.msra.mxu0 0
  %8963 = vmatprep.subr.bf16.mxu0 0
  %8964 = vmatpush2.bf16.msra.mxu0 0
  %8965 = vmatprep.subr.bf16.mxu0 0
  %8966 = vmatpush2.bf16.msra.mxu0 0
  %8967 = vmatprep.subr.bf16.mxu0 0
  %8968 = vmatpush2.bf16.msra.mxu0 0
  %8969 = vmatprep.subr.bf16.mxu0 0
  %8970 = vmatpush2.bf16.msra.mxu0 0
  %8971 = vmatprep.mubr.bf16.mxu0 0
  %8972 = vmatmul.mubr.bf16.gmra.mxu0 %v8883
  %v8973 = vpop.f32.mrf.mxu0
  %v8974 = vadd.f32 0.0, %v8973
  %v8975 = vpop.f32.mrf.mxu0
  %v8976 = vpop.f32.mrf.mxu0
  %v8977 = vadd.f32 0.0, %v8976
  %v8978 = vpop.f32.mrf.mxu0
  %8979 = vmatprep.mubr.bf16.mxu0 0
  %8980 = vmatmul.mubr.bf16.gmra.mxu0 %v8886
  %v8981 = vpop.f32.mrf.mxu0
  %v8982 = vadd.f32 0.0, %v8981
  %v8983 = vpop.f32.mrf.mxu0
  %v8984 = vpop.f32.mrf.mxu0
  %v8985 = vadd.f32 0.0, %v8984
  %v8986 = vpop.f32.mrf.mxu0
  %8987 = vmatprep.mubr.bf16.mxu0 0
  %8988 = vmatmul.mubr.bf16.gmra.mxu0 %v8889
  %v8989 = vpop.f32.mrf.mxu0
  %v8990 = vadd.f32 0.0, %v8989
  %v8991 = vpop.f32.mrf.mxu0
  %v8992 = vpop.f32.mrf.mxu0
  %v8993 = vadd.f32 0.0, %v8992
  %v8994 = vpop.f32.mrf.mxu0
  %8995 = vmatprep.mubr.bf16.mxu0 0
  %8996 = vmatmul.mubr.bf16.gmra.mxu0 %v8892
  %v8997 = vpop.f32.mrf.mxu0
  %v8998 = vadd.f32 0.0, %v8997
  %v8999 = vpop.f32.mrf.mxu0
  %v9000 = vpop.f32.mrf.mxu0
  %v9001 = vadd.f32 0.0, %v9000
  %v9002 = vpop.f32.mrf.mxu0
  %9003 = vmatprep.mubr.bf16.mxu0 0
  %9004 = vmatmul.mubr.bf16.gmra.mxu0 %v8895
  %v9005 = vpop.f32.mrf.mxu0
  %v9006 = vadd.f32 0.0, %v9005
  %v9007 = vpop.f32.mrf.mxu0
  %v9008 = vpop.f32.mrf.mxu0
  %v9009 = vadd.f32 0.0, %v9008
  %v9010 = vpop.f32.mrf.mxu0
  %9011 = vmatprep.mubr.bf16.mxu0 0
  %9012 = vmatmul.mubr.bf16.gmra.mxu0 %v8898
  %v9013 = vpop.f32.mrf.mxu0
  %v9014 = vadd.f32 0.0, %v9013
  %v9015 = vpop.f32.mrf.mxu0
  %v9016 = vpop.f32.mrf.mxu0
  %v9017 = vadd.f32 0.0, %v9016
  %v9018 = vpop.f32.mrf.mxu0
  %9019 = vmatprep.mubr.bf16.mxu0 0
  %9020 = vmatmul.mubr.bf16.gmra.mxu0 %v8901
  %v9021 = vpop.f32.mrf.mxu0
  %v9022 = vadd.f32 0.0, %v9021
  %v9023 = vpop.f32.mrf.mxu0
  %v9024 = vpop.f32.mrf.mxu0
  %v9025 = vadd.f32 0.0, %v9024
  %v9026 = vpop.f32.mrf.mxu0
  %9027 = vmatprep.mubr.bf16.mxu0 0
  %9028 = vmatmul.mubr.bf16.gmra.mxu0 %v8904
  %v9029 = vpop.f32.mrf.mxu0
  %v9030 = vadd.f32 0.0, %v9029
  %v9031 = vpop.f32.mrf.mxu0
  %v9032 = vpop.f32.mrf.mxu0
  %v9033 = vadd.f32 0.0, %v9032
  %v9034 = vpop.f32.mrf.mxu0
  %9035 = vmatprep.mubr.bf16.mxu0 0
  %9036 = vmatmul.mubr.bf16.gmra.mxu0 %v8907
  %v9037 = vpop.f32.mrf.mxu0
  %v9038 = vadd.f32 0.0, %v9037
  %v9039 = vpop.f32.mrf.mxu0
  %v9040 = vpop.f32.mrf.mxu0
  %v9041 = vadd.f32 0.0, %v9040
  %v9042 = vpop.f32.mrf.mxu0
  %9043 = vmatprep.mubr.bf16.mxu0 0
  %9044 = vmatmul.mubr.bf16.gmra.mxu0 %v8910
  %v9045 = vpop.f32.mrf.mxu0
  %v9046 = vadd.f32 0.0, %v9045
  %v9047 = vpop.f32.mrf.mxu0
  %v9048 = vpop.f32.mrf.mxu0
  %v9049 = vadd.f32 0.0, %v9048
  %v9050 = vpop.f32.mrf.mxu0
  %9051 = vmatprep.mubr.bf16.mxu0 0
  %9052 = vmatmul.mubr.bf16.gmra.mxu0 %v8913
  %v9053 = vpop.f32.mrf.mxu0
  %v9054 = vadd.f32 0.0, %v9053
  %v9055 = vpop.f32.mrf.mxu0
  %v9056 = vpop.f32.mrf.mxu0
  %v9057 = vadd.f32 0.0, %v9056
  %v9058 = vpop.f32.mrf.mxu0
  %9059 = vmatprep.mubr.bf16.mxu0 0
  %9060 = vmatmul.mubr.bf16.gmra.mxu0 %v8916
  %v9061 = vpop.f32.mrf.mxu0
  %v9062 = vadd.f32 0.0, %v9061
  %v9063 = vpop.f32.mrf.mxu0
  %v9064 = vpop.f32.mrf.mxu0
  %v9065 = vadd.f32 0.0, %v9064
  %v9066 = vpop.f32.mrf.mxu0
  %9067 = vmatprep.mubr.bf16.mxu0 0
  %9068 = vmatmul.mubr.bf16.gmra.mxu0 %v8919
  %v9069 = vpop.f32.mrf.mxu0
  %v9070 = vadd.f32 0.0, %v9069
  %v9071 = vpop.f32.mrf.mxu0
  %v9072 = vpop.f32.mrf.mxu0
  %v9073 = vadd.f32 0.0, %v9072
  %v9074 = vpop.f32.mrf.mxu0
  %9075 = vmatprep.mubr.bf16.mxu0 0
  %9076 = vmatmul.mubr.bf16.gmra.mxu0 %v8922
  %v9077 = vpop.f32.mrf.mxu0
  %v9078 = vadd.f32 0.0, %v9077
  %v9079 = vpop.f32.mrf.mxu0
  %v9080 = vpop.f32.mrf.mxu0
  %v9081 = vadd.f32 0.0, %v9080
  %v9082 = vpop.f32.mrf.mxu0
  %9083 = vmatprep.mubr.bf16.mxu0 0
  %9084 = vmatmul.mubr.bf16.gmra.mxu0 %v8925
  %v9085 = vpop.f32.mrf.mxu0
  %v9086 = vadd.f32 0.0, %v9085
  %v9087 = vpop.f32.mrf.mxu0
  %v9088 = vpop.f32.mrf.mxu0
  %v9089 = vadd.f32 0.0, %v9088
  %v9090 = vpop.f32.mrf.mxu0
  %9091 = vmatprep.mubr.bf16.mxu0 0
  %9092 = vmatmul.mubr.bf16.gmra.mxu0 %v8928
  %v9093 = vpop.f32.mrf.mxu0
  %v9094 = vadd.f32 0.0, %v9093
  %v9095 = vpop.f32.mrf.mxu0
  %v9096 = vpop.f32.mrf.mxu0
  %v9097 = vadd.f32 0.0, %v9096
  %v9098 = vpop.f32.mrf.mxu0
  %9099 = vmatprep.mubr.bf16.mxu0 0
  %9100 = vmatmul.mubr.bf16.gmra.mxu0 %v8931
  %v9101 = vpop.f32.mrf.mxu0
  %v9102 = vadd.f32 0.0, %v9101
  %v9103 = vpop.f32.mrf.mxu0
  %v9104 = vpop.f32.mrf.mxu0
  %v9105 = vadd.f32 0.0, %v9104
  %v9106 = vpop.f32.mrf.mxu0
  %9107 = vmatprep.mubr.bf16.mxu0 0
  %9108 = vmatmul.mubr.bf16.gmra.mxu0 %v8934
  %v9109 = vpop.f32.mrf.mxu0
  %v9110 = vadd.f32 0.0, %v9109
  %v9111 = vpop.f32.mrf.mxu0
  %v9112 = vpop.f32.mrf.mxu0
  %v9113 = vadd.f32 0.0, %v9112
  %v9114 = vpop.f32.mrf.mxu0
  %9115 = vdwg.mxu0
  %v9116 = vadd.f32 %v8804, %v8974
  %v9117 = vadd.f32 %v8805, %v8977
  %v9118 = vadd.f32 %v8806, %v8982
  %v9119 = vadd.f32 %v8807, %v8985
  %v9120 = vadd.f32 %v8808, %v8990
  %v9121 = vadd.f32 %v8809, %v8993
  %v9122 = vadd.f32 %v8810, %v8998
  %v9123 = vadd.f32 %v8811, %v9001
  %v9124 = vadd.f32 %v8812, %v9006
  %v9125 = vadd.f32 %v8813, %v9009
  %v9126 = vadd.f32 %v8814, %v9014
  %v9127 = vadd.f32 %v8815, %v9017
  %v9128 = vadd.f32 %v8816, %v9022
  %v9129 = vadd.f32 %v8817, %v9025
  %v9130 = vadd.f32 %v8818, %v9030
  %v9131 = vadd.f32 %v8819, %v9033
  %v9132 = vadd.f32 %v8820, %v9038
  %v9133 = vadd.f32 %v8821, %v9041
  %v9134 = vadd.f32 %v8822, %v9046
  %v9135 = vadd.f32 %v8823, %v9049
  %v9136 = vadd.f32 %v8824, %v9054
  %v9137 = vadd.f32 %v8825, %v9057
  %v9138 = vadd.f32 %v8826, %v9062
  %v9139 = vadd.f32 %v8827, %v9065
  %v9140 = vadd.f32 %v8828, %v9070
  %v9141 = vadd.f32 %v8829, %v9073
  %v9142 = vadd.f32 %v8830, %v9078
  %v9143 = vadd.f32 %v8831, %v9081
  %v9144 = vadd.f32 %v8832, %v9086
  %v9145 = vadd.f32 %v8833, %v9089
  %v9146 = vadd.f32 %v8834, %v9094
  %v9147 = vadd.f32 %v8835, %v9097
  %v9148 = vadd.f32 %v8836, %v9102
  %v9149 = vadd.f32 %v8837, %v9105
  %v9150 = vadd.f32 %v8838, %v9110
  %v9151 = vadd.f32 %v8839, %v9113
  %v9152 = vld [vmem:[%s4] sm:$0x1]
  %v9154 = vlaneseq
  %v9155 = vshrl.u32 %v9154, 7
  %v9156 = vsub.s32 0, %v9155
  %v9157 = vrot.slane %v9152, %v9156
  %v9159 = vadd.f32 %v9116, %v9157
  %v9160 = vadd.f32 %v9117, %v9157
  %v9161 = vadd.f32 %v9118, %v9157
  %v9162 = vadd.f32 %v9119, %v9157
  %v9163 = vadd.f32 %v9120, %v9157
  %v9164 = vadd.f32 %v9121, %v9157
  %v9165 = vadd.f32 %v9122, %v9157
  %v9166 = vadd.f32 %v9123, %v9157
  %v9167 = vadd.f32 %v9124, %v9157
  %v9168 = vadd.f32 %v9125, %v9157
  %v9169 = vadd.f32 %v9126, %v9157
  %v9170 = vadd.f32 %v9127, %v9157
  %v9171 = vadd.f32 %v9128, %v9157
  %v9172 = vadd.f32 %v9129, %v9157
  %v9173 = vadd.f32 %v9130, %v9157
  %v9174 = vadd.f32 %v9131, %v9157
  %v9175 = vadd.f32 %v9132, %v9157
  %v9176 = vadd.f32 %v9133, %v9157
  %v9177 = vadd.f32 %v9134, %v9157
  %v9178 = vadd.f32 %v9135, %v9157
  %v9179 = vadd.f32 %v9136, %v9157
  %v9180 = vadd.f32 %v9137, %v9157
  %v9181 = vadd.f32 %v9138, %v9157
  %v9182 = vadd.f32 %v9139, %v9157
  %v9183 = vadd.f32 %v9140, %v9157
  %v9184 = vadd.f32 %v9141, %v9157
  %v9185 = vadd.f32 %v9142, %v9157
  %v9186 = vadd.f32 %v9143, %v9157
  %v9187 = vadd.f32 %v9144, %v9157
  %v9188 = vadd.f32 %v9145, %v9157
  %v9189 = vadd.f32 %v9146, %v9157
  %v9190 = vadd.f32 %v9147, %v9157
  %v9191 = vadd.f32 %v9148, %v9157
  %v9192 = vadd.f32 %v9149, %v9157
  %v9193 = vadd.f32 %v9150, %v9157
  %v9194 = vadd.f32 %v9151, %v9157
  %v9195 = vmax.f32 %v9159, 0.0
  %v9196 = vmax.f32 %v9160, 0.0
  %v9197 = vmax.f32 %v9161, 0.0
  %v9198 = vmax.f32 %v9162, 0.0
  %v9199 = vmax.f32 %v9163, 0.0
  %v9200 = vmax.f32 %v9164, 0.0
  %v9201 = vmax.f32 %v9165, 0.0
  %v9202 = vmax.f32 %v9166, 0.0
  %v9203 = vmax.f32 %v9167, 0.0
  %v9204 = vmax.f32 %v9168, 0.0
  %v9205 = vmax.f32 %v9169, 0.0
  %v9206 = vmax.f32 %v9170, 0.0
  %v9207 = vmax.f32 %v9171, 0.0
  %v9208 = vmax.f32 %v9172, 0.0
  %v9209 = vmax.f32 %v9173, 0.0
  %v9210 = vmax.f32 %v9174, 0.0
  %v9211 = vmax.f32 %v9175, 0.0
  %v9212 = vmax.f32 %v9176, 0.0
  %v9213 = vmax.f32 %v9177, 0.0
  %v9214 = vmax.f32 %v9178, 0.0
  %v9215 = vmax.f32 %v9179, 0.0
  %v9216 = vmax.f32 %v9180, 0.0
  %v9217 = vmax.f32 %v9181, 0.0
  %v9218 = vmax.f32 %v9182, 0.0
  %v9219 = vmax.f32 %v9183, 0.0
  %v9220 = vmax.f32 %v9184, 0.0
  %v9221 = vmax.f32 %v9185, 0.0
  %v9222 = vmax.f32 %v9186, 0.0
  %v9223 = vmax.f32 %v9187, 0.0
  %v9224 = vmax.f32 %v9188, 0.0
  %v9225 = vmax.f32 %v9189, 0.0
  %v9226 = vmax.f32 %v9190, 0.0
  %v9227 = vmax.f32 %v9191, 0.0
  %v9228 = vmax.f32 %v9192, 0.0
  %v9229 = vmax.f32 %v9193, 0.0
  %v9230 = vmax.f32 %v9194, 0.0
  %v9231 = vpack.c.bf16 %v9196, %v9195
  %v9232 = vpack.c.bf16 %v9198, %v9197
  %v9233 = vpack.c.bf16 %v9200, %v9199
  %v9234 = vpack.c.bf16 %v9202, %v9201
  %v9235 = vpack.c.bf16 %v9204, %v9203
  %v9236 = vpack.c.bf16 %v9206, %v9205
  %v9237 = vpack.c.bf16 %v9208, %v9207
  %v9238 = vpack.c.bf16 %v9210, %v9209
  %v9239 = vpack.c.bf16 %v9212, %v9211
  %v9240 = vpack.c.bf16 %v9214, %v9213
  %v9241 = vpack.c.bf16 %v9216, %v9215
  %v9242 = vpack.c.bf16 %v9218, %v9217
  %v9243 = vpack.c.bf16 %v9220, %v9219
  %v9244 = vpack.c.bf16 %v9222, %v9221
  %v9245 = vpack.c.bf16 %v9224, %v9223
  %v9246 = vpack.c.bf16 %v9226, %v9225
  %v9247 = vpack.c.bf16 %v9228, %v9227
  %v9248 = vpack.c.bf16 %v9230, %v9229
  %v9250 = vunpack.c.l.b16 %v9231
  %v9251 = vunpack.c.h.b16 %v9231
  %v9252 = vpack.c.b16 %v9250, %v9250
  %v9253 = vpack.c.b16 %v9251, %v9251
  %9256 = vst.msk [vmem:[#allocation3 + $0x80] sm:$0xf] %vm748, %v9252
  %9257 = vst.msk [vmem:[#allocation3 + $0x84] sm:$0xf] %vm748, %v9253
  %v9260 = vunpack.c.l.b16 %v9232
  %v9261 = vunpack.c.h.b16 %v9232
  %v9262 = vunpack.c.l.b16 %v9233
  %v9263 = vpack.c.b16 %v9260, %v9260
  %v9264 = vpack.c.b16 %v9261, %v9261
  %v9265 = vpack.c.b16 %v9262, %v9262
  %v9266 = vrot.slane %v9263, 5
  %v9267 = vrot.slane %v9266, 4
  %v9268 = vrot.slane %v9264, 5
  %v9269 = vsel %vm4956, %v9267, %v9268
  %v9270 = vrot.slane %v9268, 4
  %v9271 = vrot.slane %v9265, 5
  %v9272 = vsel %vm4956, %v9270, %v9271
  %9275 = vst.msk [vmem:[#allocation3 + $0x88] sm:$0xf] %vm748, %v9269
  %9276 = vst.msk [vmem:[#allocation3 + $0x8c] sm:$0xf] %vm748, %v9272
  %v9278 = vunpack.c.h.b16 %v9233
  %v9279 = vunpack.c.l.b16 %v9234
  %v9280 = vpack.c.b16 %v9278, %v9278
  %v9281 = vpack.c.b16 %v9279, %v9279
  %v9282 = vrot.slane %v9265, 6
  %v9283 = vrot.slane %v9282, 4
  %v9284 = vrot.slane %v9280, 6
  %v9285 = vsel %vm4975, %v9283, %v9284
  %v9286 = vrot.slane %v9284, 4
  %v9287 = vrot.slane %v9281, 6
  %v9288 = vsel %vm4975, %v9286, %v9287
  %9291 = vst.msk [vmem:[#allocation3 + $0x90] sm:$0xf] %vm748, %v9285
  %9292 = vst.msk [vmem:[#allocation3 + $0x94] sm:$0xf] %vm748, %v9288
  %v9294 = vunpack.c.h.b16 %v9234
  %v9295 = vunpack.c.l.b16 %v9235
  %v9296 = vpack.c.b16 %v9294, %v9294
  %v9297 = vpack.c.b16 %v9295, %v9295
  %v9298 = vrot.slane %v9281, 7
  %v9299 = vrot.slane %v9298, 4
  %v9300 = vrot.slane %v9296, 7
  %v9301 = vsel %vm4994, %v9299, %v9300
  %v9302 = vrot.slane %v9300, 4
  %v9303 = vrot.slane %v9297, 7
  %v9304 = vsel %vm4994, %v9302, %v9303
  %9307 = vst.msk [vmem:[#allocation3 + $0x98] sm:$0xf] %vm748, %v9301
  %9308 = vst.msk [vmem:[#allocation3 + $0x9c] sm:$0xf] %vm748, %v9304
  %v9310 = vunpack.c.h.b16 %v9235
  %v9311 = vunpack.c.l.b16 %v9236
  %v9312 = vpack.c.b16 %v9310, %v9310
  %v9313 = vpack.c.b16 %v9311, %v9311
  %9316 = vst.msk [vmem:[#allocation3 + $0xa0] sm:$0xf] %vm748, %v9312
  %9317 = vst.msk [vmem:[#allocation3 + $0xa4] sm:$0xf] %vm748, %v9313
  %v9319 = vunpack.c.h.b16 %v9236
  %v9320 = vunpack.c.l.b16 %v9237
  %v9321 = vunpack.c.h.b16 %v9237
  %v9322 = vpack.c.b16 %v9319, %v9319
  %v9323 = vpack.c.b16 %v9320, %v9320
  %v9324 = vpack.c.b16 %v9321, %v9321
  %v9325 = vrot.slane %v9322, 5
  %v9326 = vrot.slane %v9325, 4
  %v9327 = vrot.slane %v9323, 5
  %v9328 = vsel %vm4956, %v9326, %v9327
  %v9329 = vrot.slane %v9327, 4
  %v9330 = vrot.slane %v9324, 5
  %v9331 = vsel %vm4956, %v9329, %v9330
  %9334 = vst.msk [vmem:[#allocation3 + $0xa8] sm:$0xf] %vm748, %v9328
  %9335 = vst.msk [vmem:[#allocation3 + $0xac] sm:$0xf] %vm748, %v9331
  %v9337 = vunpack.c.l.b16 %v9238
  %v9338 = vunpack.c.h.b16 %v9238
  %v9339 = vpack.c.b16 %v9337, %v9337
  %v9340 = vpack.c.b16 %v9338, %v9338
  %v9341 = vrot.slane %v9324, 6
  %v9342 = vrot.slane %v9341, 4
  %v9343 = vrot.slane %v9339, 6
  %v9344 = vsel %vm4975, %v9342, %v9343
  %v9345 = vrot.slane %v9343, 4
  %v9346 = vrot.slane %v9340, 6
  %v9347 = vsel %vm4975, %v9345, %v9346
  %9350 = vst.msk [vmem:[#allocation3 + $0xb0] sm:$0xf] %vm748, %v9344
  %9351 = vst.msk [vmem:[#allocation3 + $0xb4] sm:$0xf] %vm748, %v9347
  %v9353 = vunpack.c.l.b16 %v9239
  %v9354 = vunpack.c.h.b16 %v9239
  %v9355 = vpack.c.b16 %v9353, %v9353
  %v9356 = vpack.c.b16 %v9354, %v9354
  %v9357 = vrot.slane %v9340, 7
  %v9358 = vrot.slane %v9357, 4
  %v9359 = vrot.slane %v9355, 7
  %v9360 = vsel %vm4994, %v9358, %v9359
  %v9361 = vrot.slane %v9359, 4
  %v9362 = vrot.slane %v9356, 7
  %v9363 = vsel %vm4994, %v9361, %v9362
  %9366 = vst.msk [vmem:[#allocation3 + $0xb8] sm:$0xf] %vm748, %v9360
  %9367 = vst.msk [vmem:[#allocation3 + $0xbc] sm:$0xf] %vm748, %v9363
  %v9369 = vunpack.c.l.b16 %v9240
  %v9370 = vunpack.c.h.b16 %v9240
  %v9371 = vpack.c.b16 %v9369, %v9369
  %v9372 = vpack.c.b16 %v9370, %v9370
  %9375 = vst.msk [vmem:[#allocation3 + $0xc0] sm:$0xf] %vm748, %v9371
  %9376 = vst.msk [vmem:[#allocation3 + $0xc4] sm:$0xf] %vm748, %v9372
  %v9379 = vunpack.c.l.b16 %v9241
  %v9380 = vunpack.c.h.b16 %v9241
  %v9381 = vunpack.c.l.b16 %v9242
  %v9382 = vpack.c.b16 %v9379, %v9379
  %v9383 = vpack.c.b16 %v9380, %v9380
  %v9384 = vpack.c.b16 %v9381, %v9381
  %v9385 = vrot.slane %v9382, 5
  %v9386 = vrot.slane %v9385, 4
  %v9387 = vrot.slane %v9383, 5
  %v9388 = vsel %vm4956, %v9386, %v9387
  %v9389 = vrot.slane %v9387, 4
  %v9390 = vrot.slane %v9384, 5
  %v9391 = vsel %vm4956, %v9389, %v9390
  %9394 = vst.msk [vmem:[#allocation3 + $0xc8] sm:$0xf] %vm748, %v9388
  %9395 = vst.msk [vmem:[#allocation3 + $0xcc] sm:$0xf] %vm748, %v9391
  %v9397 = vunpack.c.h.b16 %v9242
  %v9398 = vunpack.c.l.b16 %v9243
  %v9399 = vpack.c.b16 %v9397, %v9397
  %v9400 = vpack.c.b16 %v9398, %v9398
  %v9401 = vrot.slane %v9384, 6
  %v9402 = vrot.slane %v9401, 4
  %v9403 = vrot.slane %v9399, 6
  %v9404 = vsel %vm4975, %v9402, %v9403
  %v9405 = vrot.slane %v9403, 4
  %v9406 = vrot.slane %v9400, 6
  %v9407 = vsel %vm4975, %v9405, %v9406
  %9410 = vst.msk [vmem:[#allocation3 + $0xd0] sm:$0xf] %vm748, %v9404
  %9411 = vst.msk [vmem:[#allocation3 + $0xd4] sm:$0xf] %vm748, %v9407
  %v9413 = vunpack.c.h.b16 %v9243
  %v9414 = vunpack.c.l.b16 %v9244
  %v9415 = vpack.c.b16 %v9413, %v9413
  %v9416 = vpack.c.b16 %v9414, %v9414
  %v9417 = vrot.slane %v9400, 7
  %v9418 = vrot.slane %v9417, 4
  %v9419 = vrot.slane %v9415, 7
  %v9420 = vsel %vm4994, %v9418, %v9419
  %v9421 = vrot.slane %v9419, 4
  %v9422 = vrot.slane %v9416, 7
  %v9423 = vsel %vm4994, %v9421, %v9422
  %9426 = vst.msk [vmem:[#allocation3 + $0xd8] sm:$0xf] %vm748, %v9420
  %9427 = vst.msk [vmem:[#allocation3 + $0xdc] sm:$0xf] %vm748, %v9423
  %v9429 = vunpack.c.h.b16 %v9244
  %v9430 = vunpack.c.l.b16 %v9245
  %v9431 = vpack.c.b16 %v9429, %v9429
  %v9432 = vpack.c.b16 %v9430, %v9430
  %9435 = vst.msk [vmem:[#allocation3 + $0xe0] sm:$0xf] %vm748, %v9431
  %9436 = vst.msk [vmem:[#allocation3 + $0xe4] sm:$0xf] %vm748, %v9432
  %v9438 = vunpack.c.h.b16 %v9245
  %v9439 = vunpack.c.l.b16 %v9246
  %v9440 = vunpack.c.h.b16 %v9246
  %v9441 = vpack.c.b16 %v9438, %v9438
  %v9442 = vpack.c.b16 %v9439, %v9439
  %v9443 = vpack.c.b16 %v9440, %v9440
  %v9444 = vrot.slane %v9441, 5
  %v9445 = vrot.slane %v9444, 4
  %v9446 = vrot.slane %v9442, 5
  %v9447 = vsel %vm4956, %v9445, %v9446
  %v9448 = vrot.slane %v9446, 4
  %v9449 = vrot.slane %v9443, 5
  %v9450 = vsel %vm4956, %v9448, %v9449
  %9453 = vst.msk [vmem:[#allocation3 + $0xe8] sm:$0xf] %vm748, %v9447
  %9454 = vst.msk [vmem:[#allocation3 + $0xec] sm:$0xf] %vm748, %v9450
  %v9456 = vunpack.c.l.b16 %v9247
  %v9457 = vunpack.c.h.b16 %v9247
  %v9458 = vpack.c.b16 %v9456, %v9456
  %v9459 = vpack.c.b16 %v9457, %v9457
  %v9460 = vrot.slane %v9443, 6
  %v9461 = vrot.slane %v9460, 4
  %v9462 = vrot.slane %v9458, 6
  %v9463 = vsel %vm4975, %v9461, %v9462
  %v9464 = vrot.slane %v9462, 4
  %v9465 = vrot.slane %v9459, 6
  %v9466 = vsel %vm4975, %v9464, %v9465
  %9469 = vst.msk [vmem:[#allocation3 + $0xf0] sm:$0xf] %vm748, %v9463
  %9470 = vst.msk [vmem:[#allocation3 + $0xf4] sm:$0xf] %vm748, %v9466
  %v9472 = vunpack.c.l.b16 %v9248
  %v9473 = vunpack.c.h.b16 %v9248
  %v9474 = vpack.c.b16 %v9472, %v9472
  %v9475 = vpack.c.b16 %v9473, %v9473
  %v9476 = vrot.slane %v9459, 7
  %v9477 = vrot.slane %v9476, 4
  %v9478 = vrot.slane %v9474, 7
  %v9479 = vsel %vm4994, %v9477, %v9478
  %v9480 = vrot.slane %v9478, 4
  %v9481 = vrot.slane %v9475, 7
  %v9482 = vsel %vm4994, %v9480, %v9481
  %9485 = vst.msk [vmem:[#allocation3 + $0xf8] sm:$0xf] %vm748, %v9479
  %9486 = vst.msk [vmem:[#allocation3 + $0xfc] sm:$0xf] %vm748, %v9482
  %v9487 = vld [vmem:[#allocation3] sm:$0xf]
  %v9488 = vld [vmem:[#allocation3 + $0x4] sm:$0xf]
  %v9489 = vld [vmem:[#allocation3 + $0x8] sm:$0xf]
  %v9490 = vld [vmem:[#allocation3 + $0xc] sm:$0xf]
  %v9491 = vld [vmem:[#allocation3 + $0x10] sm:$0xf]
  %v9492 = vld [vmem:[#allocation3 + $0x14] sm:$0xf]
  %v9493 = vld [vmem:[#allocation3 + $0x18] sm:$0xf]
  %v9494 = vld [vmem:[#allocation3 + $0x1c] sm:$0xf]
  %v9495 = vld [vmem:[#allocation3 + $0x20] sm:$0xf]
  %v9496 = vld [vmem:[#allocation3 + $0x24] sm:$0xf]
  %v9497 = vld [vmem:[#allocation3 + $0x28] sm:$0xf]
  %v9498 = vld [vmem:[#allocation3 + $0x2c] sm:$0xf]
  %v9499 = vld [vmem:[#allocation3 + $0x30] sm:$0xf]
  %v9500 = vld [vmem:[#allocation3 + $0x34] sm:$0xf]
  %v9501 = vld [vmem:[#allocation3 + $0x38] sm:$0xf]
  %v9502 = vld [vmem:[#allocation3 + $0x3c] sm:$0xf]
  %v9503 = vld [vmem:[#allocation3 + $0x40] sm:$0xf]
  %v9504 = vld [vmem:[#allocation3 + $0x44] sm:$0xf]
  %v9505 = vld [vmem:[#allocation3 + $0x48] sm:$0xf]
  %v9506 = vld [vmem:[#allocation3 + $0x4c] sm:$0xf]
  %v9507 = vld [vmem:[#allocation3 + $0x50] sm:$0xf]
  %v9508 = vld [vmem:[#allocation3 + $0x54] sm:$0xf]
  %v9509 = vld [vmem:[#allocation3 + $0x58] sm:$0xf]
  %v9510 = vld [vmem:[#allocation3 + $0x5c] sm:$0xf]
  %v9511 = vld [vmem:[#allocation3 + $0x60] sm:$0xf]
  %v9512 = vld [vmem:[#allocation3 + $0x64] sm:$0xf]
  %v9513 = vld [vmem:[#allocation3 + $0x68] sm:$0xf]
  %v9514 = vld [vmem:[#allocation3 + $0x6c] sm:$0xf]
  %v9515 = vld [vmem:[#allocation3 + $0x70] sm:$0xf]
  %v9516 = vld [vmem:[#allocation3 + $0x74] sm:$0xf]
  %v9517 = vld [vmem:[#allocation3 + $0x78] sm:$0xf]
  %v9518 = vld [vmem:[#allocation3 + $0x7c] sm:$0xf]
  %v9519 = vld [vmem:[#allocation3 + $0x80] sm:$0xf]
  %v9520 = vld [vmem:[#allocation3 + $0x84] sm:$0xf]
  %v9521 = vld [vmem:[#allocation3 + $0x88] sm:$0xf]
  %v9522 = vld [vmem:[#allocation3 + $0x8c] sm:$0xf]
  %v9523 = vld [vmem:[#allocation3 + $0x90] sm:$0xf]
  %v9524 = vld [vmem:[#allocation3 + $0x94] sm:$0xf]
  %v9525 = vld [vmem:[#allocation3 + $0x98] sm:$0xf]
  %v9526 = vld [vmem:[#allocation3 + $0x9c] sm:$0xf]
  %v9527 = vld [vmem:[#allocation3 + $0xa0] sm:$0xf]
  %v9528 = vld [vmem:[#allocation3 + $0xa4] sm:$0xf]
  %v9529 = vld [vmem:[#allocation3 + $0xa8] sm:$0xf]
  %v9530 = vld [vmem:[#allocation3 + $0xac] sm:$0xf]
  %v9531 = vld [vmem:[#allocation3 + $0xb0] sm:$0xf]
  %v9532 = vld [vmem:[#allocation3 + $0xb4] sm:$0xf]
  %v9533 = vld [vmem:[#allocation3 + $0xb8] sm:$0xf]
  %v9534 = vld [vmem:[#allocation3 + $0xbc] sm:$0xf]
  %v9535 = vld [vmem:[#allocation3 + $0xc0] sm:$0xf]
  %v9536 = vld [vmem:[#allocation3 + $0xc4] sm:$0xf]
  %v9537 = vld [vmem:[#allocation3 + $0xc8] sm:$0xf]
  %v9538 = vld [vmem:[#allocation3 + $0xcc] sm:$0xf]
  %v9539 = vld [vmem:[#allocation3 + $0xd0] sm:$0xf]
  %v9540 = vld [vmem:[#allocation3 + $0xd4] sm:$0xf]
  %v9541 = vld [vmem:[#allocation3 + $0xd8] sm:$0xf]
  %v9542 = vld [vmem:[#allocation3 + $0xdc] sm:$0xf]
  %v9543 = vld [vmem:[#allocation3 + $0xe0] sm:$0xf]
  %v9544 = vld [vmem:[#allocation3 + $0xe4] sm:$0xf]
  %v9545 = vld [vmem:[#allocation3 + $0xe8] sm:$0xf]
  %v9546 = vld [vmem:[#allocation3 + $0xec] sm:$0xf]
  %v9547 = vld [vmem:[#allocation3 + $0xf0] sm:$0xf]
  %v9548 = vld [vmem:[#allocation3 + $0xf4] sm:$0xf]
  %v9549 = vld [vmem:[#allocation3 + $0xf8] sm:$0xf]
  %v9550 = vld [vmem:[#allocation3 + $0xfc] sm:$0xf]
  %v9551 = vld [vmem:[%s5] sm:$0x3]
  %v9552 = vld [vmem:[%s6] sm:$0x1]
  %v9554 = vlaneseq
  %v9555 = vshrl.u32 %v9554, 7
  %v9556 = vsub.s32 0, %v9555
  %v9557 = vrot.slane %v9552, %v9556
  %v9623 = vunpack.c.l.b16 %v9487
  %v9624 = vunpack.c.l.b16 %v9488
  %v9625 = vunpack.c.l.b16 %v9489
  %v9626 = vunpack.c.l.b16 %v9490
  %v9627 = vunpack.c.l.b16 %v9491
  %v9628 = vunpack.c.l.b16 %v9492
  %v9629 = vunpack.c.l.b16 %v9493
  %v9630 = vunpack.c.l.b16 %v9494
  %v9631 = vunpack.c.l.b16 %v9495
  %v9632 = vunpack.c.l.b16 %v9496
  %v9633 = vunpack.c.l.b16 %v9497
  %v9634 = vunpack.c.l.b16 %v9498
  %v9635 = vunpack.c.l.b16 %v9499
  %v9636 = vunpack.c.l.b16 %v9500
  %v9637 = vunpack.c.l.b16 %v9501
  %v9638 = vunpack.c.l.b16 %v9502
  %v9639 = vunpack.c.l.b16 %v9503
  %v9640 = vunpack.c.l.b16 %v9504
  %v9641 = vunpack.c.l.b16 %v9505
  %v9642 = vunpack.c.l.b16 %v9506
  %v9643 = vunpack.c.l.b16 %v9507
  %v9644 = vunpack.c.l.b16 %v9508
  %v9645 = vunpack.c.l.b16 %v9509
  %v9646 = vunpack.c.l.b16 %v9510
  %v9647 = vunpack.c.l.b16 %v9511
  %v9648 = vunpack.c.l.b16 %v9512
  %v9649 = vunpack.c.l.b16 %v9513
  %v9650 = vunpack.c.l.b16 %v9514
  %v9651 = vunpack.c.l.b16 %v9515
  %v9652 = vunpack.c.l.b16 %v9516
  %v9653 = vunpack.c.l.b16 %v9517
  %v9654 = vunpack.c.l.b16 %v9518
  %v9655 = vunpack.c.l.b16 %v9519
  %v9656 = vunpack.c.l.b16 %v9520
  %v9657 = vunpack.c.l.b16 %v9521
  %v9658 = vunpack.c.l.b16 %v9522
  %v9659 = vunpack.c.l.b16 %v9523
  %v9660 = vunpack.c.l.b16 %v9524
  %v9661 = vunpack.c.l.b16 %v9525
  %v9662 = vunpack.c.l.b16 %v9526
  %v9663 = vunpack.c.l.b16 %v9527
  %v9664 = vunpack.c.l.b16 %v9528
  %v9665 = vunpack.c.l.b16 %v9529
  %v9666 = vunpack.c.l.b16 %v9530
  %v9667 = vunpack.c.l.b16 %v9531
  %v9668 = vunpack.c.l.b16 %v9532
  %v9669 = vunpack.c.l.b16 %v9533
  %v9670 = vunpack.c.l.b16 %v9534
  %v9671 = vunpack.c.l.b16 %v9535
  %v9672 = vunpack.c.l.b16 %v9536
  %v9673 = vunpack.c.l.b16 %v9537
  %v9674 = vunpack.c.l.b16 %v9538
  %v9675 = vunpack.c.l.b16 %v9539
  %v9676 = vunpack.c.l.b16 %v9540
  %v9677 = vunpack.c.l.b16 %v9541
  %v9678 = vunpack.c.l.b16 %v9542
  %v9679 = vunpack.c.l.b16 %v9543
  %v9680 = vunpack.c.l.b16 %v9544
  %v9681 = vunpack.c.l.b16 %v9545
  %v9682 = vunpack.c.l.b16 %v9546
  %v9683 = vunpack.c.l.b16 %v9547
  %v9684 = vunpack.c.l.b16 %v9548
  %v9685 = vunpack.c.l.b16 %v9549
  %v9686 = vunpack.c.l.b16 %v9550
  %v9687 = vpack.c.b16 %v9624, %v9623
  %v9688 = vpack.c.b16 %v9626, %v9625
  %v9689 = vpack.c.b16 %v9628, %v9627
  %v9690 = vpack.c.b16 %v9630, %v9629
  %v9691 = vpack.c.b16 %v9632, %v9631
  %v9692 = vpack.c.b16 %v9634, %v9633
  %v9693 = vpack.c.b16 %v9636, %v9635
  %v9694 = vpack.c.b16 %v9638, %v9637
  %v9695 = vpack.c.b16 %v9640, %v9639
  %v9696 = vpack.c.b16 %v9642, %v9641
  %v9697 = vpack.c.b16 %v9644, %v9643
  %v9698 = vpack.c.b16 %v9646, %v9645
  %v9699 = vpack.c.b16 %v9648, %v9647
  %v9700 = vpack.c.b16 %v9650, %v9649
  %v9701 = vpack.c.b16 %v9652, %v9651
  %v9702 = vpack.c.b16 %v9654, %v9653
  %v9703 = vpack.c.b16 %v9656, %v9655
  %v9704 = vpack.c.b16 %v9658, %v9657
  %v9705 = vpack.c.b16 %v9660, %v9659
  %v9706 = vpack.c.b16 %v9662, %v9661
  %v9707 = vpack.c.b16 %v9664, %v9663
  %v9708 = vpack.c.b16 %v9666, %v9665
  %v9709 = vpack.c.b16 %v9668, %v9667
  %v9710 = vpack.c.b16 %v9670, %v9669
  %v9711 = vpack.c.b16 %v9672, %v9671
  %v9712 = vpack.c.b16 %v9674, %v9673
  %v9713 = vpack.c.b16 %v9676, %v9675
  %v9714 = vpack.c.b16 %v9678, %v9677
  %v9715 = vpack.c.b16 %v9680, %v9679
  %v9716 = vpack.c.b16 %v9682, %v9681
  %v9717 = vpack.c.b16 %v9684, %v9683
  %v9718 = vpack.c.b16 %v9686, %v9685
  %v9720 = vsel %vm1674, %v9687, 0
  %v9723 = vsel %vm1674, %v9688, 0
  %v9726 = vsel %vm1674, %v9689, 0
  %v9729 = vsel %vm1674, %v9690, 0
  %v9732 = vsel %vm1674, %v9691, 0
  %v9735 = vsel %vm1674, %v9692, 0
  %v9738 = vsel %vm1674, %v9693, 0
  %v9741 = vsel %vm1674, %v9694, 0
  %v9744 = vsel %vm1674, %v9695, 0
  %v9747 = vsel %vm1674, %v9696, 0
  %v9750 = vsel %vm1674, %v9697, 0
  %v9753 = vsel %vm1674, %v9698, 0
  %v9756 = vsel %vm1674, %v9699, 0
  %v9759 = vsel %vm1674, %v9700, 0
  %v9762 = vsel %vm1674, %v9701, 0
  %v9765 = vsel %vm1674, %v9702, 0
  %v9768 = vsel %vm1674, %v9703, 0
  %v9771 = vsel %vm1674, %v9704, 0
  %v9774 = vsel %vm1674, %v9705, 0
  %v9777 = vsel %vm1674, %v9706, 0
  %v9780 = vsel %vm1674, %v9707, 0
  %v9783 = vsel %vm1674, %v9708, 0
  %v9786 = vsel %vm1674, %v9709, 0
  %v9789 = vsel %vm1674, %v9710, 0
  %v9792 = vsel %vm1674, %v9711, 0
  %v9795 = vsel %vm1674, %v9712, 0
  %v9798 = vsel %vm1674, %v9713, 0
  %v9801 = vsel %vm1674, %v9714, 0
  %v9804 = vsel %vm1674, %v9715, 0
  %v9807 = vsel %vm1674, %v9716, 0
  %v9810 = vsel %vm1674, %v9717, 0
  %v9813 = vsel %vm1674, %v9718, 0
  %v9816 = vsel %vm1729, %v9551, 0
  %9818 = vmatprep.subr.bf16.mxu0 0
  %9819 = vmatpush1.bf16.msra.mxu0 0
  %9820 = vmatprep.subr.bf16.mxu0 0
  %9821 = vmatpush1.bf16.msra.mxu0 0
  %9822 = vmatprep.subr.bf16.mxu0 0
  %9823 = vmatpush1.bf16.msra.mxu0 0
  %9824 = vmatprep.subr.bf16.mxu0 0
  %9825 = vmatpush1.bf16.msra.mxu0 0
  %9826 = vmatprep.subr.bf16.mxu0 0
  %9827 = vmatpush1.bf16.msra.mxu0 0
  %9828 = vmatprep.subr.bf16.mxu0 0
  %9829 = vmatpush1.bf16.msra.mxu0 0
  %9830 = vmatprep.subr.bf16.mxu0 0
  %9831 = vmatpush1.bf16.msra.mxu0 0
  %9832 = vmatprep.subr.bf16.mxu0 0
  %9833 = vmatpush1.bf16.msra.mxu0 %v9816
  %9834 = vmatprep.subr.bf16.mxu0 0
  %9835 = vmatpush2.bf16.msra.mxu0 0
  %9836 = vmatprep.subr.bf16.mxu0 0
  %9837 = vmatpush2.bf16.msra.mxu0 0
  %9838 = vmatprep.subr.bf16.mxu0 0
  %9839 = vmatpush2.bf16.msra.mxu0 0
  %9840 = vmatprep.subr.bf16.mxu0 0
  %9841 = vmatpush2.bf16.msra.mxu0 0
  %9842 = vmatprep.subr.bf16.mxu0 0
  %9843 = vmatpush2.bf16.msra.mxu0 0
  %9844 = vmatprep.subr.bf16.mxu0 0
  %9845 = vmatpush2.bf16.msra.mxu0 0
  %9846 = vmatprep.subr.bf16.mxu0 0
  %9847 = vmatpush2.bf16.msra.mxu0 0
  %9848 = vmatprep.subr.bf16.mxu0 0
  %9849 = vmatpush2.bf16.msra.mxu0 0
  %9850 = vmatprep.mubr.bf16.mxu0 0
  %9851 = vmatmul.mubr.bf16.gmra.mxu0 %v9720
  %v9852 = vpop.f32.mrf.mxu0
  %v9853 = vadd.f32 %v9557, %v9852
  %v9854 = vpop.f32.mrf.mxu0
  %v9855 = vpop.f32.mrf.mxu0
  %v9856 = vadd.f32 %v9557, %v9855
  %v9857 = vpop.f32.mrf.mxu0
  %9858 = vmatprep.mubr.bf16.mxu0 0
  %9859 = vmatmul.mubr.bf16.gmra.mxu0 %v9723
  %v9860 = vpop.f32.mrf.mxu0
  %v9861 = vadd.f32 %v9557, %v9860
  %v9862 = vpop.f32.mrf.mxu0
  %v9863 = vpop.f32.mrf.mxu0
  %v9864 = vadd.f32 %v9557, %v9863
  %v9865 = vpop.f32.mrf.mxu0
  %9866 = vmatprep.mubr.bf16.mxu0 0
  %9867 = vmatmul.mubr.bf16.gmra.mxu0 %v9726
  %v9868 = vpop.f32.mrf.mxu0
  %v9869 = vadd.f32 %v9557, %v9868
  %v9870 = vpop.f32.mrf.mxu0
  %v9871 = vpop.f32.mrf.mxu0
  %v9872 = vadd.f32 %v9557, %v9871
  %v9873 = vpop.f32.mrf.mxu0
  %9874 = vmatprep.mubr.bf16.mxu0 0
  %9875 = vmatmul.mubr.bf16.gmra.mxu0 %v9729
  %v9876 = vpop.f32.mrf.mxu0
  %v9877 = vadd.f32 %v9557, %v9876
  %v9878 = vpop.f32.mrf.mxu0
  %v9879 = vpop.f32.mrf.mxu0
  %v9880 = vadd.f32 %v9557, %v9879
  %v9881 = vpop.f32.mrf.mxu0
  %9882 = vmatprep.mubr.bf16.mxu0 0
  %9883 = vmatmul.mubr.bf16.gmra.mxu0 %v9732
  %v9884 = vpop.f32.mrf.mxu0
  %v9885 = vadd.f32 %v9557, %v9884
  %v9886 = vpop.f32.mrf.mxu0
  %v9887 = vpop.f32.mrf.mxu0
  %v9888 = vadd.f32 %v9557, %v9887
  %v9889 = vpop.f32.mrf.mxu0
  %9890 = vmatprep.mubr.bf16.mxu0 0
  %9891 = vmatmul.mubr.bf16.gmra.mxu0 %v9735
  %v9892 = vpop.f32.mrf.mxu0
  %v9893 = vadd.f32 %v9557, %v9892
  %v9894 = vpop.f32.mrf.mxu0
  %v9895 = vpop.f32.mrf.mxu0
  %v9896 = vadd.f32 %v9557, %v9895
  %v9897 = vpop.f32.mrf.mxu0
  %9898 = vmatprep.mubr.bf16.mxu0 0
  %9899 = vmatmul.mubr.bf16.gmra.mxu0 %v9738
  %v9900 = vpop.f32.mrf.mxu0
  %v9901 = vadd.f32 %v9557, %v9900
  %v9902 = vpop.f32.mrf.mxu0
  %v9903 = vpop.f32.mrf.mxu0
  %v9904 = vadd.f32 %v9557, %v9903
  %v9905 = vpop.f32.mrf.mxu0
  %9906 = vmatprep.mubr.bf16.mxu0 0
  %9907 = vmatmul.mubr.bf16.gmra.mxu0 %v9741
  %v9908 = vpop.f32.mrf.mxu0
  %v9909 = vadd.f32 %v9557, %v9908
  %v9910 = vpop.f32.mrf.mxu0
  %v9911 = vpop.f32.mrf.mxu0
  %v9912 = vadd.f32 %v9557, %v9911
  %v9913 = vpop.f32.mrf.mxu0
  %9914 = vmatprep.mubr.bf16.mxu0 0
  %9915 = vmatmul.mubr.bf16.gmra.mxu0 %v9744
  %v9916 = vpop.f32.mrf.mxu0
  %v9917 = vadd.f32 %v9557, %v9916
  %v9918 = vpop.f32.mrf.mxu0
  %v9919 = vpop.f32.mrf.mxu0
  %v9920 = vadd.f32 %v9557, %v9919
  %v9921 = vpop.f32.mrf.mxu0
  %9922 = vmatprep.mubr.bf16.mxu0 0
  %9923 = vmatmul.mubr.bf16.gmra.mxu0 %v9747
  %v9924 = vpop.f32.mrf.mxu0
  %v9925 = vadd.f32 %v9557, %v9924
  %v9926 = vpop.f32.mrf.mxu0
  %v9927 = vpop.f32.mrf.mxu0
  %v9928 = vadd.f32 %v9557, %v9927
  %v9929 = vpop.f32.mrf.mxu0
  %9930 = vmatprep.mubr.bf16.mxu0 0
  %9931 = vmatmul.mubr.bf16.gmra.mxu0 %v9750
  %v9932 = vpop.f32.mrf.mxu0
  %v9933 = vadd.f32 %v9557, %v9932
  %v9934 = vpop.f32.mrf.mxu0
  %v9935 = vpop.f32.mrf.mxu0
  %v9936 = vadd.f32 %v9557, %v9935
  %v9937 = vpop.f32.mrf.mxu0
  %9938 = vmatprep.mubr.bf16.mxu0 0
  %9939 = vmatmul.mubr.bf16.gmra.mxu0 %v9753
  %v9940 = vpop.f32.mrf.mxu0
  %v9941 = vadd.f32 %v9557, %v9940
  %v9942 = vpop.f32.mrf.mxu0
  %v9943 = vpop.f32.mrf.mxu0
  %v9944 = vadd.f32 %v9557, %v9943
  %v9945 = vpop.f32.mrf.mxu0
  %9946 = vmatprep.mubr.bf16.mxu0 0
  %9947 = vmatmul.mubr.bf16.gmra.mxu0 %v9756
  %v9948 = vpop.f32.mrf.mxu0
  %v9949 = vadd.f32 %v9557, %v9948
  %v9950 = vpop.f32.mrf.mxu0
  %v9951 = vpop.f32.mrf.mxu0
  %v9952 = vadd.f32 %v9557, %v9951
  %v9953 = vpop.f32.mrf.mxu0
  %9954 = vmatprep.mubr.bf16.mxu0 0
  %9955 = vmatmul.mubr.bf16.gmra.mxu0 %v9759
  %v9956 = vpop.f32.mrf.mxu0
  %v9957 = vadd.f32 %v9557, %v9956
  %v9958 = vpop.f32.mrf.mxu0
  %v9959 = vpop.f32.mrf.mxu0
  %v9960 = vadd.f32 %v9557, %v9959
  %v9961 = vpop.f32.mrf.mxu0
  %9962 = vmatprep.mubr.bf16.mxu0 0
  %9963 = vmatmul.mubr.bf16.gmra.mxu0 %v9762
  %v9964 = vpop.f32.mrf.mxu0
  %v9965 = vadd.f32 %v9557, %v9964
  %v9966 = vpop.f32.mrf.mxu0
  %v9967 = vpop.f32.mrf.mxu0
  %v9968 = vadd.f32 %v9557, %v9967
  %v9969 = vpop.f32.mrf.mxu0
  %9970 = vmatprep.mubr.bf16.mxu0 0
  %9971 = vmatmul.mubr.bf16.gmra.mxu0 %v9765
  %v9972 = vpop.f32.mrf.mxu0
  %v9973 = vadd.f32 %v9557, %v9972
  %v9974 = vpop.f32.mrf.mxu0
  %v9975 = vpop.f32.mrf.mxu0
  %v9976 = vadd.f32 %v9557, %v9975
  %v9977 = vpop.f32.mrf.mxu0
  %9978 = vmatprep.mubr.bf16.mxu0 0
  %9979 = vmatmul.mubr.bf16.gmra.mxu0 %v9768
  %v9980 = vpop.f32.mrf.mxu0
  %v9981 = vadd.f32 %v9557, %v9980
  %v9982 = vpop.f32.mrf.mxu0
  %v9983 = vpop.f32.mrf.mxu0
  %v9984 = vadd.f32 %v9557, %v9983
  %v9985 = vpop.f32.mrf.mxu0
  %9986 = vmatprep.mubr.bf16.mxu0 0
  %9987 = vmatmul.mubr.bf16.gmra.mxu0 %v9771
  %v9988 = vpop.f32.mrf.mxu0
  %v9989 = vadd.f32 %v9557, %v9988
  %v9990 = vpop.f32.mrf.mxu0
  %v9991 = vpop.f32.mrf.mxu0
  %v9992 = vadd.f32 %v9557, %v9991
  %v9993 = vpop.f32.mrf.mxu0
  %9994 = vmatprep.mubr.bf16.mxu0 0
  %9995 = vmatmul.mubr.bf16.gmra.mxu0 %v9774
  %v9996 = vpop.f32.mrf.mxu0
  %v9997 = vadd.f32 %v9557, %v9996
  %v9998 = vpop.f32.mrf.mxu0
  %v9999 = vpop.f32.mrf.mxu0
  %v10000 = vadd.f32 %v9557, %v9999
  %v10001 = vpop.f32.mrf.mxu0
  %10002 = vmatprep.mubr.bf16.mxu0 0
  %10003 = vmatmul.mubr.bf16.gmra.mxu0 %v9777
  %v10004 = vpop.f32.mrf.mxu0
  %v10005 = vadd.f32 %v9557, %v10004
  %v10006 = vpop.f32.mrf.mxu0
  %v10007 = vpop.f32.mrf.mxu0
  %v10008 = vadd.f32 %v9557, %v10007
  %v10009 = vpop.f32.mrf.mxu0
  %10010 = vmatprep.mubr.bf16.mxu0 0
  %10011 = vmatmul.mubr.bf16.gmra.mxu0 %v9780
  %v10012 = vpop.f32.mrf.mxu0
  %v10013 = vadd.f32 %v9557, %v10012
  %v10014 = vpop.f32.mrf.mxu0
  %v10015 = vpop.f32.mrf.mxu0
  %v10016 = vadd.f32 %v9557, %v10015
  %v10017 = vpop.f32.mrf.mxu0
  %10018 = vmatprep.mubr.bf16.mxu0 0
  %10019 = vmatmul.mubr.bf16.gmra.mxu0 %v9783
  %v10020 = vpop.f32.mrf.mxu0
  %v10021 = vadd.f32 %v9557, %v10020
  %v10022 = vpop.f32.mrf.mxu0
  %v10023 = vpop.f32.mrf.mxu0
  %v10024 = vadd.f32 %v9557, %v10023
  %v10025 = vpop.f32.mrf.mxu0
  %10026 = vmatprep.mubr.bf16.mxu0 0
  %10027 = vmatmul.mubr.bf16.gmra.mxu0 %v9786
  %v10028 = vpop.f32.mrf.mxu0
  %v10029 = vadd.f32 %v9557, %v10028
  %v10030 = vpop.f32.mrf.mxu0
  %v10031 = vpop.f32.mrf.mxu0
  %v10032 = vadd.f32 %v9557, %v10031
  %v10033 = vpop.f32.mrf.mxu0
  %10034 = vmatprep.mubr.bf16.mxu0 0
  %10035 = vmatmul.mubr.bf16.gmra.mxu0 %v9789
  %v10036 = vpop.f32.mrf.mxu0
  %v10037 = vadd.f32 %v9557, %v10036
  %v10038 = vpop.f32.mrf.mxu0
  %v10039 = vpop.f32.mrf.mxu0
  %v10040 = vadd.f32 %v9557, %v10039
  %v10041 = vpop.f32.mrf.mxu0
  %10042 = vmatprep.mubr.bf16.mxu0 0
  %10043 = vmatmul.mubr.bf16.gmra.mxu0 %v9792
  %v10044 = vpop.f32.mrf.mxu0
  %v10045 = vadd.f32 %v9557, %v10044
  %v10046 = vpop.f32.mrf.mxu0
  %v10047 = vpop.f32.mrf.mxu0
  %v10048 = vadd.f32 %v9557, %v10047
  %v10049 = vpop.f32.mrf.mxu0
  %10050 = vmatprep.mubr.bf16.mxu0 0
  %10051 = vmatmul.mubr.bf16.gmra.mxu0 %v9795
  %v10052 = vpop.f32.mrf.mxu0
  %v10053 = vadd.f32 %v9557, %v10052
  %v10054 = vpop.f32.mrf.mxu0
  %v10055 = vpop.f32.mrf.mxu0
  %v10056 = vadd.f32 %v9557, %v10055
  %v10057 = vpop.f32.mrf.mxu0
  %10058 = vmatprep.mubr.bf16.mxu0 0
  %10059 = vmatmul.mubr.bf16.gmra.mxu0 %v9798
  %v10060 = vpop.f32.mrf.mxu0
  %v10061 = vadd.f32 %v9557, %v10060
  %v10062 = vpop.f32.mrf.mxu0
  %v10063 = vpop.f32.mrf.mxu0
  %v10064 = vadd.f32 %v9557, %v10063
  %v10065 = vpop.f32.mrf.mxu0
  %10066 = vmatprep.mubr.bf16.mxu0 0
  %10067 = vmatmul.mubr.bf16.gmra.mxu0 %v9801
  %v10068 = vpop.f32.mrf.mxu0
  %v10069 = vadd.f32 %v9557, %v10068
  %v10070 = vpop.f32.mrf.mxu0
  %v10071 = vpop.f32.mrf.mxu0
  %v10072 = vadd.f32 %v9557, %v10071
  %v10073 = vpop.f32.mrf.mxu0
  %10074 = vmatprep.mubr.bf16.mxu0 0
  %10075 = vmatmul.mubr.bf16.gmra.mxu0 %v9804
  %v10076 = vpop.f32.mrf.mxu0
  %v10077 = vadd.f32 %v9557, %v10076
  %v10078 = vpop.f32.mrf.mxu0
  %v10079 = vpop.f32.mrf.mxu0
  %v10080 = vadd.f32 %v9557, %v10079
  %v10081 = vpop.f32.mrf.mxu0
  %10082 = vmatprep.mubr.bf16.mxu0 0
  %10083 = vmatmul.mubr.bf16.gmra.mxu0 %v9807
  %v10084 = vpop.f32.mrf.mxu0
  %v10085 = vadd.f32 %v9557, %v10084
  %v10086 = vpop.f32.mrf.mxu0
  %v10087 = vpop.f32.mrf.mxu0
  %v10088 = vadd.f32 %v9557, %v10087
  %v10089 = vpop.f32.mrf.mxu0
  %10090 = vmatprep.mubr.bf16.mxu0 0
  %10091 = vmatmul.mubr.bf16.gmra.mxu0 %v9810
  %v10092 = vpop.f32.mrf.mxu0
  %v10093 = vadd.f32 %v9557, %v10092
  %v10094 = vpop.f32.mrf.mxu0
  %v10095 = vpop.f32.mrf.mxu0
  %v10096 = vadd.f32 %v9557, %v10095
  %v10097 = vpop.f32.mrf.mxu0
  %10098 = vmatprep.mubr.bf16.mxu0 0
  %10099 = vmatmul.mubr.bf16.gmra.mxu0 %v9813
  %v10100 = vpop.f32.mrf.mxu0
  %v10101 = vadd.f32 %v9557, %v10100
  %v10102 = vpop.f32.mrf.mxu0
  %v10103 = vpop.f32.mrf.mxu0
  %v10104 = vadd.f32 %v9557, %v10103
  %v10105 = vpop.f32.mrf.mxu0
  %10106 = vdwg.mxu0
  %v10107 = vunpack.c.l.bf16 %v27
  %v10108 = vunpack.c.l.bf16 %v28
  %v10109 = vunpack.c.l.bf16 %v29
  %v10110 = vunpack.c.l.bf16 %v30
  %v10111 = vunpack.c.l.bf16 %v31
  %v10112 = vunpack.c.l.bf16 %v32
  %v10113 = vunpack.c.l.bf16 %v33
  %v10114 = vunpack.c.l.bf16 %v34
  %v10115 = vunpack.c.l.bf16 %v35
  %v10116 = vunpack.c.l.bf16 %v36
  %v10117 = vunpack.c.l.bf16 %v37
  %v10118 = vunpack.c.l.bf16 %v38
  %v10119 = vunpack.c.l.bf16 %v39
  %v10120 = vunpack.c.l.bf16 %v40
  %v10121 = vunpack.c.l.bf16 %v41
  %v10122 = vunpack.c.l.bf16 %v42
  %v10123 = vunpack.c.l.bf16 %v43
  %v10124 = vunpack.c.l.bf16 %v44
  %v10125 = vunpack.c.l.bf16 %v45
  %v10126 = vunpack.c.l.bf16 %v46
  %v10127 = vunpack.c.l.bf16 %v47
  %v10128 = vunpack.c.l.bf16 %v48
  %v10129 = vunpack.c.l.bf16 %v49
  %v10130 = vunpack.c.l.bf16 %v50
  %v10131 = vunpack.c.l.bf16 %v51
  %v10132 = vunpack.c.l.bf16 %v52
  %v10133 = vunpack.c.l.bf16 %v53
  %v10134 = vunpack.c.l.bf16 %v54
  %v10135 = vunpack.c.l.bf16 %v55
  %v10136 = vunpack.c.l.bf16 %v56
  %v10137 = vunpack.c.l.bf16 %v57
  %v10138 = vunpack.c.l.bf16 %v58
  %v10139 = vunpack.c.l.bf16 %v59
  %v10140 = vunpack.c.l.bf16 %v60
  %v10141 = vunpack.c.l.bf16 %v61
  %v10142 = vunpack.c.l.bf16 %v62
  %v10143 = vunpack.c.l.bf16 %v63
  %v10144 = vunpack.c.l.bf16 %v64
  %v10145 = vunpack.c.l.bf16 %v65
  %v10146 = vunpack.c.l.bf16 %v66
  %v10147 = vunpack.c.l.bf16 %v67
  %v10148 = vunpack.c.l.bf16 %v68
  %v10149 = vunpack.c.l.bf16 %v69
  %v10150 = vunpack.c.l.bf16 %v70
  %v10151 = vunpack.c.l.bf16 %v71
  %v10152 = vunpack.c.l.bf16 %v72
  %v10153 = vunpack.c.l.bf16 %v73
  %v10154 = vunpack.c.l.bf16 %v74
  %v10155 = vunpack.c.l.bf16 %v75
  %v10156 = vunpack.c.l.bf16 %v76
  %v10157 = vunpack.c.l.bf16 %v77
  %v10158 = vunpack.c.l.bf16 %v78
  %v10159 = vunpack.c.l.bf16 %v79
  %v10160 = vunpack.c.l.bf16 %v80
  %v10161 = vunpack.c.l.bf16 %v81
  %v10162 = vunpack.c.l.bf16 %v82
  %v10163 = vunpack.c.l.bf16 %v83
  %v10164 = vunpack.c.l.bf16 %v84
  %v10165 = vunpack.c.l.bf16 %v85
  %v10166 = vunpack.c.l.bf16 %v86
  %v10167 = vunpack.c.l.bf16 %v87
  %v10168 = vunpack.c.l.bf16 %v88
  %v10169 = vunpack.c.l.bf16 %v89
  %v10170 = vunpack.c.l.bf16 %v90
  %v10171 = vadd.f32 %v9853, %v10107
  %v10172 = vadd.f32 %v9856, %v10108
  %v10173 = vadd.f32 %v9861, %v10109
  %v10174 = vadd.f32 %v9864, %v10110
  %v10175 = vadd.f32 %v9869, %v10111
  %v10176 = vadd.f32 %v9872, %v10112
  %v10177 = vadd.f32 %v9877, %v10113
  %v10178 = vadd.f32 %v9880, %v10114
  %v10179 = vadd.f32 %v9885, %v10115
  %v10180 = vadd.f32 %v9888, %v10116
  %v10181 = vadd.f32 %v9893, %v10117
  %v10182 = vadd.f32 %v9896, %v10118
  %v10183 = vadd.f32 %v9901, %v10119
  %v10184 = vadd.f32 %v9904, %v10120
  %v10185 = vadd.f32 %v9909, %v10121
  %v10186 = vadd.f32 %v9912, %v10122
  %v10187 = vadd.f32 %v9917, %v10123
  %v10188 = vadd.f32 %v9920, %v10124
  %v10189 = vadd.f32 %v9925, %v10125
  %v10190 = vadd.f32 %v9928, %v10126
  %v10191 = vadd.f32 %v9933, %v10127
  %v10192 = vadd.f32 %v9936, %v10128
  %v10193 = vadd.f32 %v9941, %v10129
  %v10194 = vadd.f32 %v9944, %v10130
  %v10195 = vadd.f32 %v9949, %v10131
  %v10196 = vadd.f32 %v9952, %v10132
  %v10197 = vadd.f32 %v9957, %v10133
  %v10198 = vadd.f32 %v9960, %v10134
  %v10199 = vadd.f32 %v9965, %v10135
  %v10200 = vadd.f32 %v9968, %v10136
  %v10201 = vadd.f32 %v9973, %v10137
  %v10202 = vadd.f32 %v9976, %v10138
  %v10203 = vadd.f32 %v9981, %v10139
  %v10204 = vadd.f32 %v9984, %v10140
  %v10205 = vadd.f32 %v9989, %v10141
  %v10206 = vadd.f32 %v9992, %v10142
  %v10207 = vadd.f32 %v9997, %v10143
  %v10208 = vadd.f32 %v10000, %v10144
  %v10209 = vadd.f32 %v10005, %v10145
  %v10210 = vadd.f32 %v10008, %v10146
  %v10211 = vadd.f32 %v10013, %v10147
  %v10212 = vadd.f32 %v10016, %v10148
  %v10213 = vadd.f32 %v10021, %v10149
  %v10214 = vadd.f32 %v10024, %v10150
  %v10215 = vadd.f32 %v10029, %v10151
  %v10216 = vadd.f32 %v10032, %v10152
  %v10217 = vadd.f32 %v10037, %v10153
  %v10218 = vadd.f32 %v10040, %v10154
  %v10219 = vadd.f32 %v10045, %v10155
  %v10220 = vadd.f32 %v10048, %v10156
  %v10221 = vadd.f32 %v10053, %v10157
  %v10222 = vadd.f32 %v10056, %v10158
  %v10223 = vadd.f32 %v10061, %v10159
  %v10224 = vadd.f32 %v10064, %v10160
  %v10225 = vadd.f32 %v10069, %v10161
  %v10226 = vadd.f32 %v10072, %v10162
  %v10227 = vadd.f32 %v10077, %v10163
  %v10228 = vadd.f32 %v10080, %v10164
  %v10229 = vadd.f32 %v10085, %v10165
  %v10230 = vadd.f32 %v10088, %v10166
  %v10231 = vadd.f32 %v10093, %v10167
  %v10232 = vadd.f32 %v10096, %v10168
  %v10233 = vadd.f32 %v10101, %v10169
  %v10234 = vadd.f32 %v10104, %v10170
  %v10235 = vmax.f32 %v10171, 0.0
  %v10236 = vmax.f32 %v10172, 0.0
  %v10237 = vmax.f32 %v10173, 0.0
  %v10238 = vmax.f32 %v10174, 0.0
  %v10239 = vmax.f32 %v10175, 0.0
  %v10240 = vmax.f32 %v10176, 0.0
  %v10241 = vmax.f32 %v10177, 0.0
  %v10242 = vmax.f32 %v10178, 0.0
  %v10243 = vmax.f32 %v10179, 0.0
  %v10244 = vmax.f32 %v10180, 0.0
  %v10245 = vmax.f32 %v10181, 0.0
  %v10246 = vmax.f32 %v10182, 0.0
  %v10247 = vmax.f32 %v10183, 0.0
  %v10248 = vmax.f32 %v10184, 0.0
  %v10249 = vmax.f32 %v10185, 0.0
  %v10250 = vmax.f32 %v10186, 0.0
  %v10251 = vmax.f32 %v10187, 0.0
  %v10252 = vmax.f32 %v10188, 0.0
  %v10253 = vmax.f32 %v10189, 0.0
  %v10254 = vmax.f32 %v10190, 0.0
  %v10255 = vmax.f32 %v10191, 0.0
  %v10256 = vmax.f32 %v10192, 0.0
  %v10257 = vmax.f32 %v10193, 0.0
  %v10258 = vmax.f32 %v10194, 0.0
  %v10259 = vmax.f32 %v10195, 0.0
  %v10260 = vmax.f32 %v10196, 0.0
  %v10261 = vmax.f32 %v10197, 0.0
  %v10262 = vmax.f32 %v10198, 0.0
  %v10263 = vmax.f32 %v10199, 0.0
  %v10264 = vmax.f32 %v10200, 0.0
  %v10265 = vmax.f32 %v10201, 0.0
  %v10266 = vmax.f32 %v10202, 0.0
  %v10267 = vmax.f32 %v10203, 0.0
  %v10268 = vmax.f32 %v10204, 0.0
  %v10269 = vmax.f32 %v10205, 0.0
  %v10270 = vmax.f32 %v10206, 0.0
  %v10271 = vmax.f32 %v10207, 0.0
  %v10272 = vmax.f32 %v10208, 0.0
  %v10273 = vmax.f32 %v10209, 0.0
  %v10274 = vmax.f32 %v10210, 0.0
  %v10275 = vmax.f32 %v10211, 0.0
  %v10276 = vmax.f32 %v10212, 0.0
  %v10277 = vmax.f32 %v10213, 0.0
  %v10278 = vmax.f32 %v10214, 0.0
  %v10279 = vmax.f32 %v10215, 0.0
  %v10280 = vmax.f32 %v10216, 0.0
  %v10281 = vmax.f32 %v10217, 0.0
  %v10282 = vmax.f32 %v10218, 0.0
  %v10283 = vmax.f32 %v10219, 0.0
  %v10284 = vmax.f32 %v10220, 0.0
  %v10285 = vmax.f32 %v10221, 0.0
  %v10286 = vmax.f32 %v10222, 0.0
  %v10287 = vmax.f32 %v10223, 0.0
  %v10288 = vmax.f32 %v10224, 0.0
  %v10289 = vmax.f32 %v10225, 0.0
  %v10290 = vmax.f32 %v10226, 0.0
  %v10291 = vmax.f32 %v10227, 0.0
  %v10292 = vmax.f32 %v10228, 0.0
  %v10293 = vmax.f32 %v10229, 0.0
  %v10294 = vmax.f32 %v10230, 0.0
  %v10295 = vmax.f32 %v10231, 0.0
  %v10296 = vmax.f32 %v10232, 0.0
  %v10297 = vmax.f32 %v10233, 0.0
  %v10298 = vmax.f32 %v10234, 0.0
  %v10299 = vpack.c.bf16 %v10236, %v10235
  %v10300 = vpack.c.bf16 %v10238, %v10237
  %v10301 = vpack.c.bf16 %v10240, %v10239
  %v10302 = vpack.c.bf16 %v10242, %v10241
  %v10303 = vpack.c.bf16 %v10244, %v10243
  %v10304 = vpack.c.bf16 %v10246, %v10245
  %v10305 = vpack.c.bf16 %v10248, %v10247
  %v10306 = vpack.c.bf16 %v10250, %v10249
  %v10307 = vpack.c.bf16 %v10252, %v10251
  %v10308 = vpack.c.bf16 %v10254, %v10253
  %v10309 = vpack.c.bf16 %v10256, %v10255
  %v10310 = vpack.c.bf16 %v10258, %v10257
  %v10311 = vpack.c.bf16 %v10260, %v10259
  %v10312 = vpack.c.bf16 %v10262, %v10261
  %v10313 = vpack.c.bf16 %v10264, %v10263
  %v10314 = vpack.c.bf16 %v10266, %v10265
  %v10315 = vpack.c.bf16 %v10268, %v10267
  %v10316 = vpack.c.bf16 %v10270, %v10269
  %v10317 = vpack.c.bf16 %v10272, %v10271
  %v10318 = vpack.c.bf16 %v10274, %v10273
  %v10319 = vpack.c.bf16 %v10276, %v10275
  %v10320 = vpack.c.bf16 %v10278, %v10277
  %v10321 = vpack.c.bf16 %v10280, %v10279
  %v10322 = vpack.c.bf16 %v10282, %v10281
  %v10323 = vpack.c.bf16 %v10284, %v10283
  %v10324 = vpack.c.bf16 %v10286, %v10285
  %v10325 = vpack.c.bf16 %v10288, %v10287
  %v10326 = vpack.c.bf16 %v10290, %v10289
  %v10327 = vpack.c.bf16 %v10292, %v10291
  %v10328 = vpack.c.bf16 %v10294, %v10293
  %v10329 = vpack.c.bf16 %v10296, %v10295
  %v10330 = vpack.c.bf16 %v10298, %v10297
  %v10363 = vunpack.c.l.b16 %v10299
  %v10364 = vunpack.c.h.b16 %v10299
  %v10365 = vunpack.c.l.b16 %v10300
  %v10366 = vunpack.c.h.b16 %v10300
  %v10367 = vunpack.c.l.b16 %v10301
  %v10368 = vunpack.c.h.b16 %v10301
  %v10369 = vunpack.c.l.b16 %v10302
  %v10370 = vunpack.c.h.b16 %v10302
  %v10371 = vunpack.c.l.b16 %v10303
  %v10372 = vunpack.c.h.b16 %v10303
  %v10373 = vunpack.c.l.b16 %v10304
  %v10374 = vunpack.c.h.b16 %v10304
  %v10375 = vunpack.c.l.b16 %v10305
  %v10376 = vunpack.c.h.b16 %v10305
  %v10377 = vunpack.c.l.b16 %v10306
  %v10378 = vunpack.c.h.b16 %v10306
  %v10379 = vunpack.c.l.b16 %v10307
  %v10380 = vunpack.c.h.b16 %v10307
  %v10381 = vunpack.c.l.b16 %v10308
  %v10382 = vunpack.c.h.b16 %v10308
  %v10383 = vunpack.c.l.b16 %v10309
  %v10384 = vunpack.c.h.b16 %v10309
  %v10385 = vunpack.c.l.b16 %v10310
  %v10386 = vunpack.c.h.b16 %v10310
  %v10387 = vunpack.c.l.b16 %v10311
  %v10388 = vunpack.c.h.b16 %v10311
  %v10389 = vunpack.c.l.b16 %v10312
  %v10390 = vunpack.c.h.b16 %v10312
  %v10391 = vunpack.c.l.b16 %v10313
  %v10392 = vunpack.c.h.b16 %v10313
  %v10393 = vunpack.c.l.b16 %v10314
  %v10394 = vunpack.c.h.b16 %v10314
  %v10395 = vunpack.c.l.b16 %v10315
  %v10396 = vunpack.c.h.b16 %v10315
  %v10397 = vunpack.c.l.b16 %v10316
  %v10398 = vunpack.c.h.b16 %v10316
  %v10399 = vunpack.c.l.b16 %v10317
  %v10400 = vunpack.c.h.b16 %v10317
  %v10401 = vunpack.c.l.b16 %v10318
  %v10402 = vunpack.c.h.b16 %v10318
  %v10403 = vunpack.c.l.b16 %v10319
  %v10404 = vunpack.c.h.b16 %v10319
  %v10405 = vunpack.c.l.b16 %v10320
  %v10406 = vunpack.c.h.b16 %v10320
  %v10407 = vunpack.c.l.b16 %v10321
  %v10408 = vunpack.c.h.b16 %v10321
  %v10409 = vunpack.c.l.b16 %v10322
  %v10410 = vunpack.c.h.b16 %v10322
  %v10411 = vunpack.c.l.b16 %v10323
  %v10412 = vunpack.c.h.b16 %v10323
  %v10413 = vunpack.c.l.b16 %v10324
  %v10414 = vunpack.c.h.b16 %v10324
  %v10415 = vunpack.c.l.b16 %v10325
  %v10416 = vunpack.c.h.b16 %v10325
  %v10417 = vunpack.c.l.b16 %v10326
  %v10418 = vunpack.c.h.b16 %v10326
  %v10419 = vunpack.c.l.b16 %v10327
  %v10420 = vunpack.c.h.b16 %v10327
  %v10421 = vunpack.c.l.b16 %v10328
  %v10422 = vunpack.c.h.b16 %v10328
  %v10423 = vunpack.c.l.b16 %v10329
  %v10424 = vunpack.c.h.b16 %v10329
  %v10425 = vunpack.c.l.b16 %v10330
  %v10426 = vunpack.c.h.b16 %v10330
  %v10427 = vpack.c.b16 %v10363, %v10363
  %v10428 = vpack.c.b16 %v10364, %v10364
  %v10429 = vpack.c.b16 %v10365, %v10365
  %v10430 = vpack.c.b16 %v10366, %v10366
  %v10431 = vpack.c.b16 %v10367, %v10367
  %v10432 = vpack.c.b16 %v10368, %v10368
  %v10433 = vpack.c.b16 %v10369, %v10369
  %v10434 = vpack.c.b16 %v10370, %v10370
  %v10435 = vpack.c.b16 %v10371, %v10371
  %v10436 = vpack.c.b16 %v10372, %v10372
  %v10437 = vpack.c.b16 %v10373, %v10373
  %v10438 = vpack.c.b16 %v10374, %v10374
  %v10439 = vpack.c.b16 %v10375, %v10375
  %v10440 = vpack.c.b16 %v10376, %v10376
  %v10441 = vpack.c.b16 %v10377, %v10377
  %v10442 = vpack.c.b16 %v10378, %v10378
  %v10443 = vpack.c.b16 %v10379, %v10379
  %v10444 = vpack.c.b16 %v10380, %v10380
  %v10445 = vpack.c.b16 %v10381, %v10381
  %v10446 = vpack.c.b16 %v10382, %v10382
  %v10447 = vpack.c.b16 %v10383, %v10383
  %v10448 = vpack.c.b16 %v10384, %v10384
  %v10449 = vpack.c.b16 %v10385, %v10385
  %v10450 = vpack.c.b16 %v10386, %v10386
  %v10451 = vpack.c.b16 %v10387, %v10387
  %v10452 = vpack.c.b16 %v10388, %v10388
  %v10453 = vpack.c.b16 %v10389, %v10389
  %v10454 = vpack.c.b16 %v10390, %v10390
  %v10455 = vpack.c.b16 %v10391, %v10391
  %v10456 = vpack.c.b16 %v10392, %v10392
  %v10457 = vpack.c.b16 %v10393, %v10393
  %v10458 = vpack.c.b16 %v10394, %v10394
  %v10459 = vpack.c.b16 %v10395, %v10395
  %v10460 = vpack.c.b16 %v10396, %v10396
  %v10461 = vpack.c.b16 %v10397, %v10397
  %v10462 = vpack.c.b16 %v10398, %v10398
  %v10463 = vpack.c.b16 %v10399, %v10399
  %v10464 = vpack.c.b16 %v10400, %v10400
  %v10465 = vpack.c.b16 %v10401, %v10401
  %v10466 = vpack.c.b16 %v10402, %v10402
  %v10467 = vpack.c.b16 %v10403, %v10403
  %v10468 = vpack.c.b16 %v10404, %v10404
  %v10469 = vpack.c.b16 %v10405, %v10405
  %v10470 = vpack.c.b16 %v10406, %v10406
  %v10471 = vpack.c.b16 %v10407, %v10407
  %v10472 = vpack.c.b16 %v10408, %v10408
  %v10473 = vpack.c.b16 %v10409, %v10409
  %v10474 = vpack.c.b16 %v10410, %v10410
  %v10475 = vpack.c.b16 %v10411, %v10411
  %v10476 = vpack.c.b16 %v10412, %v10412
  %v10477 = vpack.c.b16 %v10413, %v10413
  %v10478 = vpack.c.b16 %v10414, %v10414
  %v10479 = vpack.c.b16 %v10415, %v10415
  %v10480 = vpack.c.b16 %v10416, %v10416
  %v10481 = vpack.c.b16 %v10417, %v10417
  %v10482 = vpack.c.b16 %v10418, %v10418
  %v10483 = vpack.c.b16 %v10419, %v10419
  %v10484 = vpack.c.b16 %v10420, %v10420
  %v10485 = vpack.c.b16 %v10421, %v10421
  %v10486 = vpack.c.b16 %v10422, %v10422
  %v10487 = vpack.c.b16 %v10423, %v10423
  %v10488 = vpack.c.b16 %v10424, %v10424
  %v10489 = vpack.c.b16 %v10425, %v10425
  %v10490 = vpack.c.b16 %v10426, %v10426
  %vm10555 = vcmask 125952
  %10556 = vst.msk [vmem:[%s7] sm:$0xf] %vm10555, %v10427
  %10557 = vst.msk [vmem:[%s7 + $0x4] sm:$0xf] %vm10555, %v10428
  %10558 = vst.msk [vmem:[%s7 + $0x8] sm:$0xf] %vm10555, %v10429
  %10559 = vst.msk [vmem:[%s7 + $0xc] sm:$0xf] %vm10555, %v10430
  %10560 = vst.msk [vmem:[%s7 + $0x10] sm:$0xf] %vm10555, %v10431
  %10561 = vst.msk [vmem:[%s7 + $0x14] sm:$0xf] %vm10555, %v10432
  %10562 = vst.msk [vmem:[%s7 + $0x18] sm:$0xf] %vm10555, %v10433
  %10563 = vst.msk [vmem:[%s7 + $0x1c] sm:$0xf] %vm10555, %v10434
  %10564 = vst.msk [vmem:[%s7 + $0x20] sm:$0xf] %vm10555, %v10435
  %10565 = vst.msk [vmem:[%s7 + $0x24] sm:$0xf] %vm10555, %v10436
  %10566 = vst.msk [vmem:[%s7 + $0x28] sm:$0xf] %vm10555, %v10437
  %10567 = vst.msk [vmem:[%s7 + $0x2c] sm:$0xf] %vm10555, %v10438
  %10568 = vst.msk [vmem:[%s7 + $0x30] sm:$0xf] %vm10555, %v10439
  %10569 = vst.msk [vmem:[%s7 + $0x34] sm:$0xf] %vm10555, %v10440
  %10570 = vst.msk [vmem:[%s7 + $0x38] sm:$0xf] %vm10555, %v10441
  %10571 = vst.msk [vmem:[%s7 + $0x3c] sm:$0xf] %vm10555, %v10442
  %10572 = vst.msk [vmem:[%s7 + $0x40] sm:$0xf] %vm10555, %v10443
  %10573 = vst.msk [vmem:[%s7 + $0x44] sm:$0xf] %vm10555, %v10444
  %10574 = vst.msk [vmem:[%s7 + $0x48] sm:$0xf] %vm10555, %v10445
  %10575 = vst.msk [vmem:[%s7 + $0x4c] sm:$0xf] %vm10555, %v10446
  %10576 = vst.msk [vmem:[%s7 + $0x50] sm:$0xf] %vm10555, %v10447
  %10577 = vst.msk [vmem:[%s7 + $0x54] sm:$0xf] %vm10555, %v10448
  %10578 = vst.msk [vmem:[%s7 + $0x58] sm:$0xf] %vm10555, %v10449
  %10579 = vst.msk [vmem:[%s7 + $0x5c] sm:$0xf] %vm10555, %v10450
  %10580 = vst.msk [vmem:[%s7 + $0x60] sm:$0xf] %vm10555, %v10451
  %10581 = vst.msk [vmem:[%s7 + $0x64] sm:$0xf] %vm10555, %v10452
  %10582 = vst.msk [vmem:[%s7 + $0x68] sm:$0xf] %vm10555, %v10453
  %10583 = vst.msk [vmem:[%s7 + $0x6c] sm:$0xf] %vm10555, %v10454
  %10584 = vst.msk [vmem:[%s7 + $0x70] sm:$0xf] %vm10555, %v10455
  %10585 = vst.msk [vmem:[%s7 + $0x74] sm:$0xf] %vm10555, %v10456
  %10586 = vst.msk [vmem:[%s7 + $0x78] sm:$0xf] %vm10555, %v10457
  %10587 = vst.msk [vmem:[%s7 + $0x7c] sm:$0xf] %vm10555, %v10458
  %10588 = vst.msk [vmem:[%s7 + $0x80] sm:$0xf] %vm10555, %v10459
  %10589 = vst.msk [vmem:[%s7 + $0x84] sm:$0xf] %vm10555, %v10460
  %10590 = vst.msk [vmem:[%s7 + $0x88] sm:$0xf] %vm10555, %v10461
  %10591 = vst.msk [vmem:[%s7 + $0x8c] sm:$0xf] %vm10555, %v10462
  %10592 = vst.msk [vmem:[%s7 + $0x90] sm:$0xf] %vm10555, %v10463
  %10593 = vst.msk [vmem:[%s7 + $0x94] sm:$0xf] %vm10555, %v10464
  %10594 = vst.msk [vmem:[%s7 + $0x98] sm:$0xf] %vm10555, %v10465
  %10595 = vst.msk [vmem:[%s7 + $0x9c] sm:$0xf] %vm10555, %v10466
  %10596 = vst.msk [vmem:[%s7 + $0xa0] sm:$0xf] %vm10555, %v10467
  %10597 = vst.msk [vmem:[%s7 + $0xa4] sm:$0xf] %vm10555, %v10468
  %10598 = vst.msk [vmem:[%s7 + $0xa8] sm:$0xf] %vm10555, %v10469
  %10599 = vst.msk [vmem:[%s7 + $0xac] sm:$0xf] %vm10555, %v10470
  %10600 = vst.msk [vmem:[%s7 + $0xb0] sm:$0xf] %vm10555, %v10471
  %10601 = vst.msk [vmem:[%s7 + $0xb4] sm:$0xf] %vm10555, %v10472
  %10602 = vst.msk [vmem:[%s7 + $0xb8] sm:$0xf] %vm10555, %v10473
  %10603 = vst.msk [vmem:[%s7 + $0xbc] sm:$0xf] %vm10555, %v10474
  %10604 = vst.msk [vmem:[%s7 + $0xc0] sm:$0xf] %vm10555, %v10475
  %10605 = vst.msk [vmem:[%s7 + $0xc4] sm:$0xf] %vm10555, %v10476
  %10606 = vst.msk [vmem:[%s7 + $0xc8] sm:$0xf] %vm10555, %v10477
  %10607 = vst.msk [vmem:[%s7 + $0xcc] sm:$0xf] %vm10555, %v10478
  %10608 = vst.msk [vmem:[%s7 + $0xd0] sm:$0xf] %vm10555, %v10479
  %10609 = vst.msk [vmem:[%s7 + $0xd4] sm:$0xf] %vm10555, %v10480
  %10610 = vst.msk [vmem:[%s7 + $0xd8] sm:$0xf] %vm10555, %v10481
  %10611 = vst.msk [vmem:[%s7 + $0xdc] sm:$0xf] %vm10555, %v10482
  %10612 = vst.msk [vmem:[%s7 + $0xe0] sm:$0xf] %vm10555, %v10483
  %10613 = vst.msk [vmem:[%s7 + $0xe4] sm:$0xf] %vm10555, %v10484
  %10614 = vst.msk [vmem:[%s7 + $0xe8] sm:$0xf] %vm10555, %v10485
  %10615 = vst.msk [vmem:[%s7 + $0xec] sm:$0xf] %vm10555, %v10486
  %10616 = vst.msk [vmem:[%s7 + $0xf0] sm:$0xf] %vm10555, %v10487
  %10617 = vst.msk [vmem:[%s7 + $0xf4] sm:$0xf] %vm10555, %v10488
  %10618 = vst.msk [vmem:[%s7 + $0xf8] sm:$0xf] %vm10555, %v10489
  %10619 = vst.msk [vmem:[%s7 + $0xfc] sm:$0xf] %vm10555, %v10490
  // Predicated region
  $region30: #{bottleneck_forward.1} parent=0 // pred_check
    _
  $region31: #{bottleneck_forward.1} parent=0 // pred_check_branch
    %10621 = sbr.rel (0) target = $region33
  $region32: #{bottleneck_forward.1} parent=0 // pred_region
    _
  $region33: #{bottleneck_forward.1} parent=0 // pred_fallthru
    _
  // Predicated region
  $region34: #{bottleneck_forward.1} parent=0 // pred_check
    _
  $region35: #{bottleneck_forward.1} parent=0 // pred_check_branch
    %10623 = sbr.rel (0) target = $region37
  $region36: #{bottleneck_forward.1} parent=0 // pred_region
    _
  $region37: #{bottleneck_forward.1} parent=0 // pred_fallthru
    _

</llo_original>
